<compile_context>
chip_gen: v7x
topology: tpu7x:2x2x1
jax: 0.10.0
libtpu: 0.0.40
codegen_flags: <defaults>
</compile_context>

<pallas_src>
import jax
import jax.numpy as jnp
from jax.experimental import pallas as pl
from jax.experimental.pallas import tpu as pltpu


# ----------------------------------------------------------------------------
# Fused ORB kernel
# ----------------------------------------------------------------------------
def make_orb(N, H, W, C, Cr, num_cab, dtype):
    num_conv = 2 * num_cab + 1
    HW = H * W

    def kernel(alpha_ref, x_ref, wc_ref, w1_ref, w2_ref, o_ref):
        f32 = jnp.float32
        bf16 = jnp.bfloat16

        def conv3x3(act, widx):
            # act: (H*W, C) f32  ->  (H*W, C) f32
            a = act.astype(bf16).reshape(H, W, C)
            zc = jnp.zeros((H, 1, C), bf16)
            a = jnp.concatenate([zc, a, zc], axis=1)          # (H, W+2, C)
            zr = jnp.zeros((1, W + 2, C), bf16)
            a = jnp.concatenate([zr, a, zr], axis=0)          # (H+2, W+2, C)
            taps = [a[dy:dy + H, dx:dx + W, :].reshape(HW, C)
                    for dy in range(3) for dx in range(3)]
            patches = jnp.concatenate(taps, axis=1)           # (H*W, 9*C) bf16
            return jnp.dot(patches, wc_ref[widx],
                           preferred_element_type=f32)        # (H*W, C) f32

        x0 = x_ref[...].astype(f32).reshape(HW, C)            # ORB input (f32)
        out = x0
        for i in range(num_cab):
            # CAB body: Conv + PReLU + Conv
            b = conv3x3(out, 2 * i)
            alpha = alpha_ref[i]                               # scalar from SMEM
            b = jnp.where(b >= 0.0, b, alpha * b)              # PReLU
            b = conv3x3(b, 2 * i + 1)
            # Channel attention (squeeze + excite), fused
            gap = jnp.mean(b, axis=0, keepdims=True)           # (1, C)
            z = jnp.maximum(
                jnp.dot(gap, w1_ref[i], preferred_element_type=f32), 0.0)
            s = jax.nn.sigmoid(
                jnp.dot(z, w2_ref[i], preferred_element_type=f32))
            out = b * s + out                                  # CA scale + CAB residual
        out = conv3x3(out, 2 * num_cab) + x0                   # final conv + ORB residual
        o_ref[...] = out.reshape(1, H, W, C).astype(o_ref.dtype)

    def wrapper(x, alphas, wconv, ca_w1, ca_w2):
        return pl.pallas_call(
            kernel,
            out_shape=jax.ShapeDtypeStruct((N, H, W, C), dtype),
            grid=(N,),
            in_specs=[
                pl.BlockSpec(memory_space=pltpu.MemorySpace.SMEM),       # alphas (num_cab,)
                pl.BlockSpec((1, H, W, C), lambda n: (n, 0, 0, 0)),      # x
                pl.BlockSpec((num_conv, 9 * C, C), lambda n: (0, 0, 0)),  # conv weights (bf16)
                pl.BlockSpec((num_cab, C, Cr), lambda n: (0, 0, 0)),      # CA squeeze weights
                pl.BlockSpec((num_cab, Cr, C), lambda n: (0, 0, 0)),      # CA excite weights
            ],
            out_specs=pl.BlockSpec((1, H, W, C), lambda n: (n, 0, 0, 0)),
            compiler_params=pltpu.CompilerParams(
                dimension_semantics=("parallel",)),
        )(alphas, x, wconv, ca_w1, ca_w2)

    return wrapper


# ----------------------------------------------------------------------------
# Parameter init (deterministic, synthetic), packing, and ORB forward
# ----------------------------------------------------------------------------
def init_orb_params(key, C, num_cab, r):
    Cr = C // r
    cabs = []
    for _ in range(num_cab):
        key, k1, k2, k3, k4 = jax.random.split(key, 5)
        cabs.append(dict(
            w1=jax.random.normal(k1, (3, 3, C, C), jnp.float32) * 0.05,
            alpha=jnp.float32(0.25),     # PyTorch nn.PReLU() default
            w2=jax.random.normal(k2, (3, 3, C, C), jnp.float32) * 0.05,
            ca_w1=jax.random.normal(k3, (C, Cr), jnp.float32) * 0.1,
            ca_w2=jax.random.normal(k4, (Cr, C), jnp.float32) * 0.1,
        ))
    key, kf = jax.random.split(key)
    w_final = jax.random.normal(kf, (3, 3, C, C), jnp.float32) * 0.05
    return dict(cabs=cabs, w_final=w_final)


def pack_orb_params(params):
    cabs = params["cabs"]
    num_cab = len(cabs)
    C = cabs[0]["w1"].shape[2]
    # Stack all 3x3 conv weights and reshape HWIO -> (9*Cin, Cout) im2col order
    # (dy-major, dx, cin) — matches the tap concatenation order in the kernel.
    wconv = jnp.stack([w for cab in cabs for w in (cab["w1"], cab["w2"])]
                      + [params["w_final"]], axis=0)           # (nconv, 3, 3, C, C)
    wconv = wconv.reshape(2 * num_cab + 1, 9 * C, C).astype(jnp.bfloat16)
    alphas = jnp.stack([jnp.asarray(cab["alpha"], jnp.float32) for cab in cabs])
    ca_w1 = jnp.stack([cab["ca_w1"] for cab in cabs]).astype(jnp.float32)
    ca_w2 = jnp.stack([cab["ca_w2"] for cab in cabs]).astype(jnp.float32)
    return alphas, wconv, ca_w1, ca_w2


def orb_forward(x, params):
    N, H, W, C = x.shape
    cabs = params["cabs"]
    num_cab = len(cabs)
    Cr = cabs[0]["ca_w1"].shape[1]
    alphas, wconv, ca_w1, ca_w2 = pack_orb_params(params)
    orb = make_orb(N, H, W, C, Cr, num_cab, x.dtype)
    return orb(x, alphas, wconv, ca_w1, ca_w2)


# ----------------------------------------------------------------------------
# Pure-JAX f32 reference (sanity check of the kernel semantics)
# ----------------------------------------------------------------------------
def orb_reference(x, params):
    def conv3x3(v, w):
        return jax.lax.conv_general_dilated(
            v, w, window_strides=(1, 1), padding="SAME",
            dimension_numbers=("NHWC", "HWIO", "NHWC"))

    out = x
    for cab in params["cabs"]:
        b = conv3x3(out, cab["w1"])
        b = jnp.where(b >= 0, b, cab["alpha"] * b)
        b = conv3x3(b, cab["w2"])
        gap = jnp.mean(b, axis=(1, 2))                          # (N, C)
        z = jnp.maximum(gap @ cab["ca_w1"], 0.0)
        s = jax.nn.sigmoid(z @ cab["ca_w2"])
        out = b * s[:, None, None, :] + out
    out = conv3x3(out, params["w_final"]) + x
    return out


if __name__ == "__main__":
    # Small shapes: batch=2, channels=32, spatial=16x16, num_cab=2, reduction r=4.
    N, H, W, C = 2, 16, 16, 32
    num_cab, r = 2, 4

    key = jax.random.PRNGKey(0)
    kx, kp = jax.random.split(key)
    x = jax.random.normal(kx, (N, H, W, C), jnp.float32)   # NHWC (== NCHW [2,32,16,16])
    params = init_orb_params(kp, C, num_cab, r)

    out = jax.block_until_ready(orb_forward(x, params))
    ref = jax.block_until_ready(orb_reference(x, params))

    max_err = float(jnp.max(jnp.abs(out - ref)))
    assert out.shape == (N, H, W, C)
    # Kernel runs the conv matmuls with bf16 inputs (f32 accumulation); the
    # reference is full f32, so the tolerance is loosened accordingly.
    assert max_err < 5e-2, f"mismatch vs reference: {max_err}"

    print("KERNEL_OK")
</pallas_src>

<mosaic_0001>
module attributes {stable_mosaic.version = 11 : i64} {
  func.func @kernel(%arg0: i32, %arg1: memref<2xf32, #tpu.memory_space<smem>>, %arg2: memref<1x16x16x32xf32, #tpu.memory_space<vmem>>, %arg3: memref<5x288x32xbf16, #tpu.memory_space<vmem>>, %arg4: memref<2x32x8xf32, #tpu.memory_space<vmem>>, %arg5: memref<2x8x32xf32, #tpu.memory_space<vmem>>, %arg6: memref<1x16x16x32xf32, #tpu.memory_space<vmem>>) attributes {dimension_semantics = [#tpu.dimension_semantics<parallel>], iteration_bounds = array<i64: 2>, scalar_prefetch = 0 : i64, scratch_operands = 0 : i64, tpu.core_type = #tpu.core_type<tc>, window_params = [{transform_indices = @transform_0, window_bounds = array<i64: 2>}, {transform_indices = @transform_1, window_bounds = array<i64: 1, 16, 16, 32>}, {pipeline_mode = #tpu.pipeline_mode<synchronous>, transform_indices = @transform_2, window_bounds = array<i64: 5, 288, 32>}, {pipeline_mode = #tpu.pipeline_mode<synchronous>, transform_indices = @transform_3, window_bounds = array<i64: 2, 32, 8>}, {pipeline_mode = #tpu.pipeline_mode<synchronous>, transform_indices = @transform_4, window_bounds = array<i64: 2, 8, 32>}, {transform_indices = @transform_5, window_bounds = array<i64: 1, 16, 16, 32>}]} {
    %c0 = arith.constant 0 : index
    %c0_0 = arith.constant 0 : index
    %c0_1 = arith.constant 0 : index
    %c0_2 = arith.constant 0 : index
    %0 = vector.load %arg2[%c0, %c0_0, %c0_1, %c0_2] : memref<1x16x16x32xf32, #tpu.memory_space<vmem>>, vector<1x16x16x32xf32>
    %1 = vector.shape_cast %0 : vector<1x16x16x32xf32> to vector<256x32xf32>
    %2 = arith.truncf %1 : vector<256x32xf32> to vector<256x32xbf16>
    %3 = vector.shape_cast %2 : vector<256x32xbf16> to vector<16x16x32xbf16>
    %cst = arith.constant 0.000000e+00 : bf16
    %4 = vector.broadcast %cst : bf16 to vector<16x1x32xbf16>
    %5 = tpu.concatenate %4, %3, %4 in 1 : vector<16x1x32xbf16>, vector<16x16x32xbf16>, vector<16x1x32xbf16> -> vector<16x18x32xbf16>
    %cst_3 = arith.constant 0.000000e+00 : bf16
    %6 = vector.broadcast %cst_3 : bf16 to vector<1x18x32xbf16>
    %7 = tpu.concatenate %6, %5, %6 in 0 : vector<1x18x32xbf16>, vector<16x18x32xbf16>, vector<1x18x32xbf16> -> vector<18x18x32xbf16>
    %8 = vector.extract_strided_slice %7 {offsets = [0, 0, 0], sizes = [16, 16, 32], strides = [1, 1, 1]} : vector<18x18x32xbf16> to vector<16x16x32xbf16>
    %9 = vector.shape_cast %8 : vector<16x16x32xbf16> to vector<256x32xbf16>
    %10 = vector.extract_strided_slice %7 {offsets = [0, 1, 0], sizes = [16, 16, 32], strides = [1, 1, 1]} : vector<18x18x32xbf16> to vector<16x16x32xbf16>
    %11 = vector.shape_cast %10 : vector<16x16x32xbf16> to vector<256x32xbf16>
    %12 = vector.extract_strided_slice %7 {offsets = [0, 2, 0], sizes = [16, 16, 32], strides = [1, 1, 1]} : vector<18x18x32xbf16> to vector<16x16x32xbf16>
    %13 = vector.shape_cast %12 : vector<16x16x32xbf16> to vector<256x32xbf16>
    %14 = vector.extract_strided_slice %7 {offsets = [1, 0, 0], sizes = [16, 16, 32], strides = [1, 1, 1]} : vector<18x18x32xbf16> to vector<16x16x32xbf16>
    %15 = vector.shape_cast %14 : vector<16x16x32xbf16> to vector<256x32xbf16>
    %16 = vector.extract_strided_slice %7 {offsets = [1, 1, 0], sizes = [16, 16, 32], strides = [1, 1, 1]} : vector<18x18x32xbf16> to vector<16x16x32xbf16>
    %17 = vector.shape_cast %16 : vector<16x16x32xbf16> to vector<256x32xbf16>
    %18 = vector.extract_strided_slice %7 {offsets = [1, 2, 0], sizes = [16, 16, 32], strides = [1, 1, 1]} : vector<18x18x32xbf16> to vector<16x16x32xbf16>
    %19 = vector.shape_cast %18 : vector<16x16x32xbf16> to vector<256x32xbf16>
    %20 = vector.extract_strided_slice %7 {offsets = [2, 0, 0], sizes = [16, 16, 32], strides = [1, 1, 1]} : vector<18x18x32xbf16> to vector<16x16x32xbf16>
    %21 = vector.shape_cast %20 : vector<16x16x32xbf16> to vector<256x32xbf16>
    %22 = vector.extract_strided_slice %7 {offsets = [2, 1, 0], sizes = [16, 16, 32], strides = [1, 1, 1]} : vector<18x18x32xbf16> to vector<16x16x32xbf16>
    %23 = vector.shape_cast %22 : vector<16x16x32xbf16> to vector<256x32xbf16>
    %24 = vector.extract_strided_slice %7 {offsets = [2, 2, 0], sizes = [16, 16, 32], strides = [1, 1, 1]} : vector<18x18x32xbf16> to vector<16x16x32xbf16>
    %25 = vector.shape_cast %24 : vector<16x16x32xbf16> to vector<256x32xbf16>
    %26 = tpu.concatenate %9, %11, %13, %15, %17, %19, %21, %23, %25 in 1 : vector<256x32xbf16>, vector<256x32xbf16>, vector<256x32xbf16>, vector<256x32xbf16>, vector<256x32xbf16>, vector<256x32xbf16>, vector<256x32xbf16>, vector<256x32xbf16>, vector<256x32xbf16> -> vector<256x288xbf16>
    %c0_4 = arith.constant 0 : index
    %c0_5 = arith.constant 0 : index
    %c0_6 = arith.constant 0 : index
    %27 = vector.load %arg3[%c0_4, %c0_5, %c0_6] : memref<5x288x32xbf16, #tpu.memory_space<vmem>>, vector<1x288x32xbf16>
    %28 = vector.shape_cast %27 : vector<1x288x32xbf16> to vector<288x32xbf16>
    %cst_7 = arith.constant dense<0.000000e+00> : vector<256x32xf32>
    %29 = tpu.matmul %26, %28, %cst_7 {dimension_numbers = #tpu.dot_dimension_numbers<[1], [0], [0], [1], [0, 0, 1, 1], [], []>} : vector<256x288xbf16>, vector<288x32xbf16>, vector<256x32xf32> -> vector<256x32xf32>
    %c0_8 = arith.constant 0 : index
    %30 = memref.load %arg1[%c0_8] : memref<2xf32, #tpu.memory_space<smem>>
    %cst_9 = arith.constant 0.000000e+00 : f32
    %31 = vector.broadcast %cst_9 : f32 to vector<256x32xf32>
    %32 = arith.cmpf oge, %29, %31 : vector<256x32xf32>
    %33 = vector.broadcast %30 : f32 to vector<256x32xf32>
    %34 = arith.mulf %33, %29 : vector<256x32xf32>
    %35 = arith.select %32, %29, %34 : vector<256x32xi1>, vector<256x32xf32>
    %36 = arith.truncf %35 : vector<256x32xf32> to vector<256x32xbf16>
    %37 = vector.shape_cast %36 : vector<256x32xbf16> to vector<16x16x32xbf16>
    %cst_10 = arith.constant 0.000000e+00 : bf16
    %38 = vector.broadcast %cst_10 : bf16 to vector<16x1x32xbf16>
    %39 = tpu.concatenate %38, %37, %38 in 1 : vector<16x1x32xbf16>, vector<16x16x32xbf16>, vector<16x1x32xbf16> -> vector<16x18x32xbf16>
    %cst_11 = arith.constant 0.000000e+00 : bf16
    %40 = vector.broadcast %cst_11 : bf16 to vector<1x18x32xbf16>
    %41 = tpu.concatenate %40, %39, %40 in 0 : vector<1x18x32xbf16>, vector<16x18x32xbf16>, vector<1x18x32xbf16> -> vector<18x18x32xbf16>
    %42 = vector.extract_strided_slice %41 {offsets = [0, 0, 0], sizes = [16, 16, 32], strides = [1, 1, 1]} : vector<18x18x32xbf16> to vector<16x16x32xbf16>
    %43 = vector.shape_cast %42 : vector<16x16x32xbf16> to vector<256x32xbf16>
    %44 = vector.extract_strided_slice %41 {offsets = [0, 1, 0], sizes = [16, 16, 32], strides = [1, 1, 1]} : vector<18x18x32xbf16> to vector<16x16x32xbf16>
    %45 = vector.shape_cast %44 : vector<16x16x32xbf16> to vector<256x32xbf16>
    %46 = vector.extract_strided_slice %41 {offsets = [0, 2, 0], sizes = [16, 16, 32], strides = [1, 1, 1]} : vector<18x18x32xbf16> to vector<16x16x32xbf16>
    %47 = vector.shape_cast %46 : vector<16x16x32xbf16> to vector<256x32xbf16>
    %48 = vector.extract_strided_slice %41 {offsets = [1, 0, 0], sizes = [16, 16, 32], strides = [1, 1, 1]} : vector<18x18x32xbf16> to vector<16x16x32xbf16>
    %49 = vector.shape_cast %48 : vector<16x16x32xbf16> to vector<256x32xbf16>
    %50 = vector.extract_strided_slice %41 {offsets = [1, 1, 0], sizes = [16, 16, 32], strides = [1, 1, 1]} : vector<18x18x32xbf16> to vector<16x16x32xbf16>
    %51 = vector.shape_cast %50 : vector<16x16x32xbf16> to vector<256x32xbf16>
    %52 = vector.extract_strided_slice %41 {offsets = [1, 2, 0], sizes = [16, 16, 32], strides = [1, 1, 1]} : vector<18x18x32xbf16> to vector<16x16x32xbf16>
    %53 = vector.shape_cast %52 : vector<16x16x32xbf16> to vector<256x32xbf16>
    %54 = vector.extract_strided_slice %41 {offsets = [2, 0, 0], sizes = [16, 16, 32], strides = [1, 1, 1]} : vector<18x18x32xbf16> to vector<16x16x32xbf16>
    %55 = vector.shape_cast %54 : vector<16x16x32xbf16> to vector<256x32xbf16>
    %56 = vector.extract_strided_slice %41 {offsets = [2, 1, 0], sizes = [16, 16, 32], strides = [1, 1, 1]} : vector<18x18x32xbf16> to vector<16x16x32xbf16>
    %57 = vector.shape_cast %56 : vector<16x16x32xbf16> to vector<256x32xbf16>
    %58 = vector.extract_strided_slice %41 {offsets = [2, 2, 0], sizes = [16, 16, 32], strides = [1, 1, 1]} : vector<18x18x32xbf16> to vector<16x16x32xbf16>
    %59 = vector.shape_cast %58 : vector<16x16x32xbf16> to vector<256x32xbf16>
    %60 = tpu.concatenate %43, %45, %47, %49, %51, %53, %55, %57, %59 in 1 : vector<256x32xbf16>, vector<256x32xbf16>, vector<256x32xbf16>, vector<256x32xbf16>, vector<256x32xbf16>, vector<256x32xbf16>, vector<256x32xbf16>, vector<256x32xbf16>, vector<256x32xbf16> -> vector<256x288xbf16>
    %c1 = arith.constant 1 : index
    %c0_12 = arith.constant 0 : index
    %c0_13 = arith.constant 0 : index
    %61 = vector.load %arg3[%c1, %c0_12, %c0_13] : memref<5x288x32xbf16, #tpu.memory_space<vmem>>, vector<1x288x32xbf16>
    %62 = vector.shape_cast %61 : vector<1x288x32xbf16> to vector<288x32xbf16>
    %cst_14 = arith.constant dense<0.000000e+00> : vector<256x32xf32>
    %63 = tpu.matmul %60, %62, %cst_14 {dimension_numbers = #tpu.dot_dimension_numbers<[1], [0], [0], [1], [0, 0, 1, 1], [], []>} : vector<256x288xbf16>, vector<288x32xbf16>, vector<256x32xf32> -> vector<256x32xf32>
    %cst_15 = arith.constant dense<0.000000e+00> : vector<32xf32>
    %64 = vector.multi_reduction <add>, %63, %cst_15 [0] : vector<256x32xf32> to vector<32xf32>
    %65 = vector.shape_cast %64 : vector<32xf32> to vector<1x32xf32>
    %cst_16 = arith.constant 2.560000e+02 : f32
    %66 = vector.broadcast %cst_16 : f32 to vector<1x32xf32>
    %67 = arith.divf %65, %66 : vector<1x32xf32>
    %c0_17 = arith.constant 0 : index
    %c0_18 = arith.constant 0 : index
    %c0_19 = arith.constant 0 : index
    %68 = vector.load %arg4[%c0_17, %c0_18, %c0_19] : memref<2x32x8xf32, #tpu.memory_space<vmem>>, vector<1x32x8xf32>
    %69 = vector.shape_cast %68 : vector<1x32x8xf32> to vector<32x8xf32>
    %cst_20 = arith.constant dense<0.000000e+00> : vector<1x8xf32>
    %70 = tpu.matmul %67, %69, %cst_20 {dimension_numbers = #tpu.dot_dimension_numbers<[1], [0], [0], [1], [0, 0, 1, 1], [], []>} : vector<1x32xf32>, vector<32x8xf32>, vector<1x8xf32> -> vector<1x8xf32>
    %cst_21 = arith.constant 0.000000e+00 : f32
    %71 = vector.broadcast %cst_21 : f32 to vector<1x8xf32>
    %72 = arith.maximumf %70, %71 : vector<1x8xf32>
    %c0_22 = arith.constant 0 : index
    %c0_23 = arith.constant 0 : index
    %c0_24 = arith.constant 0 : index
    %73 = vector.load %arg5[%c0_22, %c0_23, %c0_24] : memref<2x8x32xf32, #tpu.memory_space<vmem>>, vector<1x8x32xf32>
    %74 = vector.shape_cast %73 : vector<1x8x32xf32> to vector<8x32xf32>
    %cst_25 = arith.constant dense<0.000000e+00> : vector<1x32xf32>
    %75 = tpu.matmul %72, %74, %cst_25 {dimension_numbers = #tpu.dot_dimension_numbers<[1], [0], [0], [1], [0, 0, 1, 1], [], []>} : vector<1x8xf32>, vector<8x32xf32>, vector<1x32xf32> -> vector<1x32xf32>
    %76 = arith.negf %75 : vector<1x32xf32>
    %77 = math.exp %76 : vector<1x32xf32>
    %cst_26 = arith.constant 1.000000e+00 : f32
    %78 = vector.broadcast %cst_26 : f32 to vector<1x32xf32>
    %79 = arith.addf %78, %77 : vector<1x32xf32>
    %80 = arith.divf %78, %79 : vector<1x32xf32>
    %81 = vector.broadcast %80 : vector<1x32xf32> to vector<256x32xf32>
    %82 = arith.mulf %63, %81 : vector<256x32xf32>
    %83 = arith.addf %82, %1 : vector<256x32xf32>
    %84 = arith.truncf %83 : vector<256x32xf32> to vector<256x32xbf16>
    %85 = vector.shape_cast %84 : vector<256x32xbf16> to vector<16x16x32xbf16>
    %cst_27 = arith.constant 0.000000e+00 : bf16
    %86 = vector.broadcast %cst_27 : bf16 to vector<16x1x32xbf16>
    %87 = tpu.concatenate %86, %85, %86 in 1 : vector<16x1x32xbf16>, vector<16x16x32xbf16>, vector<16x1x32xbf16> -> vector<16x18x32xbf16>
    %cst_28 = arith.constant 0.000000e+00 : bf16
    %88 = vector.broadcast %cst_28 : bf16 to vector<1x18x32xbf16>
    %89 = tpu.concatenate %88, %87, %88 in 0 : vector<1x18x32xbf16>, vector<16x18x32xbf16>, vector<1x18x32xbf16> -> vector<18x18x32xbf16>
    %90 = vector.extract_strided_slice %89 {offsets = [0, 0, 0], sizes = [16, 16, 32], strides = [1, 1, 1]} : vector<18x18x32xbf16> to vector<16x16x32xbf16>
    %91 = vector.shape_cast %90 : vector<16x16x32xbf16> to vector<256x32xbf16>
    %92 = vector.extract_strided_slice %89 {offsets = [0, 1, 0], sizes = [16, 16, 32], strides = [1, 1, 1]} : vector<18x18x32xbf16> to vector<16x16x32xbf16>
    %93 = vector.shape_cast %92 : vector<16x16x32xbf16> to vector<256x32xbf16>
    %94 = vector.extract_strided_slice %89 {offsets = [0, 2, 0], sizes = [16, 16, 32], strides = [1, 1, 1]} : vector<18x18x32xbf16> to vector<16x16x32xbf16>
    %95 = vector.shape_cast %94 : vector<16x16x32xbf16> to vector<256x32xbf16>
    %96 = vector.extract_strided_slice %89 {offsets = [1, 0, 0], sizes = [16, 16, 32], strides = [1, 1, 1]} : vector<18x18x32xbf16> to vector<16x16x32xbf16>
    %97 = vector.shape_cast %96 : vector<16x16x32xbf16> to vector<256x32xbf16>
    %98 = vector.extract_strided_slice %89 {offsets = [1, 1, 0], sizes = [16, 16, 32], strides = [1, 1, 1]} : vector<18x18x32xbf16> to vector<16x16x32xbf16>
    %99 = vector.shape_cast %98 : vector<16x16x32xbf16> to vector<256x32xbf16>
    %100 = vector.extract_strided_slice %89 {offsets = [1, 2, 0], sizes = [16, 16, 32], strides = [1, 1, 1]} : vector<18x18x32xbf16> to vector<16x16x32xbf16>
    %101 = vector.shape_cast %100 : vector<16x16x32xbf16> to vector<256x32xbf16>
    %102 = vector.extract_strided_slice %89 {offsets = [2, 0, 0], sizes = [16, 16, 32], strides = [1, 1, 1]} : vector<18x18x32xbf16> to vector<16x16x32xbf16>
    %103 = vector.shape_cast %102 : vector<16x16x32xbf16> to vector<256x32xbf16>
    %104 = vector.extract_strided_slice %89 {offsets = [2, 1, 0], sizes = [16, 16, 32], strides = [1, 1, 1]} : vector<18x18x32xbf16> to vector<16x16x32xbf16>
    %105 = vector.shape_cast %104 : vector<16x16x32xbf16> to vector<256x32xbf16>
    %106 = vector.extract_strided_slice %89 {offsets = [2, 2, 0], sizes = [16, 16, 32], strides = [1, 1, 1]} : vector<18x18x32xbf16> to vector<16x16x32xbf16>
    %107 = vector.shape_cast %106 : vector<16x16x32xbf16> to vector<256x32xbf16>
    %108 = tpu.concatenate %91, %93, %95, %97, %99, %101, %103, %105, %107 in 1 : vector<256x32xbf16>, vector<256x32xbf16>, vector<256x32xbf16>, vector<256x32xbf16>, vector<256x32xbf16>, vector<256x32xbf16>, vector<256x32xbf16>, vector<256x32xbf16>, vector<256x32xbf16> -> vector<256x288xbf16>
    %c2 = arith.constant 2 : index
    %c0_29 = arith.constant 0 : index
    %c0_30 = arith.constant 0 : index
    %109 = vector.load %arg3[%c2, %c0_29, %c0_30] : memref<5x288x32xbf16, #tpu.memory_space<vmem>>, vector<1x288x32xbf16>
    %110 = vector.shape_cast %109 : vector<1x288x32xbf16> to vector<288x32xbf16>
    %cst_31 = arith.constant dense<0.000000e+00> : vector<256x32xf32>
    %111 = tpu.matmul %108, %110, %cst_31 {dimension_numbers = #tpu.dot_dimension_numbers<[1], [0], [0], [1], [0, 0, 1, 1], [], []>} : vector<256x288xbf16>, vector<288x32xbf16>, vector<256x32xf32> -> vector<256x32xf32>
    %c1_32 = arith.constant 1 : index
    %112 = memref.load %arg1[%c1_32] : memref<2xf32, #tpu.memory_space<smem>>
    %cst_33 = arith.constant 0.000000e+00 : f32
    %113 = vector.broadcast %cst_33 : f32 to vector<256x32xf32>
    %114 = arith.cmpf oge, %111, %113 : vector<256x32xf32>
    %115 = vector.broadcast %112 : f32 to vector<256x32xf32>
    %116 = arith.mulf %115, %111 : vector<256x32xf32>
    %117 = arith.select %114, %111, %116 : vector<256x32xi1>, vector<256x32xf32>
    %118 = arith.truncf %117 : vector<256x32xf32> to vector<256x32xbf16>
    %119 = vector.shape_cast %118 : vector<256x32xbf16> to vector<16x16x32xbf16>
    %cst_34 = arith.constant 0.000000e+00 : bf16
    %120 = vector.broadcast %cst_34 : bf16 to vector<16x1x32xbf16>
    %121 = tpu.concatenate %120, %119, %120 in 1 : vector<16x1x32xbf16>, vector<16x16x32xbf16>, vector<16x1x32xbf16> -> vector<16x18x32xbf16>
    %cst_35 = arith.constant 0.000000e+00 : bf16
    %122 = vector.broadcast %cst_35 : bf16 to vector<1x18x32xbf16>
    %123 = tpu.concatenate %122, %121, %122 in 0 : vector<1x18x32xbf16>, vector<16x18x32xbf16>, vector<1x18x32xbf16> -> vector<18x18x32xbf16>
    %124 = vector.extract_strided_slice %123 {offsets = [0, 0, 0], sizes = [16, 16, 32], strides = [1, 1, 1]} : vector<18x18x32xbf16> to vector<16x16x32xbf16>
    %125 = vector.shape_cast %124 : vector<16x16x32xbf16> to vector<256x32xbf16>
    %126 = vector.extract_strided_slice %123 {offsets = [0, 1, 0], sizes = [16, 16, 32], strides = [1, 1, 1]} : vector<18x18x32xbf16> to vector<16x16x32xbf16>
    %127 = vector.shape_cast %126 : vector<16x16x32xbf16> to vector<256x32xbf16>
    %128 = vector.extract_strided_slice %123 {offsets = [0, 2, 0], sizes = [16, 16, 32], strides = [1, 1, 1]} : vector<18x18x32xbf16> to vector<16x16x32xbf16>
    %129 = vector.shape_cast %128 : vector<16x16x32xbf16> to vector<256x32xbf16>
    %130 = vector.extract_strided_slice %123 {offsets = [1, 0, 0], sizes = [16, 16, 32], strides = [1, 1, 1]} : vector<18x18x32xbf16> to vector<16x16x32xbf16>
    %131 = vector.shape_cast %130 : vector<16x16x32xbf16> to vector<256x32xbf16>
    %132 = vector.extract_strided_slice %123 {offsets = [1, 1, 0], sizes = [16, 16, 32], strides = [1, 1, 1]} : vector<18x18x32xbf16> to vector<16x16x32xbf16>
    %133 = vector.shape_cast %132 : vector<16x16x32xbf16> to vector<256x32xbf16>
    %134 = vector.extract_strided_slice %123 {offsets = [1, 2, 0], sizes = [16, 16, 32], strides = [1, 1, 1]} : vector<18x18x32xbf16> to vector<16x16x32xbf16>
    %135 = vector.shape_cast %134 : vector<16x16x32xbf16> to vector<256x32xbf16>
    %136 = vector.extract_strided_slice %123 {offsets = [2, 0, 0], sizes = [16, 16, 32], strides = [1, 1, 1]} : vector<18x18x32xbf16> to vector<16x16x32xbf16>
    %137 = vector.shape_cast %136 : vector<16x16x32xbf16> to vector<256x32xbf16>
    %138 = vector.extract_strided_slice %123 {offsets = [2, 1, 0], sizes = [16, 16, 32], strides = [1, 1, 1]} : vector<18x18x32xbf16> to vector<16x16x32xbf16>
    %139 = vector.shape_cast %138 : vector<16x16x32xbf16> to vector<256x32xbf16>
    %140 = vector.extract_strided_slice %123 {offsets = [2, 2, 0], sizes = [16, 16, 32], strides = [1, 1, 1]} : vector<18x18x32xbf16> to vector<16x16x32xbf16>
    %141 = vector.shape_cast %140 : vector<16x16x32xbf16> to vector<256x32xbf16>
    %142 = tpu.concatenate %125, %127, %129, %131, %133, %135, %137, %139, %141 in 1 : vector<256x32xbf16>, vector<256x32xbf16>, vector<256x32xbf16>, vector<256x32xbf16>, vector<256x32xbf16>, vector<256x32xbf16>, vector<256x32xbf16>, vector<256x32xbf16>, vector<256x32xbf16> -> vector<256x288xbf16>
    %c3 = arith.constant 3 : index
    %c0_36 = arith.constant 0 : index
    %c0_37 = arith.constant 0 : index
    %143 = vector.load %arg3[%c3, %c0_36, %c0_37] : memref<5x288x32xbf16, #tpu.memory_space<vmem>>, vector<1x288x32xbf16>
    %144 = vector.shape_cast %143 : vector<1x288x32xbf16> to vector<288x32xbf16>
    %cst_38 = arith.constant dense<0.000000e+00> : vector<256x32xf32>
    %145 = tpu.matmul %142, %144, %cst_38 {dimension_numbers = #tpu.dot_dimension_numbers<[1], [0], [0], [1], [0, 0, 1, 1], [], []>} : vector<256x288xbf16>, vector<288x32xbf16>, vector<256x32xf32> -> vector<256x32xf32>
    %cst_39 = arith.constant dense<0.000000e+00> : vector<32xf32>
    %146 = vector.multi_reduction <add>, %145, %cst_39 [0] : vector<256x32xf32> to vector<32xf32>
    %147 = vector.shape_cast %146 : vector<32xf32> to vector<1x32xf32>
    %cst_40 = arith.constant 2.560000e+02 : f32
    %148 = vector.broadcast %cst_40 : f32 to vector<1x32xf32>
    %149 = arith.divf %147, %148 : vector<1x32xf32>
    %c1_41 = arith.constant 1 : index
    %c0_42 = arith.constant 0 : index
    %c0_43 = arith.constant 0 : index
    %150 = vector.load %arg4[%c1_41, %c0_42, %c0_43] : memref<2x32x8xf32, #tpu.memory_space<vmem>>, vector<1x32x8xf32>
    %151 = vector.shape_cast %150 : vector<1x32x8xf32> to vector<32x8xf32>
    %cst_44 = arith.constant dense<0.000000e+00> : vector<1x8xf32>
    %152 = tpu.matmul %149, %151, %cst_44 {dimension_numbers = #tpu.dot_dimension_numbers<[1], [0], [0], [1], [0, 0, 1, 1], [], []>} : vector<1x32xf32>, vector<32x8xf32>, vector<1x8xf32> -> vector<1x8xf32>
    %cst_45 = arith.constant 0.000000e+00 : f32
    %153 = vector.broadcast %cst_45 : f32 to vector<1x8xf32>
    %154 = arith.maximumf %152, %153 : vector<1x8xf32>
    %c1_46 = arith.constant 1 : index
    %c0_47 = arith.constant 0 : index
    %c0_48 = arith.constant 0 : index
    %155 = vector.load %arg5[%c1_46, %c0_47, %c0_48] : memref<2x8x32xf32, #tpu.memory_space<vmem>>, vector<1x8x32xf32>
    %156 = vector.shape_cast %155 : vector<1x8x32xf32> to vector<8x32xf32>
    %cst_49 = arith.constant dense<0.000000e+00> : vector<1x32xf32>
    %157 = tpu.matmul %154, %156, %cst_49 {dimension_numbers = #tpu.dot_dimension_numbers<[1], [0], [0], [1], [0, 0, 1, 1], [], []>} : vector<1x8xf32>, vector<8x32xf32>, vector<1x32xf32> -> vector<1x32xf32>
    %158 = arith.negf %157 : vector<1x32xf32>
    %159 = math.exp %158 : vector<1x32xf32>
    %cst_50 = arith.constant 1.000000e+00 : f32
    %160 = vector.broadcast %cst_50 : f32 to vector<1x32xf32>
    %161 = arith.addf %160, %159 : vector<1x32xf32>
    %162 = arith.divf %160, %161 : vector<1x32xf32>
    %163 = vector.broadcast %162 : vector<1x32xf32> to vector<256x32xf32>
    %164 = arith.mulf %145, %163 : vector<256x32xf32>
    %165 = arith.addf %164, %83 : vector<256x32xf32>
    %166 = arith.truncf %165 : vector<256x32xf32> to vector<256x32xbf16>
    %167 = vector.shape_cast %166 : vector<256x32xbf16> to vector<16x16x32xbf16>
    %cst_51 = arith.constant 0.000000e+00 : bf16
    %168 = vector.broadcast %cst_51 : bf16 to vector<16x1x32xbf16>
    %169 = tpu.concatenate %168, %167, %168 in 1 : vector<16x1x32xbf16>, vector<16x16x32xbf16>, vector<16x1x32xbf16> -> vector<16x18x32xbf16>
    %cst_52 = arith.constant 0.000000e+00 : bf16
    %170 = vector.broadcast %cst_52 : bf16 to vector<1x18x32xbf16>
    %171 = tpu.concatenate %170, %169, %170 in 0 : vector<1x18x32xbf16>, vector<16x18x32xbf16>, vector<1x18x32xbf16> -> vector<18x18x32xbf16>
    %172 = vector.extract_strided_slice %171 {offsets = [0, 0, 0], sizes = [16, 16, 32], strides = [1, 1, 1]} : vector<18x18x32xbf16> to vector<16x16x32xbf16>
    %173 = vector.shape_cast %172 : vector<16x16x32xbf16> to vector<256x32xbf16>
    %174 = vector.extract_strided_slice %171 {offsets = [0, 1, 0], sizes = [16, 16, 32], strides = [1, 1, 1]} : vector<18x18x32xbf16> to vector<16x16x32xbf16>
    %175 = vector.shape_cast %174 : vector<16x16x32xbf16> to vector<256x32xbf16>
    %176 = vector.extract_strided_slice %171 {offsets = [0, 2, 0], sizes = [16, 16, 32], strides = [1, 1, 1]} : vector<18x18x32xbf16> to vector<16x16x32xbf16>
    %177 = vector.shape_cast %176 : vector<16x16x32xbf16> to vector<256x32xbf16>
    %178 = vector.extract_strided_slice %171 {offsets = [1, 0, 0], sizes = [16, 16, 32], strides = [1, 1, 1]} : vector<18x18x32xbf16> to vector<16x16x32xbf16>
    %179 = vector.shape_cast %178 : vector<16x16x32xbf16> to vector<256x32xbf16>
    %180 = vector.extract_strided_slice %171 {offsets = [1, 1, 0], sizes = [16, 16, 32], strides = [1, 1, 1]} : vector<18x18x32xbf16> to vector<16x16x32xbf16>
    %181 = vector.shape_cast %180 : vector<16x16x32xbf16> to vector<256x32xbf16>
    %182 = vector.extract_strided_slice %171 {offsets = [1, 2, 0], sizes = [16, 16, 32], strides = [1, 1, 1]} : vector<18x18x32xbf16> to vector<16x16x32xbf16>
    %183 = vector.shape_cast %182 : vector<16x16x32xbf16> to vector<256x32xbf16>
    %184 = vector.extract_strided_slice %171 {offsets = [2, 0, 0], sizes = [16, 16, 32], strides = [1, 1, 1]} : vector<18x18x32xbf16> to vector<16x16x32xbf16>
    %185 = vector.shape_cast %184 : vector<16x16x32xbf16> to vector<256x32xbf16>
    %186 = vector.extract_strided_slice %171 {offsets = [2, 1, 0], sizes = [16, 16, 32], strides = [1, 1, 1]} : vector<18x18x32xbf16> to vector<16x16x32xbf16>
    %187 = vector.shape_cast %186 : vector<16x16x32xbf16> to vector<256x32xbf16>
    %188 = vector.extract_strided_slice %171 {offsets = [2, 2, 0], sizes = [16, 16, 32], strides = [1, 1, 1]} : vector<18x18x32xbf16> to vector<16x16x32xbf16>
    %189 = vector.shape_cast %188 : vector<16x16x32xbf16> to vector<256x32xbf16>
    %190 = tpu.concatenate %173, %175, %177, %179, %181, %183, %185, %187, %189 in 1 : vector<256x32xbf16>, vector<256x32xbf16>, vector<256x32xbf16>, vector<256x32xbf16>, vector<256x32xbf16>, vector<256x32xbf16>, vector<256x32xbf16>, vector<256x32xbf16>, vector<256x32xbf16> -> vector<256x288xbf16>
    %c4 = arith.constant 4 : index
    %c0_53 = arith.constant 0 : index
    %c0_54 = arith.constant 0 : index
    %191 = vector.load %arg3[%c4, %c0_53, %c0_54] : memref<5x288x32xbf16, #tpu.memory_space<vmem>>, vector<1x288x32xbf16>
    %192 = vector.shape_cast %191 : vector<1x288x32xbf16> to vector<288x32xbf16>
    %cst_55 = arith.constant dense<0.000000e+00> : vector<256x32xf32>
    %193 = tpu.matmul %190, %192, %cst_55 {dimension_numbers = #tpu.dot_dimension_numbers<[1], [0], [0], [1], [0, 0, 1, 1], [], []>} : vector<256x288xbf16>, vector<288x32xbf16>, vector<256x32xf32> -> vector<256x32xf32>
    %194 = arith.addf %193, %1 : vector<256x32xf32>
    %195 = vector.shape_cast %194 : vector<256x32xf32> to vector<1x16x16x32xf32>
    %c0_56 = arith.constant 0 : index
    %c0_57 = arith.constant 0 : index
    %c0_58 = arith.constant 0 : index
    %c0_59 = arith.constant 0 : index
    %196 = vector.load %arg6[%c0_56, %c0_57, %c0_58, %c0_59] : memref<1x16x16x32xf32, #tpu.memory_space<vmem>>, vector<1x16x16x32xf32>
    tpu.vector_store %arg6[%c0_56, %c0_57, %c0_58, %c0_59], %195 {strides = array<i32>} : memref<1x16x16x32xf32, #tpu.memory_space<vmem>>, vector<1x16x16x32xf32>,
    return
  }
  func.func @transform_0(%arg0: i32) -> i32 {
    %c0_i32 = arith.constant 0 : i32
    %c0_i32_0 = arith.constant 0 : i32
    return %c0_i32 : i32
  }
  func.func @transform_1(%arg0: i32) -> (i32, i32, i32, i32) {
    %c0_i32 = arith.constant 0 : i32
    %c0_i32_0 = arith.constant 0 : i32
    %c0_i32_1 = arith.constant 0 : i32
    %c0_i32_2 = arith.constant 0 : i32
    return %arg0, %c0_i32, %c0_i32_0, %c0_i32_1 : i32, i32, i32, i32
  }
  func.func @transform_2(%arg0: i32) -> (i32, i32, i32) {
    %c0_i32 = arith.constant 0 : i32
    %c0_i32_0 = arith.constant 0 : i32
    %c0_i32_1 = arith.constant 0 : i32
    %c0_i32_2 = arith.constant 0 : i32
    return %c0_i32, %c0_i32_0, %c0_i32_1 : i32, i32, i32
  }
  func.func @transform_3(%arg0: i32) -> (i32, i32, i32) {
    %c0_i32 = arith.constant 0 : i32
    %c0_i32_0 = arith.constant 0 : i32
    %c0_i32_1 = arith.constant 0 : i32
    %c0_i32_2 = arith.constant 0 : i32
    return %c0_i32, %c0_i32_0, %c0_i32_1 : i32, i32, i32
  }
  func.func @transform_4(%arg0: i32) -> (i32, i32, i32) {
    %c0_i32 = arith.constant 0 : i32
    %c0_i32_0 = arith.constant 0 : i32
    %c0_i32_1 = arith.constant 0 : i32
    %c0_i32_2 = arith.constant 0 : i32
    return %c0_i32, %c0_i32_0, %c0_i32_1 : i32, i32, i32
  }
  func.func @transform_5(%arg0: i32) -> (i32, i32, i32, i32) {
    %c0_i32 = arith.constant 0 : i32
    %c0_i32_0 = arith.constant 0 : i32
    %c0_i32_1 = arith.constant 0 : i32
    %c0_i32_2 = arith.constant 0 : i32
    return %arg0, %c0_i32, %c0_i32_0, %c0_i32_1 : i32, i32, i32, i32
  }
}

</mosaic_0001>

<llo_original>
// kernel: tpu_custom_call.1
$region0: #{tpu_custom_call.1}
  #allocation0 [shape = 'u32[]', space=smem, size = 0x4, offset = 0x4, fixed_abs, tag = 'smem constant byte address 0x4 - core index']
  #allocation1 [shape = 'u32[144,128]{1,0:T(1,128)}', space=vmem, size = 0x12000, scoped, tag = 'internal scratch']
  %s0 = inlined_call_operand.vmem [shape: f32[2], index: 0, kind: input, shape index: {}]
  %s1 = inlined_call_operand.vmem [shape: f32[2,16,16,32], index: 1, kind: input, shape index: {}]
  %s2 = inlined_call_operand.vmem [shape: bf16[5,288,32], index: 2, kind: input, shape index: {}]
  %s3 = inlined_call_operand.vmem [shape: f32[2,32,8], index: 3, kind: input, shape index: {}]
  %s4 = inlined_call_operand.vmem [shape: f32[2,8,32], index: 4, kind: input, shape index: {}]
  %s5 = inlined_call_operand.hbm [shape: f32[2,16,16,32], index: 5, kind: output, shape index: {}]
  %s6 = sld [smem:[#allocation0]]
  $region57: #{tpu_custom_call.1} parent=0
    _
  %s8 = ssub.s32 1, %s6
  %s9 = scalar_select 0, %s8, %s6
  $region1: #{tpu_custom_call.1} parent=0
    #allocation2 [shape = 'u8[512]{0}', space=smem, size = 0x200, scoped, tag = 'input window, operand 0, single buffered']
    #allocation3 [shape = 's32[2]{0}', space=sflag, size = 0x8, scoped, tag = 'scoped memory for tpu_custom_call.1']
    #allocation4 [shape = 's32[2]{0}', space=sflag, size = 0x8, scoped, tag = 'scoped memory for tpu_custom_call.1']
    #allocation5 [shape = 'u8[262144]{0}', space=vmem, size = 0x40000, scoped, tag = 'output window, operand 0']
    %10 = vsyncpa [#allocation4], 0
    %11 = vsyncpa [#allocation3], 0
    %s12 = scalar_lea.sflag [#allocation3], 1
    %13 = vsyncpa %s12, 0
    loop: start=0, step=1, limit=4
    $region2: #{tpu_custom_call.1} parent=1 // loop_pre_header
      _
    $region3: #{tpu_custom_call.1} parent=1 // loop_header
      %s15 = sphi 0, %s19
      %p16 = scmp.ge.s32.totalorder %s15, 4
      %s23 = sphi 0, %s23
      %s25 = sphi 0, %s23
      %s26 = sphi 0, %s25
      %s40 = sphi 0, %s26
      %s46 = sphi 0, %s48
      %s49 = sphi 0, %s46
      %s50 = sphi 0, %s49
      %s66 = sphi 0, %s50
      %s70 = sphi 0, %s70
      %s72 = sphi 0, %s70
      %s73 = sphi 0, %s72
      %s87 = sphi 0, %s73
      %s91 = sphi 0, %s91
      %s93 = sphi 0, %s91
      %s94 = sphi 0, %s93
      %s108 = sphi 0, %s94
      %s112 = sphi 0, %s112
      %s114 = sphi 0, %s112
      %s115 = sphi 0, %s114
      %s129 = sphi 0, %s115
      %s135 = sphi 0, %s137
      %s138 = sphi 0, %s135
      %s139 = sphi 0, %s138
      %s155 = sphi 0, %s139
    $region4: #{tpu_custom_call.1} parent=1 // loop_header_branch
      %18 = sbr.rel (%p16) target = $region8
    $region5: #{tpu_custom_call.1} parent=1 // loop_body
      %s20 = ssub.s32 %s15, 1
      %s21 = ssub.s32 %s15, 2
      %s22 = sadd.s32 %s15, 1
      %s24 = sadd.s32 %s23, 1
      %p27 = scmp.eq.s32.totalorder %s15, 1
      %p28 = scmp.ne.s32.totalorder %s23, %s25
      %p29 = scmp.eq.s32.totalorder %s15, 0
      %p30 = por %p28, %p29
      %p31 = scmp.ne.s32.totalorder %s23, %s25
      %p32 = scmp.eq.s32.totalorder %s20, 1
      %p33 = por %p31, %p32
      %p34 = scmp.ne.s32.totalorder %s25, %s26
      %p35 = scmp.eq.s32.totalorder %s20, 0
      %p36 = por %p34, %p35
      %p37 = scmp.ne.s32.totalorder %s25, %s26
      %p38 = scmp.eq.s32.totalorder %s21, 1
      %p39 = por %p37, %p38
      %p41 = scmp.ne.s32.totalorder %s26, %s40
      %p42 = scmp.eq.s32.totalorder %s21, 0
      %p43 = por %p41, %p42
      %s44 = ssub.s32 %s15, %s22
      %p45 = scmp.eq.s32.totalorder %s44, 0
      %s47 = sadd.s32 %s46, 1
      %s48 = scalar_select %p45, %s46, %s47
      %p51 = pneg %p45
      %p52 = scmp.eq.s32.totalorder %s15, 1
      %p53 = por %p51, %p52
      %p54 = scmp.ne.s32.totalorder %s46, %s49
      %p55 = scmp.eq.s32.totalorder %s15, 0
      %p56 = por %p54, %p55
      %p57 = scmp.ne.s32.totalorder %s46, %s49
      %p58 = scmp.eq.s32.totalorder %s20, 1
      %p59 = por %p57, %p58
      %p60 = scmp.ne.s32.totalorder %s49, %s50
      %p61 = scmp.eq.s32.totalorder %s20, 0
      %p62 = por %p60, %p61
      %p63 = scmp.ne.s32.totalorder %s49, %s50
      %p64 = scmp.eq.s32.totalorder %s21, 1
      %p65 = por %p63, %p64
      %p67 = scmp.ne.s32.totalorder %s50, %s66
      %p68 = scmp.eq.s32.totalorder %s21, 0
      %p69 = por %p67, %p68
      %s71 = sadd.s32 %s70, 1
      %p74 = scmp.eq.s32.totalorder %s15, 1
      %p75 = scmp.ne.s32.totalorder %s70, %s72
      %p76 = scmp.eq.s32.totalorder %s15, 0
      %p77 = por %p75, %p76
      %p78 = scmp.ne.s32.totalorder %s70, %s72
      %p79 = scmp.eq.s32.totalorder %s20, 1
      %p80 = por %p78, %p79
      %p81 = scmp.ne.s32.totalorder %s72, %s73
      %p82 = scmp.eq.s32.totalorder %s20, 0
      %p83 = por %p81, %p82
      %p84 = scmp.ne.s32.totalorder %s72, %s73
      %p85 = scmp.eq.s32.totalorder %s21, 1
      %p86 = por %p84, %p85
      %p88 = scmp.ne.s32.totalorder %s73, %s87
      %p89 = scmp.eq.s32.totalorder %s21, 0
      %p90 = por %p88, %p89
      %s92 = sadd.s32 %s91, 1
      %p95 = scmp.eq.s32.totalorder %s15, 1
      %p96 = scmp.ne.s32.totalorder %s91, %s93
      %p97 = scmp.eq.s32.totalorder %s15, 0
      %p98 = por %p96, %p97
      %p99 = scmp.ne.s32.totalorder %s91, %s93
      %p100 = scmp.eq.s32.totalorder %s20, 1
      %p101 = por %p99, %p100
      %p102 = scmp.ne.s32.totalorder %s93, %s94
      %p103 = scmp.eq.s32.totalorder %s20, 0
      %p104 = por %p102, %p103
      %p105 = scmp.ne.s32.totalorder %s93, %s94
      %p106 = scmp.eq.s32.totalorder %s21, 1
      %p107 = por %p105, %p106
      %p109 = scmp.ne.s32.totalorder %s94, %s108
      %p110 = scmp.eq.s32.totalorder %s21, 0
      %p111 = por %p109, %p110
      %s113 = sadd.s32 %s112, 1
      %p116 = scmp.eq.s32.totalorder %s15, 1
      %p117 = scmp.ne.s32.totalorder %s112, %s114
      %p118 = scmp.eq.s32.totalorder %s15, 0
      %p119 = por %p117, %p118
      %p120 = scmp.ne.s32.totalorder %s112, %s114
      %p121 = scmp.eq.s32.totalorder %s20, 1
      %p122 = por %p120, %p121
      %p123 = scmp.ne.s32.totalorder %s114, %s115
      %p124 = scmp.eq.s32.totalorder %s20, 0
      %p125 = por %p123, %p124
      %p126 = scmp.ne.s32.totalorder %s114, %s115
      %p127 = scmp.eq.s32.totalorder %s21, 1
      %p128 = por %p126, %p127
      %p130 = scmp.ne.s32.totalorder %s115, %s129
      %p131 = scmp.eq.s32.totalorder %s21, 0
      %p132 = por %p130, %p131
      %s133 = ssub.s32 %s15, %s22
      %p134 = scmp.eq.s32.totalorder %s133, 0
      %s136 = sadd.s32 %s135, 1
      %s137 = scalar_select %p134, %s135, %s136
      %p140 = pneg %p134
      %p141 = scmp.eq.s32.totalorder %s15, 1
      %p142 = por %p140, %p141
      %p143 = scmp.ne.s32.totalorder %s135, %s138
      %p144 = scmp.eq.s32.totalorder %s15, 0
      %p145 = por %p143, %p144
      %p146 = scmp.ne.s32.totalorder %s135, %s138
      %p147 = scmp.eq.s32.totalorder %s20, 1
      %p148 = por %p146, %p147
      %p149 = scmp.ne.s32.totalorder %s138, %s139
      %p150 = scmp.eq.s32.totalorder %s20, 0
      %p151 = por %p149, %p150
      %p152 = scmp.ne.s32.totalorder %s138, %s139
      %p153 = scmp.eq.s32.totalorder %s21, 1
      %p154 = por %p152, %p153
      %p156 = scmp.ne.s32.totalorder %s139, %s155
      %p157 = scmp.eq.s32.totalorder %s21, 0
      %p158 = por %p156, %p157
      %p159 = scmp.le.s32.totalorder 1, %s15
      %p160 = scmp.lt.s32.totalorder %s15, 3
      %p161 = pnand %p159, %p160
      %p162 = pneg %p161
      // Predicated region
      $region9: #{tpu_custom_call.1} parent=5 // pred_check
        _
      $region10: #{tpu_custom_call.1} parent=5 // pred_check_branch
        %164 = sbr.rel (%p161) target = $region12
      $region11: #{tpu_custom_call.1} parent=5 // pred_region
        %s165 = ssub.s32 %s15, 1
        // Predicated region
        $region13: #{tpu_custom_call.1} parent=11 // pred_check
          %p166 = pneg %p36
        $region14: #{tpu_custom_call.1} parent=11 // pred_check_branch
          %168 = sbr.rel (%p166) target = $region16
        $region15: #{tpu_custom_call.1} parent=11 // pred_region
          %s170 = ssub.s32 16, 16
          %171 = vsyncadd [#allocation4], %s170
          %s173 = sshll.u32 %s0, 4
          %s174 = int_to_ptr.vmem [resolvable:$true] %s173
          %176 = dma.vmem_to_smem %s174, 16, [#allocation2], [#allocation4]
        $region16: #{tpu_custom_call.1} parent=11 // pred_fallthru
          _
        // Predicated region
        $region17: #{tpu_custom_call.1} parent=11 // pred_check
          %p177 = pneg %p83
        $region18: #{tpu_custom_call.1} parent=11 // pred_check_branch
          %179 = sbr.rel (%p177) target = $region20
        $region19: #{tpu_custom_call.1} parent=11 // pred_region
          _
        $region20: #{tpu_custom_call.1} parent=11 // pred_fallthru
          _
        // Predicated region
        $region21: #{tpu_custom_call.1} parent=11 // pred_check
          %p180 = pneg %p104
        $region22: #{tpu_custom_call.1} parent=11 // pred_check_branch
          %182 = sbr.rel (%p180) target = $region24
        $region23: #{tpu_custom_call.1} parent=11 // pred_region
          _
        $region24: #{tpu_custom_call.1} parent=11 // pred_fallthru
          _
        // Predicated region
        $region25: #{tpu_custom_call.1} parent=11 // pred_check
          %p183 = pneg %p125
        $region26: #{tpu_custom_call.1} parent=11 // pred_check_branch
          %185 = sbr.rel (%p183) target = $region28
        $region27: #{tpu_custom_call.1} parent=11 // pred_region
          _
        $region28: #{tpu_custom_call.1} parent=11 // pred_fallthru
          _
      $region12: #{tpu_custom_call.1} parent=5 // pred_fallthru
        _
      %p186 = scmp.lt.s32.totalorder %s15, 2
      // Predicated region
      $region29: #{tpu_custom_call.1} parent=5 // pred_check
        %p187 = pneg %p186
      $region30: #{tpu_custom_call.1} parent=5 // pred_check_branch
        %189 = sbr.rel (%p187) target = $region32
      $region31: #{tpu_custom_call.1} parent=5 // pred_region
        // Predicated region
        $region33: #{tpu_custom_call.1} parent=31 // pred_check
          %p190 = pneg %p56
        $region34: #{tpu_custom_call.1} parent=31 // pred_check_branch
          %192 = sbr.rel (%p190) target = $region36
        $region35: #{tpu_custom_call.1} parent=31 // pred_region
          %p193 = scmp.lt.s32.totalorder %s15, 1
          %s194 = scalar_select %p193, %s15, 1
          %s195 = smul.addr %s194, 32
          %s196 = smul.addr %s195, 8
          %s197 = scalar_lea.vmem %s1, %s196
        $region36: #{tpu_custom_call.1} parent=31 // pred_fallthru
          _
      $region32: #{tpu_custom_call.1} parent=5 // pred_fallthru
        _
      %p198 = scmp.le.s32.totalorder 1, %s15
      %p199 = scmp.lt.s32.totalorder %s15, 3
      %p200 = pnand %p198, %p199
      %p201 = pneg %p200
      // Predicated region
      $region37: #{tpu_custom_call.1} parent=5 // pred_check
        _
      $region38: #{tpu_custom_call.1} parent=5 // pred_check_branch
        %203 = sbr.rel (%p200) target = $region40
      $region39: #{tpu_custom_call.1} parent=5 // pred_region
        %s204 = ssub.s32 %s15, 1
        // Predicated region
        $region41: #{tpu_custom_call.1} parent=39 // pred_check
          %p205 = pneg %p36
        $region42: #{tpu_custom_call.1} parent=39 // pred_check_branch
          %207 = sbr.rel (%p205) target = $region44
        $region43: #{tpu_custom_call.1} parent=39 // pred_region
          %208 = dma.done [#allocation4], 16
        $region44: #{tpu_custom_call.1} parent=39 // pred_fallthru
          _
        %209 = sfence
        %p210 = pneg %p36
        %p211 = pneg %p33
        %p212 = scmp.lt.s32.totalorder %s20, 1
        %s213 = scalar_select %p212, %s20, 1
        %s214 = smul.addr %s213, 32
        %s215 = smul.addr %s214, 8
        %s216 = scalar_lea.vmem %s1, %s215
        %p217 = pneg %p62
        %p218 = pneg %p59
        %p219 = pneg %p83
        %p220 = pneg %p80
        %p221 = pneg %p104
        %p222 = pneg %p101
        %p223 = pneg %p125
        %p224 = pneg %p122
        %p225 = pneg %p151
        %p226 = pneg %p148
        %s227 = sand.u32 %s138, 1
        %s228 = scalar_lea.sflag [#allocation3], %s227
        %s229 = sand.u32 %s138, 1
        %s230 = smul.addr %s229, 256
        %s231 = scalar_lea.vmem [#allocation5], %s230
        %p232 = scmp.lt.s32.totalorder %s20, 1
        %s233 = scalar_select %p232, %s20, 1
        %s234 = smul.addr %s233, 32
        %s235 = smul.addr %s234, 8
        %s236 = scalar_lea.vmem %s1, %s235
        %v238 = vld [vmem:[%s236] sm:$0xff]
        %v239 = vld [vmem:[%s236 + $0x8] sm:$0xff]
        %v240 = vld [vmem:[%s236 + $0x10] sm:$0xff]
        %v241 = vld [vmem:[%s236 + $0x18] sm:$0xff]
        %v242 = vld [vmem:[%s236 + $0x20] sm:$0xff]
        %v243 = vld [vmem:[%s236 + $0x28] sm:$0xff]
        %v244 = vld [vmem:[%s236 + $0x30] sm:$0xff]
        %v245 = vld [vmem:[%s236 + $0x38] sm:$0xff]
        %v246 = vld [vmem:[%s236 + $0x40] sm:$0xff]
        %v247 = vld [vmem:[%s236 + $0x48] sm:$0xff]
        %v248 = vld [vmem:[%s236 + $0x50] sm:$0xff]
        %v249 = vld [vmem:[%s236 + $0x58] sm:$0xff]
        %v250 = vld [vmem:[%s236 + $0x60] sm:$0xff]
        %v251 = vld [vmem:[%s236 + $0x68] sm:$0xff]
        %v252 = vld [vmem:[%s236 + $0x70] sm:$0xff]
        %v253 = vld [vmem:[%s236 + $0x78] sm:$0xff]
        %v254 = vld [vmem:[%s236 + $0x80] sm:$0xff]
        %v255 = vld [vmem:[%s236 + $0x88] sm:$0xff]
        %v256 = vld [vmem:[%s236 + $0x90] sm:$0xff]
        %v257 = vld [vmem:[%s236 + $0x98] sm:$0xff]
        %v258 = vld [vmem:[%s236 + $0xa0] sm:$0xff]
        %v259 = vld [vmem:[%s236 + $0xa8] sm:$0xff]
        %v260 = vld [vmem:[%s236 + $0xb0] sm:$0xff]
        %v261 = vld [vmem:[%s236 + $0xb8] sm:$0xff]
        %v262 = vld [vmem:[%s236 + $0xc0] sm:$0xff]
        %v263 = vld [vmem:[%s236 + $0xc8] sm:$0xff]
        %v264 = vld [vmem:[%s236 + $0xd0] sm:$0xff]
        %v265 = vld [vmem:[%s236 + $0xd8] sm:$0xff]
        %v266 = vld [vmem:[%s236 + $0xe0] sm:$0xff]
        %v267 = vld [vmem:[%s236 + $0xe8] sm:$0xff]
        %v268 = vld [vmem:[%s236 + $0xf0] sm:$0xff]
        %v269 = vld [vmem:[%s236 + $0xf8] sm:$0xff]
        %v270 = vpack.c.bf16 %v239, %v238
        %v271 = vpack.c.bf16 %v241, %v240
        %v272 = vpack.c.bf16 %v243, %v242
        %v273 = vpack.c.bf16 %v245, %v244
        %v274 = vpack.c.bf16 %v247, %v246
        %v275 = vpack.c.bf16 %v249, %v248
        %v276 = vpack.c.bf16 %v251, %v250
        %v277 = vpack.c.bf16 %v253, %v252
        %v278 = vpack.c.bf16 %v255, %v254
        %v279 = vpack.c.bf16 %v257, %v256
        %v280 = vpack.c.bf16 %v259, %v258
        %v281 = vpack.c.bf16 %v261, %v260
        %v282 = vpack.c.bf16 %v263, %v262
        %v283 = vpack.c.bf16 %v265, %v264
        %v284 = vpack.c.bf16 %v267, %v266
        %v285 = vpack.c.bf16 %v269, %v268
        %v287 = vshrl.u32 %v270, 16
        %v289 = vrot.slane %v287, 7
        %v290 = vshll.u32 %v270, 16
        %v292 = vor.u32 %v289, %v290
        %v294 = vshrl.u32 %v271, 16
        %v296 = vrot.slane %v294, 7
        %v297 = vshll.u32 %v271, 16
        %v299 = vor.u32 %v296, %v297
        %v301 = vshrl.u32 %v272, 16
        %v303 = vrot.slane %v301, 7
        %v304 = vshll.u32 %v272, 16
        %v306 = vor.u32 %v303, %v304
        %v308 = vshrl.u32 %v273, 16
        %v310 = vrot.slane %v308, 7
        %v311 = vshll.u32 %v273, 16
        %v313 = vor.u32 %v310, %v311
        %v315 = vshrl.u32 %v274, 16
        %v317 = vrot.slane %v315, 7
        %v318 = vshll.u32 %v274, 16
        %v320 = vor.u32 %v317, %v318
        %v322 = vshrl.u32 %v275, 16
        %v324 = vrot.slane %v322, 7
        %v325 = vshll.u32 %v275, 16
        %v327 = vor.u32 %v324, %v325
        %v329 = vshrl.u32 %v276, 16
        %v331 = vrot.slane %v329, 7
        %v332 = vshll.u32 %v276, 16
        %v334 = vor.u32 %v331, %v332
        %v336 = vshrl.u32 %v277, 16
        %v338 = vrot.slane %v336, 7
        %v339 = vshll.u32 %v277, 16
        %v341 = vor.u32 %v338, %v339
        %v343 = vshrl.u32 %v278, 16
        %v345 = vrot.slane %v343, 7
        %v346 = vshll.u32 %v278, 16
        %v348 = vor.u32 %v345, %v346
        %v350 = vshrl.u32 %v279, 16
        %v352 = vrot.slane %v350, 7
        %v353 = vshll.u32 %v279, 16
        %v355 = vor.u32 %v352, %v353
        %v357 = vshrl.u32 %v280, 16
        %v359 = vrot.slane %v357, 7
        %v360 = vshll.u32 %v280, 16
        %v362 = vor.u32 %v359, %v360
        %v364 = vshrl.u32 %v281, 16
        %v366 = vrot.slane %v364, 7
        %v367 = vshll.u32 %v281, 16
        %v369 = vor.u32 %v366, %v367
        %v371 = vshrl.u32 %v282, 16
        %v373 = vrot.slane %v371, 7
        %v374 = vshll.u32 %v282, 16
        %v376 = vor.u32 %v373, %v374
        %v378 = vshrl.u32 %v283, 16
        %v380 = vrot.slane %v378, 7
        %v381 = vshll.u32 %v283, 16
        %v383 = vor.u32 %v380, %v381
        %v385 = vshrl.u32 %v284, 16
        %v387 = vrot.slane %v385, 7
        %v388 = vshll.u32 %v284, 16
        %v390 = vor.u32 %v387, %v388
        %v392 = vshrl.u32 %v285, 16
        %v394 = vrot.slane %v392, 7
        %v395 = vshll.u32 %v285, 16
        %v397 = vor.u32 %v394, %v395
        %vm430 = vcmask 1040384
        %vm431 = vsmask.f32 256
        %vm432 = vmand %vm430, %vm431
        %v433 = vsel %vm432, 0, %v292
        %v434 = vsel %vm432, 0, %v299
        %v435 = vsel %vm432, 0, %v306
        %v436 = vsel %vm432, 0, %v313
        %v437 = vsel %vm432, 0, %v320
        %v438 = vsel %vm432, 0, %v327
        %v439 = vsel %vm432, 0, %v334
        %v440 = vsel %vm432, 0, %v341
        %v441 = vsel %vm432, 0, %v348
        %v442 = vsel %vm432, 0, %v355
        %v443 = vsel %vm432, 0, %v362
        %v444 = vsel %vm432, 0, %v369
        %v445 = vsel %vm432, 0, %v376
        %v446 = vsel %vm432, 0, %v383
        %v447 = vsel %vm432, 0, %v390
        %v448 = vsel %vm432, 0, %v397
        %v449 = vsel %vm432, %v289, 0
        %v450 = vsel %vm432, %v296, 0
        %v451 = vsel %vm432, %v303, 0
        %v452 = vsel %vm432, %v310, 0
        %v453 = vsel %vm432, %v317, 0
        %v454 = vsel %vm432, %v324, 0
        %v455 = vsel %vm432, %v331, 0
        %v456 = vsel %vm432, %v338, 0
        %v457 = vsel %vm432, %v345, 0
        %v458 = vsel %vm432, %v352, 0
        %v459 = vsel %vm432, %v359, 0
        %v460 = vsel %vm432, %v366, 0
        %v461 = vsel %vm432, %v373, 0
        %v462 = vsel %vm432, %v380, 0
        %v463 = vsel %vm432, %v387, 0
        %v464 = vsel %vm432, %v394, 0
        %vm465 = vsmask.f32 7424
        %v467 = vshrl.u32 0, 16
        %v469 = vshll.u32 0, 16
        %v471 = vrot.slane %v469, 1
        %v472 = vor.u32 %v467, %v471
        %v473 = vsel %vm465, %v472, %v471
        %v475 = vshrl.u32 %v433, 16
        %v477 = vshll.u32 %v433, 16
        %v479 = vrot.slane %v477, 1
        %v480 = vor.u32 %v475, %v479
        %v482 = vshll.u32 %v449, 16
        %v484 = vrot.slane %v482, 1
        %v485 = vsel %vm465, %v480, %v484
        %v487 = vshrl.u32 %v434, 16
        %v489 = vshll.u32 %v434, 16
        %v491 = vrot.slane %v489, 1
        %v492 = vor.u32 %v487, %v491
        %v494 = vshll.u32 %v450, 16
        %v496 = vrot.slane %v494, 1
        %v497 = vsel %vm465, %v492, %v496
        %v499 = vshrl.u32 %v435, 16
        %v501 = vshll.u32 %v435, 16
        %v503 = vrot.slane %v501, 1
        %v504 = vor.u32 %v499, %v503
        %v506 = vshll.u32 %v451, 16
        %v508 = vrot.slane %v506, 1
        %v509 = vsel %vm465, %v504, %v508
        %v511 = vshrl.u32 %v436, 16
        %v513 = vshll.u32 %v436, 16
        %v515 = vrot.slane %v513, 1
        %v516 = vor.u32 %v511, %v515
        %v518 = vshll.u32 %v452, 16
        %v520 = vrot.slane %v518, 1
        %v521 = vsel %vm465, %v516, %v520
        %v523 = vshrl.u32 %v437, 16
        %v525 = vshll.u32 %v437, 16
        %v527 = vrot.slane %v525, 1
        %v528 = vor.u32 %v523, %v527
        %v530 = vshll.u32 %v453, 16
        %v532 = vrot.slane %v530, 1
        %v533 = vsel %vm465, %v528, %v532
        %v535 = vshrl.u32 %v438, 16
        %v537 = vshll.u32 %v438, 16
        %v539 = vrot.slane %v537, 1
        %v540 = vor.u32 %v535, %v539
        %v542 = vshll.u32 %v454, 16
        %v544 = vrot.slane %v542, 1
        %v545 = vsel %vm465, %v540, %v544
        %v547 = vshrl.u32 %v439, 16
        %v549 = vshll.u32 %v439, 16
        %v551 = vrot.slane %v549, 1
        %v552 = vor.u32 %v547, %v551
        %v554 = vshll.u32 %v455, 16
        %v556 = vrot.slane %v554, 1
        %v557 = vsel %vm465, %v552, %v556
        %v559 = vshrl.u32 %v440, 16
        %v561 = vshll.u32 %v440, 16
        %v563 = vrot.slane %v561, 1
        %v564 = vor.u32 %v559, %v563
        %v566 = vshll.u32 %v456, 16
        %v568 = vrot.slane %v566, 1
        %v569 = vsel %vm465, %v564, %v568
        %v571 = vshrl.u32 %v441, 16
        %v573 = vshll.u32 %v441, 16
        %v575 = vrot.slane %v573, 1
        %v576 = vor.u32 %v571, %v575
        %v578 = vshll.u32 %v457, 16
        %v580 = vrot.slane %v578, 1
        %v581 = vsel %vm465, %v576, %v580
        %v583 = vshrl.u32 %v442, 16
        %v585 = vshll.u32 %v442, 16
        %v587 = vrot.slane %v585, 1
        %v588 = vor.u32 %v583, %v587
        %v590 = vshll.u32 %v458, 16
        %v592 = vrot.slane %v590, 1
        %v593 = vsel %vm465, %v588, %v592
        %v595 = vshrl.u32 %v443, 16
        %v597 = vshll.u32 %v443, 16
        %v599 = vrot.slane %v597, 1
        %v600 = vor.u32 %v595, %v599
        %v602 = vshll.u32 %v459, 16
        %v604 = vrot.slane %v602, 1
        %v605 = vsel %vm465, %v600, %v604
        %v607 = vshrl.u32 %v444, 16
        %v609 = vshll.u32 %v444, 16
        %v611 = vrot.slane %v609, 1
        %v612 = vor.u32 %v607, %v611
        %v614 = vshll.u32 %v460, 16
        %v616 = vrot.slane %v614, 1
        %v617 = vsel %vm465, %v612, %v616
        %v619 = vshrl.u32 %v445, 16
        %v621 = vshll.u32 %v445, 16
        %v623 = vrot.slane %v621, 1
        %v624 = vor.u32 %v619, %v623
        %v626 = vshll.u32 %v461, 16
        %v628 = vrot.slane %v626, 1
        %v629 = vsel %vm465, %v624, %v628
        %v631 = vshrl.u32 %v446, 16
        %v633 = vshll.u32 %v446, 16
        %v635 = vrot.slane %v633, 1
        %v636 = vor.u32 %v631, %v635
        %v638 = vshll.u32 %v462, 16
        %v640 = vrot.slane %v638, 1
        %v641 = vsel %vm465, %v636, %v640
        %v643 = vshrl.u32 %v447, 16
        %v645 = vshll.u32 %v447, 16
        %v647 = vrot.slane %v645, 1
        %v648 = vor.u32 %v643, %v647
        %v650 = vshll.u32 %v463, 16
        %v652 = vrot.slane %v650, 1
        %v653 = vsel %vm465, %v648, %v652
        %vm685 = vcmask 1046528
        %v686 = vrot.slane 0, 1
        %v687 = vsel %vm685, %v686, %v686
        %v688 = vrot.slane %v433, 1
        %v689 = vrot.slane %v449, 1
        %v690 = vsel %vm685, %v688, %v689
        %v691 = vrot.slane %v434, 1
        %v692 = vrot.slane %v450, 1
        %v693 = vsel %vm685, %v691, %v692
        %v694 = vrot.slane %v435, 1
        %v695 = vrot.slane %v451, 1
        %v696 = vsel %vm685, %v694, %v695
        %v697 = vrot.slane %v436, 1
        %v698 = vrot.slane %v452, 1
        %v699 = vsel %vm685, %v697, %v698
        %v700 = vrot.slane %v437, 1
        %v701 = vrot.slane %v453, 1
        %v702 = vsel %vm685, %v700, %v701
        %v703 = vrot.slane %v438, 1
        %v704 = vrot.slane %v454, 1
        %v705 = vsel %vm685, %v703, %v704
        %v706 = vrot.slane %v439, 1
        %v707 = vrot.slane %v455, 1
        %v708 = vsel %vm685, %v706, %v707
        %v709 = vrot.slane %v440, 1
        %v710 = vrot.slane %v456, 1
        %v711 = vsel %vm685, %v709, %v710
        %v712 = vrot.slane %v441, 1
        %v713 = vrot.slane %v457, 1
        %v714 = vsel %vm685, %v712, %v713
        %v715 = vrot.slane %v442, 1
        %v716 = vrot.slane %v458, 1
        %v717 = vsel %vm685, %v715, %v716
        %v718 = vrot.slane %v443, 1
        %v719 = vrot.slane %v459, 1
        %v720 = vsel %vm685, %v718, %v719
        %v721 = vrot.slane %v444, 1
        %v722 = vrot.slane %v460, 1
        %v723 = vsel %vm685, %v721, %v722
        %v724 = vrot.slane %v445, 1
        %v725 = vrot.slane %v461, 1
        %v726 = vsel %vm685, %v724, %v725
        %v727 = vrot.slane %v446, 1
        %v728 = vrot.slane %v462, 1
        %v729 = vsel %vm685, %v727, %v728
        %v730 = vrot.slane %v447, 1
        %v731 = vrot.slane %v463, 1
        %v732 = vsel %vm685, %v730, %v731
        %v734 = vshrl.u32 %v448, 16
        %v736 = vshll.u32 %v448, 16
        %v738 = vrot.slane %v736, 1
        %v739 = vor.u32 %v734, %v738
        %v741 = vshll.u32 %v464, 16
        %v743 = vrot.slane %v741, 1
        %v744 = vsel %vm465, %v739, %v743
        %v747 = vrot.slane %v448, 1
        %v748 = vrot.slane %v464, 1
        %v749 = vsel %vm685, %v747, %v748
        %750 = vrot.lane.b32.xlu0 %v473, 32
        %v751 = vpop.permute.xlu0 %750
        %752 = vrot.lane.b32.xlu0 %v485, 32
        %v753 = vpop.permute.xlu0 %752
        %754 = vrot.lane.b32.xlu0 %v497, 32
        %v755 = vpop.permute.xlu0 %754
        %756 = vrot.lane.b32.xlu0 %v509, 32
        %v757 = vpop.permute.xlu0 %756
        %758 = vrot.lane.b32.xlu0 %v521, 32
        %v759 = vpop.permute.xlu0 %758
        %760 = vrot.lane.b32.xlu0 %v533, 32
        %v761 = vpop.permute.xlu0 %760
        %762 = vrot.lane.b32.xlu0 %v545, 32
        %v763 = vpop.permute.xlu0 %762
        %764 = vrot.lane.b32.xlu0 %v557, 32
        %v765 = vpop.permute.xlu0 %764
        %766 = vrot.lane.b32.xlu0 %v569, 32
        %v767 = vpop.permute.xlu0 %766
        %768 = vrot.lane.b32.xlu0 %v581, 32
        %v769 = vpop.permute.xlu0 %768
        %770 = vrot.lane.b32.xlu0 %v593, 32
        %v771 = vpop.permute.xlu0 %770
        %772 = vrot.lane.b32.xlu0 %v605, 32
        %v773 = vpop.permute.xlu0 %772
        %774 = vrot.lane.b32.xlu0 %v617, 32
        %v775 = vpop.permute.xlu0 %774
        %776 = vrot.lane.b32.xlu0 %v629, 32
        %v777 = vpop.permute.xlu0 %776
        %778 = vrot.lane.b32.xlu0 %v641, 32
        %v779 = vpop.permute.xlu0 %778
        %780 = vrot.lane.b32.xlu0 %v653, 32
        %v781 = vpop.permute.xlu0 %780
        %782 = vrot.lane.b32.xlu0 %v687, 64
        %v783 = vpop.permute.xlu0 %782
        %784 = vrot.lane.b32.xlu0 %v690, 64
        %v785 = vpop.permute.xlu0 %784
        %786 = vrot.lane.b32.xlu0 %v693, 64
        %v787 = vpop.permute.xlu0 %786
        %788 = vrot.lane.b32.xlu0 %v696, 64
        %v789 = vpop.permute.xlu0 %788
        %790 = vrot.lane.b32.xlu0 %v699, 64
        %v791 = vpop.permute.xlu0 %790
        %792 = vrot.lane.b32.xlu0 %v702, 64
        %v793 = vpop.permute.xlu0 %792
        %794 = vrot.lane.b32.xlu0 %v705, 64
        %v795 = vpop.permute.xlu0 %794
        %796 = vrot.lane.b32.xlu0 %v708, 64
        %v797 = vpop.permute.xlu0 %796
        %798 = vrot.lane.b32.xlu0 %v711, 64
        %v799 = vpop.permute.xlu0 %798
        %800 = vrot.lane.b32.xlu0 %v714, 64
        %v801 = vpop.permute.xlu0 %800
        %802 = vrot.lane.b32.xlu0 %v717, 64
        %v803 = vpop.permute.xlu0 %802
        %804 = vrot.lane.b32.xlu0 %v720, 64
        %v805 = vpop.permute.xlu0 %804
        %806 = vrot.lane.b32.xlu0 %v723, 64
        %v807 = vpop.permute.xlu0 %806
        %808 = vrot.lane.b32.xlu0 %v726, 64
        %v809 = vpop.permute.xlu0 %808
        %810 = vrot.lane.b32.xlu0 %v729, 64
        %v811 = vpop.permute.xlu0 %810
        %812 = vrot.lane.b32.xlu0 %v732, 64
        %v813 = vpop.permute.xlu0 %812
        %814 = vrot.lane.b32.xlu0 %v433, 96
        %v815 = vpop.permute.xlu0 %814
        %816 = vrot.lane.b32.xlu0 %v434, 96
        %v817 = vpop.permute.xlu0 %816
        %818 = vrot.lane.b32.xlu0 %v435, 96
        %v819 = vpop.permute.xlu0 %818
        %820 = vrot.lane.b32.xlu0 %v436, 96
        %v821 = vpop.permute.xlu0 %820
        %822 = vrot.lane.b32.xlu0 %v437, 96
        %v823 = vpop.permute.xlu0 %822
        %824 = vrot.lane.b32.xlu0 %v438, 96
        %v825 = vpop.permute.xlu0 %824
        %826 = vrot.lane.b32.xlu0 %v439, 96
        %v827 = vpop.permute.xlu0 %826
        %828 = vrot.lane.b32.xlu0 %v440, 96
        %v829 = vpop.permute.xlu0 %828
        %830 = vrot.lane.b32.xlu0 %v441, 96
        %v831 = vpop.permute.xlu0 %830
        %832 = vrot.lane.b32.xlu0 %v442, 96
        %v833 = vpop.permute.xlu0 %832
        %834 = vrot.lane.b32.xlu0 %v443, 96
        %v835 = vpop.permute.xlu0 %834
        %836 = vrot.lane.b32.xlu0 %v444, 96
        %v837 = vpop.permute.xlu0 %836
        %838 = vrot.lane.b32.xlu0 %v445, 96
        %v839 = vpop.permute.xlu0 %838
        %840 = vrot.lane.b32.xlu0 %v446, 96
        %v841 = vpop.permute.xlu0 %840
        %842 = vrot.lane.b32.xlu0 %v447, 96
        %v843 = vpop.permute.xlu0 %842
        %844 = vrot.lane.b32.xlu0 %v448, 96
        %v845 = vpop.permute.xlu0 %844
        %846 = vrot.lane.b32.xlu0 %v690, 32
        %v847 = vpop.permute.xlu0 %846
        %848 = vrot.lane.b32.xlu0 %v693, 32
        %v849 = vpop.permute.xlu0 %848
        %850 = vrot.lane.b32.xlu0 %v696, 32
        %v851 = vpop.permute.xlu0 %850
        %852 = vrot.lane.b32.xlu0 %v699, 32
        %v853 = vpop.permute.xlu0 %852
        %854 = vrot.lane.b32.xlu0 %v702, 32
        %v855 = vpop.permute.xlu0 %854
        %856 = vrot.lane.b32.xlu0 %v705, 32
        %v857 = vpop.permute.xlu0 %856
        %858 = vrot.lane.b32.xlu0 %v708, 32
        %v859 = vpop.permute.xlu0 %858
        %860 = vrot.lane.b32.xlu0 %v711, 32
        %v861 = vpop.permute.xlu0 %860
        %862 = vrot.lane.b32.xlu0 %v714, 32
        %v863 = vpop.permute.xlu0 %862
        %864 = vrot.lane.b32.xlu0 %v717, 32
        %v865 = vpop.permute.xlu0 %864
        %866 = vrot.lane.b32.xlu0 %v720, 32
        %v867 = vpop.permute.xlu0 %866
        %868 = vrot.lane.b32.xlu0 %v723, 32
        %v869 = vpop.permute.xlu0 %868
        %870 = vrot.lane.b32.xlu0 %v726, 32
        %v871 = vpop.permute.xlu0 %870
        %872 = vrot.lane.b32.xlu0 %v729, 32
        %v873 = vpop.permute.xlu0 %872
        %874 = vrot.lane.b32.xlu0 %v732, 32
        %v875 = vpop.permute.xlu0 %874
        %876 = vrot.lane.b32.xlu0 %v749, 32
        %v877 = vpop.permute.xlu0 %876
        %878 = vrot.lane.b32.xlu0 %v434, 64
        %v879 = vpop.permute.xlu0 %878
        %880 = vrot.lane.b32.xlu0 %v435, 64
        %v881 = vpop.permute.xlu0 %880
        %882 = vrot.lane.b32.xlu0 %v436, 64
        %v883 = vpop.permute.xlu0 %882
        %884 = vrot.lane.b32.xlu0 %v437, 64
        %v885 = vpop.permute.xlu0 %884
        %886 = vrot.lane.b32.xlu0 %v438, 64
        %v887 = vpop.permute.xlu0 %886
        %888 = vrot.lane.b32.xlu0 %v439, 64
        %v889 = vpop.permute.xlu0 %888
        %890 = vrot.lane.b32.xlu0 %v440, 64
        %v891 = vpop.permute.xlu0 %890
        %892 = vrot.lane.b32.xlu0 %v441, 64
        %v893 = vpop.permute.xlu0 %892
        %894 = vrot.lane.b32.xlu0 %v442, 64
        %v895 = vpop.permute.xlu0 %894
        %896 = vrot.lane.b32.xlu0 %v443, 64
        %v897 = vpop.permute.xlu0 %896
        %898 = vrot.lane.b32.xlu0 %v444, 64
        %v899 = vpop.permute.xlu0 %898
        %900 = vrot.lane.b32.xlu0 %v445, 64
        %v901 = vpop.permute.xlu0 %900
        %902 = vrot.lane.b32.xlu0 %v446, 64
        %v903 = vpop.permute.xlu0 %902
        %904 = vrot.lane.b32.xlu0 %v447, 64
        %v905 = vpop.permute.xlu0 %904
        %906 = vrot.lane.b32.xlu0 %v448, 64
        %v907 = vpop.permute.xlu0 %906
        %908 = vrot.lane.b32.xlu0 0, 64
        %v909 = vpop.permute.xlu0 %908
        %910 = vrot.lane.b32.xlu0 %v497, 96
        %v911 = vpop.permute.xlu0 %910
        %912 = vrot.lane.b32.xlu0 %v509, 96
        %v913 = vpop.permute.xlu0 %912
        %914 = vrot.lane.b32.xlu0 %v521, 96
        %v915 = vpop.permute.xlu0 %914
        %916 = vrot.lane.b32.xlu0 %v533, 96
        %v917 = vpop.permute.xlu0 %916
        %918 = vrot.lane.b32.xlu0 %v545, 96
        %v919 = vpop.permute.xlu0 %918
        %920 = vrot.lane.b32.xlu0 %v557, 96
        %v921 = vpop.permute.xlu0 %920
        %922 = vrot.lane.b32.xlu0 %v569, 96
        %v923 = vpop.permute.xlu0 %922
        %924 = vrot.lane.b32.xlu0 %v581, 96
        %v925 = vpop.permute.xlu0 %924
        %926 = vrot.lane.b32.xlu0 %v593, 96
        %v927 = vpop.permute.xlu0 %926
        %928 = vrot.lane.b32.xlu0 %v605, 96
        %v929 = vpop.permute.xlu0 %928
        %930 = vrot.lane.b32.xlu0 %v617, 96
        %v931 = vpop.permute.xlu0 %930
        %932 = vrot.lane.b32.xlu0 %v629, 96
        %v933 = vpop.permute.xlu0 %932
        %934 = vrot.lane.b32.xlu0 %v641, 96
        %v935 = vpop.permute.xlu0 %934
        %936 = vrot.lane.b32.xlu0 %v653, 96
        %v937 = vpop.permute.xlu0 %936
        %938 = vrot.lane.b32.xlu0 %v744, 96
        %v939 = vpop.permute.xlu0 %938
        %940 = vrot.lane.b32.xlu0 %v473, 96
        %v941 = vpop.permute.xlu0 %940
        %vm942 = vcmask 261120
        %v944 = vsel %vm942, 0, %v751
        %v946 = vsel %vm942, %v433, %v753
        %v948 = vsel %vm942, %v434, %v755
        %v950 = vsel %vm942, %v435, %v757
        %v952 = vsel %vm942, %v436, %v759
        %v954 = vsel %vm942, %v437, %v761
        %v956 = vsel %vm942, %v438, %v763
        %v958 = vsel %vm942, %v439, %v765
        %v960 = vsel %vm942, %v440, %v767
        %v962 = vsel %vm942, %v441, %v769
        %v964 = vsel %vm942, %v442, %v771
        %v966 = vsel %vm942, %v443, %v773
        %v968 = vsel %vm942, %v444, %v775
        %v970 = vsel %vm942, %v445, %v777
        %v972 = vsel %vm942, %v446, %v779
        %v974 = vsel %vm942, %v447, %v781
        %vm975 = vcmask 523264
        %v977 = vsel %vm975, %v944, %v783
        %v979 = vsel %vm975, %v946, %v785
        %v981 = vsel %vm975, %v948, %v787
        %v983 = vsel %vm975, %v950, %v789
        %v985 = vsel %vm975, %v952, %v791
        %v987 = vsel %vm975, %v954, %v793
        %v989 = vsel %vm975, %v956, %v795
        %v991 = vsel %vm975, %v958, %v797
        %v993 = vsel %vm975, %v960, %v799
        %v995 = vsel %vm975, %v962, %v801
        %v997 = vsel %vm975, %v964, %v803
        %v999 = vsel %vm975, %v966, %v805
        %v1001 = vsel %vm975, %v968, %v807
        %v1003 = vsel %vm975, %v970, %v809
        %v1005 = vsel %vm975, %v972, %v811
        %v1007 = vsel %vm975, %v974, %v813
        %vm1008 = vcmask 785408
        %v1010 = vsel %vm1008, %v977, %v815
        %v1013 = vsel %vm1008, %v979, %v817
        %v1016 = vsel %vm1008, %v981, %v819
        %v1019 = vsel %vm1008, %v983, %v821
        %v1022 = vsel %vm1008, %v985, %v823
        %v1025 = vsel %vm1008, %v987, %v825
        %v1028 = vsel %vm1008, %v989, %v827
        %v1031 = vsel %vm1008, %v991, %v829
        %v1034 = vsel %vm1008, %v993, %v831
        %v1037 = vsel %vm1008, %v995, %v833
        %v1040 = vsel %vm1008, %v997, %v835
        %v1043 = vsel %vm1008, %v999, %v837
        %v1046 = vsel %vm1008, %v1001, %v839
        %v1049 = vsel %vm1008, %v1003, %v841
        %v1052 = vsel %vm1008, %v1005, %v843
        %v1055 = vsel %vm1008, %v1007, %v845
        %v1059 = vsel %vm942, %v485, %v847
        %v1062 = vsel %vm942, %v497, %v849
        %v1065 = vsel %vm942, %v509, %v851
        %v1068 = vsel %vm942, %v521, %v853
        %v1071 = vsel %vm942, %v533, %v855
        %v1074 = vsel %vm942, %v545, %v857
        %v1077 = vsel %vm942, %v557, %v859
        %v1080 = vsel %vm942, %v569, %v861
        %v1083 = vsel %vm942, %v581, %v863
        %v1086 = vsel %vm942, %v593, %v865
        %v1089 = vsel %vm942, %v605, %v867
        %v1092 = vsel %vm942, %v617, %v869
        %v1095 = vsel %vm942, %v629, %v871
        %v1098 = vsel %vm942, %v641, %v873
        %v1101 = vsel %vm942, %v653, %v875
        %v1104 = vsel %vm942, %v744, %v877
        %v1106 = vsel %vm975, %v1059, %v879
        %v1108 = vsel %vm975, %v1062, %v881
        %v1110 = vsel %vm975, %v1065, %v883
        %v1112 = vsel %vm975, %v1068, %v885
        %v1114 = vsel %vm975, %v1071, %v887
        %v1116 = vsel %vm975, %v1074, %v889
        %v1118 = vsel %vm975, %v1077, %v891
        %v1120 = vsel %vm975, %v1080, %v893
        %v1122 = vsel %vm975, %v1083, %v895
        %v1124 = vsel %vm975, %v1086, %v897
        %v1126 = vsel %vm975, %v1089, %v899
        %v1128 = vsel %vm975, %v1092, %v901
        %v1130 = vsel %vm975, %v1095, %v903
        %v1132 = vsel %vm975, %v1098, %v905
        %v1134 = vsel %vm975, %v1101, %v907
        %v1136 = vsel %vm975, %v1104, %v909
        %v1138 = vsel %vm1008, %v1106, %v911
        %v1141 = vsel %vm1008, %v1108, %v913
        %v1144 = vsel %vm1008, %v1110, %v915
        %v1147 = vsel %vm1008, %v1112, %v917
        %v1150 = vsel %vm1008, %v1114, %v919
        %v1153 = vsel %vm1008, %v1116, %v921
        %v1156 = vsel %vm1008, %v1118, %v923
        %v1159 = vsel %vm1008, %v1120, %v925
        %v1162 = vsel %vm1008, %v1122, %v927
        %v1165 = vsel %vm1008, %v1124, %v929
        %v1168 = vsel %vm1008, %v1126, %v931
        %v1171 = vsel %vm1008, %v1128, %v933
        %v1174 = vsel %vm1008, %v1130, %v935
        %v1177 = vsel %vm1008, %v1132, %v937
        %v1180 = vsel %vm1008, %v1134, %v939
        %v1183 = vsel %vm1008, %v1136, %v941
        %v1185 = vld [vmem:[%s2] sm:$0xf]
        %v1186 = vld [vmem:[%s2 + $0x4] sm:$0xf]
        %v1187 = vld [vmem:[%s2 + $0x8] sm:$0xf]
        %v1188 = vld [vmem:[%s2 + $0xc] sm:$0xf]
        %v1189 = vld [vmem:[%s2 + $0x10] sm:$0xf]
        %v1190 = vld [vmem:[%s2 + $0x14] sm:$0xf]
        %v1191 = vld [vmem:[%s2 + $0x18] sm:$0xf]
        %v1192 = vld [vmem:[%s2 + $0x1c] sm:$0xf]
        %v1193 = vld [vmem:[%s2 + $0x20] sm:$0xf]
        %v1194 = vld [vmem:[%s2 + $0x24] sm:$0xf]
        %v1195 = vld [vmem:[%s2 + $0x28] sm:$0xf]
        %v1196 = vld [vmem:[%s2 + $0x2c] sm:$0xf]
        %v1197 = vld [vmem:[%s2 + $0x30] sm:$0xf]
        %v1198 = vld [vmem:[%s2 + $0x34] sm:$0xf]
        %v1199 = vld [vmem:[%s2 + $0x38] sm:$0xf]
        %v1200 = vld [vmem:[%s2 + $0x3c] sm:$0xf]
        %v1201 = vld [vmem:[%s2 + $0x40] sm:$0xf]
        %v1202 = vld [vmem:[%s2 + $0x44] sm:$0xf]
        %v1203 = vld [vmem:[%s2 + $0x48] sm:$0xf]
        %v1204 = vld [vmem:[%s2 + $0x4c] sm:$0xf]
        %v1205 = vld [vmem:[%s2 + $0x50] sm:$0xf]
        %v1206 = vld [vmem:[%s2 + $0x54] sm:$0xf]
        %v1207 = vld [vmem:[%s2 + $0x58] sm:$0xf]
        %v1208 = vld [vmem:[%s2 + $0x5c] sm:$0xf]
        %v1209 = vld [vmem:[%s2 + $0x60] sm:$0xf]
        %v1210 = vld [vmem:[%s2 + $0x64] sm:$0xf]
        %v1211 = vld [vmem:[%s2 + $0x68] sm:$0xf]
        %v1212 = vld [vmem:[%s2 + $0x6c] sm:$0xf]
        %v1213 = vld [vmem:[%s2 + $0x70] sm:$0xf]
        %v1214 = vld [vmem:[%s2 + $0x74] sm:$0xf]
        %v1215 = vld [vmem:[%s2 + $0x78] sm:$0xf]
        %v1216 = vld [vmem:[%s2 + $0x7c] sm:$0xf]
        %v1217 = vld [vmem:[%s2 + $0x80] sm:$0xf]
        %v1218 = vld [vmem:[%s2 + $0x84] sm:$0xf]
        %v1219 = vld [vmem:[%s2 + $0x88] sm:$0xf]
        %v1220 = vld [vmem:[%s2 + $0x8c] sm:$0xf]
        %v1257 = vunpack.c.l.b16 %v1185
        %v1258 = vunpack.c.l.b16 %v1186
        %v1259 = vunpack.c.l.b16 %v1187
        %v1260 = vunpack.c.l.b16 %v1188
        %v1261 = vunpack.c.l.b16 %v1189
        %v1262 = vunpack.c.l.b16 %v1190
        %v1263 = vunpack.c.l.b16 %v1191
        %v1264 = vunpack.c.l.b16 %v1192
        %v1265 = vunpack.c.l.b16 %v1193
        %v1266 = vunpack.c.l.b16 %v1194
        %v1267 = vunpack.c.l.b16 %v1195
        %v1268 = vunpack.c.l.b16 %v1196
        %v1269 = vunpack.c.l.b16 %v1197
        %v1270 = vunpack.c.l.b16 %v1198
        %v1271 = vunpack.c.l.b16 %v1199
        %v1272 = vunpack.c.l.b16 %v1200
        %v1273 = vunpack.c.l.b16 %v1201
        %v1274 = vunpack.c.l.b16 %v1202
        %v1275 = vunpack.c.l.b16 %v1203
        %v1276 = vunpack.c.l.b16 %v1204
        %v1277 = vunpack.c.l.b16 %v1205
        %v1278 = vunpack.c.l.b16 %v1206
        %v1279 = vunpack.c.l.b16 %v1207
        %v1280 = vunpack.c.l.b16 %v1208
        %v1281 = vunpack.c.l.b16 %v1209
        %v1282 = vunpack.c.l.b16 %v1210
        %v1283 = vunpack.c.l.b16 %v1211
        %v1284 = vunpack.c.l.b16 %v1212
        %v1285 = vunpack.c.l.b16 %v1213
        %v1286 = vunpack.c.l.b16 %v1214
        %v1287 = vunpack.c.l.b16 %v1215
        %v1288 = vunpack.c.l.b16 %v1216
        %v1289 = vunpack.c.l.b16 %v1217
        %v1290 = vunpack.c.l.b16 %v1218
        %v1291 = vunpack.c.l.b16 %v1219
        %v1292 = vunpack.c.l.b16 %v1220
        %v1293 = vpack.c.b16 %v1258, %v1257
        %v1294 = vpack.c.b16 %v1260, %v1259
        %v1295 = vpack.c.b16 %v1262, %v1261
        %v1296 = vpack.c.b16 %v1264, %v1263
        %v1297 = vpack.c.b16 %v1266, %v1265
        %v1298 = vpack.c.b16 %v1268, %v1267
        %v1299 = vpack.c.b16 %v1270, %v1269
        %v1300 = vpack.c.b16 %v1272, %v1271
        %v1301 = vpack.c.b16 %v1274, %v1273
        %v1302 = vpack.c.b16 %v1276, %v1275
        %v1303 = vpack.c.b16 %v1278, %v1277
        %v1304 = vpack.c.b16 %v1280, %v1279
        %v1305 = vpack.c.b16 %v1282, %v1281
        %v1306 = vpack.c.b16 %v1284, %v1283
        %v1307 = vpack.c.b16 %v1286, %v1285
        %v1308 = vpack.c.b16 %v1288, %v1287
        %v1309 = vpack.c.b16 %v1290, %v1289
        %v1310 = vpack.c.b16 %v1292, %v1291
        %v1330 = vsel %vm942, %v693, 0
        %v1333 = vsel %vm942, %v696, 0
        %v1336 = vsel %vm942, %v699, 0
        %v1339 = vsel %vm942, %v702, 0
        %v1342 = vsel %vm942, %v705, 0
        %v1345 = vsel %vm942, %v708, 0
        %v1348 = vsel %vm942, %v711, 0
        %v1351 = vsel %vm942, %v714, 0
        %v1354 = vsel %vm942, %v717, 0
        %v1357 = vsel %vm942, %v720, 0
        %v1360 = vsel %vm942, %v723, 0
        %v1363 = vsel %vm942, %v726, 0
        %v1366 = vsel %vm942, %v729, 0
        %v1369 = vsel %vm942, %v732, 0
        %v1372 = vsel %vm942, %v749, 0
        %v1375 = vsel %vm942, %v687, 0
        %1377 = vmatprep.subr.bf16.mxu0 0
        %1378 = vmatpush1.bf16.msra.mxu0 %v1293
        %1379 = vmatprep.subr.bf16.mxu0 0
        %1380 = vmatpush1.bf16.msra.mxu0 %v1294
        %1381 = vmatprep.subr.bf16.mxu0 0
        %1382 = vmatpush1.bf16.msra.mxu0 %v1295
        %1383 = vmatprep.subr.bf16.mxu0 0
        %1384 = vmatpush1.bf16.msra.mxu0 %v1296
        %1385 = vmatprep.subr.bf16.mxu0 0
        %1386 = vmatpush1.bf16.msra.mxu0 %v1297
        %1387 = vmatprep.subr.bf16.mxu0 0
        %1388 = vmatpush1.bf16.msra.mxu0 %v1298
        %1389 = vmatprep.subr.bf16.mxu0 0
        %1390 = vmatpush1.bf16.msra.mxu0 %v1299
        %1391 = vmatprep.subr.bf16.mxu0 0
        %1392 = vmatpush1.bf16.msra.mxu0 %v1300
        %1393 = vmatprep.subr.bf16.mxu0 0
        %1394 = vmatpush1.bf16.msra.mxu0 %v1301
        %1395 = vmatprep.subr.bf16.mxu0 0
        %1396 = vmatpush1.bf16.msra.mxu0 %v1302
        %1397 = vmatprep.subr.bf16.mxu0 0
        %1398 = vmatpush1.bf16.msra.mxu0 %v1303
        %1399 = vmatprep.subr.bf16.mxu0 0
        %1400 = vmatpush1.bf16.msra.mxu0 %v1304
        %1401 = vmatprep.subr.bf16.mxu0 0
        %1402 = vmatpush1.bf16.msra.mxu0 %v1305
        %1403 = vmatprep.subr.bf16.mxu0 0
        %1404 = vmatpush1.bf16.msra.mxu0 %v1306
        %1405 = vmatprep.subr.bf16.mxu0 0
        %1406 = vmatpush1.bf16.msra.mxu0 %v1307
        %1407 = vmatprep.subr.bf16.mxu0 0
        %1408 = vmatpush1.bf16.msra.mxu0 %v1308
        %1409 = vmatprep.mubr.bf16.mxu0 %v1138
        %1410 = vmatmul.mubr.bf16.gmra.mrb[0].mxu0 %v1010
        %v1411 = vpop.f32.mrb[0].mxu0
        %v1412 = vadd.f32 0.0, %v1411
        %v1413 = vpop.f32.mrb[0].mxu0
        %v1414 = vpop.f32.mrb[0].mxu0
        %v1415 = vadd.f32 0.0, %v1414
        %v1416 = vpop.f32.mrb[0].mxu0
        %1417 = vmatprep.mubr.bf16.mxu0 %v1141
        %1418 = vmatmul.mubr.bf16.gmra.mrb[0].mxu0 %v1013
        %v1419 = vpop.f32.mrb[0].mxu0
        %v1420 = vadd.f32 0.0, %v1419
        %v1421 = vpop.f32.mrb[0].mxu0
        %v1422 = vpop.f32.mrb[0].mxu0
        %v1423 = vadd.f32 0.0, %v1422
        %v1424 = vpop.f32.mrb[0].mxu0
        %1425 = vmatprep.mubr.bf16.mxu0 %v1144
        %1426 = vmatmul.mubr.bf16.gmra.mrb[0].mxu0 %v1016
        %v1427 = vpop.f32.mrb[0].mxu0
        %v1428 = vadd.f32 0.0, %v1427
        %v1429 = vpop.f32.mrb[0].mxu0
        %v1430 = vpop.f32.mrb[0].mxu0
        %v1431 = vadd.f32 0.0, %v1430
        %v1432 = vpop.f32.mrb[0].mxu0
        %1433 = vmatprep.mubr.bf16.mxu0 %v1147
        %1434 = vmatmul.mubr.bf16.gmra.mrb[0].mxu0 %v1019
        %v1435 = vpop.f32.mrb[0].mxu0
        %v1436 = vadd.f32 0.0, %v1435
        %v1437 = vpop.f32.mrb[0].mxu0
        %v1438 = vpop.f32.mrb[0].mxu0
        %v1439 = vadd.f32 0.0, %v1438
        %v1440 = vpop.f32.mrb[0].mxu0
        %1441 = vmatprep.mubr.bf16.mxu0 %v1150
        %1442 = vmatmul.mubr.bf16.gmra.mrb[0].mxu0 %v1022
        %v1443 = vpop.f32.mrb[0].mxu0
        %v1444 = vadd.f32 0.0, %v1443
        %v1445 = vpop.f32.mrb[0].mxu0
        %v1446 = vpop.f32.mrb[0].mxu0
        %v1447 = vadd.f32 0.0, %v1446
        %v1448 = vpop.f32.mrb[0].mxu0
        %1449 = vmatprep.mubr.bf16.mxu0 %v1153
        %1450 = vmatmul.mubr.bf16.gmra.mrb[0].mxu0 %v1025
        %v1451 = vpop.f32.mrb[0].mxu0
        %v1452 = vadd.f32 0.0, %v1451
        %v1453 = vpop.f32.mrb[0].mxu0
        %v1454 = vpop.f32.mrb[0].mxu0
        %v1455 = vadd.f32 0.0, %v1454
        %v1456 = vpop.f32.mrb[0].mxu0
        %1457 = vmatprep.mubr.bf16.mxu0 %v1156
        %1458 = vmatmul.mubr.bf16.gmra.mrb[0].mxu0 %v1028
        %v1459 = vpop.f32.mrb[0].mxu0
        %v1460 = vadd.f32 0.0, %v1459
        %v1461 = vpop.f32.mrb[0].mxu0
        %v1462 = vpop.f32.mrb[0].mxu0
        %v1463 = vadd.f32 0.0, %v1462
        %v1464 = vpop.f32.mrb[0].mxu0
        %1465 = vmatprep.mubr.bf16.mxu0 %v1159
        %1466 = vmatmul.mubr.bf16.gmra.mrb[0].mxu0 %v1031
        %v1467 = vpop.f32.mrb[0].mxu0
        %v1468 = vadd.f32 0.0, %v1467
        %v1469 = vpop.f32.mrb[0].mxu0
        %v1470 = vpop.f32.mrb[0].mxu0
        %v1471 = vadd.f32 0.0, %v1470
        %v1472 = vpop.f32.mrb[0].mxu0
        %1473 = vmatprep.mubr.bf16.mxu0 %v1162
        %1474 = vmatmul.mubr.bf16.gmra.mrb[0].mxu0 %v1034
        %v1475 = vpop.f32.mrb[0].mxu0
        %v1476 = vadd.f32 0.0, %v1475
        %v1477 = vpop.f32.mrb[0].mxu0
        %v1478 = vpop.f32.mrb[0].mxu0
        %v1479 = vadd.f32 0.0, %v1478
        %v1480 = vpop.f32.mrb[0].mxu0
        %1481 = vmatprep.mubr.bf16.mxu0 %v1165
        %1482 = vmatmul.mubr.bf16.gmra.mrb[0].mxu0 %v1037
        %v1483 = vpop.f32.mrb[0].mxu0
        %v1484 = vadd.f32 0.0, %v1483
        %v1485 = vpop.f32.mrb[0].mxu0
        %v1486 = vpop.f32.mrb[0].mxu0
        %v1487 = vadd.f32 0.0, %v1486
        %v1488 = vpop.f32.mrb[0].mxu0
        %1489 = vmatprep.mubr.bf16.mxu0 %v1168
        %1490 = vmatmul.mubr.bf16.gmra.mrb[0].mxu0 %v1040
        %v1491 = vpop.f32.mrb[0].mxu0
        %v1492 = vadd.f32 0.0, %v1491
        %v1493 = vpop.f32.mrb[0].mxu0
        %v1494 = vpop.f32.mrb[0].mxu0
        %v1495 = vadd.f32 0.0, %v1494
        %v1496 = vpop.f32.mrb[0].mxu0
        %1497 = vmatprep.mubr.bf16.mxu0 %v1171
        %1498 = vmatmul.mubr.bf16.gmra.mrb[0].mxu0 %v1043
        %v1499 = vpop.f32.mrb[0].mxu0
        %v1500 = vadd.f32 0.0, %v1499
        %v1501 = vpop.f32.mrb[0].mxu0
        %v1502 = vpop.f32.mrb[0].mxu0
        %v1503 = vadd.f32 0.0, %v1502
        %v1504 = vpop.f32.mrb[0].mxu0
        %1505 = vmatprep.mubr.bf16.mxu0 %v1174
        %1506 = vmatmul.mubr.bf16.gmra.mrb[0].mxu0 %v1046
        %v1507 = vpop.f32.mrb[0].mxu0
        %v1508 = vadd.f32 0.0, %v1507
        %v1509 = vpop.f32.mrb[0].mxu0
        %v1510 = vpop.f32.mrb[0].mxu0
        %v1511 = vadd.f32 0.0, %v1510
        %v1512 = vpop.f32.mrb[0].mxu0
        %1513 = vmatprep.mubr.bf16.mxu0 %v1177
        %1514 = vmatmul.mubr.bf16.gmra.mrb[0].mxu0 %v1049
        %v1515 = vpop.f32.mrb[0].mxu0
        %v1516 = vadd.f32 0.0, %v1515
        %v1517 = vpop.f32.mrb[0].mxu0
        %v1518 = vpop.f32.mrb[0].mxu0
        %v1519 = vadd.f32 0.0, %v1518
        %v1520 = vpop.f32.mrb[0].mxu0
        %1521 = vmatprep.mubr.bf16.mxu0 %v1180
        %1522 = vmatmul.mubr.bf16.gmra.mrb[0].mxu0 %v1052
        %v1523 = vpop.f32.mrb[0].mxu0
        %v1524 = vadd.f32 0.0, %v1523
        %v1525 = vpop.f32.mrb[0].mxu0
        %v1526 = vpop.f32.mrb[0].mxu0
        %v1527 = vadd.f32 0.0, %v1526
        %v1528 = vpop.f32.mrb[0].mxu0
        %1529 = vmatprep.mubr.bf16.mxu0 %v1183
        %1530 = vmatmul.mubr.bf16.gmra.mrb[0].mxu0 %v1055
        %v1531 = vpop.f32.mrb[0].mxu0
        %v1532 = vadd.f32 0.0, %v1531
        %v1533 = vpop.f32.mrb[0].mxu0
        %v1534 = vpop.f32.mrb[0].mxu0
        %v1535 = vadd.f32 0.0, %v1534
        %v1536 = vpop.f32.mrb[0].mxu0
        %1537 = vdwg.mxu0
        %1538 = vmatprep.subr.bf16.mxu0 0
        %1539 = vmatpush1.bf16.msra.mxu0 %v1309
        %1540 = vmatprep.subr.bf16.mxu0 0
        %1541 = vmatpush1.bf16.msra.mxu0 %v1310
        %1542 = vmatprep.subr.bf16.mxu0 0
        %1543 = vmatpush1.bf16.msra.mxu0 0
        %1544 = vmatprep.subr.bf16.mxu0 0
        %1545 = vmatpush1.bf16.msra.mxu0 0
        %1546 = vmatprep.subr.bf16.mxu0 0
        %1547 = vmatpush1.bf16.msra.mxu0 0
        %1548 = vmatprep.subr.bf16.mxu0 0
        %1549 = vmatpush1.bf16.msra.mxu0 0
        %1550 = vmatprep.subr.bf16.mxu0 0
        %1551 = vmatpush1.bf16.msra.mxu0 0
        %1552 = vmatprep.subr.bf16.mxu0 0
        %1553 = vmatpush1.bf16.msra.mxu0 0
        %1554 = vmatprep.subr.bf16.mxu0 0
        %1555 = vmatpush1.bf16.msra.mxu0 0
        %1556 = vmatprep.subr.bf16.mxu0 0
        %1557 = vmatpush1.bf16.msra.mxu0 0
        %1558 = vmatprep.subr.bf16.mxu0 0
        %1559 = vmatpush1.bf16.msra.mxu0 0
        %1560 = vmatprep.subr.bf16.mxu0 0
        %1561 = vmatpush1.bf16.msra.mxu0 0
        %1562 = vmatprep.subr.bf16.mxu0 0
        %1563 = vmatpush1.bf16.msra.mxu0 0
        %1564 = vmatprep.subr.bf16.mxu0 0
        %1565 = vmatpush1.bf16.msra.mxu0 0
        %1566 = vmatprep.subr.bf16.mxu0 0
        %1567 = vmatpush1.bf16.msra.mxu0 0
        %1568 = vmatprep.subr.bf16.mxu0 0
        %1569 = vmatpush1.bf16.msra.mxu0 0
        %1570 = vmatprep.mubr.bf16.mxu0 0
        %1571 = vmatmul.mubr.bf16.gmra.mrb[0].mxu0 %v1330
        %v1572 = vpop.f32.mrb[0].mxu0
        %v1573 = vadd.f32 %v1412, %v1572
        %v1574 = vpop.f32.mrb[0].mxu0
        %v1575 = vpop.f32.mrb[0].mxu0
        %v1576 = vadd.f32 %v1415, %v1575
        %v1577 = vpop.f32.mrb[0].mxu0
        %1578 = vmatprep.mubr.bf16.mxu0 0
        %1579 = vmatmul.mubr.bf16.gmra.mrb[0].mxu0 %v1333
        %v1580 = vpop.f32.mrb[0].mxu0
        %v1581 = vadd.f32 %v1420, %v1580
        %v1582 = vpop.f32.mrb[0].mxu0
        %v1583 = vpop.f32.mrb[0].mxu0
        %v1584 = vadd.f32 %v1423, %v1583
        %v1585 = vpop.f32.mrb[0].mxu0
        %1586 = vmatprep.mubr.bf16.mxu0 0
        %1587 = vmatmul.mubr.bf16.gmra.mrb[0].mxu0 %v1336
        %v1588 = vpop.f32.mrb[0].mxu0
        %v1589 = vadd.f32 %v1428, %v1588
        %v1590 = vpop.f32.mrb[0].mxu0
        %v1591 = vpop.f32.mrb[0].mxu0
        %v1592 = vadd.f32 %v1431, %v1591
        %v1593 = vpop.f32.mrb[0].mxu0
        %1594 = vmatprep.mubr.bf16.mxu0 0
        %1595 = vmatmul.mubr.bf16.gmra.mrb[0].mxu0 %v1339
        %v1596 = vpop.f32.mrb[0].mxu0
        %v1597 = vadd.f32 %v1436, %v1596
        %v1598 = vpop.f32.mrb[0].mxu0
        %v1599 = vpop.f32.mrb[0].mxu0
        %v1600 = vadd.f32 %v1439, %v1599
        %v1601 = vpop.f32.mrb[0].mxu0
        %1602 = vmatprep.mubr.bf16.mxu0 0
        %1603 = vmatmul.mubr.bf16.gmra.mrb[0].mxu0 %v1342
        %v1604 = vpop.f32.mrb[0].mxu0
        %v1605 = vadd.f32 %v1444, %v1604
        %v1606 = vpop.f32.mrb[0].mxu0
        %v1607 = vpop.f32.mrb[0].mxu0
        %v1608 = vadd.f32 %v1447, %v1607
        %v1609 = vpop.f32.mrb[0].mxu0
        %1610 = vmatprep.mubr.bf16.mxu0 0
        %1611 = vmatmul.mubr.bf16.gmra.mrb[0].mxu0 %v1345
        %v1612 = vpop.f32.mrb[0].mxu0
        %v1613 = vadd.f32 %v1452, %v1612
        %v1614 = vpop.f32.mrb[0].mxu0
        %v1615 = vpop.f32.mrb[0].mxu0
        %v1616 = vadd.f32 %v1455, %v1615
        %v1617 = vpop.f32.mrb[0].mxu0
        %1618 = vmatprep.mubr.bf16.mxu0 0
        %1619 = vmatmul.mubr.bf16.gmra.mrb[0].mxu0 %v1348
        %v1620 = vpop.f32.mrb[0].mxu0
        %v1621 = vadd.f32 %v1460, %v1620
        %v1622 = vpop.f32.mrb[0].mxu0
        %v1623 = vpop.f32.mrb[0].mxu0
        %v1624 = vadd.f32 %v1463, %v1623
        %v1625 = vpop.f32.mrb[0].mxu0
        %1626 = vmatprep.mubr.bf16.mxu0 0
        %1627 = vmatmul.mubr.bf16.gmra.mrb[0].mxu0 %v1351
        %v1628 = vpop.f32.mrb[0].mxu0
        %v1629 = vadd.f32 %v1468, %v1628
        %v1630 = vpop.f32.mrb[0].mxu0
        %v1631 = vpop.f32.mrb[0].mxu0
        %v1632 = vadd.f32 %v1471, %v1631
        %v1633 = vpop.f32.mrb[0].mxu0
        %1634 = vmatprep.mubr.bf16.mxu0 0
        %1635 = vmatmul.mubr.bf16.gmra.mrb[0].mxu0 %v1354
        %v1636 = vpop.f32.mrb[0].mxu0
        %v1637 = vadd.f32 %v1476, %v1636
        %v1638 = vpop.f32.mrb[0].mxu0
        %v1639 = vpop.f32.mrb[0].mxu0
        %v1640 = vadd.f32 %v1479, %v1639
        %v1641 = vpop.f32.mrb[0].mxu0
        %1642 = vmatprep.mubr.bf16.mxu0 0
        %1643 = vmatmul.mubr.bf16.gmra.mrb[0].mxu0 %v1357
        %v1644 = vpop.f32.mrb[0].mxu0
        %v1645 = vadd.f32 %v1484, %v1644
        %v1646 = vpop.f32.mrb[0].mxu0
        %v1647 = vpop.f32.mrb[0].mxu0
        %v1648 = vadd.f32 %v1487, %v1647
        %v1649 = vpop.f32.mrb[0].mxu0
        %1650 = vmatprep.mubr.bf16.mxu0 0
        %1651 = vmatmul.mubr.bf16.gmra.mrb[0].mxu0 %v1360
        %v1652 = vpop.f32.mrb[0].mxu0
        %v1653 = vadd.f32 %v1492, %v1652
        %v1654 = vpop.f32.mrb[0].mxu0
        %v1655 = vpop.f32.mrb[0].mxu0
        %v1656 = vadd.f32 %v1495, %v1655
        %v1657 = vpop.f32.mrb[0].mxu0
        %1658 = vmatprep.mubr.bf16.mxu0 0
        %1659 = vmatmul.mubr.bf16.gmra.mrb[0].mxu0 %v1363
        %v1660 = vpop.f32.mrb[0].mxu0
        %v1661 = vadd.f32 %v1500, %v1660
        %v1662 = vpop.f32.mrb[0].mxu0
        %v1663 = vpop.f32.mrb[0].mxu0
        %v1664 = vadd.f32 %v1503, %v1663
        %v1665 = vpop.f32.mrb[0].mxu0
        %1666 = vmatprep.mubr.bf16.mxu0 0
        %1667 = vmatmul.mubr.bf16.gmra.mrb[0].mxu0 %v1366
        %v1668 = vpop.f32.mrb[0].mxu0
        %v1669 = vadd.f32 %v1508, %v1668
        %v1670 = vpop.f32.mrb[0].mxu0
        %v1671 = vpop.f32.mrb[0].mxu0
        %v1672 = vadd.f32 %v1511, %v1671
        %v1673 = vpop.f32.mrb[0].mxu0
        %1674 = vmatprep.mubr.bf16.mxu0 0
        %1675 = vmatmul.mubr.bf16.gmra.mrb[0].mxu0 %v1369
        %v1676 = vpop.f32.mrb[0].mxu0
        %v1677 = vadd.f32 %v1516, %v1676
        %v1678 = vpop.f32.mrb[0].mxu0
        %v1679 = vpop.f32.mrb[0].mxu0
        %v1680 = vadd.f32 %v1519, %v1679
        %v1681 = vpop.f32.mrb[0].mxu0
        %1682 = vmatprep.mubr.bf16.mxu0 0
        %1683 = vmatmul.mubr.bf16.gmra.mrb[0].mxu0 %v1372
        %v1684 = vpop.f32.mrb[0].mxu0
        %v1685 = vadd.f32 %v1524, %v1684
        %v1686 = vpop.f32.mrb[0].mxu0
        %v1687 = vpop.f32.mrb[0].mxu0
        %v1688 = vadd.f32 %v1527, %v1687
        %v1689 = vpop.f32.mrb[0].mxu0
        %1690 = vmatprep.mubr.bf16.mxu0 0
        %1691 = vmatmul.mubr.bf16.gmra.mrb[0].mxu0 %v1375
        %v1692 = vpop.f32.mrb[0].mxu0
        %v1693 = vadd.f32 %v1532, %v1692
        %v1694 = vpop.f32.mrb[0].mxu0
        %v1695 = vpop.f32.mrb[0].mxu0
        %v1696 = vadd.f32 %v1535, %v1695
        %v1697 = vpop.f32.mrb[0].mxu0
        %1698 = vdwg.mxu0
        %s1699 = sld [smem:[#allocation2]]
        %vm1700 = vcmp.ge.f32.partialorder %v1573, 0.0
        %vm1701 = vcmp.ge.f32.partialorder %v1576, 0.0
        %vm1702 = vcmp.ge.f32.partialorder %v1581, 0.0
        %vm1703 = vcmp.ge.f32.partialorder %v1584, 0.0
        %vm1704 = vcmp.ge.f32.partialorder %v1589, 0.0
        %vm1705 = vcmp.ge.f32.partialorder %v1592, 0.0
        %vm1706 = vcmp.ge.f32.partialorder %v1597, 0.0
        %vm1707 = vcmp.ge.f32.partialorder %v1600, 0.0
        %vm1708 = vcmp.ge.f32.partialorder %v1605, 0.0
        %vm1709 = vcmp.ge.f32.partialorder %v1608, 0.0
        %vm1710 = vcmp.ge.f32.partialorder %v1613, 0.0
        %vm1711 = vcmp.ge.f32.partialorder %v1616, 0.0
        %vm1712 = vcmp.ge.f32.partialorder %v1621, 0.0
        %vm1713 = vcmp.ge.f32.partialorder %v1624, 0.0
        %vm1714 = vcmp.ge.f32.partialorder %v1629, 0.0
        %vm1715 = vcmp.ge.f32.partialorder %v1632, 0.0
        %vm1716 = vcmp.ge.f32.partialorder %v1637, 0.0
        %vm1717 = vcmp.ge.f32.partialorder %v1640, 0.0
        %vm1718 = vcmp.ge.f32.partialorder %v1645, 0.0
        %vm1719 = vcmp.ge.f32.partialorder %v1648, 0.0
        %vm1720 = vcmp.ge.f32.partialorder %v1653, 0.0
        %vm1721 = vcmp.ge.f32.partialorder %v1656, 0.0
        %vm1722 = vcmp.ge.f32.partialorder %v1661, 0.0
        %vm1723 = vcmp.ge.f32.partialorder %v1664, 0.0
        %vm1724 = vcmp.ge.f32.partialorder %v1669, 0.0
        %vm1725 = vcmp.ge.f32.partialorder %v1672, 0.0
        %vm1726 = vcmp.ge.f32.partialorder %v1677, 0.0
        %vm1727 = vcmp.ge.f32.partialorder %v1680, 0.0
        %vm1728 = vcmp.ge.f32.partialorder %v1685, 0.0
        %vm1729 = vcmp.ge.f32.partialorder %v1688, 0.0
        %vm1730 = vcmp.ge.f32.partialorder %v1693, 0.0
        %vm1731 = vcmp.ge.f32.partialorder %v1696, 0.0
        %v1732 = vstv %s1699
        %v1733 = vmul.f32 %v1732, %v1573
        %v1734 = vmul.f32 %v1732, %v1576
        %v1735 = vmul.f32 %v1732, %v1581
        %v1736 = vmul.f32 %v1732, %v1584
        %v1737 = vmul.f32 %v1732, %v1589
        %v1738 = vmul.f32 %v1732, %v1592
        %v1739 = vmul.f32 %v1732, %v1597
        %v1740 = vmul.f32 %v1732, %v1600
        %v1741 = vmul.f32 %v1732, %v1605
        %v1742 = vmul.f32 %v1732, %v1608
        %v1743 = vmul.f32 %v1732, %v1613
        %v1744 = vmul.f32 %v1732, %v1616
        %v1745 = vmul.f32 %v1732, %v1621
        %v1746 = vmul.f32 %v1732, %v1624
        %v1747 = vmul.f32 %v1732, %v1629
        %v1748 = vmul.f32 %v1732, %v1632
        %v1749 = vmul.f32 %v1732, %v1637
        %v1750 = vmul.f32 %v1732, %v1640
        %v1751 = vmul.f32 %v1732, %v1645
        %v1752 = vmul.f32 %v1732, %v1648
        %v1753 = vmul.f32 %v1732, %v1653
        %v1754 = vmul.f32 %v1732, %v1656
        %v1755 = vmul.f32 %v1732, %v1661
        %v1756 = vmul.f32 %v1732, %v1664
        %v1757 = vmul.f32 %v1732, %v1669
        %v1758 = vmul.f32 %v1732, %v1672
        %v1759 = vmul.f32 %v1732, %v1677
        %v1760 = vmul.f32 %v1732, %v1680
        %v1761 = vmul.f32 %v1732, %v1685
        %v1762 = vmul.f32 %v1732, %v1688
        %v1763 = vmul.f32 %v1732, %v1693
        %v1764 = vmul.f32 %v1732, %v1696
        %v1765 = vsel %vm1700, %v1573, %v1733
        %v1766 = vsel %vm1701, %v1576, %v1734
        %v1767 = vsel %vm1702, %v1581, %v1735
        %v1768 = vsel %vm1703, %v1584, %v1736
        %v1769 = vsel %vm1704, %v1589, %v1737
        %v1770 = vsel %vm1705, %v1592, %v1738
        %v1771 = vsel %vm1706, %v1597, %v1739
        %v1772 = vsel %vm1707, %v1600, %v1740
        %v1773 = vsel %vm1708, %v1605, %v1741
        %v1774 = vsel %vm1709, %v1608, %v1742
        %v1775 = vsel %vm1710, %v1613, %v1743
        %v1776 = vsel %vm1711, %v1616, %v1744
        %v1777 = vsel %vm1712, %v1621, %v1745
        %v1778 = vsel %vm1713, %v1624, %v1746
        %v1779 = vsel %vm1714, %v1629, %v1747
        %v1780 = vsel %vm1715, %v1632, %v1748
        %v1781 = vsel %vm1716, %v1637, %v1749
        %v1782 = vsel %vm1717, %v1640, %v1750
        %v1783 = vsel %vm1718, %v1645, %v1751
        %v1784 = vsel %vm1719, %v1648, %v1752
        %v1785 = vsel %vm1720, %v1653, %v1753
        %v1786 = vsel %vm1721, %v1656, %v1754
        %v1787 = vsel %vm1722, %v1661, %v1755
        %v1788 = vsel %vm1723, %v1664, %v1756
        %v1789 = vsel %vm1724, %v1669, %v1757
        %v1790 = vsel %vm1725, %v1672, %v1758
        %v1791 = vsel %vm1726, %v1677, %v1759
        %v1792 = vsel %vm1727, %v1680, %v1760
        %v1793 = vsel %vm1728, %v1685, %v1761
        %v1794 = vsel %vm1729, %v1688, %v1762
        %v1795 = vsel %vm1730, %v1693, %v1763
        %v1796 = vsel %vm1731, %v1696, %v1764
        %v1797 = vpack.c.bf16 %v1766, %v1765
        %v1798 = vpack.c.bf16 %v1768, %v1767
        %v1799 = vpack.c.bf16 %v1770, %v1769
        %v1800 = vpack.c.bf16 %v1772, %v1771
        %v1801 = vpack.c.bf16 %v1774, %v1773
        %v1802 = vpack.c.bf16 %v1776, %v1775
        %v1803 = vpack.c.bf16 %v1778, %v1777
        %v1804 = vpack.c.bf16 %v1780, %v1779
        %v1805 = vpack.c.bf16 %v1782, %v1781
        %v1806 = vpack.c.bf16 %v1784, %v1783
        %v1807 = vpack.c.bf16 %v1786, %v1785
        %v1808 = vpack.c.bf16 %v1788, %v1787
        %v1809 = vpack.c.bf16 %v1790, %v1789
        %v1810 = vpack.c.bf16 %v1792, %v1791
        %v1811 = vpack.c.bf16 %v1794, %v1793
        %v1812 = vpack.c.bf16 %v1796, %v1795
        %v1814 = vshrl.u32 %v1797, 16
        %v1816 = vrot.slane %v1814, 7
        %v1817 = vshll.u32 %v1797, 16
        %v1819 = vor.u32 %v1816, %v1817
        %v1821 = vshrl.u32 %v1798, 16
        %v1823 = vrot.slane %v1821, 7
        %v1824 = vshll.u32 %v1798, 16
        %v1826 = vor.u32 %v1823, %v1824
        %v1828 = vshrl.u32 %v1799, 16
        %v1830 = vrot.slane %v1828, 7
        %v1831 = vshll.u32 %v1799, 16
        %v1833 = vor.u32 %v1830, %v1831
        %v1835 = vshrl.u32 %v1800, 16
        %v1837 = vrot.slane %v1835, 7
        %v1838 = vshll.u32 %v1800, 16
        %v1840 = vor.u32 %v1837, %v1838
        %v1842 = vshrl.u32 %v1801, 16
        %v1844 = vrot.slane %v1842, 7
        %v1845 = vshll.u32 %v1801, 16
        %v1847 = vor.u32 %v1844, %v1845
        %v1849 = vshrl.u32 %v1802, 16
        %v1851 = vrot.slane %v1849, 7
        %v1852 = vshll.u32 %v1802, 16
        %v1854 = vor.u32 %v1851, %v1852
        %v1856 = vshrl.u32 %v1803, 16
        %v1858 = vrot.slane %v1856, 7
        %v1859 = vshll.u32 %v1803, 16
        %v1861 = vor.u32 %v1858, %v1859
        %v1863 = vshrl.u32 %v1804, 16
        %v1865 = vrot.slane %v1863, 7
        %v1866 = vshll.u32 %v1804, 16
        %v1868 = vor.u32 %v1865, %v1866
        %v1870 = vshrl.u32 %v1805, 16
        %v1872 = vrot.slane %v1870, 7
        %v1873 = vshll.u32 %v1805, 16
        %v1875 = vor.u32 %v1872, %v1873
        %v1877 = vshrl.u32 %v1806, 16
        %v1879 = vrot.slane %v1877, 7
        %v1880 = vshll.u32 %v1806, 16
        %v1882 = vor.u32 %v1879, %v1880
        %v1884 = vshrl.u32 %v1807, 16
        %v1886 = vrot.slane %v1884, 7
        %v1887 = vshll.u32 %v1807, 16
        %v1889 = vor.u32 %v1886, %v1887
        %v1891 = vshrl.u32 %v1808, 16
        %v1893 = vrot.slane %v1891, 7
        %v1894 = vshll.u32 %v1808, 16
        %v1896 = vor.u32 %v1893, %v1894
        %v1898 = vshrl.u32 %v1809, 16
        %v1900 = vrot.slane %v1898, 7
        %v1901 = vshll.u32 %v1809, 16
        %v1903 = vor.u32 %v1900, %v1901
        %v1905 = vshrl.u32 %v1810, 16
        %v1907 = vrot.slane %v1905, 7
        %v1908 = vshll.u32 %v1810, 16
        %v1910 = vor.u32 %v1907, %v1908
        %v1912 = vshrl.u32 %v1811, 16
        %v1914 = vrot.slane %v1912, 7
        %v1915 = vshll.u32 %v1811, 16
        %v1917 = vor.u32 %v1914, %v1915
        %v1919 = vshrl.u32 %v1812, 16
        %v1921 = vrot.slane %v1919, 7
        %v1922 = vshll.u32 %v1812, 16
        %v1924 = vor.u32 %v1921, %v1922
        %v1957 = vsel %vm432, 0, %v1819
        %v1958 = vsel %vm432, 0, %v1826
        %v1959 = vsel %vm432, 0, %v1833
        %v1960 = vsel %vm432, 0, %v1840
        %v1961 = vsel %vm432, 0, %v1847
        %v1962 = vsel %vm432, 0, %v1854
        %v1963 = vsel %vm432, 0, %v1861
        %v1964 = vsel %vm432, 0, %v1868
        %v1965 = vsel %vm432, 0, %v1875
        %v1966 = vsel %vm432, 0, %v1882
        %v1967 = vsel %vm432, 0, %v1889
        %v1968 = vsel %vm432, 0, %v1896
        %v1969 = vsel %vm432, 0, %v1903
        %v1970 = vsel %vm432, 0, %v1910
        %v1971 = vsel %vm432, 0, %v1917
        %v1972 = vsel %vm432, 0, %v1924
        %v1973 = vsel %vm432, %v1816, 0
        %v1974 = vsel %vm432, %v1823, 0
        %v1975 = vsel %vm432, %v1830, 0
        %v1976 = vsel %vm432, %v1837, 0
        %v1977 = vsel %vm432, %v1844, 0
        %v1978 = vsel %vm432, %v1851, 0
        %v1979 = vsel %vm432, %v1858, 0
        %v1980 = vsel %vm432, %v1865, 0
        %v1981 = vsel %vm432, %v1872, 0
        %v1982 = vsel %vm432, %v1879, 0
        %v1983 = vsel %vm432, %v1886, 0
        %v1984 = vsel %vm432, %v1893, 0
        %v1985 = vsel %vm432, %v1900, 0
        %v1986 = vsel %vm432, %v1907, 0
        %v1987 = vsel %vm432, %v1914, 0
        %v1988 = vsel %vm432, %v1921, 0
        %v1990 = vshrl.u32 %v1957, 16
        %v1992 = vshll.u32 %v1957, 16
        %v1994 = vrot.slane %v1992, 1
        %v1995 = vor.u32 %v1990, %v1994
        %v1997 = vshll.u32 %v1973, 16
        %v1999 = vrot.slane %v1997, 1
        %v2000 = vsel %vm465, %v1995, %v1999
        %v2002 = vshrl.u32 %v1958, 16
        %v2004 = vshll.u32 %v1958, 16
        %v2006 = vrot.slane %v2004, 1
        %v2007 = vor.u32 %v2002, %v2006
        %v2009 = vshll.u32 %v1974, 16
        %v2011 = vrot.slane %v2009, 1
        %v2012 = vsel %vm465, %v2007, %v2011
        %v2014 = vshrl.u32 %v1959, 16
        %v2016 = vshll.u32 %v1959, 16
        %v2018 = vrot.slane %v2016, 1
        %v2019 = vor.u32 %v2014, %v2018
        %v2021 = vshll.u32 %v1975, 16
        %v2023 = vrot.slane %v2021, 1
        %v2024 = vsel %vm465, %v2019, %v2023
        %v2026 = vshrl.u32 %v1960, 16
        %v2028 = vshll.u32 %v1960, 16
        %v2030 = vrot.slane %v2028, 1
        %v2031 = vor.u32 %v2026, %v2030
        %v2033 = vshll.u32 %v1976, 16
        %v2035 = vrot.slane %v2033, 1
        %v2036 = vsel %vm465, %v2031, %v2035
        %v2038 = vshrl.u32 %v1961, 16
        %v2040 = vshll.u32 %v1961, 16
        %v2042 = vrot.slane %v2040, 1
        %v2043 = vor.u32 %v2038, %v2042
        %v2045 = vshll.u32 %v1977, 16
        %v2047 = vrot.slane %v2045, 1
        %v2048 = vsel %vm465, %v2043, %v2047
        %v2050 = vshrl.u32 %v1962, 16
        %v2052 = vshll.u32 %v1962, 16
        %v2054 = vrot.slane %v2052, 1
        %v2055 = vor.u32 %v2050, %v2054
        %v2057 = vshll.u32 %v1978, 16
        %v2059 = vrot.slane %v2057, 1
        %v2060 = vsel %vm465, %v2055, %v2059
        %v2062 = vshrl.u32 %v1963, 16
        %v2064 = vshll.u32 %v1963, 16
        %v2066 = vrot.slane %v2064, 1
        %v2067 = vor.u32 %v2062, %v2066
        %v2069 = vshll.u32 %v1979, 16
        %v2071 = vrot.slane %v2069, 1
        %v2072 = vsel %vm465, %v2067, %v2071
        %v2074 = vshrl.u32 %v1964, 16
        %v2076 = vshll.u32 %v1964, 16
        %v2078 = vrot.slane %v2076, 1
        %v2079 = vor.u32 %v2074, %v2078
        %v2081 = vshll.u32 %v1980, 16
        %v2083 = vrot.slane %v2081, 1
        %v2084 = vsel %vm465, %v2079, %v2083
        %v2086 = vshrl.u32 %v1965, 16
        %v2088 = vshll.u32 %v1965, 16
        %v2090 = vrot.slane %v2088, 1
        %v2091 = vor.u32 %v2086, %v2090
        %v2093 = vshll.u32 %v1981, 16
        %v2095 = vrot.slane %v2093, 1
        %v2096 = vsel %vm465, %v2091, %v2095
        %v2098 = vshrl.u32 %v1966, 16
        %v2100 = vshll.u32 %v1966, 16
        %v2102 = vrot.slane %v2100, 1
        %v2103 = vor.u32 %v2098, %v2102
        %v2105 = vshll.u32 %v1982, 16
        %v2107 = vrot.slane %v2105, 1
        %v2108 = vsel %vm465, %v2103, %v2107
        %v2110 = vshrl.u32 %v1967, 16
        %v2112 = vshll.u32 %v1967, 16
        %v2114 = vrot.slane %v2112, 1
        %v2115 = vor.u32 %v2110, %v2114
        %v2117 = vshll.u32 %v1983, 16
        %v2119 = vrot.slane %v2117, 1
        %v2120 = vsel %vm465, %v2115, %v2119
        %v2122 = vshrl.u32 %v1968, 16
        %v2124 = vshll.u32 %v1968, 16
        %v2126 = vrot.slane %v2124, 1
        %v2127 = vor.u32 %v2122, %v2126
        %v2129 = vshll.u32 %v1984, 16
        %v2131 = vrot.slane %v2129, 1
        %v2132 = vsel %vm465, %v2127, %v2131
        %v2134 = vshrl.u32 %v1969, 16
        %v2136 = vshll.u32 %v1969, 16
        %v2138 = vrot.slane %v2136, 1
        %v2139 = vor.u32 %v2134, %v2138
        %v2141 = vshll.u32 %v1985, 16
        %v2143 = vrot.slane %v2141, 1
        %v2144 = vsel %vm465, %v2139, %v2143
        %v2146 = vshrl.u32 %v1970, 16
        %v2148 = vshll.u32 %v1970, 16
        %v2150 = vrot.slane %v2148, 1
        %v2151 = vor.u32 %v2146, %v2150
        %v2153 = vshll.u32 %v1986, 16
        %v2155 = vrot.slane %v2153, 1
        %v2156 = vsel %vm465, %v2151, %v2155
        %v2158 = vshrl.u32 %v1971, 16
        %v2160 = vshll.u32 %v1971, 16
        %v2162 = vrot.slane %v2160, 1
        %v2163 = vor.u32 %v2158, %v2162
        %v2165 = vshll.u32 %v1987, 16
        %v2167 = vrot.slane %v2165, 1
        %v2168 = vsel %vm465, %v2163, %v2167
        %v2199 = vrot.slane %v1957, 1
        %v2200 = vrot.slane %v1973, 1
        %v2201 = vsel %vm685, %v2199, %v2200
        %v2202 = vrot.slane %v1958, 1
        %v2203 = vrot.slane %v1974, 1
        %v2204 = vsel %vm685, %v2202, %v2203
        %v2205 = vrot.slane %v1959, 1
        %v2206 = vrot.slane %v1975, 1
        %v2207 = vsel %vm685, %v2205, %v2206
        %v2208 = vrot.slane %v1960, 1
        %v2209 = vrot.slane %v1976, 1
        %v2210 = vsel %vm685, %v2208, %v2209
        %v2211 = vrot.slane %v1961, 1
        %v2212 = vrot.slane %v1977, 1
        %v2213 = vsel %vm685, %v2211, %v2212
        %v2214 = vrot.slane %v1962, 1
        %v2215 = vrot.slane %v1978, 1
        %v2216 = vsel %vm685, %v2214, %v2215
        %v2217 = vrot.slane %v1963, 1
        %v2218 = vrot.slane %v1979, 1
        %v2219 = vsel %vm685, %v2217, %v2218
        %v2220 = vrot.slane %v1964, 1
        %v2221 = vrot.slane %v1980, 1
        %v2222 = vsel %vm685, %v2220, %v2221
        %v2223 = vrot.slane %v1965, 1
        %v2224 = vrot.slane %v1981, 1
        %v2225 = vsel %vm685, %v2223, %v2224
        %v2226 = vrot.slane %v1966, 1
        %v2227 = vrot.slane %v1982, 1
        %v2228 = vsel %vm685, %v2226, %v2227
        %v2229 = vrot.slane %v1967, 1
        %v2230 = vrot.slane %v1983, 1
        %v2231 = vsel %vm685, %v2229, %v2230
        %v2232 = vrot.slane %v1968, 1
        %v2233 = vrot.slane %v1984, 1
        %v2234 = vsel %vm685, %v2232, %v2233
        %v2235 = vrot.slane %v1969, 1
        %v2236 = vrot.slane %v1985, 1
        %v2237 = vsel %vm685, %v2235, %v2236
        %v2238 = vrot.slane %v1970, 1
        %v2239 = vrot.slane %v1986, 1
        %v2240 = vsel %vm685, %v2238, %v2239
        %v2241 = vrot.slane %v1971, 1
        %v2242 = vrot.slane %v1987, 1
        %v2243 = vsel %vm685, %v2241, %v2242
        %v2245 = vshrl.u32 %v1972, 16
        %v2247 = vshll.u32 %v1972, 16
        %v2249 = vrot.slane %v2247, 1
        %v2250 = vor.u32 %v2245, %v2249
        %v2252 = vshll.u32 %v1988, 16
        %v2254 = vrot.slane %v2252, 1
        %v2255 = vsel %vm465, %v2250, %v2254
        %v2258 = vrot.slane %v1972, 1
        %v2259 = vrot.slane %v1988, 1
        %v2260 = vsel %vm685, %v2258, %v2259
        %2261 = vrot.lane.b32.xlu0 %v2000, 32
        %v2262 = vpop.permute.xlu0 %2261
        %2263 = vrot.lane.b32.xlu0 %v2012, 32
        %v2264 = vpop.permute.xlu0 %2263
        %2265 = vrot.lane.b32.xlu0 %v2024, 32
        %v2266 = vpop.permute.xlu0 %2265
        %2267 = vrot.lane.b32.xlu0 %v2036, 32
        %v2268 = vpop.permute.xlu0 %2267
        %2269 = vrot.lane.b32.xlu0 %v2048, 32
        %v2270 = vpop.permute.xlu0 %2269
        %2271 = vrot.lane.b32.xlu0 %v2060, 32
        %v2272 = vpop.permute.xlu0 %2271
        %2273 = vrot.lane.b32.xlu0 %v2072, 32
        %v2274 = vpop.permute.xlu0 %2273
        %2275 = vrot.lane.b32.xlu0 %v2084, 32
        %v2276 = vpop.permute.xlu0 %2275
        %2277 = vrot.lane.b32.xlu0 %v2096, 32
        %v2278 = vpop.permute.xlu0 %2277
        %2279 = vrot.lane.b32.xlu0 %v2108, 32
        %v2280 = vpop.permute.xlu0 %2279
        %2281 = vrot.lane.b32.xlu0 %v2120, 32
        %v2282 = vpop.permute.xlu0 %2281
        %2283 = vrot.lane.b32.xlu0 %v2132, 32
        %v2284 = vpop.permute.xlu0 %2283
        %2285 = vrot.lane.b32.xlu0 %v2144, 32
        %v2286 = vpop.permute.xlu0 %2285
        %2287 = vrot.lane.b32.xlu0 %v2156, 32
        %v2288 = vpop.permute.xlu0 %2287
        %2289 = vrot.lane.b32.xlu0 %v2168, 32
        %v2290 = vpop.permute.xlu0 %2289
        %2291 = vrot.lane.b32.xlu0 %v2201, 64
        %v2292 = vpop.permute.xlu0 %2291
        %2293 = vrot.lane.b32.xlu0 %v2204, 64
        %v2294 = vpop.permute.xlu0 %2293
        %2295 = vrot.lane.b32.xlu0 %v2207, 64
        %v2296 = vpop.permute.xlu0 %2295
        %2297 = vrot.lane.b32.xlu0 %v2210, 64
        %v2298 = vpop.permute.xlu0 %2297
        %2299 = vrot.lane.b32.xlu0 %v2213, 64
        %v2300 = vpop.permute.xlu0 %2299
        %2301 = vrot.lane.b32.xlu0 %v2216, 64
        %v2302 = vpop.permute.xlu0 %2301
        %2303 = vrot.lane.b32.xlu0 %v2219, 64
        %v2304 = vpop.permute.xlu0 %2303
        %2305 = vrot.lane.b32.xlu0 %v2222, 64
        %v2306 = vpop.permute.xlu0 %2305
        %2307 = vrot.lane.b32.xlu0 %v2225, 64
        %v2308 = vpop.permute.xlu0 %2307
        %2309 = vrot.lane.b32.xlu0 %v2228, 64
        %v2310 = vpop.permute.xlu0 %2309
        %2311 = vrot.lane.b32.xlu0 %v2231, 64
        %v2312 = vpop.permute.xlu0 %2311
        %2313 = vrot.lane.b32.xlu0 %v2234, 64
        %v2314 = vpop.permute.xlu0 %2313
        %2315 = vrot.lane.b32.xlu0 %v2237, 64
        %v2316 = vpop.permute.xlu0 %2315
        %2317 = vrot.lane.b32.xlu0 %v2240, 64
        %v2318 = vpop.permute.xlu0 %2317
        %2319 = vrot.lane.b32.xlu0 %v2243, 64
        %v2320 = vpop.permute.xlu0 %2319
        %2321 = vrot.lane.b32.xlu0 %v1957, 96
        %v2322 = vpop.permute.xlu0 %2321
        %2323 = vrot.lane.b32.xlu0 %v1958, 96
        %v2324 = vpop.permute.xlu0 %2323
        %2325 = vrot.lane.b32.xlu0 %v1959, 96
        %v2326 = vpop.permute.xlu0 %2325
        %2327 = vrot.lane.b32.xlu0 %v1960, 96
        %v2328 = vpop.permute.xlu0 %2327
        %2329 = vrot.lane.b32.xlu0 %v1961, 96
        %v2330 = vpop.permute.xlu0 %2329
        %2331 = vrot.lane.b32.xlu0 %v1962, 96
        %v2332 = vpop.permute.xlu0 %2331
        %2333 = vrot.lane.b32.xlu0 %v1963, 96
        %v2334 = vpop.permute.xlu0 %2333
        %2335 = vrot.lane.b32.xlu0 %v1964, 96
        %v2336 = vpop.permute.xlu0 %2335
        %2337 = vrot.lane.b32.xlu0 %v1965, 96
        %v2338 = vpop.permute.xlu0 %2337
        %2339 = vrot.lane.b32.xlu0 %v1966, 96
        %v2340 = vpop.permute.xlu0 %2339
        %2341 = vrot.lane.b32.xlu0 %v1967, 96
        %v2342 = vpop.permute.xlu0 %2341
        %2343 = vrot.lane.b32.xlu0 %v1968, 96
        %v2344 = vpop.permute.xlu0 %2343
        %2345 = vrot.lane.b32.xlu0 %v1969, 96
        %v2346 = vpop.permute.xlu0 %2345
        %2347 = vrot.lane.b32.xlu0 %v1970, 96
        %v2348 = vpop.permute.xlu0 %2347
        %2349 = vrot.lane.b32.xlu0 %v1971, 96
        %v2350 = vpop.permute.xlu0 %2349
        %2351 = vrot.lane.b32.xlu0 %v1972, 96
        %v2352 = vpop.permute.xlu0 %2351
        %2353 = vrot.lane.b32.xlu0 %v2201, 32
        %v2354 = vpop.permute.xlu0 %2353
        %2355 = vrot.lane.b32.xlu0 %v2204, 32
        %v2356 = vpop.permute.xlu0 %2355
        %2357 = vrot.lane.b32.xlu0 %v2207, 32
        %v2358 = vpop.permute.xlu0 %2357
        %2359 = vrot.lane.b32.xlu0 %v2210, 32
        %v2360 = vpop.permute.xlu0 %2359
        %2361 = vrot.lane.b32.xlu0 %v2213, 32
        %v2362 = vpop.permute.xlu0 %2361
        %2363 = vrot.lane.b32.xlu0 %v2216, 32
        %v2364 = vpop.permute.xlu0 %2363
        %2365 = vrot.lane.b32.xlu0 %v2219, 32
        %v2366 = vpop.permute.xlu0 %2365
        %2367 = vrot.lane.b32.xlu0 %v2222, 32
        %v2368 = vpop.permute.xlu0 %2367
        %2369 = vrot.lane.b32.xlu0 %v2225, 32
        %v2370 = vpop.permute.xlu0 %2369
        %2371 = vrot.lane.b32.xlu0 %v2228, 32
        %v2372 = vpop.permute.xlu0 %2371
        %2373 = vrot.lane.b32.xlu0 %v2231, 32
        %v2374 = vpop.permute.xlu0 %2373
        %2375 = vrot.lane.b32.xlu0 %v2234, 32
        %v2376 = vpop.permute.xlu0 %2375
        %2377 = vrot.lane.b32.xlu0 %v2237, 32
        %v2378 = vpop.permute.xlu0 %2377
        %2379 = vrot.lane.b32.xlu0 %v2240, 32
        %v2380 = vpop.permute.xlu0 %2379
        %2381 = vrot.lane.b32.xlu0 %v2243, 32
        %v2382 = vpop.permute.xlu0 %2381
        %2383 = vrot.lane.b32.xlu0 %v2260, 32
        %v2384 = vpop.permute.xlu0 %2383
        %2385 = vrot.lane.b32.xlu0 %v1958, 64
        %v2386 = vpop.permute.xlu0 %2385
        %2387 = vrot.lane.b32.xlu0 %v1959, 64
        %v2388 = vpop.permute.xlu0 %2387
        %2389 = vrot.lane.b32.xlu0 %v1960, 64
        %v2390 = vpop.permute.xlu0 %2389
        %2391 = vrot.lane.b32.xlu0 %v1961, 64
        %v2392 = vpop.permute.xlu0 %2391
        %2393 = vrot.lane.b32.xlu0 %v1962, 64
        %v2394 = vpop.permute.xlu0 %2393
        %2395 = vrot.lane.b32.xlu0 %v1963, 64
        %v2396 = vpop.permute.xlu0 %2395
        %2397 = vrot.lane.b32.xlu0 %v1964, 64
        %v2398 = vpop.permute.xlu0 %2397
        %2399 = vrot.lane.b32.xlu0 %v1965, 64
        %v2400 = vpop.permute.xlu0 %2399
        %2401 = vrot.lane.b32.xlu0 %v1966, 64
        %v2402 = vpop.permute.xlu0 %2401
        %2403 = vrot.lane.b32.xlu0 %v1967, 64
        %v2404 = vpop.permute.xlu0 %2403
        %2405 = vrot.lane.b32.xlu0 %v1968, 64
        %v2406 = vpop.permute.xlu0 %2405
        %2407 = vrot.lane.b32.xlu0 %v1969, 64
        %v2408 = vpop.permute.xlu0 %2407
        %2409 = vrot.lane.b32.xlu0 %v1970, 64
        %v2410 = vpop.permute.xlu0 %2409
        %2411 = vrot.lane.b32.xlu0 %v1971, 64
        %v2412 = vpop.permute.xlu0 %2411
        %2413 = vrot.lane.b32.xlu0 %v1972, 64
        %v2414 = vpop.permute.xlu0 %2413
        %2415 = vrot.lane.b32.xlu0 %v2012, 96
        %v2416 = vpop.permute.xlu0 %2415
        %2417 = vrot.lane.b32.xlu0 %v2024, 96
        %v2418 = vpop.permute.xlu0 %2417
        %2419 = vrot.lane.b32.xlu0 %v2036, 96
        %v2420 = vpop.permute.xlu0 %2419
        %2421 = vrot.lane.b32.xlu0 %v2048, 96
        %v2422 = vpop.permute.xlu0 %2421
        %2423 = vrot.lane.b32.xlu0 %v2060, 96
        %v2424 = vpop.permute.xlu0 %2423
        %2425 = vrot.lane.b32.xlu0 %v2072, 96
        %v2426 = vpop.permute.xlu0 %2425
        %2427 = vrot.lane.b32.xlu0 %v2084, 96
        %v2428 = vpop.permute.xlu0 %2427
        %2429 = vrot.lane.b32.xlu0 %v2096, 96
        %v2430 = vpop.permute.xlu0 %2429
        %2431 = vrot.lane.b32.xlu0 %v2108, 96
        %v2432 = vpop.permute.xlu0 %2431
        %2433 = vrot.lane.b32.xlu0 %v2120, 96
        %v2434 = vpop.permute.xlu0 %2433
        %2435 = vrot.lane.b32.xlu0 %v2132, 96
        %v2436 = vpop.permute.xlu0 %2435
        %2437 = vrot.lane.b32.xlu0 %v2144, 96
        %v2438 = vpop.permute.xlu0 %2437
        %2439 = vrot.lane.b32.xlu0 %v2156, 96
        %v2440 = vpop.permute.xlu0 %2439
        %2441 = vrot.lane.b32.xlu0 %v2168, 96
        %v2442 = vpop.permute.xlu0 %2441
        %2443 = vrot.lane.b32.xlu0 %v2255, 96
        %v2444 = vpop.permute.xlu0 %2443
        %v2446 = vsel %vm942, %v1957, %v2262
        %v2448 = vsel %vm942, %v1958, %v2264
        %v2450 = vsel %vm942, %v1959, %v2266
        %v2452 = vsel %vm942, %v1960, %v2268
        %v2454 = vsel %vm942, %v1961, %v2270
        %v2456 = vsel %vm942, %v1962, %v2272
        %v2458 = vsel %vm942, %v1963, %v2274
        %v2460 = vsel %vm942, %v1964, %v2276
        %v2462 = vsel %vm942, %v1965, %v2278
        %v2464 = vsel %vm942, %v1966, %v2280
        %v2466 = vsel %vm942, %v1967, %v2282
        %v2468 = vsel %vm942, %v1968, %v2284
        %v2470 = vsel %vm942, %v1969, %v2286
        %v2472 = vsel %vm942, %v1970, %v2288
        %v2474 = vsel %vm942, %v1971, %v2290
        %v2476 = vsel %vm975, %v2446, %v2292
        %v2478 = vsel %vm975, %v2448, %v2294
        %v2480 = vsel %vm975, %v2450, %v2296
        %v2482 = vsel %vm975, %v2452, %v2298
        %v2484 = vsel %vm975, %v2454, %v2300
        %v2486 = vsel %vm975, %v2456, %v2302
        %v2488 = vsel %vm975, %v2458, %v2304
        %v2490 = vsel %vm975, %v2460, %v2306
        %v2492 = vsel %vm975, %v2462, %v2308
        %v2494 = vsel %vm975, %v2464, %v2310
        %v2496 = vsel %vm975, %v2466, %v2312
        %v2498 = vsel %vm975, %v2468, %v2314
        %v2500 = vsel %vm975, %v2470, %v2316
        %v2502 = vsel %vm975, %v2472, %v2318
        %v2504 = vsel %vm975, %v2474, %v2320
        %v2506 = vsel %vm1008, %v977, %v2322
        %v2509 = vsel %vm1008, %v2476, %v2324
        %v2512 = vsel %vm1008, %v2478, %v2326
        %v2515 = vsel %vm1008, %v2480, %v2328
        %v2518 = vsel %vm1008, %v2482, %v2330
        %v2521 = vsel %vm1008, %v2484, %v2332
        %v2524 = vsel %vm1008, %v2486, %v2334
        %v2527 = vsel %vm1008, %v2488, %v2336
        %v2530 = vsel %vm1008, %v2490, %v2338
        %v2533 = vsel %vm1008, %v2492, %v2340
        %v2536 = vsel %vm1008, %v2494, %v2342
        %v2539 = vsel %vm1008, %v2496, %v2344
        %v2542 = vsel %vm1008, %v2498, %v2346
        %v2545 = vsel %vm1008, %v2500, %v2348
        %v2548 = vsel %vm1008, %v2502, %v2350
        %v2551 = vsel %vm1008, %v2504, %v2352
        %v2555 = vsel %vm942, %v2000, %v2354
        %v2558 = vsel %vm942, %v2012, %v2356
        %v2561 = vsel %vm942, %v2024, %v2358
        %v2564 = vsel %vm942, %v2036, %v2360
        %v2567 = vsel %vm942, %v2048, %v2362
        %v2570 = vsel %vm942, %v2060, %v2364
        %v2573 = vsel %vm942, %v2072, %v2366
        %v2576 = vsel %vm942, %v2084, %v2368
        %v2579 = vsel %vm942, %v2096, %v2370
        %v2582 = vsel %vm942, %v2108, %v2372
        %v2585 = vsel %vm942, %v2120, %v2374
        %v2588 = vsel %vm942, %v2132, %v2376
        %v2591 = vsel %vm942, %v2144, %v2378
        %v2594 = vsel %vm942, %v2156, %v2380
        %v2597 = vsel %vm942, %v2168, %v2382
        %v2600 = vsel %vm942, %v2255, %v2384
        %v2602 = vsel %vm975, %v2555, %v2386
        %v2604 = vsel %vm975, %v2558, %v2388
        %v2606 = vsel %vm975, %v2561, %v2390
        %v2608 = vsel %vm975, %v2564, %v2392
        %v2610 = vsel %vm975, %v2567, %v2394
        %v2612 = vsel %vm975, %v2570, %v2396
        %v2614 = vsel %vm975, %v2573, %v2398
        %v2616 = vsel %vm975, %v2576, %v2400
        %v2618 = vsel %vm975, %v2579, %v2402
        %v2620 = vsel %vm975, %v2582, %v2404
        %v2622 = vsel %vm975, %v2585, %v2406
        %v2624 = vsel %vm975, %v2588, %v2408
        %v2626 = vsel %vm975, %v2591, %v2410
        %v2628 = vsel %vm975, %v2594, %v2412
        %v2630 = vsel %vm975, %v2597, %v2414
        %v2631 = vsel %vm975, %v2600, %v909
        %v2633 = vsel %vm1008, %v2602, %v2416
        %v2636 = vsel %vm1008, %v2604, %v2418
        %v2639 = vsel %vm1008, %v2606, %v2420
        %v2642 = vsel %vm1008, %v2608, %v2422
        %v2645 = vsel %vm1008, %v2610, %v2424
        %v2648 = vsel %vm1008, %v2612, %v2426
        %v2651 = vsel %vm1008, %v2614, %v2428
        %v2654 = vsel %vm1008, %v2616, %v2430
        %v2657 = vsel %vm1008, %v2618, %v2432
        %v2660 = vsel %vm1008, %v2620, %v2434
        %v2663 = vsel %vm1008, %v2622, %v2436
        %v2666 = vsel %vm1008, %v2624, %v2438
        %v2669 = vsel %vm1008, %v2626, %v2440
        %v2672 = vsel %vm1008, %v2628, %v2442
        %v2675 = vsel %vm1008, %v2630, %v2444
        %v2677 = vsel %vm1008, %v2631, %v941
        %s2679 = scalar_lea.vmem %s2, 144
        %v2680 = vld [vmem:[%s2679] sm:$0xf]
        %v2681 = vld [vmem:[%s2679 + $0x4] sm:$0xf]
        %v2682 = vld [vmem:[%s2679 + $0x8] sm:$0xf]
        %v2683 = vld [vmem:[%s2679 + $0xc] sm:$0xf]
        %v2684 = vld [vmem:[%s2679 + $0x10] sm:$0xf]
        %v2685 = vld [vmem:[%s2679 + $0x14] sm:$0xf]
        %v2686 = vld [vmem:[%s2679 + $0x18] sm:$0xf]
        %v2687 = vld [vmem:[%s2679 + $0x1c] sm:$0xf]
        %v2688 = vld [vmem:[%s2679 + $0x20] sm:$0xf]
        %v2689 = vld [vmem:[%s2679 + $0x24] sm:$0xf]
        %v2690 = vld [vmem:[%s2679 + $0x28] sm:$0xf]
        %v2691 = vld [vmem:[%s2679 + $0x2c] sm:$0xf]
        %v2692 = vld [vmem:[%s2679 + $0x30] sm:$0xf]
        %v2693 = vld [vmem:[%s2679 + $0x34] sm:$0xf]
        %v2694 = vld [vmem:[%s2679 + $0x38] sm:$0xf]
        %v2695 = vld [vmem:[%s2679 + $0x3c] sm:$0xf]
        %v2696 = vld [vmem:[%s2679 + $0x40] sm:$0xf]
        %v2697 = vld [vmem:[%s2679 + $0x44] sm:$0xf]
        %v2698 = vld [vmem:[%s2679 + $0x48] sm:$0xf]
        %v2699 = vld [vmem:[%s2679 + $0x4c] sm:$0xf]
        %v2700 = vld [vmem:[%s2679 + $0x50] sm:$0xf]
        %v2701 = vld [vmem:[%s2679 + $0x54] sm:$0xf]
        %v2702 = vld [vmem:[%s2679 + $0x58] sm:$0xf]
        %v2703 = vld [vmem:[%s2679 + $0x5c] sm:$0xf]
        %v2704 = vld [vmem:[%s2679 + $0x60] sm:$0xf]
        %v2705 = vld [vmem:[%s2679 + $0x64] sm:$0xf]
        %v2706 = vld [vmem:[%s2679 + $0x68] sm:$0xf]
        %v2707 = vld [vmem:[%s2679 + $0x6c] sm:$0xf]
        %v2708 = vld [vmem:[%s2679 + $0x70] sm:$0xf]
        %v2709 = vld [vmem:[%s2679 + $0x74] sm:$0xf]
        %v2710 = vld [vmem:[%s2679 + $0x78] sm:$0xf]
        %v2711 = vld [vmem:[%s2679 + $0x7c] sm:$0xf]
        %v2712 = vld [vmem:[%s2679 + $0x80] sm:$0xf]
        %v2713 = vld [vmem:[%s2679 + $0x84] sm:$0xf]
        %v2714 = vld [vmem:[%s2679 + $0x88] sm:$0xf]
        %v2715 = vld [vmem:[%s2679 + $0x8c] sm:$0xf]
        %v2752 = vunpack.c.l.b16 %v2680
        %v2753 = vunpack.c.l.b16 %v2681
        %v2754 = vunpack.c.l.b16 %v2682
        %v2755 = vunpack.c.l.b16 %v2683
        %v2756 = vunpack.c.l.b16 %v2684
        %v2757 = vunpack.c.l.b16 %v2685
        %v2758 = vunpack.c.l.b16 %v2686
        %v2759 = vunpack.c.l.b16 %v2687
        %v2760 = vunpack.c.l.b16 %v2688
        %v2761 = vunpack.c.l.b16 %v2689
        %v2762 = vunpack.c.l.b16 %v2690
        %v2763 = vunpack.c.l.b16 %v2691
        %v2764 = vunpack.c.l.b16 %v2692
        %v2765 = vunpack.c.l.b16 %v2693
        %v2766 = vunpack.c.l.b16 %v2694
        %v2767 = vunpack.c.l.b16 %v2695
        %v2768 = vunpack.c.l.b16 %v2696
        %v2769 = vunpack.c.l.b16 %v2697
        %v2770 = vunpack.c.l.b16 %v2698
        %v2771 = vunpack.c.l.b16 %v2699
        %v2772 = vunpack.c.l.b16 %v2700
        %v2773 = vunpack.c.l.b16 %v2701
        %v2774 = vunpack.c.l.b16 %v2702
        %v2775 = vunpack.c.l.b16 %v2703
        %v2776 = vunpack.c.l.b16 %v2704
        %v2777 = vunpack.c.l.b16 %v2705
        %v2778 = vunpack.c.l.b16 %v2706
        %v2779 = vunpack.c.l.b16 %v2707
        %v2780 = vunpack.c.l.b16 %v2708
        %v2781 = vunpack.c.l.b16 %v2709
        %v2782 = vunpack.c.l.b16 %v2710
        %v2783 = vunpack.c.l.b16 %v2711
        %v2784 = vunpack.c.l.b16 %v2712
        %v2785 = vunpack.c.l.b16 %v2713
        %v2786 = vunpack.c.l.b16 %v2714
        %v2787 = vunpack.c.l.b16 %v2715
        %v2788 = vpack.c.b16 %v2753, %v2752
        %v2789 = vpack.c.b16 %v2755, %v2754
        %v2790 = vpack.c.b16 %v2757, %v2756
        %v2791 = vpack.c.b16 %v2759, %v2758
        %v2792 = vpack.c.b16 %v2761, %v2760
        %v2793 = vpack.c.b16 %v2763, %v2762
        %v2794 = vpack.c.b16 %v2765, %v2764
        %v2795 = vpack.c.b16 %v2767, %v2766
        %v2796 = vpack.c.b16 %v2769, %v2768
        %v2797 = vpack.c.b16 %v2771, %v2770
        %v2798 = vpack.c.b16 %v2773, %v2772
        %v2799 = vpack.c.b16 %v2775, %v2774
        %v2800 = vpack.c.b16 %v2777, %v2776
        %v2801 = vpack.c.b16 %v2779, %v2778
        %v2802 = vpack.c.b16 %v2781, %v2780
        %v2803 = vpack.c.b16 %v2783, %v2782
        %v2804 = vpack.c.b16 %v2785, %v2784
        %v2805 = vpack.c.b16 %v2787, %v2786
        %v2825 = vsel %vm942, %v2204, 0
        %v2828 = vsel %vm942, %v2207, 0
        %v2831 = vsel %vm942, %v2210, 0
        %v2834 = vsel %vm942, %v2213, 0
        %v2837 = vsel %vm942, %v2216, 0
        %v2840 = vsel %vm942, %v2219, 0
        %v2843 = vsel %vm942, %v2222, 0
        %v2846 = vsel %vm942, %v2225, 0
        %v2849 = vsel %vm942, %v2228, 0
        %v2852 = vsel %vm942, %v2231, 0
        %v2855 = vsel %vm942, %v2234, 0
        %v2858 = vsel %vm942, %v2237, 0
        %v2861 = vsel %vm942, %v2240, 0
        %v2864 = vsel %vm942, %v2243, 0
        %v2867 = vsel %vm942, %v2260, 0
        %2869 = vmatprep.subr.bf16.mxu0 0
        %2870 = vmatpush1.bf16.msra.mxu0 %v2788
        %2871 = vmatprep.subr.bf16.mxu0 0
        %2872 = vmatpush1.bf16.msra.mxu0 %v2789
        %2873 = vmatprep.subr.bf16.mxu0 0
        %2874 = vmatpush1.bf16.msra.mxu0 %v2790
        %2875 = vmatprep.subr.bf16.mxu0 0
        %2876 = vmatpush1.bf16.msra.mxu0 %v2791
        %2877 = vmatprep.subr.bf16.mxu0 0
        %2878 = vmatpush1.bf16.msra.mxu0 %v2792
        %2879 = vmatprep.subr.bf16.mxu0 0
        %2880 = vmatpush1.bf16.msra.mxu0 %v2793
        %2881 = vmatprep.subr.bf16.mxu0 0
        %2882 = vmatpush1.bf16.msra.mxu0 %v2794
        %2883 = vmatprep.subr.bf16.mxu0 0
        %2884 = vmatpush1.bf16.msra.mxu0 %v2795
        %2885 = vmatprep.subr.bf16.mxu0 0
        %2886 = vmatpush1.bf16.msra.mxu0 %v2796
        %2887 = vmatprep.subr.bf16.mxu0 0
        %2888 = vmatpush1.bf16.msra.mxu0 %v2797
        %2889 = vmatprep.subr.bf16.mxu0 0
        %2890 = vmatpush1.bf16.msra.mxu0 %v2798
        %2891 = vmatprep.subr.bf16.mxu0 0
        %2892 = vmatpush1.bf16.msra.mxu0 %v2799
        %2893 = vmatprep.subr.bf16.mxu0 0
        %2894 = vmatpush1.bf16.msra.mxu0 %v2800
        %2895 = vmatprep.subr.bf16.mxu0 0
        %2896 = vmatpush1.bf16.msra.mxu0 %v2801
        %2897 = vmatprep.subr.bf16.mxu0 0
        %2898 = vmatpush1.bf16.msra.mxu0 %v2802
        %2899 = vmatprep.subr.bf16.mxu0 0
        %2900 = vmatpush1.bf16.msra.mxu0 %v2803
        %2901 = vmatprep.mubr.bf16.mxu0 %v2633
        %2902 = vmatmul.mubr.bf16.gmra.mrb[0].mxu0 %v2506
        %v2903 = vpop.f32.mrb[0].mxu0
        %v2904 = vadd.f32 0.0, %v2903
        %v2905 = vpop.f32.mrb[0].mxu0
        %v2906 = vpop.f32.mrb[0].mxu0
        %v2907 = vadd.f32 0.0, %v2906
        %v2908 = vpop.f32.mrb[0].mxu0
        %2909 = vmatprep.mubr.bf16.mxu0 %v2636
        %2910 = vmatmul.mubr.bf16.gmra.mrb[0].mxu0 %v2509
        %v2911 = vpop.f32.mrb[0].mxu0
        %v2912 = vadd.f32 0.0, %v2911
        %v2913 = vpop.f32.mrb[0].mxu0
        %v2914 = vpop.f32.mrb[0].mxu0
        %v2915 = vadd.f32 0.0, %v2914
        %v2916 = vpop.f32.mrb[0].mxu0
        %2917 = vmatprep.mubr.bf16.mxu0 %v2639
        %2918 = vmatmul.mubr.bf16.gmra.mrb[0].mxu0 %v2512
        %v2919 = vpop.f32.mrb[0].mxu0
        %v2920 = vadd.f32 0.0, %v2919
        %v2921 = vpop.f32.mrb[0].mxu0
        %v2922 = vpop.f32.mrb[0].mxu0
        %v2923 = vadd.f32 0.0, %v2922
        %v2924 = vpop.f32.mrb[0].mxu0
        %2925 = vmatprep.mubr.bf16.mxu0 %v2642
        %2926 = vmatmul.mubr.bf16.gmra.mrb[0].mxu0 %v2515
        %v2927 = vpop.f32.mrb[0].mxu0
        %v2928 = vadd.f32 0.0, %v2927
        %v2929 = vpop.f32.mrb[0].mxu0
        %v2930 = vpop.f32.mrb[0].mxu0
        %v2931 = vadd.f32 0.0, %v2930
        %v2932 = vpop.f32.mrb[0].mxu0
        %2933 = vmatprep.mubr.bf16.mxu0 %v2645
        %2934 = vmatmul.mubr.bf16.gmra.mrb[0].mxu0 %v2518
        %v2935 = vpop.f32.mrb[0].mxu0
        %v2936 = vadd.f32 0.0, %v2935
        %v2937 = vpop.f32.mrb[0].mxu0
        %v2938 = vpop.f32.mrb[0].mxu0
        %v2939 = vadd.f32 0.0, %v2938
        %v2940 = vpop.f32.mrb[0].mxu0
        %2941 = vmatprep.mubr.bf16.mxu0 %v2648
        %2942 = vmatmul.mubr.bf16.gmra.mrb[0].mxu0 %v2521
        %v2943 = vpop.f32.mrb[0].mxu0
        %v2944 = vadd.f32 0.0, %v2943
        %v2945 = vpop.f32.mrb[0].mxu0
        %v2946 = vpop.f32.mrb[0].mxu0
        %v2947 = vadd.f32 0.0, %v2946
        %v2948 = vpop.f32.mrb[0].mxu0
        %2949 = vmatprep.mubr.bf16.mxu0 %v2651
        %2950 = vmatmul.mubr.bf16.gmra.mrb[0].mxu0 %v2524
        %v2951 = vpop.f32.mrb[0].mxu0
        %v2952 = vadd.f32 0.0, %v2951
        %v2953 = vpop.f32.mrb[0].mxu0
        %v2954 = vpop.f32.mrb[0].mxu0
        %v2955 = vadd.f32 0.0, %v2954
        %v2956 = vpop.f32.mrb[0].mxu0
        %2957 = vmatprep.mubr.bf16.mxu0 %v2654
        %2958 = vmatmul.mubr.bf16.gmra.mrb[0].mxu0 %v2527
        %v2959 = vpop.f32.mrb[0].mxu0
        %v2960 = vadd.f32 0.0, %v2959
        %v2961 = vpop.f32.mrb[0].mxu0
        %v2962 = vpop.f32.mrb[0].mxu0
        %v2963 = vadd.f32 0.0, %v2962
        %v2964 = vpop.f32.mrb[0].mxu0
        %2965 = vmatprep.mubr.bf16.mxu0 %v2657
        %2966 = vmatmul.mubr.bf16.gmra.mrb[0].mxu0 %v2530
        %v2967 = vpop.f32.mrb[0].mxu0
        %v2968 = vadd.f32 0.0, %v2967
        %v2969 = vpop.f32.mrb[0].mxu0
        %v2970 = vpop.f32.mrb[0].mxu0
        %v2971 = vadd.f32 0.0, %v2970
        %v2972 = vpop.f32.mrb[0].mxu0
        %2973 = vmatprep.mubr.bf16.mxu0 %v2660
        %2974 = vmatmul.mubr.bf16.gmra.mrb[0].mxu0 %v2533
        %v2975 = vpop.f32.mrb[0].mxu0
        %v2976 = vadd.f32 0.0, %v2975
        %v2977 = vpop.f32.mrb[0].mxu0
        %v2978 = vpop.f32.mrb[0].mxu0
        %v2979 = vadd.f32 0.0, %v2978
        %v2980 = vpop.f32.mrb[0].mxu0
        %2981 = vmatprep.mubr.bf16.mxu0 %v2663
        %2982 = vmatmul.mubr.bf16.gmra.mrb[0].mxu0 %v2536
        %v2983 = vpop.f32.mrb[0].mxu0
        %v2984 = vadd.f32 0.0, %v2983
        %v2985 = vpop.f32.mrb[0].mxu0
        %v2986 = vpop.f32.mrb[0].mxu0
        %v2987 = vadd.f32 0.0, %v2986
        %v2988 = vpop.f32.mrb[0].mxu0
        %2989 = vmatprep.mubr.bf16.mxu0 %v2666
        %2990 = vmatmul.mubr.bf16.gmra.mrb[0].mxu0 %v2539
        %v2991 = vpop.f32.mrb[0].mxu0
        %v2992 = vadd.f32 0.0, %v2991
        %v2993 = vpop.f32.mrb[0].mxu0
        %v2994 = vpop.f32.mrb[0].mxu0
        %v2995 = vadd.f32 0.0, %v2994
        %v2996 = vpop.f32.mrb[0].mxu0
        %2997 = vmatprep.mubr.bf16.mxu0 %v2669
        %2998 = vmatmul.mubr.bf16.gmra.mrb[0].mxu0 %v2542
        %v2999 = vpop.f32.mrb[0].mxu0
        %v3000 = vadd.f32 0.0, %v2999
        %v3001 = vpop.f32.mrb[0].mxu0
        %v3002 = vpop.f32.mrb[0].mxu0
        %v3003 = vadd.f32 0.0, %v3002
        %v3004 = vpop.f32.mrb[0].mxu0
        %3005 = vmatprep.mubr.bf16.mxu0 %v2672
        %3006 = vmatmul.mubr.bf16.gmra.mrb[0].mxu0 %v2545
        %v3007 = vpop.f32.mrb[0].mxu0
        %v3008 = vadd.f32 0.0, %v3007
        %v3009 = vpop.f32.mrb[0].mxu0
        %v3010 = vpop.f32.mrb[0].mxu0
        %v3011 = vadd.f32 0.0, %v3010
        %v3012 = vpop.f32.mrb[0].mxu0
        %3013 = vmatprep.mubr.bf16.mxu0 %v2675
        %3014 = vmatmul.mubr.bf16.gmra.mrb[0].mxu0 %v2548
        %v3015 = vpop.f32.mrb[0].mxu0
        %v3016 = vadd.f32 0.0, %v3015
        %v3017 = vpop.f32.mrb[0].mxu0
        %v3018 = vpop.f32.mrb[0].mxu0
        %v3019 = vadd.f32 0.0, %v3018
        %v3020 = vpop.f32.mrb[0].mxu0
        %3021 = vmatprep.mubr.bf16.mxu0 %v2677
        %3022 = vmatmul.mubr.bf16.gmra.mrb[0].mxu0 %v2551
        %v3023 = vpop.f32.mrb[0].mxu0
        %v3024 = vadd.f32 0.0, %v3023
        %v3025 = vpop.f32.mrb[0].mxu0
        %v3026 = vpop.f32.mrb[0].mxu0
        %v3027 = vadd.f32 0.0, %v3026
        %v3028 = vpop.f32.mrb[0].mxu0
        %3029 = vdwg.mxu0
        %3030 = vmatprep.subr.bf16.mxu0 0
        %3031 = vmatpush1.bf16.msra.mxu0 %v2804
        %3032 = vmatprep.subr.bf16.mxu0 0
        %3033 = vmatpush1.bf16.msra.mxu0 %v2805
        %3034 = vmatprep.subr.bf16.mxu0 0
        %3035 = vmatpush1.bf16.msra.mxu0 0
        %3036 = vmatprep.subr.bf16.mxu0 0
        %3037 = vmatpush1.bf16.msra.mxu0 0
        %3038 = vmatprep.subr.bf16.mxu0 0
        %3039 = vmatpush1.bf16.msra.mxu0 0
        %3040 = vmatprep.subr.bf16.mxu0 0
        %3041 = vmatpush1.bf16.msra.mxu0 0
        %3042 = vmatprep.subr.bf16.mxu0 0
        %3043 = vmatpush1.bf16.msra.mxu0 0
        %3044 = vmatprep.subr.bf16.mxu0 0
        %3045 = vmatpush1.bf16.msra.mxu0 0
        %3046 = vmatprep.subr.bf16.mxu0 0
        %3047 = vmatpush1.bf16.msra.mxu0 0
        %3048 = vmatprep.subr.bf16.mxu0 0
        %3049 = vmatpush1.bf16.msra.mxu0 0
        %3050 = vmatprep.subr.bf16.mxu0 0
        %3051 = vmatpush1.bf16.msra.mxu0 0
        %3052 = vmatprep.subr.bf16.mxu0 0
        %3053 = vmatpush1.bf16.msra.mxu0 0
        %3054 = vmatprep.subr.bf16.mxu0 0
        %3055 = vmatpush1.bf16.msra.mxu0 0
        %3056 = vmatprep.subr.bf16.mxu0 0
        %3057 = vmatpush1.bf16.msra.mxu0 0
        %3058 = vmatprep.subr.bf16.mxu0 0
        %3059 = vmatpush1.bf16.msra.mxu0 0
        %3060 = vmatprep.subr.bf16.mxu0 0
        %3061 = vmatpush1.bf16.msra.mxu0 0
        %3062 = vmatprep.mubr.bf16.mxu0 0
        %3063 = vmatmul.mubr.bf16.gmra.mrb[0].mxu0 %v2825
        %v3064 = vpop.f32.mrb[0].mxu0
        %v3065 = vadd.f32 %v2904, %v3064
        %v3066 = vpop.f32.mrb[0].mxu0
        %v3067 = vpop.f32.mrb[0].mxu0
        %v3068 = vadd.f32 %v2907, %v3067
        %v3069 = vpop.f32.mrb[0].mxu0
        %3070 = vmatprep.mubr.bf16.mxu0 0
        %3071 = vmatmul.mubr.bf16.gmra.mrb[0].mxu0 %v2828
        %v3072 = vpop.f32.mrb[0].mxu0
        %v3073 = vadd.f32 %v2912, %v3072
        %v3074 = vpop.f32.mrb[0].mxu0
        %v3075 = vpop.f32.mrb[0].mxu0
        %v3076 = vadd.f32 %v2915, %v3075
        %v3077 = vpop.f32.mrb[0].mxu0
        %3078 = vmatprep.mubr.bf16.mxu0 0
        %3079 = vmatmul.mubr.bf16.gmra.mrb[0].mxu0 %v2831
        %v3080 = vpop.f32.mrb[0].mxu0
        %v3081 = vadd.f32 %v2920, %v3080
        %v3082 = vpop.f32.mrb[0].mxu0
        %v3083 = vpop.f32.mrb[0].mxu0
        %v3084 = vadd.f32 %v2923, %v3083
        %v3085 = vpop.f32.mrb[0].mxu0
        %3086 = vmatprep.mubr.bf16.mxu0 0
        %3087 = vmatmul.mubr.bf16.gmra.mrb[0].mxu0 %v2834
        %v3088 = vpop.f32.mrb[0].mxu0
        %v3089 = vadd.f32 %v2928, %v3088
        %v3090 = vpop.f32.mrb[0].mxu0
        %v3091 = vpop.f32.mrb[0].mxu0
        %v3092 = vadd.f32 %v2931, %v3091
        %v3093 = vpop.f32.mrb[0].mxu0
        %3094 = vmatprep.mubr.bf16.mxu0 0
        %3095 = vmatmul.mubr.bf16.gmra.mrb[0].mxu0 %v2837
        %v3096 = vpop.f32.mrb[0].mxu0
        %v3097 = vadd.f32 %v2936, %v3096
        %v3098 = vpop.f32.mrb[0].mxu0
        %v3099 = vpop.f32.mrb[0].mxu0
        %v3100 = vadd.f32 %v2939, %v3099
        %v3101 = vpop.f32.mrb[0].mxu0
        %3102 = vmatprep.mubr.bf16.mxu0 0
        %3103 = vmatmul.mubr.bf16.gmra.mrb[0].mxu0 %v2840
        %v3104 = vpop.f32.mrb[0].mxu0
        %v3105 = vadd.f32 %v2944, %v3104
        %v3106 = vpop.f32.mrb[0].mxu0
        %v3107 = vpop.f32.mrb[0].mxu0
        %v3108 = vadd.f32 %v2947, %v3107
        %v3109 = vpop.f32.mrb[0].mxu0
        %3110 = vmatprep.mubr.bf16.mxu0 0
        %3111 = vmatmul.mubr.bf16.gmra.mrb[0].mxu0 %v2843
        %v3112 = vpop.f32.mrb[0].mxu0
        %v3113 = vadd.f32 %v2952, %v3112
        %v3114 = vpop.f32.mrb[0].mxu0
        %v3115 = vpop.f32.mrb[0].mxu0
        %v3116 = vadd.f32 %v2955, %v3115
        %v3117 = vpop.f32.mrb[0].mxu0
        %3118 = vmatprep.mubr.bf16.mxu0 0
        %3119 = vmatmul.mubr.bf16.gmra.mrb[0].mxu0 %v2846
        %v3120 = vpop.f32.mrb[0].mxu0
        %v3121 = vadd.f32 %v2960, %v3120
        %v3122 = vpop.f32.mrb[0].mxu0
        %v3123 = vpop.f32.mrb[0].mxu0
        %v3124 = vadd.f32 %v2963, %v3123
        %v3125 = vpop.f32.mrb[0].mxu0
        %3126 = vmatprep.mubr.bf16.mxu0 0
        %3127 = vmatmul.mubr.bf16.gmra.mrb[0].mxu0 %v2849
        %v3128 = vpop.f32.mrb[0].mxu0
        %v3129 = vadd.f32 %v2968, %v3128
        %v3130 = vpop.f32.mrb[0].mxu0
        %v3131 = vpop.f32.mrb[0].mxu0
        %v3132 = vadd.f32 %v2971, %v3131
        %v3133 = vpop.f32.mrb[0].mxu0
        %3134 = vmatprep.mubr.bf16.mxu0 0
        %3135 = vmatmul.mubr.bf16.gmra.mrb[0].mxu0 %v2852
        %v3136 = vpop.f32.mrb[0].mxu0
        %v3137 = vadd.f32 %v2976, %v3136
        %v3138 = vpop.f32.mrb[0].mxu0
        %v3139 = vpop.f32.mrb[0].mxu0
        %v3140 = vadd.f32 %v2979, %v3139
        %v3141 = vpop.f32.mrb[0].mxu0
        %3142 = vmatprep.mubr.bf16.mxu0 0
        %3143 = vmatmul.mubr.bf16.gmra.mrb[0].mxu0 %v2855
        %v3144 = vpop.f32.mrb[0].mxu0
        %v3145 = vadd.f32 %v2984, %v3144
        %v3146 = vpop.f32.mrb[0].mxu0
        %v3147 = vpop.f32.mrb[0].mxu0
        %v3148 = vadd.f32 %v2987, %v3147
        %v3149 = vpop.f32.mrb[0].mxu0
        %3150 = vmatprep.mubr.bf16.mxu0 0
        %3151 = vmatmul.mubr.bf16.gmra.mrb[0].mxu0 %v2858
        %v3152 = vpop.f32.mrb[0].mxu0
        %v3153 = vadd.f32 %v2992, %v3152
        %v3154 = vpop.f32.mrb[0].mxu0
        %v3155 = vpop.f32.mrb[0].mxu0
        %v3156 = vadd.f32 %v2995, %v3155
        %v3157 = vpop.f32.mrb[0].mxu0
        %3158 = vmatprep.mubr.bf16.mxu0 0
        %3159 = vmatmul.mubr.bf16.gmra.mrb[0].mxu0 %v2861
        %v3160 = vpop.f32.mrb[0].mxu0
        %v3161 = vadd.f32 %v3000, %v3160
        %v3162 = vpop.f32.mrb[0].mxu0
        %v3163 = vpop.f32.mrb[0].mxu0
        %v3164 = vadd.f32 %v3003, %v3163
        %v3165 = vpop.f32.mrb[0].mxu0
        %3166 = vmatprep.mubr.bf16.mxu0 0
        %3167 = vmatmul.mubr.bf16.gmra.mrb[0].mxu0 %v2864
        %v3168 = vpop.f32.mrb[0].mxu0
        %v3169 = vadd.f32 %v3008, %v3168
        %v3170 = vpop.f32.mrb[0].mxu0
        %v3171 = vpop.f32.mrb[0].mxu0
        %v3172 = vadd.f32 %v3011, %v3171
        %v3173 = vpop.f32.mrb[0].mxu0
        %3174 = vmatprep.mubr.bf16.mxu0 0
        %3175 = vmatmul.mubr.bf16.gmra.mrb[0].mxu0 %v2867
        %v3176 = vpop.f32.mrb[0].mxu0
        %v3177 = vadd.f32 %v3016, %v3176
        %v3178 = vpop.f32.mrb[0].mxu0
        %v3179 = vpop.f32.mrb[0].mxu0
        %v3180 = vadd.f32 %v3019, %v3179
        %v3181 = vpop.f32.mrb[0].mxu0
        %3182 = vmatprep.mubr.bf16.mxu0 0
        %3183 = vmatmul.mubr.bf16.gmra.mrb[0].mxu0 %v1375
        %v3184 = vpop.f32.mrb[0].mxu0
        %v3185 = vadd.f32 %v3024, %v3184
        %v3186 = vpop.f32.mrb[0].mxu0
        %v3187 = vpop.f32.mrb[0].mxu0
        %v3188 = vadd.f32 %v3027, %v3187
        %v3189 = vpop.f32.mrb[0].mxu0
        %3190 = vdwg.mxu0
        %v3191 = vsel %vm942, %v3065, 0.0
        %v3192 = vsel %vm942, %v3068, 0.0
        %v3193 = vadd.f32 %v3191, %v3192
        %v3194 = vsel %vm942, %v3073, 0.0
        %v3195 = vadd.f32 %v3193, %v3194
        %v3196 = vsel %vm942, %v3076, 0.0
        %v3197 = vadd.f32 %v3195, %v3196
        %v3198 = vsel %vm942, %v3081, 0.0
        %v3199 = vadd.f32 %v3197, %v3198
        %v3200 = vsel %vm942, %v3084, 0.0
        %v3201 = vadd.f32 %v3199, %v3200
        %v3202 = vsel %vm942, %v3089, 0.0
        %v3203 = vadd.f32 %v3201, %v3202
        %v3204 = vsel %vm942, %v3092, 0.0
        %v3205 = vadd.f32 %v3203, %v3204
        %v3206 = vsel %vm942, %v3097, 0.0
        %v3207 = vadd.f32 %v3205, %v3206
        %v3208 = vsel %vm942, %v3100, 0.0
        %v3209 = vadd.f32 %v3207, %v3208
        %v3210 = vsel %vm942, %v3105, 0.0
        %v3211 = vadd.f32 %v3209, %v3210
        %v3212 = vsel %vm942, %v3108, 0.0
        %v3213 = vadd.f32 %v3211, %v3212
        %v3214 = vsel %vm942, %v3113, 0.0
        %v3215 = vadd.f32 %v3213, %v3214
        %v3216 = vsel %vm942, %v3116, 0.0
        %v3217 = vadd.f32 %v3215, %v3216
        %v3218 = vsel %vm942, %v3121, 0.0
        %v3219 = vadd.f32 %v3217, %v3218
        %v3220 = vsel %vm942, %v3124, 0.0
        %v3221 = vadd.f32 %v3219, %v3220
        %v3222 = vsel %vm942, %v3129, 0.0
        %v3223 = vadd.f32 %v3221, %v3222
        %v3224 = vsel %vm942, %v3132, 0.0
        %v3225 = vadd.f32 %v3223, %v3224
        %v3226 = vsel %vm942, %v3137, 0.0
        %v3227 = vadd.f32 %v3225, %v3226
        %v3228 = vsel %vm942, %v3140, 0.0
        %v3229 = vadd.f32 %v3227, %v3228
        %v3230 = vsel %vm942, %v3145, 0.0
        %v3231 = vadd.f32 %v3229, %v3230
        %v3232 = vsel %vm942, %v3148, 0.0
        %v3233 = vadd.f32 %v3231, %v3232
        %v3234 = vsel %vm942, %v3153, 0.0
        %v3235 = vadd.f32 %v3233, %v3234
        %v3236 = vsel %vm942, %v3156, 0.0
        %v3237 = vadd.f32 %v3235, %v3236
        %v3238 = vsel %vm942, %v3161, 0.0
        %v3239 = vadd.f32 %v3237, %v3238
        %v3240 = vsel %vm942, %v3164, 0.0
        %v3241 = vadd.f32 %v3239, %v3240
        %v3242 = vsel %vm942, %v3169, 0.0
        %v3243 = vadd.f32 %v3241, %v3242
        %v3244 = vsel %vm942, %v3172, 0.0
        %v3245 = vadd.f32 %v3243, %v3244
        %v3246 = vsel %vm942, %v3177, 0.0
        %v3247 = vadd.f32 %v3245, %v3246
        %v3248 = vsel %vm942, %v3180, 0.0
        %v3249 = vadd.f32 %v3247, %v3248
        %v3250 = vsel %vm942, %v3185, 0.0
        %v3251 = vadd.f32 %v3249, %v3250
        %v3252 = vsel %vm942, %v3188, 0.0
        %v3253 = vadd.f32 %v3251, %v3252
        %v3254 = vrot.slane %v3253, 4
        %v3255 = vadd.f32 %v3253, %v3254
        %v3256 = vrot.slane %v3255, 2
        %v3257 = vadd.f32 %v3255, %v3256
        %v3258 = vrot.slane %v3257, 1
        %v3259 = vadd.f32 %v3257, %v3258
        %v3260 = vrcp.pop 256.0
        %v3261 = vmul.f32 %v3259, %v3260
        %v3262 = vld [vmem:[%s3] sm:$0xff]
        %v3263 = vld [vmem:[%s3 + $0x8] sm:$0xff]
        %v3264 = vld [vmem:[%s3 + $0x10] sm:$0xff]
        %v3265 = vld [vmem:[%s3 + $0x18] sm:$0xff]
        %v3267 = vsel %vm942, %v3261, 0
        %3269 = vmatprep.subr.mxu0 0.0
        %3270 = vmatpush1.msra.mxu0 %v3262
        %3271 = vmatprep.subr.mxu0 0.0
        %3272 = vmatpush1.msra.mxu0 %v3263
        %3273 = vmatprep.subr.mxu0 0.0
        %3274 = vmatpush1.msra.mxu0 %v3264
        %3275 = vmatprep.subr.mxu0 0.0
        %3276 = vmatpush1.msra.mxu0 %v3265
        %3277 = vmatprep.subr.mxu0 0.0
        %3278 = vmatpush1.msra.mxu0 0.0
        %3279 = vmatprep.subr.mxu0 0.0
        %3280 = vmatpush1.msra.mxu0 0.0
        %3281 = vmatprep.subr.mxu0 0.0
        %3282 = vmatpush1.msra.mxu0 0.0
        %3283 = vmatprep.subr.mxu0 0.0
        %3284 = vmatpush1.msra.mxu0 0.0
        %3285 = vmatprep.subr.mxu0 0.0
        %3286 = vmatpush1.msra.mxu0 0.0
        %3287 = vmatprep.subr.mxu0 0.0
        %3288 = vmatpush1.msra.mxu0 0.0
        %3289 = vmatprep.subr.mxu0 0.0
        %3290 = vmatpush1.msra.mxu0 0.0
        %3291 = vmatprep.subr.mxu0 0.0
        %3292 = vmatpush1.msra.mxu0 0.0
        %3293 = vmatprep.subr.mxu0 0.0
        %3294 = vmatpush1.msra.mxu0 0.0
        %3295 = vmatprep.subr.mxu0 0.0
        %3296 = vmatpush1.msra.mxu0 0.0
        %3297 = vmatprep.subr.mxu0 0.0
        %3298 = vmatpush1.msra.mxu0 0.0
        %3299 = vmatprep.subr.mxu0 0.0
        %3300 = vmatpush1.msra.mxu0 0.0
        %3301 = vmatprep.subr.mxu0 0.0
        %3302 = vmatpush1.msra.mxu0 0.0
        %3303 = vmatprep.subr.mxu0 0.0
        %3304 = vmatpush1.msra.mxu0 0.0
        %3305 = vmatprep.subr.mxu0 0.0
        %3306 = vmatpush1.msra.mxu0 0.0
        %3307 = vmatprep.subr.mxu0 0.0
        %3308 = vmatpush1.msra.mxu0 0.0
        %3309 = vmatprep.subr.mxu0 0.0
        %3310 = vmatpush1.msra.mxu0 0.0
        %3311 = vmatprep.subr.mxu0 0.0
        %3312 = vmatpush1.msra.mxu0 0.0
        %3313 = vmatprep.subr.mxu0 0.0
        %3314 = vmatpush1.msra.mxu0 0.0
        %3315 = vmatprep.subr.mxu0 0.0
        %3316 = vmatpush1.msra.mxu0 0.0
        %3317 = vmatprep.subr.mxu0 0.0
        %3318 = vmatpush1.msra.mxu0 0.0
        %3319 = vmatprep.subr.mxu0 0.0
        %3320 = vmatpush1.msra.mxu0 0.0
        %3321 = vmatprep.subr.mxu0 0.0
        %3322 = vmatpush1.msra.mxu0 0.0
        %3323 = vmatprep.subr.mxu0 0.0
        %3324 = vmatpush1.msra.mxu0 0.0
        %3325 = vmatprep.subr.mxu0 0.0
        %3326 = vmatpush1.msra.mxu0 0.0
        %3327 = vmatprep.subr.mxu0 0.0
        %3328 = vmatpush1.msra.mxu0 0.0
        %3329 = vmatprep.subr.mxu0 0.0
        %3330 = vmatpush1.msra.mxu0 0.0
        %3331 = vmatprep.subr.mxu0 0.0
        %3332 = vmatpush1.msra.mxu0 0.0
        %3333 = vmatprep.mubr.f32.mxu0 0.0
        %3334 = vmatmul.mubr.f32.gmra.mrb[0].mxu0 %v3267
        %v3335 = vpop.f32.mrb[0].mxu0
        %v3336 = vadd.f32 0.0, %v3335
        %v3337 = vpop.f32.mrb[0].mxu0
        %3338 = vdwg.mxu0
        %v3339 = vmax.f32 %v3336, 0.0
        %v3340 = vld [vmem:[%s4] sm:$0xff]
        %vm3341 = vcmask 64512
        %v3343 = vsel %vm3341, %v3339, 0
        %3345 = vmatprep.subr.mxu0 0.0
        %3346 = vmatpush1.msra.mxu0 %v3340
        %3347 = vmatprep.subr.mxu0 0.0
        %3348 = vmatpush1.msra.mxu0 0.0
        %3349 = vmatprep.subr.mxu0 0.0
        %3350 = vmatpush1.msra.mxu0 0.0
        %3351 = vmatprep.subr.mxu0 0.0
        %3352 = vmatpush1.msra.mxu0 0.0
        %3353 = vmatprep.subr.mxu0 0.0
        %3354 = vmatpush1.msra.mxu0 0.0
        %3355 = vmatprep.subr.mxu0 0.0
        %3356 = vmatpush1.msra.mxu0 0.0
        %3357 = vmatprep.subr.mxu0 0.0
        %3358 = vmatpush1.msra.mxu0 0.0
        %3359 = vmatprep.subr.mxu0 0.0
        %3360 = vmatpush1.msra.mxu0 0.0
        %3361 = vmatprep.subr.mxu0 0.0
        %3362 = vmatpush1.msra.mxu0 0.0
        %3363 = vmatprep.subr.mxu0 0.0
        %3364 = vmatpush1.msra.mxu0 0.0
        %3365 = vmatprep.subr.mxu0 0.0
        %3366 = vmatpush1.msra.mxu0 0.0
        %3367 = vmatprep.subr.mxu0 0.0
        %3368 = vmatpush1.msra.mxu0 0.0
        %3369 = vmatprep.subr.mxu0 0.0
        %3370 = vmatpush1.msra.mxu0 0.0
        %3371 = vmatprep.subr.mxu0 0.0
        %3372 = vmatpush1.msra.mxu0 0.0
        %3373 = vmatprep.subr.mxu0 0.0
        %3374 = vmatpush1.msra.mxu0 0.0
        %3375 = vmatprep.subr.mxu0 0.0
        %3376 = vmatpush1.msra.mxu0 0.0
        %3377 = vmatprep.subr.mxu0 0.0
        %3378 = vmatpush1.msra.mxu0 0.0
        %3379 = vmatprep.subr.mxu0 0.0
        %3380 = vmatpush1.msra.mxu0 0.0
        %3381 = vmatprep.subr.mxu0 0.0
        %3382 = vmatpush1.msra.mxu0 0.0
        %3383 = vmatprep.subr.mxu0 0.0
        %3384 = vmatpush1.msra.mxu0 0.0
        %3385 = vmatprep.subr.mxu0 0.0
        %3386 = vmatpush1.msra.mxu0 0.0
        %3387 = vmatprep.subr.mxu0 0.0
        %3388 = vmatpush1.msra.mxu0 0.0
        %3389 = vmatprep.subr.mxu0 0.0
        %3390 = vmatpush1.msra.mxu0 0.0
        %3391 = vmatprep.subr.mxu0 0.0
        %3392 = vmatpush1.msra.mxu0 0.0
        %3393 = vmatprep.subr.mxu0 0.0
        %3394 = vmatpush1.msra.mxu0 0.0
        %3395 = vmatprep.subr.mxu0 0.0
        %3396 = vmatpush1.msra.mxu0 0.0
        %3397 = vmatprep.subr.mxu0 0.0
        %3398 = vmatpush1.msra.mxu0 0.0
        %3399 = vmatprep.subr.mxu0 0.0
        %3400 = vmatpush1.msra.mxu0 0.0
        %3401 = vmatprep.subr.mxu0 0.0
        %3402 = vmatpush1.msra.mxu0 0.0
        %3403 = vmatprep.subr.mxu0 0.0
        %3404 = vmatpush1.msra.mxu0 0.0
        %3405 = vmatprep.subr.mxu0 0.0
        %3406 = vmatpush1.msra.mxu0 0.0
        %3407 = vmatprep.subr.mxu0 0.0
        %3408 = vmatpush1.msra.mxu0 0.0
        %3409 = vmatprep.mubr.f32.mxu0 0.0
        %3410 = vmatmul.mubr.f32.gmra.mrb[0].mxu0 %v3343
        %v3411 = vpop.f32.mrb[0].mxu0
        %v3412 = vadd.f32 0.0, %v3411
        %v3413 = vpop.f32.mrb[0].mxu0
        %3414 = vdwg.mxu0
        %v3415 = vxor.u32 %v3412, 2147483648
        %v3416 = vmul.f32 %v3415, 1.442695
        %v3417 = vpow.pop %v3416
        %v3418 = vadd.f32 %v3417, 1.0
        %v3419 = vrcp.pop %v3418
        %v3420 = vmul.f32 1.0, %v3419
        %v3421 = vlaneseq
        %v3422 = vshrl.u32 %v3421, 7
        %v3423 = vsub.s32 0, %v3422
        %v3424 = vrot.slane %v3420, %v3423
        %v3425 = vmul.f32 %v3065, %v3424
        %v3426 = vmul.f32 %v3068, %v3424
        %v3427 = vmul.f32 %v3073, %v3424
        %v3428 = vmul.f32 %v3076, %v3424
        %v3429 = vmul.f32 %v3081, %v3424
        %v3430 = vmul.f32 %v3084, %v3424
        %v3431 = vmul.f32 %v3089, %v3424
        %v3432 = vmul.f32 %v3092, %v3424
        %v3433 = vmul.f32 %v3097, %v3424
        %v3434 = vmul.f32 %v3100, %v3424
        %v3435 = vmul.f32 %v3105, %v3424
        %v3436 = vmul.f32 %v3108, %v3424
        %v3437 = vmul.f32 %v3113, %v3424
        %v3438 = vmul.f32 %v3116, %v3424
        %v3439 = vmul.f32 %v3121, %v3424
        %v3440 = vmul.f32 %v3124, %v3424
        %v3441 = vmul.f32 %v3129, %v3424
        %v3442 = vmul.f32 %v3132, %v3424
        %v3443 = vmul.f32 %v3137, %v3424
        %v3444 = vmul.f32 %v3140, %v3424
        %v3445 = vmul.f32 %v3145, %v3424
        %v3446 = vmul.f32 %v3148, %v3424
        %v3447 = vmul.f32 %v3153, %v3424
        %v3448 = vmul.f32 %v3156, %v3424
        %v3449 = vmul.f32 %v3161, %v3424
        %v3450 = vmul.f32 %v3164, %v3424
        %v3451 = vmul.f32 %v3169, %v3424
        %v3452 = vmul.f32 %v3172, %v3424
        %v3453 = vmul.f32 %v3177, %v3424
        %v3454 = vmul.f32 %v3180, %v3424
        %v3455 = vmul.f32 %v3185, %v3424
        %v3456 = vmul.f32 %v3188, %v3424
        %v3457 = vadd.f32 %v3425, %v238
        %v3458 = vadd.f32 %v3426, %v239
        %v3459 = vadd.f32 %v3427, %v240
        %v3460 = vadd.f32 %v3428, %v241
        %v3461 = vadd.f32 %v3429, %v242
        %v3462 = vadd.f32 %v3430, %v243
        %v3463 = vadd.f32 %v3431, %v244
        %v3464 = vadd.f32 %v3432, %v245
        %v3465 = vadd.f32 %v3433, %v246
        %v3466 = vadd.f32 %v3434, %v247
        %v3467 = vadd.f32 %v3435, %v248
        %v3468 = vadd.f32 %v3436, %v249
        %v3469 = vadd.f32 %v3437, %v250
        %v3470 = vadd.f32 %v3438, %v251
        %v3471 = vadd.f32 %v3439, %v252
        %v3472 = vadd.f32 %v3440, %v253
        %v3473 = vadd.f32 %v3441, %v254
        %v3474 = vadd.f32 %v3442, %v255
        %v3475 = vadd.f32 %v3443, %v256
        %v3476 = vadd.f32 %v3444, %v257
        %v3477 = vadd.f32 %v3445, %v258
        %v3478 = vadd.f32 %v3446, %v259
        %v3479 = vadd.f32 %v3447, %v260
        %v3480 = vadd.f32 %v3448, %v261
        %v3481 = vadd.f32 %v3449, %v262
        %v3482 = vadd.f32 %v3450, %v263
        %v3483 = vadd.f32 %v3451, %v264
        %v3484 = vadd.f32 %v3452, %v265
        %v3485 = vadd.f32 %v3453, %v266
        %v3486 = vadd.f32 %v3454, %v267
        %v3487 = vadd.f32 %v3455, %v268
        %v3488 = vadd.f32 %v3456, %v269
        %v3489 = vpack.c.bf16 %v3458, %v3457
        %v3490 = vpack.c.bf16 %v3460, %v3459
        %v3491 = vpack.c.bf16 %v3462, %v3461
        %v3492 = vpack.c.bf16 %v3464, %v3463
        %v3493 = vpack.c.bf16 %v3466, %v3465
        %v3494 = vpack.c.bf16 %v3468, %v3467
        %v3495 = vpack.c.bf16 %v3470, %v3469
        %v3496 = vpack.c.bf16 %v3472, %v3471
        %v3497 = vpack.c.bf16 %v3474, %v3473
        %v3498 = vpack.c.bf16 %v3476, %v3475
        %v3499 = vpack.c.bf16 %v3478, %v3477
        %v3500 = vpack.c.bf16 %v3480, %v3479
        %v3501 = vpack.c.bf16 %v3482, %v3481
        %v3502 = vpack.c.bf16 %v3484, %v3483
        %v3503 = vpack.c.bf16 %v3486, %v3485
        %v3504 = vpack.c.bf16 %v3488, %v3487
        %v3506 = vshrl.u32 %v3489, 16
        %v3508 = vrot.slane %v3506, 7
        %v3509 = vshll.u32 %v3489, 16
        %v3511 = vor.u32 %v3508, %v3509
        %v3513 = vshrl.u32 %v3490, 16
        %v3515 = vrot.slane %v3513, 7
        %v3516 = vshll.u32 %v3490, 16
        %v3518 = vor.u32 %v3515, %v3516
        %v3520 = vshrl.u32 %v3491, 16
        %v3522 = vrot.slane %v3520, 7
        %v3523 = vshll.u32 %v3491, 16
        %v3525 = vor.u32 %v3522, %v3523
        %v3527 = vshrl.u32 %v3492, 16
        %v3529 = vrot.slane %v3527, 7
        %v3530 = vshll.u32 %v3492, 16
        %v3532 = vor.u32 %v3529, %v3530
        %v3534 = vshrl.u32 %v3493, 16
        %v3536 = vrot.slane %v3534, 7
        %v3537 = vshll.u32 %v3493, 16
        %v3539 = vor.u32 %v3536, %v3537
        %v3541 = vshrl.u32 %v3494, 16
        %v3543 = vrot.slane %v3541, 7
        %v3544 = vshll.u32 %v3494, 16
        %v3546 = vor.u32 %v3543, %v3544
        %v3548 = vshrl.u32 %v3495, 16
        %v3550 = vrot.slane %v3548, 7
        %v3551 = vshll.u32 %v3495, 16
        %v3553 = vor.u32 %v3550, %v3551
        %v3555 = vshrl.u32 %v3496, 16
        %v3557 = vrot.slane %v3555, 7
        %v3558 = vshll.u32 %v3496, 16
        %v3560 = vor.u32 %v3557, %v3558
        %v3562 = vshrl.u32 %v3497, 16
        %v3564 = vrot.slane %v3562, 7
        %v3565 = vshll.u32 %v3497, 16
        %v3567 = vor.u32 %v3564, %v3565
        %v3569 = vshrl.u32 %v3498, 16
        %v3571 = vrot.slane %v3569, 7
        %v3572 = vshll.u32 %v3498, 16
        %v3574 = vor.u32 %v3571, %v3572
        %v3576 = vshrl.u32 %v3499, 16
        %v3578 = vrot.slane %v3576, 7
        %v3579 = vshll.u32 %v3499, 16
        %v3581 = vor.u32 %v3578, %v3579
        %v3583 = vshrl.u32 %v3500, 16
        %v3585 = vrot.slane %v3583, 7
        %v3586 = vshll.u32 %v3500, 16
        %v3588 = vor.u32 %v3585, %v3586
        %v3590 = vshrl.u32 %v3501, 16
        %v3592 = vrot.slane %v3590, 7
        %v3593 = vshll.u32 %v3501, 16
        %v3595 = vor.u32 %v3592, %v3593
        %v3597 = vshrl.u32 %v3502, 16
        %v3599 = vrot.slane %v3597, 7
        %v3600 = vshll.u32 %v3502, 16
        %v3602 = vor.u32 %v3599, %v3600
        %v3604 = vshrl.u32 %v3503, 16
        %v3606 = vrot.slane %v3604, 7
        %v3607 = vshll.u32 %v3503, 16
        %v3609 = vor.u32 %v3606, %v3607
        %v3611 = vshrl.u32 %v3504, 16
        %v3613 = vrot.slane %v3611, 7
        %v3614 = vshll.u32 %v3504, 16
        %v3616 = vor.u32 %v3613, %v3614
        %v3649 = vsel %vm432, 0, %v3511
        %v3650 = vsel %vm432, 0, %v3518
        %v3651 = vsel %vm432, 0, %v3525
        %v3652 = vsel %vm432, 0, %v3532
        %v3653 = vsel %vm432, 0, %v3539
        %v3654 = vsel %vm432, 0, %v3546
        %v3655 = vsel %vm432, 0, %v3553
        %v3656 = vsel %vm432, 0, %v3560
        %v3657 = vsel %vm432, 0, %v3567
        %v3658 = vsel %vm432, 0, %v3574
        %v3659 = vsel %vm432, 0, %v3581
        %v3660 = vsel %vm432, 0, %v3588
        %v3661 = vsel %vm432, 0, %v3595
        %v3662 = vsel %vm432, 0, %v3602
        %v3663 = vsel %vm432, 0, %v3609
        %v3664 = vsel %vm432, 0, %v3616
        %v3665 = vsel %vm432, %v3508, 0
        %v3666 = vsel %vm432, %v3515, 0
        %v3667 = vsel %vm432, %v3522, 0
        %v3668 = vsel %vm432, %v3529, 0
        %v3669 = vsel %vm432, %v3536, 0
        %v3670 = vsel %vm432, %v3543, 0
        %v3671 = vsel %vm432, %v3550, 0
        %v3672 = vsel %vm432, %v3557, 0
        %v3673 = vsel %vm432, %v3564, 0
        %v3674 = vsel %vm432, %v3571, 0
        %v3675 = vsel %vm432, %v3578, 0
        %v3676 = vsel %vm432, %v3585, 0
        %v3677 = vsel %vm432, %v3592, 0
        %v3678 = vsel %vm432, %v3599, 0
        %v3679 = vsel %vm432, %v3606, 0
        %v3680 = vsel %vm432, %v3613, 0
        %v3682 = vshrl.u32 %v3649, 16
        %v3684 = vshll.u32 %v3649, 16
        %v3686 = vrot.slane %v3684, 1
        %v3687 = vor.u32 %v3682, %v3686
        %v3689 = vshll.u32 %v3665, 16
        %v3691 = vrot.slane %v3689, 1
        %v3692 = vsel %vm465, %v3687, %v3691
        %v3694 = vshrl.u32 %v3650, 16
        %v3696 = vshll.u32 %v3650, 16
        %v3698 = vrot.slane %v3696, 1
        %v3699 = vor.u32 %v3694, %v3698
        %v3701 = vshll.u32 %v3666, 16
        %v3703 = vrot.slane %v3701, 1
        %v3704 = vsel %vm465, %v3699, %v3703
        %v3706 = vshrl.u32 %v3651, 16
        %v3708 = vshll.u32 %v3651, 16
        %v3710 = vrot.slane %v3708, 1
        %v3711 = vor.u32 %v3706, %v3710
        %v3713 = vshll.u32 %v3667, 16
        %v3715 = vrot.slane %v3713, 1
        %v3716 = vsel %vm465, %v3711, %v3715
        %v3718 = vshrl.u32 %v3652, 16
        %v3720 = vshll.u32 %v3652, 16
        %v3722 = vrot.slane %v3720, 1
        %v3723 = vor.u32 %v3718, %v3722
        %v3725 = vshll.u32 %v3668, 16
        %v3727 = vrot.slane %v3725, 1
        %v3728 = vsel %vm465, %v3723, %v3727
        %v3730 = vshrl.u32 %v3653, 16
        %v3732 = vshll.u32 %v3653, 16
        %v3734 = vrot.slane %v3732, 1
        %v3735 = vor.u32 %v3730, %v3734
        %v3737 = vshll.u32 %v3669, 16
        %v3739 = vrot.slane %v3737, 1
        %v3740 = vsel %vm465, %v3735, %v3739
        %v3742 = vshrl.u32 %v3654, 16
        %v3744 = vshll.u32 %v3654, 16
        %v3746 = vrot.slane %v3744, 1
        %v3747 = vor.u32 %v3742, %v3746
        %v3749 = vshll.u32 %v3670, 16
        %v3751 = vrot.slane %v3749, 1
        %v3752 = vsel %vm465, %v3747, %v3751
        %v3754 = vshrl.u32 %v3655, 16
        %v3756 = vshll.u32 %v3655, 16
        %v3758 = vrot.slane %v3756, 1
        %v3759 = vor.u32 %v3754, %v3758
        %v3761 = vshll.u32 %v3671, 16
        %v3763 = vrot.slane %v3761, 1
        %v3764 = vsel %vm465, %v3759, %v3763
        %v3766 = vshrl.u32 %v3656, 16
        %v3768 = vshll.u32 %v3656, 16
        %v3770 = vrot.slane %v3768, 1
        %v3771 = vor.u32 %v3766, %v3770
        %v3773 = vshll.u32 %v3672, 16
        %v3775 = vrot.slane %v3773, 1
        %v3776 = vsel %vm465, %v3771, %v3775
        %v3778 = vshrl.u32 %v3657, 16
        %v3780 = vshll.u32 %v3657, 16
        %v3782 = vrot.slane %v3780, 1
        %v3783 = vor.u32 %v3778, %v3782
        %v3785 = vshll.u32 %v3673, 16
        %v3787 = vrot.slane %v3785, 1
        %v3788 = vsel %vm465, %v3783, %v3787
        %v3790 = vshrl.u32 %v3658, 16
        %v3792 = vshll.u32 %v3658, 16
        %v3794 = vrot.slane %v3792, 1
        %v3795 = vor.u32 %v3790, %v3794
        %v3797 = vshll.u32 %v3674, 16
        %v3799 = vrot.slane %v3797, 1
        %v3800 = vsel %vm465, %v3795, %v3799
        %v3802 = vshrl.u32 %v3659, 16
        %v3804 = vshll.u32 %v3659, 16
        %v3806 = vrot.slane %v3804, 1
        %v3807 = vor.u32 %v3802, %v3806
        %v3809 = vshll.u32 %v3675, 16
        %v3811 = vrot.slane %v3809, 1
        %v3812 = vsel %vm465, %v3807, %v3811
        %v3814 = vshrl.u32 %v3660, 16
        %v3816 = vshll.u32 %v3660, 16
        %v3818 = vrot.slane %v3816, 1
        %v3819 = vor.u32 %v3814, %v3818
        %v3821 = vshll.u32 %v3676, 16
        %v3823 = vrot.slane %v3821, 1
        %v3824 = vsel %vm465, %v3819, %v3823
        %v3826 = vshrl.u32 %v3661, 16
        %v3828 = vshll.u32 %v3661, 16
        %v3830 = vrot.slane %v3828, 1
        %v3831 = vor.u32 %v3826, %v3830
        %v3833 = vshll.u32 %v3677, 16
        %v3835 = vrot.slane %v3833, 1
        %v3836 = vsel %vm465, %v3831, %v3835
        %v3838 = vshrl.u32 %v3662, 16
        %v3840 = vshll.u32 %v3662, 16
        %v3842 = vrot.slane %v3840, 1
        %v3843 = vor.u32 %v3838, %v3842
        %v3845 = vshll.u32 %v3678, 16
        %v3847 = vrot.slane %v3845, 1
        %v3848 = vsel %vm465, %v3843, %v3847
        %v3850 = vshrl.u32 %v3663, 16
        %v3852 = vshll.u32 %v3663, 16
        %v3854 = vrot.slane %v3852, 1
        %v3855 = vor.u32 %v3850, %v3854
        %v3857 = vshll.u32 %v3679, 16
        %v3859 = vrot.slane %v3857, 1
        %v3860 = vsel %vm465, %v3855, %v3859
        %v3891 = vrot.slane %v3649, 1
        %v3892 = vrot.slane %v3665, 1
        %v3893 = vsel %vm685, %v3891, %v3892
        %v3894 = vrot.slane %v3650, 1
        %v3895 = vrot.slane %v3666, 1
        %v3896 = vsel %vm685, %v3894, %v3895
        %v3897 = vrot.slane %v3651, 1
        %v3898 = vrot.slane %v3667, 1
        %v3899 = vsel %vm685, %v3897, %v3898
        %v3900 = vrot.slane %v3652, 1
        %v3901 = vrot.slane %v3668, 1
        %v3902 = vsel %vm685, %v3900, %v3901
        %v3903 = vrot.slane %v3653, 1
        %v3904 = vrot.slane %v3669, 1
        %v3905 = vsel %vm685, %v3903, %v3904
        %v3906 = vrot.slane %v3654, 1
        %v3907 = vrot.slane %v3670, 1
        %v3908 = vsel %vm685, %v3906, %v3907
        %v3909 = vrot.slane %v3655, 1
        %v3910 = vrot.slane %v3671, 1
        %v3911 = vsel %vm685, %v3909, %v3910
        %v3912 = vrot.slane %v3656, 1
        %v3913 = vrot.slane %v3672, 1
        %v3914 = vsel %vm685, %v3912, %v3913
        %v3915 = vrot.slane %v3657, 1
        %v3916 = vrot.slane %v3673, 1
        %v3917 = vsel %vm685, %v3915, %v3916
        %v3918 = vrot.slane %v3658, 1
        %v3919 = vrot.slane %v3674, 1
        %v3920 = vsel %vm685, %v3918, %v3919
        %v3921 = vrot.slane %v3659, 1
        %v3922 = vrot.slane %v3675, 1
        %v3923 = vsel %vm685, %v3921, %v3922
        %v3924 = vrot.slane %v3660, 1
        %v3925 = vrot.slane %v3676, 1
        %v3926 = vsel %vm685, %v3924, %v3925
        %v3927 = vrot.slane %v3661, 1
        %v3928 = vrot.slane %v3677, 1
        %v3929 = vsel %vm685, %v3927, %v3928
        %v3930 = vrot.slane %v3662, 1
        %v3931 = vrot.slane %v3678, 1
        %v3932 = vsel %vm685, %v3930, %v3931
        %v3933 = vrot.slane %v3663, 1
        %v3934 = vrot.slane %v3679, 1
        %v3935 = vsel %vm685, %v3933, %v3934
        %v3937 = vshrl.u32 %v3664, 16
        %v3939 = vshll.u32 %v3664, 16
        %v3941 = vrot.slane %v3939, 1
        %v3942 = vor.u32 %v3937, %v3941
        %v3944 = vshll.u32 %v3680, 16
        %v3946 = vrot.slane %v3944, 1
        %v3947 = vsel %vm465, %v3942, %v3946
        %v3950 = vrot.slane %v3664, 1
        %v3951 = vrot.slane %v3680, 1
        %v3952 = vsel %vm685, %v3950, %v3951
        %3953 = vrot.lane.b32.xlu0 %v3692, 32
        %v3954 = vpop.permute.xlu0 %3953
        %3955 = vrot.lane.b32.xlu0 %v3704, 32
        %v3956 = vpop.permute.xlu0 %3955
        %3957 = vrot.lane.b32.xlu0 %v3716, 32
        %v3958 = vpop.permute.xlu0 %3957
        %3959 = vrot.lane.b32.xlu0 %v3728, 32
        %v3960 = vpop.permute.xlu0 %3959
        %3961 = vrot.lane.b32.xlu0 %v3740, 32
        %v3962 = vpop.permute.xlu0 %3961
        %3963 = vrot.lane.b32.xlu0 %v3752, 32
        %v3964 = vpop.permute.xlu0 %3963
        %3965 = vrot.lane.b32.xlu0 %v3764, 32
        %v3966 = vpop.permute.xlu0 %3965
        %3967 = vrot.lane.b32.xlu0 %v3776, 32
        %v3968 = vpop.permute.xlu0 %3967
        %3969 = vrot.lane.b32.xlu0 %v3788, 32
        %v3970 = vpop.permute.xlu0 %3969
        %3971 = vrot.lane.b32.xlu0 %v3800, 32
        %v3972 = vpop.permute.xlu0 %3971
        %3973 = vrot.lane.b32.xlu0 %v3812, 32
        %v3974 = vpop.permute.xlu0 %3973
        %3975 = vrot.lane.b32.xlu0 %v3824, 32
        %v3976 = vpop.permute.xlu0 %3975
        %3977 = vrot.lane.b32.xlu0 %v3836, 32
        %v3978 = vpop.permute.xlu0 %3977
        %3979 = vrot.lane.b32.xlu0 %v3848, 32
        %v3980 = vpop.permute.xlu0 %3979
        %3981 = vrot.lane.b32.xlu0 %v3860, 32
        %v3982 = vpop.permute.xlu0 %3981
        %3983 = vrot.lane.b32.xlu0 %v3893, 64
        %v3984 = vpop.permute.xlu0 %3983
        %3985 = vrot.lane.b32.xlu0 %v3896, 64
        %v3986 = vpop.permute.xlu0 %3985
        %3987 = vrot.lane.b32.xlu0 %v3899, 64
        %v3988 = vpop.permute.xlu0 %3987
        %3989 = vrot.lane.b32.xlu0 %v3902, 64
        %v3990 = vpop.permute.xlu0 %3989
        %3991 = vrot.lane.b32.xlu0 %v3905, 64
        %v3992 = vpop.permute.xlu0 %3991
        %3993 = vrot.lane.b32.xlu0 %v3908, 64
        %v3994 = vpop.permute.xlu0 %3993
        %3995 = vrot.lane.b32.xlu0 %v3911, 64
        %v3996 = vpop.permute.xlu0 %3995
        %3997 = vrot.lane.b32.xlu0 %v3914, 64
        %v3998 = vpop.permute.xlu0 %3997
        %3999 = vrot.lane.b32.xlu0 %v3917, 64
        %v4000 = vpop.permute.xlu0 %3999
        %4001 = vrot.lane.b32.xlu0 %v3920, 64
        %v4002 = vpop.permute.xlu0 %4001
        %4003 = vrot.lane.b32.xlu0 %v3923, 64
        %v4004 = vpop.permute.xlu0 %4003
        %4005 = vrot.lane.b32.xlu0 %v3926, 64
        %v4006 = vpop.permute.xlu0 %4005
        %4007 = vrot.lane.b32.xlu0 %v3929, 64
        %v4008 = vpop.permute.xlu0 %4007
        %4009 = vrot.lane.b32.xlu0 %v3932, 64
        %v4010 = vpop.permute.xlu0 %4009
        %4011 = vrot.lane.b32.xlu0 %v3935, 64
        %v4012 = vpop.permute.xlu0 %4011
        %4013 = vrot.lane.b32.xlu0 %v3649, 96
        %v4014 = vpop.permute.xlu0 %4013
        %4015 = vrot.lane.b32.xlu0 %v3650, 96
        %v4016 = vpop.permute.xlu0 %4015
        %4017 = vrot.lane.b32.xlu0 %v3651, 96
        %v4018 = vpop.permute.xlu0 %4017
        %4019 = vrot.lane.b32.xlu0 %v3652, 96
        %v4020 = vpop.permute.xlu0 %4019
        %4021 = vrot.lane.b32.xlu0 %v3653, 96
        %v4022 = vpop.permute.xlu0 %4021
        %4023 = vrot.lane.b32.xlu0 %v3654, 96
        %v4024 = vpop.permute.xlu0 %4023
        %4025 = vrot.lane.b32.xlu0 %v3655, 96
        %v4026 = vpop.permute.xlu0 %4025
        %4027 = vrot.lane.b32.xlu0 %v3656, 96
        %v4028 = vpop.permute.xlu0 %4027
        %4029 = vrot.lane.b32.xlu0 %v3657, 96
        %v4030 = vpop.permute.xlu0 %4029
        %4031 = vrot.lane.b32.xlu0 %v3658, 96
        %v4032 = vpop.permute.xlu0 %4031
        %4033 = vrot.lane.b32.xlu0 %v3659, 96
        %v4034 = vpop.permute.xlu0 %4033
        %4035 = vrot.lane.b32.xlu0 %v3660, 96
        %v4036 = vpop.permute.xlu0 %4035
        %4037 = vrot.lane.b32.xlu0 %v3661, 96
        %v4038 = vpop.permute.xlu0 %4037
        %4039 = vrot.lane.b32.xlu0 %v3662, 96
        %v4040 = vpop.permute.xlu0 %4039
        %4041 = vrot.lane.b32.xlu0 %v3663, 96
        %v4042 = vpop.permute.xlu0 %4041
        %4043 = vrot.lane.b32.xlu0 %v3664, 96
        %v4044 = vpop.permute.xlu0 %4043
        %4045 = vrot.lane.b32.xlu0 %v3893, 32
        %v4046 = vpop.permute.xlu0 %4045
        %4047 = vrot.lane.b32.xlu0 %v3896, 32
        %v4048 = vpop.permute.xlu0 %4047
        %4049 = vrot.lane.b32.xlu0 %v3899, 32
        %v4050 = vpop.permute.xlu0 %4049
        %4051 = vrot.lane.b32.xlu0 %v3902, 32
        %v4052 = vpop.permute.xlu0 %4051
        %4053 = vrot.lane.b32.xlu0 %v3905, 32
        %v4054 = vpop.permute.xlu0 %4053
        %4055 = vrot.lane.b32.xlu0 %v3908, 32
        %v4056 = vpop.permute.xlu0 %4055
        %4057 = vrot.lane.b32.xlu0 %v3911, 32
        %v4058 = vpop.permute.xlu0 %4057
        %4059 = vrot.lane.b32.xlu0 %v3914, 32
        %v4060 = vpop.permute.xlu0 %4059
        %4061 = vrot.lane.b32.xlu0 %v3917, 32
        %v4062 = vpop.permute.xlu0 %4061
        %4063 = vrot.lane.b32.xlu0 %v3920, 32
        %v4064 = vpop.permute.xlu0 %4063
        %4065 = vrot.lane.b32.xlu0 %v3923, 32
        %v4066 = vpop.permute.xlu0 %4065
        %4067 = vrot.lane.b32.xlu0 %v3926, 32
        %v4068 = vpop.permute.xlu0 %4067
        %4069 = vrot.lane.b32.xlu0 %v3929, 32
        %v4070 = vpop.permute.xlu0 %4069
        %4071 = vrot.lane.b32.xlu0 %v3932, 32
        %v4072 = vpop.permute.xlu0 %4071
        %4073 = vrot.lane.b32.xlu0 %v3935, 32
        %v4074 = vpop.permute.xlu0 %4073
        %4075 = vrot.lane.b32.xlu0 %v3952, 32
        %v4076 = vpop.permute.xlu0 %4075
        %4077 = vrot.lane.b32.xlu0 %v3650, 64
        %v4078 = vpop.permute.xlu0 %4077
        %4079 = vrot.lane.b32.xlu0 %v3651, 64
        %v4080 = vpop.permute.xlu0 %4079
        %4081 = vrot.lane.b32.xlu0 %v3652, 64
        %v4082 = vpop.permute.xlu0 %4081
        %4083 = vrot.lane.b32.xlu0 %v3653, 64
        %v4084 = vpop.permute.xlu0 %4083
        %4085 = vrot.lane.b32.xlu0 %v3654, 64
        %v4086 = vpop.permute.xlu0 %4085
        %4087 = vrot.lane.b32.xlu0 %v3655, 64
        %v4088 = vpop.permute.xlu0 %4087
        %4089 = vrot.lane.b32.xlu0 %v3656, 64
        %v4090 = vpop.permute.xlu0 %4089
        %4091 = vrot.lane.b32.xlu0 %v3657, 64
        %v4092 = vpop.permute.xlu0 %4091
        %4093 = vrot.lane.b32.xlu0 %v3658, 64
        %v4094 = vpop.permute.xlu0 %4093
        %4095 = vrot.lane.b32.xlu0 %v3659, 64
        %v4096 = vpop.permute.xlu0 %4095
        %4097 = vrot.lane.b32.xlu0 %v3660, 64
        %v4098 = vpop.permute.xlu0 %4097
        %4099 = vrot.lane.b32.xlu0 %v3661, 64
        %v4100 = vpop.permute.xlu0 %4099
        %4101 = vrot.lane.b32.xlu0 %v3662, 64
        %v4102 = vpop.permute.xlu0 %4101
        %4103 = vrot.lane.b32.xlu0 %v3663, 64
        %v4104 = vpop.permute.xlu0 %4103
        %4105 = vrot.lane.b32.xlu0 %v3664, 64
        %v4106 = vpop.permute.xlu0 %4105
        %4107 = vrot.lane.b32.xlu0 %v3704, 96
        %v4108 = vpop.permute.xlu0 %4107
        %4109 = vrot.lane.b32.xlu0 %v3716, 96
        %v4110 = vpop.permute.xlu0 %4109
        %4111 = vrot.lane.b32.xlu0 %v3728, 96
        %v4112 = vpop.permute.xlu0 %4111
        %4113 = vrot.lane.b32.xlu0 %v3740, 96
        %v4114 = vpop.permute.xlu0 %4113
        %4115 = vrot.lane.b32.xlu0 %v3752, 96
        %v4116 = vpop.permute.xlu0 %4115
        %4117 = vrot.lane.b32.xlu0 %v3764, 96
        %v4118 = vpop.permute.xlu0 %4117
        %4119 = vrot.lane.b32.xlu0 %v3776, 96
        %v4120 = vpop.permute.xlu0 %4119
        %4121 = vrot.lane.b32.xlu0 %v3788, 96
        %v4122 = vpop.permute.xlu0 %4121
        %4123 = vrot.lane.b32.xlu0 %v3800, 96
        %v4124 = vpop.permute.xlu0 %4123
        %4125 = vrot.lane.b32.xlu0 %v3812, 96
        %v4126 = vpop.permute.xlu0 %4125
        %4127 = vrot.lane.b32.xlu0 %v3824, 96
        %v4128 = vpop.permute.xlu0 %4127
        %4129 = vrot.lane.b32.xlu0 %v3836, 96
        %v4130 = vpop.permute.xlu0 %4129
        %4131 = vrot.lane.b32.xlu0 %v3848, 96
        %v4132 = vpop.permute.xlu0 %4131
        %4133 = vrot.lane.b32.xlu0 %v3860, 96
        %v4134 = vpop.permute.xlu0 %4133
        %4135 = vrot.lane.b32.xlu0 %v3947, 96
        %v4136 = vpop.permute.xlu0 %4135
        %v4138 = vsel %vm942, %v3649, %v3954
        %v4140 = vsel %vm942, %v3650, %v3956
        %v4142 = vsel %vm942, %v3651, %v3958
        %v4144 = vsel %vm942, %v3652, %v3960
        %v4146 = vsel %vm942, %v3653, %v3962
        %v4148 = vsel %vm942, %v3654, %v3964
        %v4150 = vsel %vm942, %v3655, %v3966
        %v4152 = vsel %vm942, %v3656, %v3968
        %v4154 = vsel %vm942, %v3657, %v3970
        %v4156 = vsel %vm942, %v3658, %v3972
        %v4158 = vsel %vm942, %v3659, %v3974
        %v4160 = vsel %vm942, %v3660, %v3976
        %v4162 = vsel %vm942, %v3661, %v3978
        %v4164 = vsel %vm942, %v3662, %v3980
        %v4166 = vsel %vm942, %v3663, %v3982
        %v4168 = vsel %vm975, %v4138, %v3984
        %v4170 = vsel %vm975, %v4140, %v3986
        %v4172 = vsel %vm975, %v4142, %v3988
        %v4174 = vsel %vm975, %v4144, %v3990
        %v4176 = vsel %vm975, %v4146, %v3992
        %v4178 = vsel %vm975, %v4148, %v3994
        %v4180 = vsel %vm975, %v4150, %v3996
        %v4182 = vsel %vm975, %v4152, %v3998
        %v4184 = vsel %vm975, %v4154, %v4000
        %v4186 = vsel %vm975, %v4156, %v4002
        %v4188 = vsel %vm975, %v4158, %v4004
        %v4190 = vsel %vm975, %v4160, %v4006
        %v4192 = vsel %vm975, %v4162, %v4008
        %v4194 = vsel %vm975, %v4164, %v4010
        %v4196 = vsel %vm975, %v4166, %v4012
        %v4198 = vsel %vm1008, %v977, %v4014
        %v4201 = vsel %vm1008, %v4168, %v4016
        %v4204 = vsel %vm1008, %v4170, %v4018
        %v4207 = vsel %vm1008, %v4172, %v4020
        %v4210 = vsel %vm1008, %v4174, %v4022
        %v4213 = vsel %vm1008, %v4176, %v4024
        %v4216 = vsel %vm1008, %v4178, %v4026
        %v4219 = vsel %vm1008, %v4180, %v4028
        %v4222 = vsel %vm1008, %v4182, %v4030
        %v4225 = vsel %vm1008, %v4184, %v4032
        %v4228 = vsel %vm1008, %v4186, %v4034
        %v4231 = vsel %vm1008, %v4188, %v4036
        %v4234 = vsel %vm1008, %v4190, %v4038
        %v4237 = vsel %vm1008, %v4192, %v4040
        %v4240 = vsel %vm1008, %v4194, %v4042
        %v4243 = vsel %vm1008, %v4196, %v4044
        %v4247 = vsel %vm942, %v3692, %v4046
        %v4250 = vsel %vm942, %v3704, %v4048
        %v4253 = vsel %vm942, %v3716, %v4050
        %v4256 = vsel %vm942, %v3728, %v4052
        %v4259 = vsel %vm942, %v3740, %v4054
        %v4262 = vsel %vm942, %v3752, %v4056
        %v4265 = vsel %vm942, %v3764, %v4058
        %v4268 = vsel %vm942, %v3776, %v4060
        %v4271 = vsel %vm942, %v3788, %v4062
        %v4274 = vsel %vm942, %v3800, %v4064
        %v4277 = vsel %vm942, %v3812, %v4066
        %v4280 = vsel %vm942, %v3824, %v4068
        %v4283 = vsel %vm942, %v3836, %v4070
        %v4286 = vsel %vm942, %v3848, %v4072
        %v4289 = vsel %vm942, %v3860, %v4074
        %v4292 = vsel %vm942, %v3947, %v4076
        %v4294 = vsel %vm975, %v4247, %v4078
        %v4296 = vsel %vm975, %v4250, %v4080
        %v4298 = vsel %vm975, %v4253, %v4082
        %v4300 = vsel %vm975, %v4256, %v4084
        %v4302 = vsel %vm975, %v4259, %v4086
        %v4304 = vsel %vm975, %v4262, %v4088
        %v4306 = vsel %vm975, %v4265, %v4090
        %v4308 = vsel %vm975, %v4268, %v4092
        %v4310 = vsel %vm975, %v4271, %v4094
        %v4312 = vsel %vm975, %v4274, %v4096
        %v4314 = vsel %vm975, %v4277, %v4098
        %v4316 = vsel %vm975, %v4280, %v4100
        %v4318 = vsel %vm975, %v4283, %v4102
        %v4320 = vsel %vm975, %v4286, %v4104
        %v4322 = vsel %vm975, %v4289, %v4106
        %v4323 = vsel %vm975, %v4292, %v909
        %v4325 = vsel %vm1008, %v4294, %v4108
        %v4328 = vsel %vm1008, %v4296, %v4110
        %v4331 = vsel %vm1008, %v4298, %v4112
        %v4334 = vsel %vm1008, %v4300, %v4114
        %v4337 = vsel %vm1008, %v4302, %v4116
        %v4340 = vsel %vm1008, %v4304, %v4118
        %v4343 = vsel %vm1008, %v4306, %v4120
        %v4346 = vsel %vm1008, %v4308, %v4122
        %v4349 = vsel %vm1008, %v4310, %v4124
        %v4352 = vsel %vm1008, %v4312, %v4126
        %v4355 = vsel %vm1008, %v4314, %v4128
        %v4358 = vsel %vm1008, %v4316, %v4130
        %v4361 = vsel %vm1008, %v4318, %v4132
        %v4364 = vsel %vm1008, %v4320, %v4134
        %v4367 = vsel %vm1008, %v4322, %v4136
        %v4369 = vsel %vm1008, %v4323, %v941
        %s4371 = scalar_lea.vmem %s2, 288
        %v4372 = vld [vmem:[%s4371] sm:$0xf]
        %v4373 = vld [vmem:[%s4371 + $0x4] sm:$0xf]
        %v4374 = vld [vmem:[%s4371 + $0x8] sm:$0xf]
        %v4375 = vld [vmem:[%s4371 + $0xc] sm:$0xf]
        %v4376 = vld [vmem:[%s4371 + $0x10] sm:$0xf]
        %v4377 = vld [vmem:[%s4371 + $0x14] sm:$0xf]
        %v4378 = vld [vmem:[%s4371 + $0x18] sm:$0xf]
        %v4379 = vld [vmem:[%s4371 + $0x1c] sm:$0xf]
        %v4380 = vld [vmem:[%s4371 + $0x20] sm:$0xf]
        %v4381 = vld [vmem:[%s4371 + $0x24] sm:$0xf]
        %v4382 = vld [vmem:[%s4371 + $0x28] sm:$0xf]
        %v4383 = vld [vmem:[%s4371 + $0x2c] sm:$0xf]
        %v4384 = vld [vmem:[%s4371 + $0x30] sm:$0xf]
        %v4385 = vld [vmem:[%s4371 + $0x34] sm:$0xf]
        %v4386 = vld [vmem:[%s4371 + $0x38] sm:$0xf]
        %v4387 = vld [vmem:[%s4371 + $0x3c] sm:$0xf]
        %v4388 = vld [vmem:[%s4371 + $0x40] sm:$0xf]
        %v4389 = vld [vmem:[%s4371 + $0x44] sm:$0xf]
        %v4390 = vld [vmem:[%s4371 + $0x48] sm:$0xf]
        %v4391 = vld [vmem:[%s4371 + $0x4c] sm:$0xf]
        %v4392 = vld [vmem:[%s4371 + $0x50] sm:$0xf]
        %v4393 = vld [vmem:[%s4371 + $0x54] sm:$0xf]
        %v4394 = vld [vmem:[%s4371 + $0x58] sm:$0xf]
        %v4395 = vld [vmem:[%s4371 + $0x5c] sm:$0xf]
        %v4396 = vld [vmem:[%s4371 + $0x60] sm:$0xf]
        %v4397 = vld [vmem:[%s4371 + $0x64] sm:$0xf]
        %v4398 = vld [vmem:[%s4371 + $0x68] sm:$0xf]
        %v4399 = vld [vmem:[%s4371 + $0x6c] sm:$0xf]
        %v4400 = vld [vmem:[%s4371 + $0x70] sm:$0xf]
        %v4401 = vld [vmem:[%s4371 + $0x74] sm:$0xf]
        %v4402 = vld [vmem:[%s4371 + $0x78] sm:$0xf]
        %v4403 = vld [vmem:[%s4371 + $0x7c] sm:$0xf]
        %v4404 = vld [vmem:[%s4371 + $0x80] sm:$0xf]
        %v4405 = vld [vmem:[%s4371 + $0x84] sm:$0xf]
        %v4406 = vld [vmem:[%s4371 + $0x88] sm:$0xf]
        %v4407 = vld [vmem:[%s4371 + $0x8c] sm:$0xf]
        %v4444 = vunpack.c.l.b16 %v4372
        %v4445 = vunpack.c.l.b16 %v4373
        %v4446 = vunpack.c.l.b16 %v4374
        %v4447 = vunpack.c.l.b16 %v4375
        %v4448 = vunpack.c.l.b16 %v4376
        %v4449 = vunpack.c.l.b16 %v4377
        %v4450 = vunpack.c.l.b16 %v4378
        %v4451 = vunpack.c.l.b16 %v4379
        %v4452 = vunpack.c.l.b16 %v4380
        %v4453 = vunpack.c.l.b16 %v4381
        %v4454 = vunpack.c.l.b16 %v4382
        %v4455 = vunpack.c.l.b16 %v4383
        %v4456 = vunpack.c.l.b16 %v4384
        %v4457 = vunpack.c.l.b16 %v4385
        %v4458 = vunpack.c.l.b16 %v4386
        %v4459 = vunpack.c.l.b16 %v4387
        %v4460 = vunpack.c.l.b16 %v4388
        %v4461 = vunpack.c.l.b16 %v4389
        %v4462 = vunpack.c.l.b16 %v4390
        %v4463 = vunpack.c.l.b16 %v4391
        %v4464 = vunpack.c.l.b16 %v4392
        %v4465 = vunpack.c.l.b16 %v4393
        %v4466 = vunpack.c.l.b16 %v4394
        %v4467 = vunpack.c.l.b16 %v4395
        %v4468 = vunpack.c.l.b16 %v4396
        %v4469 = vunpack.c.l.b16 %v4397
        %v4470 = vunpack.c.l.b16 %v4398
        %v4471 = vunpack.c.l.b16 %v4399
        %v4472 = vunpack.c.l.b16 %v4400
        %v4473 = vunpack.c.l.b16 %v4401
        %v4474 = vunpack.c.l.b16 %v4402
        %v4475 = vunpack.c.l.b16 %v4403
        %v4476 = vunpack.c.l.b16 %v4404
        %v4477 = vunpack.c.l.b16 %v4405
        %v4478 = vunpack.c.l.b16 %v4406
        %v4479 = vunpack.c.l.b16 %v4407
        %v4480 = vpack.c.b16 %v4445, %v4444
        %v4481 = vpack.c.b16 %v4447, %v4446
        %v4482 = vpack.c.b16 %v4449, %v4448
        %v4483 = vpack.c.b16 %v4451, %v4450
        %v4484 = vpack.c.b16 %v4453, %v4452
        %v4485 = vpack.c.b16 %v4455, %v4454
        %v4486 = vpack.c.b16 %v4457, %v4456
        %v4487 = vpack.c.b16 %v4459, %v4458
        %v4488 = vpack.c.b16 %v4461, %v4460
        %v4489 = vpack.c.b16 %v4463, %v4462
        %v4490 = vpack.c.b16 %v4465, %v4464
        %v4491 = vpack.c.b16 %v4467, %v4466
        %v4492 = vpack.c.b16 %v4469, %v4468
        %v4493 = vpack.c.b16 %v4471, %v4470
        %v4494 = vpack.c.b16 %v4473, %v4472
        %v4495 = vpack.c.b16 %v4475, %v4474
        %v4496 = vpack.c.b16 %v4477, %v4476
        %v4497 = vpack.c.b16 %v4479, %v4478
        %v4517 = vsel %vm942, %v3896, 0
        %v4520 = vsel %vm942, %v3899, 0
        %v4523 = vsel %vm942, %v3902, 0
        %v4526 = vsel %vm942, %v3905, 0
        %v4529 = vsel %vm942, %v3908, 0
        %v4532 = vsel %vm942, %v3911, 0
        %v4535 = vsel %vm942, %v3914, 0
        %v4538 = vsel %vm942, %v3917, 0
        %v4541 = vsel %vm942, %v3920, 0
        %v4544 = vsel %vm942, %v3923, 0
        %v4547 = vsel %vm942, %v3926, 0
        %v4550 = vsel %vm942, %v3929, 0
        %v4553 = vsel %vm942, %v3932, 0
        %v4556 = vsel %vm942, %v3935, 0
        %v4559 = vsel %vm942, %v3952, 0
        %4561 = vmatprep.subr.bf16.mxu0 0
        %4562 = vmatpush1.bf16.msra.mxu0 %v4480
        %4563 = vmatprep.subr.bf16.mxu0 0
        %4564 = vmatpush1.bf16.msra.mxu0 %v4481
        %4565 = vmatprep.subr.bf16.mxu0 0
        %4566 = vmatpush1.bf16.msra.mxu0 %v4482
        %4567 = vmatprep.subr.bf16.mxu0 0
        %4568 = vmatpush1.bf16.msra.mxu0 %v4483
        %4569 = vmatprep.subr.bf16.mxu0 0
        %4570 = vmatpush1.bf16.msra.mxu0 %v4484
        %4571 = vmatprep.subr.bf16.mxu0 0
        %4572 = vmatpush1.bf16.msra.mxu0 %v4485
        %4573 = vmatprep.subr.bf16.mxu0 0
        %4574 = vmatpush1.bf16.msra.mxu0 %v4486
        %4575 = vmatprep.subr.bf16.mxu0 0
        %4576 = vmatpush1.bf16.msra.mxu0 %v4487
        %4577 = vmatprep.subr.bf16.mxu0 0
        %4578 = vmatpush1.bf16.msra.mxu0 %v4488
        %4579 = vmatprep.subr.bf16.mxu0 0
        %4580 = vmatpush1.bf16.msra.mxu0 %v4489
        %4581 = vmatprep.subr.bf16.mxu0 0
        %4582 = vmatpush1.bf16.msra.mxu0 %v4490
        %4583 = vmatprep.subr.bf16.mxu0 0
        %4584 = vmatpush1.bf16.msra.mxu0 %v4491
        %4585 = vmatprep.subr.bf16.mxu0 0
        %4586 = vmatpush1.bf16.msra.mxu0 %v4492
        %4587 = vmatprep.subr.bf16.mxu0 0
        %4588 = vmatpush1.bf16.msra.mxu0 %v4493
        %4589 = vmatprep.subr.bf16.mxu0 0
        %4590 = vmatpush1.bf16.msra.mxu0 %v4494
        %4591 = vmatprep.subr.bf16.mxu0 0
        %4592 = vmatpush1.bf16.msra.mxu0 %v4495
        %4593 = vmatprep.mubr.bf16.mxu0 %v4325
        %4594 = vmatmul.mubr.bf16.gmra.mrb[0].mxu0 %v4198
        %v4595 = vpop.f32.mrb[0].mxu0
        %v4596 = vadd.f32 0.0, %v4595
        %v4597 = vpop.f32.mrb[0].mxu0
        %v4598 = vpop.f32.mrb[0].mxu0
        %v4599 = vadd.f32 0.0, %v4598
        %v4600 = vpop.f32.mrb[0].mxu0
        %4601 = vmatprep.mubr.bf16.mxu0 %v4328
        %4602 = vmatmul.mubr.bf16.gmra.mrb[0].mxu0 %v4201
        %v4603 = vpop.f32.mrb[0].mxu0
        %v4604 = vadd.f32 0.0, %v4603
        %v4605 = vpop.f32.mrb[0].mxu0
        %v4606 = vpop.f32.mrb[0].mxu0
        %v4607 = vadd.f32 0.0, %v4606
        %v4608 = vpop.f32.mrb[0].mxu0
        %4609 = vmatprep.mubr.bf16.mxu0 %v4331
        %4610 = vmatmul.mubr.bf16.gmra.mrb[0].mxu0 %v4204
        %v4611 = vpop.f32.mrb[0].mxu0
        %v4612 = vadd.f32 0.0, %v4611
        %v4613 = vpop.f32.mrb[0].mxu0
        %v4614 = vpop.f32.mrb[0].mxu0
        %v4615 = vadd.f32 0.0, %v4614
        %v4616 = vpop.f32.mrb[0].mxu0
        %4617 = vmatprep.mubr.bf16.mxu0 %v4334
        %4618 = vmatmul.mubr.bf16.gmra.mrb[0].mxu0 %v4207
        %v4619 = vpop.f32.mrb[0].mxu0
        %v4620 = vadd.f32 0.0, %v4619
        %v4621 = vpop.f32.mrb[0].mxu0
        %v4622 = vpop.f32.mrb[0].mxu0
        %v4623 = vadd.f32 0.0, %v4622
        %v4624 = vpop.f32.mrb[0].mxu0
        %4625 = vmatprep.mubr.bf16.mxu0 %v4337
        %4626 = vmatmul.mubr.bf16.gmra.mrb[0].mxu0 %v4210
        %v4627 = vpop.f32.mrb[0].mxu0
        %v4628 = vadd.f32 0.0, %v4627
        %v4629 = vpop.f32.mrb[0].mxu0
        %v4630 = vpop.f32.mrb[0].mxu0
        %v4631 = vadd.f32 0.0, %v4630
        %v4632 = vpop.f32.mrb[0].mxu0
        %4633 = vmatprep.mubr.bf16.mxu0 %v4340
        %4634 = vmatmul.mubr.bf16.gmra.mrb[0].mxu0 %v4213
        %v4635 = vpop.f32.mrb[0].mxu0
        %v4636 = vadd.f32 0.0, %v4635
        %v4637 = vpop.f32.mrb[0].mxu0
        %v4638 = vpop.f32.mrb[0].mxu0
        %v4639 = vadd.f32 0.0, %v4638
        %v4640 = vpop.f32.mrb[0].mxu0
        %4641 = vmatprep.mubr.bf16.mxu0 %v4343
        %4642 = vmatmul.mubr.bf16.gmra.mrb[0].mxu0 %v4216
        %v4643 = vpop.f32.mrb[0].mxu0
        %v4644 = vadd.f32 0.0, %v4643
        %v4645 = vpop.f32.mrb[0].mxu0
        %v4646 = vpop.f32.mrb[0].mxu0
        %v4647 = vadd.f32 0.0, %v4646
        %v4648 = vpop.f32.mrb[0].mxu0
        %4649 = vmatprep.mubr.bf16.mxu0 %v4346
        %4650 = vmatmul.mubr.bf16.gmra.mrb[0].mxu0 %v4219
        %v4651 = vpop.f32.mrb[0].mxu0
        %v4652 = vadd.f32 0.0, %v4651
        %v4653 = vpop.f32.mrb[0].mxu0
        %v4654 = vpop.f32.mrb[0].mxu0
        %v4655 = vadd.f32 0.0, %v4654
        %v4656 = vpop.f32.mrb[0].mxu0
        %4657 = vmatprep.mubr.bf16.mxu0 %v4349
        %4658 = vmatmul.mubr.bf16.gmra.mrb[0].mxu0 %v4222
        %v4659 = vpop.f32.mrb[0].mxu0
        %v4660 = vadd.f32 0.0, %v4659
        %v4661 = vpop.f32.mrb[0].mxu0
        %v4662 = vpop.f32.mrb[0].mxu0
        %v4663 = vadd.f32 0.0, %v4662
        %v4664 = vpop.f32.mrb[0].mxu0
        %4665 = vmatprep.mubr.bf16.mxu0 %v4352
        %4666 = vmatmul.mubr.bf16.gmra.mrb[0].mxu0 %v4225
        %v4667 = vpop.f32.mrb[0].mxu0
        %v4668 = vadd.f32 0.0, %v4667
        %v4669 = vpop.f32.mrb[0].mxu0
        %v4670 = vpop.f32.mrb[0].mxu0
        %v4671 = vadd.f32 0.0, %v4670
        %v4672 = vpop.f32.mrb[0].mxu0
        %4673 = vmatprep.mubr.bf16.mxu0 %v4355
        %4674 = vmatmul.mubr.bf16.gmra.mrb[0].mxu0 %v4228
        %v4675 = vpop.f32.mrb[0].mxu0
        %v4676 = vadd.f32 0.0, %v4675
        %v4677 = vpop.f32.mrb[0].mxu0
        %v4678 = vpop.f32.mrb[0].mxu0
        %v4679 = vadd.f32 0.0, %v4678
        %v4680 = vpop.f32.mrb[0].mxu0
        %4681 = vmatprep.mubr.bf16.mxu0 %v4358
        %4682 = vmatmul.mubr.bf16.gmra.mrb[0].mxu0 %v4231
        %v4683 = vpop.f32.mrb[0].mxu0
        %v4684 = vadd.f32 0.0, %v4683
        %v4685 = vpop.f32.mrb[0].mxu0
        %v4686 = vpop.f32.mrb[0].mxu0
        %v4687 = vadd.f32 0.0, %v4686
        %v4688 = vpop.f32.mrb[0].mxu0
        %4689 = vmatprep.mubr.bf16.mxu0 %v4361
        %4690 = vmatmul.mubr.bf16.gmra.mrb[0].mxu0 %v4234
        %v4691 = vpop.f32.mrb[0].mxu0
        %v4692 = vadd.f32 0.0, %v4691
        %v4693 = vpop.f32.mrb[0].mxu0
        %v4694 = vpop.f32.mrb[0].mxu0
        %v4695 = vadd.f32 0.0, %v4694
        %v4696 = vpop.f32.mrb[0].mxu0
        %4697 = vmatprep.mubr.bf16.mxu0 %v4364
        %4698 = vmatmul.mubr.bf16.gmra.mrb[0].mxu0 %v4237
        %v4699 = vpop.f32.mrb[0].mxu0
        %v4700 = vadd.f32 0.0, %v4699
        %v4701 = vpop.f32.mrb[0].mxu0
        %v4702 = vpop.f32.mrb[0].mxu0
        %v4703 = vadd.f32 0.0, %v4702
        %v4704 = vpop.f32.mrb[0].mxu0
        %4705 = vmatprep.mubr.bf16.mxu0 %v4367
        %4706 = vmatmul.mubr.bf16.gmra.mrb[0].mxu0 %v4240
        %v4707 = vpop.f32.mrb[0].mxu0
        %v4708 = vadd.f32 0.0, %v4707
        %v4709 = vpop.f32.mrb[0].mxu0
        %v4710 = vpop.f32.mrb[0].mxu0
        %v4711 = vadd.f32 0.0, %v4710
        %v4712 = vpop.f32.mrb[0].mxu0
        %4713 = vmatprep.mubr.bf16.mxu0 %v4369
        %4714 = vmatmul.mubr.bf16.gmra.mrb[0].mxu0 %v4243
        %v4715 = vpop.f32.mrb[0].mxu0
        %v4716 = vadd.f32 0.0, %v4715
        %v4717 = vpop.f32.mrb[0].mxu0
        %v4718 = vpop.f32.mrb[0].mxu0
        %v4719 = vadd.f32 0.0, %v4718
        %v4720 = vpop.f32.mrb[0].mxu0
        %4721 = vdwg.mxu0
        %4722 = vmatprep.subr.bf16.mxu0 0
        %4723 = vmatpush1.bf16.msra.mxu0 %v4496
        %4724 = vmatprep.subr.bf16.mxu0 0
        %4725 = vmatpush1.bf16.msra.mxu0 %v4497
        %4726 = vmatprep.subr.bf16.mxu0 0
        %4727 = vmatpush1.bf16.msra.mxu0 0
        %4728 = vmatprep.subr.bf16.mxu0 0
        %4729 = vmatpush1.bf16.msra.mxu0 0
        %4730 = vmatprep.subr.bf16.mxu0 0
        %4731 = vmatpush1.bf16.msra.mxu0 0
        %4732 = vmatprep.subr.bf16.mxu0 0
        %4733 = vmatpush1.bf16.msra.mxu0 0
        %4734 = vmatprep.subr.bf16.mxu0 0
        %4735 = vmatpush1.bf16.msra.mxu0 0
        %4736 = vmatprep.subr.bf16.mxu0 0
        %4737 = vmatpush1.bf16.msra.mxu0 0
        %4738 = vmatprep.subr.bf16.mxu0 0
        %4739 = vmatpush1.bf16.msra.mxu0 0
        %4740 = vmatprep.subr.bf16.mxu0 0
        %4741 = vmatpush1.bf16.msra.mxu0 0
        %4742 = vmatprep.subr.bf16.mxu0 0
        %4743 = vmatpush1.bf16.msra.mxu0 0
        %4744 = vmatprep.subr.bf16.mxu0 0
        %4745 = vmatpush1.bf16.msra.mxu0 0
        %4746 = vmatprep.subr.bf16.mxu0 0
        %4747 = vmatpush1.bf16.msra.mxu0 0
        %4748 = vmatprep.subr.bf16.mxu0 0
        %4749 = vmatpush1.bf16.msra.mxu0 0
        %4750 = vmatprep.subr.bf16.mxu0 0
        %4751 = vmatpush1.bf16.msra.mxu0 0
        %4752 = vmatprep.subr.bf16.mxu0 0
        %4753 = vmatpush1.bf16.msra.mxu0 0
        %4754 = vmatprep.mubr.bf16.mxu0 0
        %4755 = vmatmul.mubr.bf16.gmra.mrb[0].mxu0 %v4517
        %v4756 = vpop.f32.mrb[0].mxu0
        %v4757 = vadd.f32 %v4596, %v4756
        %v4758 = vpop.f32.mrb[0].mxu0
        %v4759 = vpop.f32.mrb[0].mxu0
        %v4760 = vadd.f32 %v4599, %v4759
        %v4761 = vpop.f32.mrb[0].mxu0
        %4762 = vmatprep.mubr.bf16.mxu0 0
        %4763 = vmatmul.mubr.bf16.gmra.mrb[0].mxu0 %v4520
        %v4764 = vpop.f32.mrb[0].mxu0
        %v4765 = vadd.f32 %v4604, %v4764
        %v4766 = vpop.f32.mrb[0].mxu0
        %v4767 = vpop.f32.mrb[0].mxu0
        %v4768 = vadd.f32 %v4607, %v4767
        %v4769 = vpop.f32.mrb[0].mxu0
        %4770 = vmatprep.mubr.bf16.mxu0 0
        %4771 = vmatmul.mubr.bf16.gmra.mrb[0].mxu0 %v4523
        %v4772 = vpop.f32.mrb[0].mxu0
        %v4773 = vadd.f32 %v4612, %v4772
        %v4774 = vpop.f32.mrb[0].mxu0
        %v4775 = vpop.f32.mrb[0].mxu0
        %v4776 = vadd.f32 %v4615, %v4775
        %v4777 = vpop.f32.mrb[0].mxu0
        %4778 = vmatprep.mubr.bf16.mxu0 0
        %4779 = vmatmul.mubr.bf16.gmra.mrb[0].mxu0 %v4526
        %v4780 = vpop.f32.mrb[0].mxu0
        %v4781 = vadd.f32 %v4620, %v4780
        %v4782 = vpop.f32.mrb[0].mxu0
        %v4783 = vpop.f32.mrb[0].mxu0
        %v4784 = vadd.f32 %v4623, %v4783
        %v4785 = vpop.f32.mrb[0].mxu0
        %4786 = vmatprep.mubr.bf16.mxu0 0
        %4787 = vmatmul.mubr.bf16.gmra.mrb[0].mxu0 %v4529
        %v4788 = vpop.f32.mrb[0].mxu0
        %v4789 = vadd.f32 %v4628, %v4788
        %v4790 = vpop.f32.mrb[0].mxu0
        %v4791 = vpop.f32.mrb[0].mxu0
        %v4792 = vadd.f32 %v4631, %v4791
        %v4793 = vpop.f32.mrb[0].mxu0
        %4794 = vmatprep.mubr.bf16.mxu0 0
        %4795 = vmatmul.mubr.bf16.gmra.mrb[0].mxu0 %v4532
        %v4796 = vpop.f32.mrb[0].mxu0
        %v4797 = vadd.f32 %v4636, %v4796
        %v4798 = vpop.f32.mrb[0].mxu0
        %v4799 = vpop.f32.mrb[0].mxu0
        %v4800 = vadd.f32 %v4639, %v4799
        %v4801 = vpop.f32.mrb[0].mxu0
        %4802 = vmatprep.mubr.bf16.mxu0 0
        %4803 = vmatmul.mubr.bf16.gmra.mrb[0].mxu0 %v4535
        %v4804 = vpop.f32.mrb[0].mxu0
        %v4805 = vadd.f32 %v4644, %v4804
        %v4806 = vpop.f32.mrb[0].mxu0
        %v4807 = vpop.f32.mrb[0].mxu0
        %v4808 = vadd.f32 %v4647, %v4807
        %v4809 = vpop.f32.mrb[0].mxu0
        %4810 = vmatprep.mubr.bf16.mxu0 0
        %4811 = vmatmul.mubr.bf16.gmra.mrb[0].mxu0 %v4538
        %v4812 = vpop.f32.mrb[0].mxu0
        %v4813 = vadd.f32 %v4652, %v4812
        %v4814 = vpop.f32.mrb[0].mxu0
        %v4815 = vpop.f32.mrb[0].mxu0
        %v4816 = vadd.f32 %v4655, %v4815
        %v4817 = vpop.f32.mrb[0].mxu0
        %4818 = vmatprep.mubr.bf16.mxu0 0
        %4819 = vmatmul.mubr.bf16.gmra.mrb[0].mxu0 %v4541
        %v4820 = vpop.f32.mrb[0].mxu0
        %v4821 = vadd.f32 %v4660, %v4820
        %v4822 = vpop.f32.mrb[0].mxu0
        %v4823 = vpop.f32.mrb[0].mxu0
        %v4824 = vadd.f32 %v4663, %v4823
        %v4825 = vpop.f32.mrb[0].mxu0
        %4826 = vmatprep.mubr.bf16.mxu0 0
        %4827 = vmatmul.mubr.bf16.gmra.mrb[0].mxu0 %v4544
        %v4828 = vpop.f32.mrb[0].mxu0
        %v4829 = vadd.f32 %v4668, %v4828
        %v4830 = vpop.f32.mrb[0].mxu0
        %v4831 = vpop.f32.mrb[0].mxu0
        %v4832 = vadd.f32 %v4671, %v4831
        %v4833 = vpop.f32.mrb[0].mxu0
        %4834 = vmatprep.mubr.bf16.mxu0 0
        %4835 = vmatmul.mubr.bf16.gmra.mrb[0].mxu0 %v4547
        %v4836 = vpop.f32.mrb[0].mxu0
        %v4837 = vadd.f32 %v4676, %v4836
        %v4838 = vpop.f32.mrb[0].mxu0
        %v4839 = vpop.f32.mrb[0].mxu0
        %v4840 = vadd.f32 %v4679, %v4839
        %v4841 = vpop.f32.mrb[0].mxu0
        %4842 = vmatprep.mubr.bf16.mxu0 0
        %4843 = vmatmul.mubr.bf16.gmra.mrb[0].mxu0 %v4550
        %v4844 = vpop.f32.mrb[0].mxu0
        %v4845 = vadd.f32 %v4684, %v4844
        %v4846 = vpop.f32.mrb[0].mxu0
        %v4847 = vpop.f32.mrb[0].mxu0
        %v4848 = vadd.f32 %v4687, %v4847
        %v4849 = vpop.f32.mrb[0].mxu0
        %4850 = vmatprep.mubr.bf16.mxu0 0
        %4851 = vmatmul.mubr.bf16.gmra.mrb[0].mxu0 %v4553
        %v4852 = vpop.f32.mrb[0].mxu0
        %v4853 = vadd.f32 %v4692, %v4852
        %v4854 = vpop.f32.mrb[0].mxu0
        %v4855 = vpop.f32.mrb[0].mxu0
        %v4856 = vadd.f32 %v4695, %v4855
        %v4857 = vpop.f32.mrb[0].mxu0
        %4858 = vmatprep.mubr.bf16.mxu0 0
        %4859 = vmatmul.mubr.bf16.gmra.mrb[0].mxu0 %v4556
        %v4860 = vpop.f32.mrb[0].mxu0
        %v4861 = vadd.f32 %v4700, %v4860
        %v4862 = vpop.f32.mrb[0].mxu0
        %v4863 = vpop.f32.mrb[0].mxu0
        %v4864 = vadd.f32 %v4703, %v4863
        %v4865 = vpop.f32.mrb[0].mxu0
        %4866 = vmatprep.mubr.bf16.mxu0 0
        %4867 = vmatmul.mubr.bf16.gmra.mrb[0].mxu0 %v4559
        %v4868 = vpop.f32.mrb[0].mxu0
        %v4869 = vadd.f32 %v4708, %v4868
        %v4870 = vpop.f32.mrb[0].mxu0
        %v4871 = vpop.f32.mrb[0].mxu0
        %v4872 = vadd.f32 %v4711, %v4871
        %v4873 = vpop.f32.mrb[0].mxu0
        %4874 = vmatprep.mubr.bf16.mxu0 0
        %4875 = vmatmul.mubr.bf16.gmra.mrb[0].mxu0 %v1375
        %v4876 = vpop.f32.mrb[0].mxu0
        %v4877 = vadd.f32 %v4716, %v4876
        %v4878 = vpop.f32.mrb[0].mxu0
        %v4879 = vpop.f32.mrb[0].mxu0
        %v4880 = vadd.f32 %v4719, %v4879
        %v4881 = vpop.f32.mrb[0].mxu0
        %4882 = vdwg.mxu0
        %s4883 = sld [smem:[#allocation2 + $0x1]]
        %vm4884 = vcmp.ge.f32.partialorder %v4757, 0.0
        %vm4885 = vcmp.ge.f32.partialorder %v4760, 0.0
        %vm4886 = vcmp.ge.f32.partialorder %v4765, 0.0
        %vm4887 = vcmp.ge.f32.partialorder %v4768, 0.0
        %vm4888 = vcmp.ge.f32.partialorder %v4773, 0.0
        %vm4889 = vcmp.ge.f32.partialorder %v4776, 0.0
        %vm4890 = vcmp.ge.f32.partialorder %v4781, 0.0
        %vm4891 = vcmp.ge.f32.partialorder %v4784, 0.0
        %vm4892 = vcmp.ge.f32.partialorder %v4789, 0.0
        %vm4893 = vcmp.ge.f32.partialorder %v4792, 0.0
        %vm4894 = vcmp.ge.f32.partialorder %v4797, 0.0
        %vm4895 = vcmp.ge.f32.partialorder %v4800, 0.0
        %vm4896 = vcmp.ge.f32.partialorder %v4805, 0.0
        %vm4897 = vcmp.ge.f32.partialorder %v4808, 0.0
        %vm4898 = vcmp.ge.f32.partialorder %v4813, 0.0
        %vm4899 = vcmp.ge.f32.partialorder %v4816, 0.0
        %vm4900 = vcmp.ge.f32.partialorder %v4821, 0.0
        %vm4901 = vcmp.ge.f32.partialorder %v4824, 0.0
        %vm4902 = vcmp.ge.f32.partialorder %v4829, 0.0
        %vm4903 = vcmp.ge.f32.partialorder %v4832, 0.0
        %vm4904 = vcmp.ge.f32.partialorder %v4837, 0.0
        %vm4905 = vcmp.ge.f32.partialorder %v4840, 0.0
        %vm4906 = vcmp.ge.f32.partialorder %v4845, 0.0
        %vm4907 = vcmp.ge.f32.partialorder %v4848, 0.0
        %vm4908 = vcmp.ge.f32.partialorder %v4853, 0.0
        %vm4909 = vcmp.ge.f32.partialorder %v4856, 0.0
        %vm4910 = vcmp.ge.f32.partialorder %v4861, 0.0
        %vm4911 = vcmp.ge.f32.partialorder %v4864, 0.0
        %vm4912 = vcmp.ge.f32.partialorder %v4869, 0.0
        %vm4913 = vcmp.ge.f32.partialorder %v4872, 0.0
        %vm4914 = vcmp.ge.f32.partialorder %v4877, 0.0
        %vm4915 = vcmp.ge.f32.partialorder %v4880, 0.0
        %v4916 = vstv %s4883
        %v4917 = vmul.f32 %v4916, %v4757
        %v4918 = vmul.f32 %v4916, %v4760
        %v4919 = vmul.f32 %v4916, %v4765
        %v4920 = vmul.f32 %v4916, %v4768
        %v4921 = vmul.f32 %v4916, %v4773
        %v4922 = vmul.f32 %v4916, %v4776
        %v4923 = vmul.f32 %v4916, %v4781
        %v4924 = vmul.f32 %v4916, %v4784
        %v4925 = vmul.f32 %v4916, %v4789
        %v4926 = vmul.f32 %v4916, %v4792
        %v4927 = vmul.f32 %v4916, %v4797
        %v4928 = vmul.f32 %v4916, %v4800
        %v4929 = vmul.f32 %v4916, %v4805
        %v4930 = vmul.f32 %v4916, %v4808
        %v4931 = vmul.f32 %v4916, %v4813
        %v4932 = vmul.f32 %v4916, %v4816
        %v4933 = vmul.f32 %v4916, %v4821
        %v4934 = vmul.f32 %v4916, %v4824
        %v4935 = vmul.f32 %v4916, %v4829
        %v4936 = vmul.f32 %v4916, %v4832
        %v4937 = vmul.f32 %v4916, %v4837
        %v4938 = vmul.f32 %v4916, %v4840
        %v4939 = vmul.f32 %v4916, %v4845
        %v4940 = vmul.f32 %v4916, %v4848
        %v4941 = vmul.f32 %v4916, %v4853
        %v4942 = vmul.f32 %v4916, %v4856
        %v4943 = vmul.f32 %v4916, %v4861
        %v4944 = vmul.f32 %v4916, %v4864
        %v4945 = vmul.f32 %v4916, %v4869
        %v4946 = vmul.f32 %v4916, %v4872
        %v4947 = vmul.f32 %v4916, %v4877
        %v4948 = vmul.f32 %v4916, %v4880
        %v4949 = vsel %vm4884, %v4757, %v4917
        %v4950 = vsel %vm4885, %v4760, %v4918
        %v4951 = vsel %vm4886, %v4765, %v4919
        %v4952 = vsel %vm4887, %v4768, %v4920
        %v4953 = vsel %vm4888, %v4773, %v4921
        %v4954 = vsel %vm4889, %v4776, %v4922
        %v4955 = vsel %vm4890, %v4781, %v4923
        %v4956 = vsel %vm4891, %v4784, %v4924
        %v4957 = vsel %vm4892, %v4789, %v4925
        %v4958 = vsel %vm4893, %v4792, %v4926
        %v4959 = vsel %vm4894, %v4797, %v4927
        %v4960 = vsel %vm4895, %v4800, %v4928
        %v4961 = vsel %vm4896, %v4805, %v4929
        %v4962 = vsel %vm4897, %v4808, %v4930
        %v4963 = vsel %vm4898, %v4813, %v4931
        %v4964 = vsel %vm4899, %v4816, %v4932
        %v4965 = vsel %vm4900, %v4821, %v4933
        %v4966 = vsel %vm4901, %v4824, %v4934
        %v4967 = vsel %vm4902, %v4829, %v4935
        %v4968 = vsel %vm4903, %v4832, %v4936
        %v4969 = vsel %vm4904, %v4837, %v4937
        %v4970 = vsel %vm4905, %v4840, %v4938
        %v4971 = vsel %vm4906, %v4845, %v4939
        %v4972 = vsel %vm4907, %v4848, %v4940
        %v4973 = vsel %vm4908, %v4853, %v4941
        %v4974 = vsel %vm4909, %v4856, %v4942
        %v4975 = vsel %vm4910, %v4861, %v4943
        %v4976 = vsel %vm4911, %v4864, %v4944
        %v4977 = vsel %vm4912, %v4869, %v4945
        %v4978 = vsel %vm4913, %v4872, %v4946
        %v4979 = vsel %vm4914, %v4877, %v4947
        %v4980 = vsel %vm4915, %v4880, %v4948
        %v4981 = vpack.c.bf16 %v4950, %v4949
        %v4982 = vpack.c.bf16 %v4952, %v4951
        %v4983 = vpack.c.bf16 %v4954, %v4953
        %v4984 = vpack.c.bf16 %v4956, %v4955
        %v4985 = vpack.c.bf16 %v4958, %v4957
        %v4986 = vpack.c.bf16 %v4960, %v4959
        %v4987 = vpack.c.bf16 %v4962, %v4961
        %v4988 = vpack.c.bf16 %v4964, %v4963
        %v4989 = vpack.c.bf16 %v4966, %v4965
        %v4990 = vpack.c.bf16 %v4968, %v4967
        %v4991 = vpack.c.bf16 %v4970, %v4969
        %v4992 = vpack.c.bf16 %v4972, %v4971
        %v4993 = vpack.c.bf16 %v4974, %v4973
        %v4994 = vpack.c.bf16 %v4976, %v4975
        %v4995 = vpack.c.bf16 %v4978, %v4977
        %v4996 = vpack.c.bf16 %v4980, %v4979
        %v4998 = vshrl.u32 %v4981, 16
        %v5000 = vrot.slane %v4998, 7
        %v5001 = vshll.u32 %v4981, 16
        %v5003 = vor.u32 %v5000, %v5001
        %v5005 = vshrl.u32 %v4982, 16
        %v5007 = vrot.slane %v5005, 7
        %v5008 = vshll.u32 %v4982, 16
        %v5010 = vor.u32 %v5007, %v5008
        %v5012 = vshrl.u32 %v4983, 16
        %v5014 = vrot.slane %v5012, 7
        %v5015 = vshll.u32 %v4983, 16
        %v5017 = vor.u32 %v5014, %v5015
        %v5019 = vshrl.u32 %v4984, 16
        %v5021 = vrot.slane %v5019, 7
        %v5022 = vshll.u32 %v4984, 16
        %v5024 = vor.u32 %v5021, %v5022
        %v5026 = vshrl.u32 %v4985, 16
        %v5028 = vrot.slane %v5026, 7
        %v5029 = vshll.u32 %v4985, 16
        %v5031 = vor.u32 %v5028, %v5029
        %v5033 = vshrl.u32 %v4986, 16
        %v5035 = vrot.slane %v5033, 7
        %v5036 = vshll.u32 %v4986, 16
        %v5038 = vor.u32 %v5035, %v5036
        %v5040 = vshrl.u32 %v4987, 16
        %v5042 = vrot.slane %v5040, 7
        %v5043 = vshll.u32 %v4987, 16
        %v5045 = vor.u32 %v5042, %v5043
        %v5047 = vshrl.u32 %v4988, 16
        %v5049 = vrot.slane %v5047, 7
        %v5050 = vshll.u32 %v4988, 16
        %v5052 = vor.u32 %v5049, %v5050
        %v5054 = vshrl.u32 %v4989, 16
        %v5056 = vrot.slane %v5054, 7
        %v5057 = vshll.u32 %v4989, 16
        %v5059 = vor.u32 %v5056, %v5057
        %v5061 = vshrl.u32 %v4990, 16
        %v5063 = vrot.slane %v5061, 7
        %v5064 = vshll.u32 %v4990, 16
        %v5066 = vor.u32 %v5063, %v5064
        %v5068 = vshrl.u32 %v4991, 16
        %v5070 = vrot.slane %v5068, 7
        %v5071 = vshll.u32 %v4991, 16
        %v5073 = vor.u32 %v5070, %v5071
        %v5075 = vshrl.u32 %v4992, 16
        %v5077 = vrot.slane %v5075, 7
        %v5078 = vshll.u32 %v4992, 16
        %v5080 = vor.u32 %v5077, %v5078
        %v5082 = vshrl.u32 %v4993, 16
        %v5084 = vrot.slane %v5082, 7
        %v5085 = vshll.u32 %v4993, 16
        %v5087 = vor.u32 %v5084, %v5085
        %v5089 = vshrl.u32 %v4994, 16
        %v5091 = vrot.slane %v5089, 7
        %v5092 = vshll.u32 %v4994, 16
        %v5094 = vor.u32 %v5091, %v5092
        %v5096 = vshrl.u32 %v4995, 16
        %v5098 = vrot.slane %v5096, 7
        %v5099 = vshll.u32 %v4995, 16
        %v5101 = vor.u32 %v5098, %v5099
        %v5103 = vshrl.u32 %v4996, 16
        %v5105 = vrot.slane %v5103, 7
        %v5106 = vshll.u32 %v4996, 16
        %v5108 = vor.u32 %v5105, %v5106
        %v5141 = vsel %vm432, 0, %v5003
        %v5142 = vsel %vm432, 0, %v5010
        %v5143 = vsel %vm432, 0, %v5017
        %v5144 = vsel %vm432, 0, %v5024
        %v5145 = vsel %vm432, 0, %v5031
        %v5146 = vsel %vm432, 0, %v5038
        %v5147 = vsel %vm432, 0, %v5045
        %v5148 = vsel %vm432, 0, %v5052
        %v5149 = vsel %vm432, 0, %v5059
        %v5150 = vsel %vm432, 0, %v5066
        %v5151 = vsel %vm432, 0, %v5073
        %v5152 = vsel %vm432, 0, %v5080
        %v5153 = vsel %vm432, 0, %v5087
        %v5154 = vsel %vm432, 0, %v5094
        %v5155 = vsel %vm432, 0, %v5101
        %v5156 = vsel %vm432, 0, %v5108
        %v5157 = vsel %vm432, %v5000, 0
        %v5158 = vsel %vm432, %v5007, 0
        %v5159 = vsel %vm432, %v5014, 0
        %v5160 = vsel %vm432, %v5021, 0
        %v5161 = vsel %vm432, %v5028, 0
        %v5162 = vsel %vm432, %v5035, 0
        %v5163 = vsel %vm432, %v5042, 0
        %v5164 = vsel %vm432, %v5049, 0
        %v5165 = vsel %vm432, %v5056, 0
        %v5166 = vsel %vm432, %v5063, 0
        %v5167 = vsel %vm432, %v5070, 0
        %v5168 = vsel %vm432, %v5077, 0
        %v5169 = vsel %vm432, %v5084, 0
        %v5170 = vsel %vm432, %v5091, 0
        %v5171 = vsel %vm432, %v5098, 0
        %v5172 = vsel %vm432, %v5105, 0
        %v5174 = vshrl.u32 %v5141, 16
        %v5176 = vshll.u32 %v5141, 16
        %v5178 = vrot.slane %v5176, 1
        %v5179 = vor.u32 %v5174, %v5178
        %v5181 = vshll.u32 %v5157, 16
        %v5183 = vrot.slane %v5181, 1
        %v5184 = vsel %vm465, %v5179, %v5183
        %v5186 = vshrl.u32 %v5142, 16
        %v5188 = vshll.u32 %v5142, 16
        %v5190 = vrot.slane %v5188, 1
        %v5191 = vor.u32 %v5186, %v5190
        %v5193 = vshll.u32 %v5158, 16
        %v5195 = vrot.slane %v5193, 1
        %v5196 = vsel %vm465, %v5191, %v5195
        %v5198 = vshrl.u32 %v5143, 16
        %v5200 = vshll.u32 %v5143, 16
        %v5202 = vrot.slane %v5200, 1
        %v5203 = vor.u32 %v5198, %v5202
        %v5205 = vshll.u32 %v5159, 16
        %v5207 = vrot.slane %v5205, 1
        %v5208 = vsel %vm465, %v5203, %v5207
        %v5210 = vshrl.u32 %v5144, 16
        %v5212 = vshll.u32 %v5144, 16
        %v5214 = vrot.slane %v5212, 1
        %v5215 = vor.u32 %v5210, %v5214
        %v5217 = vshll.u32 %v5160, 16
        %v5219 = vrot.slane %v5217, 1
        %v5220 = vsel %vm465, %v5215, %v5219
        %v5222 = vshrl.u32 %v5145, 16
        %v5224 = vshll.u32 %v5145, 16
        %v5226 = vrot.slane %v5224, 1
        %v5227 = vor.u32 %v5222, %v5226
        %v5229 = vshll.u32 %v5161, 16
        %v5231 = vrot.slane %v5229, 1
        %v5232 = vsel %vm465, %v5227, %v5231
        %v5234 = vshrl.u32 %v5146, 16
        %v5236 = vshll.u32 %v5146, 16
        %v5238 = vrot.slane %v5236, 1
        %v5239 = vor.u32 %v5234, %v5238
        %v5241 = vshll.u32 %v5162, 16
        %v5243 = vrot.slane %v5241, 1
        %v5244 = vsel %vm465, %v5239, %v5243
        %v5246 = vshrl.u32 %v5147, 16
        %v5248 = vshll.u32 %v5147, 16
        %v5250 = vrot.slane %v5248, 1
        %v5251 = vor.u32 %v5246, %v5250
        %v5253 = vshll.u32 %v5163, 16
        %v5255 = vrot.slane %v5253, 1
        %v5256 = vsel %vm465, %v5251, %v5255
        %v5258 = vshrl.u32 %v5148, 16
        %v5260 = vshll.u32 %v5148, 16
        %v5262 = vrot.slane %v5260, 1
        %v5263 = vor.u32 %v5258, %v5262
        %v5265 = vshll.u32 %v5164, 16
        %v5267 = vrot.slane %v5265, 1
        %v5268 = vsel %vm465, %v5263, %v5267
        %v5270 = vshrl.u32 %v5149, 16
        %v5272 = vshll.u32 %v5149, 16
        %v5274 = vrot.slane %v5272, 1
        %v5275 = vor.u32 %v5270, %v5274
        %v5277 = vshll.u32 %v5165, 16
        %v5279 = vrot.slane %v5277, 1
        %v5280 = vsel %vm465, %v5275, %v5279
        %v5282 = vshrl.u32 %v5150, 16
        %v5284 = vshll.u32 %v5150, 16
        %v5286 = vrot.slane %v5284, 1
        %v5287 = vor.u32 %v5282, %v5286
        %v5289 = vshll.u32 %v5166, 16
        %v5291 = vrot.slane %v5289, 1
        %v5292 = vsel %vm465, %v5287, %v5291
        %v5294 = vshrl.u32 %v5151, 16
        %v5296 = vshll.u32 %v5151, 16
        %v5298 = vrot.slane %v5296, 1
        %v5299 = vor.u32 %v5294, %v5298
        %v5301 = vshll.u32 %v5167, 16
        %v5303 = vrot.slane %v5301, 1
        %v5304 = vsel %vm465, %v5299, %v5303
        %v5306 = vshrl.u32 %v5152, 16
        %v5308 = vshll.u32 %v5152, 16
        %v5310 = vrot.slane %v5308, 1
        %v5311 = vor.u32 %v5306, %v5310
        %v5313 = vshll.u32 %v5168, 16
        %v5315 = vrot.slane %v5313, 1
        %v5316 = vsel %vm465, %v5311, %v5315
        %v5318 = vshrl.u32 %v5153, 16
        %v5320 = vshll.u32 %v5153, 16
        %v5322 = vrot.slane %v5320, 1
        %v5323 = vor.u32 %v5318, %v5322
        %v5325 = vshll.u32 %v5169, 16
        %v5327 = vrot.slane %v5325, 1
        %v5328 = vsel %vm465, %v5323, %v5327
        %v5330 = vshrl.u32 %v5154, 16
        %v5332 = vshll.u32 %v5154, 16
        %v5334 = vrot.slane %v5332, 1
        %v5335 = vor.u32 %v5330, %v5334
        %v5337 = vshll.u32 %v5170, 16
        %v5339 = vrot.slane %v5337, 1
        %v5340 = vsel %vm465, %v5335, %v5339
        %v5342 = vshrl.u32 %v5155, 16
        %v5344 = vshll.u32 %v5155, 16
        %v5346 = vrot.slane %v5344, 1
        %v5347 = vor.u32 %v5342, %v5346
        %v5349 = vshll.u32 %v5171, 16
        %v5351 = vrot.slane %v5349, 1
        %v5352 = vsel %vm465, %v5347, %v5351
        %v5383 = vrot.slane %v5141, 1
        %v5384 = vrot.slane %v5157, 1
        %v5385 = vsel %vm685, %v5383, %v5384
        %v5386 = vrot.slane %v5142, 1
        %v5387 = vrot.slane %v5158, 1
        %v5388 = vsel %vm685, %v5386, %v5387
        %v5389 = vrot.slane %v5143, 1
        %v5390 = vrot.slane %v5159, 1
        %v5391 = vsel %vm685, %v5389, %v5390
        %v5392 = vrot.slane %v5144, 1
        %v5393 = vrot.slane %v5160, 1
        %v5394 = vsel %vm685, %v5392, %v5393
        %v5395 = vrot.slane %v5145, 1
        %v5396 = vrot.slane %v5161, 1
        %v5397 = vsel %vm685, %v5395, %v5396
        %v5398 = vrot.slane %v5146, 1
        %v5399 = vrot.slane %v5162, 1
        %v5400 = vsel %vm685, %v5398, %v5399
        %v5401 = vrot.slane %v5147, 1
        %v5402 = vrot.slane %v5163, 1
        %v5403 = vsel %vm685, %v5401, %v5402
        %v5404 = vrot.slane %v5148, 1
        %v5405 = vrot.slane %v5164, 1
        %v5406 = vsel %vm685, %v5404, %v5405
        %v5407 = vrot.slane %v5149, 1
        %v5408 = vrot.slane %v5165, 1
        %v5409 = vsel %vm685, %v5407, %v5408
        %v5410 = vrot.slane %v5150, 1
        %v5411 = vrot.slane %v5166, 1
        %v5412 = vsel %vm685, %v5410, %v5411
        %v5413 = vrot.slane %v5151, 1
        %v5414 = vrot.slane %v5167, 1
        %v5415 = vsel %vm685, %v5413, %v5414
        %v5416 = vrot.slane %v5152, 1
        %v5417 = vrot.slane %v5168, 1
        %v5418 = vsel %vm685, %v5416, %v5417
        %v5419 = vrot.slane %v5153, 1
        %v5420 = vrot.slane %v5169, 1
        %v5421 = vsel %vm685, %v5419, %v5420
        %v5422 = vrot.slane %v5154, 1
        %v5423 = vrot.slane %v5170, 1
        %v5424 = vsel %vm685, %v5422, %v5423
        %v5425 = vrot.slane %v5155, 1
        %v5426 = vrot.slane %v5171, 1
        %v5427 = vsel %vm685, %v5425, %v5426
        %v5429 = vshrl.u32 %v5156, 16
        %v5431 = vshll.u32 %v5156, 16
        %v5433 = vrot.slane %v5431, 1
        %v5434 = vor.u32 %v5429, %v5433
        %v5436 = vshll.u32 %v5172, 16
        %v5438 = vrot.slane %v5436, 1
        %v5439 = vsel %vm465, %v5434, %v5438
        %v5442 = vrot.slane %v5156, 1
        %v5443 = vrot.slane %v5172, 1
        %v5444 = vsel %vm685, %v5442, %v5443
        %5445 = vrot.lane.b32.xlu0 %v5184, 32
        %v5446 = vpop.permute.xlu0 %5445
        %5447 = vrot.lane.b32.xlu0 %v5196, 32
        %v5448 = vpop.permute.xlu0 %5447
        %5449 = vrot.lane.b32.xlu0 %v5208, 32
        %v5450 = vpop.permute.xlu0 %5449
        %5451 = vrot.lane.b32.xlu0 %v5220, 32
        %v5452 = vpop.permute.xlu0 %5451
        %5453 = vrot.lane.b32.xlu0 %v5232, 32
        %v5454 = vpop.permute.xlu0 %5453
        %5455 = vrot.lane.b32.xlu0 %v5244, 32
        %v5456 = vpop.permute.xlu0 %5455
        %5457 = vrot.lane.b32.xlu0 %v5256, 32
        %v5458 = vpop.permute.xlu0 %5457
        %5459 = vrot.lane.b32.xlu0 %v5268, 32
        %v5460 = vpop.permute.xlu0 %5459
        %5461 = vrot.lane.b32.xlu0 %v5280, 32
        %v5462 = vpop.permute.xlu0 %5461
        %5463 = vrot.lane.b32.xlu0 %v5292, 32
        %v5464 = vpop.permute.xlu0 %5463
        %5465 = vrot.lane.b32.xlu0 %v5304, 32
        %v5466 = vpop.permute.xlu0 %5465
        %5467 = vrot.lane.b32.xlu0 %v5316, 32
        %v5468 = vpop.permute.xlu0 %5467
        %5469 = vrot.lane.b32.xlu0 %v5328, 32
        %v5470 = vpop.permute.xlu0 %5469
        %5471 = vrot.lane.b32.xlu0 %v5340, 32
        %v5472 = vpop.permute.xlu0 %5471
        %5473 = vrot.lane.b32.xlu0 %v5352, 32
        %v5474 = vpop.permute.xlu0 %5473
        %5475 = vrot.lane.b32.xlu0 %v5385, 64
        %v5476 = vpop.permute.xlu0 %5475
        %5477 = vrot.lane.b32.xlu0 %v5388, 64
        %v5478 = vpop.permute.xlu0 %5477
        %5479 = vrot.lane.b32.xlu0 %v5391, 64
        %v5480 = vpop.permute.xlu0 %5479
        %5481 = vrot.lane.b32.xlu0 %v5394, 64
        %v5482 = vpop.permute.xlu0 %5481
        %5483 = vrot.lane.b32.xlu0 %v5397, 64
        %v5484 = vpop.permute.xlu0 %5483
        %5485 = vrot.lane.b32.xlu0 %v5400, 64
        %v5486 = vpop.permute.xlu0 %5485
        %5487 = vrot.lane.b32.xlu0 %v5403, 64
        %v5488 = vpop.permute.xlu0 %5487
        %5489 = vrot.lane.b32.xlu0 %v5406, 64
        %v5490 = vpop.permute.xlu0 %5489
        %5491 = vrot.lane.b32.xlu0 %v5409, 64
        %v5492 = vpop.permute.xlu0 %5491
        %5493 = vrot.lane.b32.xlu0 %v5412, 64
        %v5494 = vpop.permute.xlu0 %5493
        %5495 = vrot.lane.b32.xlu0 %v5415, 64
        %v5496 = vpop.permute.xlu0 %5495
        %5497 = vrot.lane.b32.xlu0 %v5418, 64
        %v5498 = vpop.permute.xlu0 %5497
        %5499 = vrot.lane.b32.xlu0 %v5421, 64
        %v5500 = vpop.permute.xlu0 %5499
        %5501 = vrot.lane.b32.xlu0 %v5424, 64
        %v5502 = vpop.permute.xlu0 %5501
        %5503 = vrot.lane.b32.xlu0 %v5427, 64
        %v5504 = vpop.permute.xlu0 %5503
        %5505 = vrot.lane.b32.xlu0 %v5141, 96
        %v5506 = vpop.permute.xlu0 %5505
        %5507 = vrot.lane.b32.xlu0 %v5142, 96
        %v5508 = vpop.permute.xlu0 %5507
        %5509 = vrot.lane.b32.xlu0 %v5143, 96
        %v5510 = vpop.permute.xlu0 %5509
        %5511 = vrot.lane.b32.xlu0 %v5144, 96
        %v5512 = vpop.permute.xlu0 %5511
        %5513 = vrot.lane.b32.xlu0 %v5145, 96
        %v5514 = vpop.permute.xlu0 %5513
        %5515 = vrot.lane.b32.xlu0 %v5146, 96
        %v5516 = vpop.permute.xlu0 %5515
        %5517 = vrot.lane.b32.xlu0 %v5147, 96
        %v5518 = vpop.permute.xlu0 %5517
        %5519 = vrot.lane.b32.xlu0 %v5148, 96
        %v5520 = vpop.permute.xlu0 %5519
        %5521 = vrot.lane.b32.xlu0 %v5149, 96
        %v5522 = vpop.permute.xlu0 %5521
        %5523 = vrot.lane.b32.xlu0 %v5150, 96
        %v5524 = vpop.permute.xlu0 %5523
        %5525 = vrot.lane.b32.xlu0 %v5151, 96
        %v5526 = vpop.permute.xlu0 %5525
        %5527 = vrot.lane.b32.xlu0 %v5152, 96
        %v5528 = vpop.permute.xlu0 %5527
        %5529 = vrot.lane.b32.xlu0 %v5153, 96
        %v5530 = vpop.permute.xlu0 %5529
        %5531 = vrot.lane.b32.xlu0 %v5154, 96
        %v5532 = vpop.permute.xlu0 %5531
        %5533 = vrot.lane.b32.xlu0 %v5155, 96
        %v5534 = vpop.permute.xlu0 %5533
        %5535 = vrot.lane.b32.xlu0 %v5156, 96
        %v5536 = vpop.permute.xlu0 %5535
        %5537 = vrot.lane.b32.xlu0 %v5385, 32
        %v5538 = vpop.permute.xlu0 %5537
        %5539 = vrot.lane.b32.xlu0 %v5388, 32
        %v5540 = vpop.permute.xlu0 %5539
        %5541 = vrot.lane.b32.xlu0 %v5391, 32
        %v5542 = vpop.permute.xlu0 %5541
        %5543 = vrot.lane.b32.xlu0 %v5394, 32
        %v5544 = vpop.permute.xlu0 %5543
        %5545 = vrot.lane.b32.xlu0 %v5397, 32
        %v5546 = vpop.permute.xlu0 %5545
        %5547 = vrot.lane.b32.xlu0 %v5400, 32
        %v5548 = vpop.permute.xlu0 %5547
        %5549 = vrot.lane.b32.xlu0 %v5403, 32
        %v5550 = vpop.permute.xlu0 %5549
        %5551 = vrot.lane.b32.xlu0 %v5406, 32
        %v5552 = vpop.permute.xlu0 %5551
        %5553 = vrot.lane.b32.xlu0 %v5409, 32
        %v5554 = vpop.permute.xlu0 %5553
        %5555 = vrot.lane.b32.xlu0 %v5412, 32
        %v5556 = vpop.permute.xlu0 %5555
        %5557 = vrot.lane.b32.xlu0 %v5415, 32
        %v5558 = vpop.permute.xlu0 %5557
        %5559 = vrot.lane.b32.xlu0 %v5418, 32
        %v5560 = vpop.permute.xlu0 %5559
        %5561 = vrot.lane.b32.xlu0 %v5421, 32
        %v5562 = vpop.permute.xlu0 %5561
        %5563 = vrot.lane.b32.xlu0 %v5424, 32
        %v5564 = vpop.permute.xlu0 %5563
        %5565 = vrot.lane.b32.xlu0 %v5427, 32
        %v5566 = vpop.permute.xlu0 %5565
        %5567 = vrot.lane.b32.xlu0 %v5444, 32
        %v5568 = vpop.permute.xlu0 %5567
        %5569 = vrot.lane.b32.xlu0 %v5142, 64
        %v5570 = vpop.permute.xlu0 %5569
        %5571 = vrot.lane.b32.xlu0 %v5143, 64
        %v5572 = vpop.permute.xlu0 %5571
        %5573 = vrot.lane.b32.xlu0 %v5144, 64
        %v5574 = vpop.permute.xlu0 %5573
        %5575 = vrot.lane.b32.xlu0 %v5145, 64
        %v5576 = vpop.permute.xlu0 %5575
        %5577 = vrot.lane.b32.xlu0 %v5146, 64
        %v5578 = vpop.permute.xlu0 %5577
        %5579 = vrot.lane.b32.xlu0 %v5147, 64
        %v5580 = vpop.permute.xlu0 %5579
        %5581 = vrot.lane.b32.xlu0 %v5148, 64
        %v5582 = vpop.permute.xlu0 %5581
        %5583 = vrot.lane.b32.xlu0 %v5149, 64
        %v5584 = vpop.permute.xlu0 %5583
        %5585 = vrot.lane.b32.xlu0 %v5150, 64
        %v5586 = vpop.permute.xlu0 %5585
        %5587 = vrot.lane.b32.xlu0 %v5151, 64
        %v5588 = vpop.permute.xlu0 %5587
        %5589 = vrot.lane.b32.xlu0 %v5152, 64
        %v5590 = vpop.permute.xlu0 %5589
        %5591 = vrot.lane.b32.xlu0 %v5153, 64
        %v5592 = vpop.permute.xlu0 %5591
        %5593 = vrot.lane.b32.xlu0 %v5154, 64
        %v5594 = vpop.permute.xlu0 %5593
        %5595 = vrot.lane.b32.xlu0 %v5155, 64
        %v5596 = vpop.permute.xlu0 %5595
        %5597 = vrot.lane.b32.xlu0 %v5156, 64
        %v5598 = vpop.permute.xlu0 %5597
        %5599 = vrot.lane.b32.xlu0 %v5196, 96
        %v5600 = vpop.permute.xlu0 %5599
        %5601 = vrot.lane.b32.xlu0 %v5208, 96
        %v5602 = vpop.permute.xlu0 %5601
        %5603 = vrot.lane.b32.xlu0 %v5220, 96
        %v5604 = vpop.permute.xlu0 %5603
        %5605 = vrot.lane.b32.xlu0 %v5232, 96
        %v5606 = vpop.permute.xlu0 %5605
        %5607 = vrot.lane.b32.xlu0 %v5244, 96
        %v5608 = vpop.permute.xlu0 %5607
        %5609 = vrot.lane.b32.xlu0 %v5256, 96
        %v5610 = vpop.permute.xlu0 %5609
        %5611 = vrot.lane.b32.xlu0 %v5268, 96
        %v5612 = vpop.permute.xlu0 %5611
        %5613 = vrot.lane.b32.xlu0 %v5280, 96
        %v5614 = vpop.permute.xlu0 %5613
        %5615 = vrot.lane.b32.xlu0 %v5292, 96
        %v5616 = vpop.permute.xlu0 %5615
        %5617 = vrot.lane.b32.xlu0 %v5304, 96
        %v5618 = vpop.permute.xlu0 %5617
        %5619 = vrot.lane.b32.xlu0 %v5316, 96
        %v5620 = vpop.permute.xlu0 %5619
        %5621 = vrot.lane.b32.xlu0 %v5328, 96
        %v5622 = vpop.permute.xlu0 %5621
        %5623 = vrot.lane.b32.xlu0 %v5340, 96
        %v5624 = vpop.permute.xlu0 %5623
        %5625 = vrot.lane.b32.xlu0 %v5352, 96
        %v5626 = vpop.permute.xlu0 %5625
        %5627 = vrot.lane.b32.xlu0 %v5439, 96
        %v5628 = vpop.permute.xlu0 %5627
        %v5630 = vsel %vm942, %v5141, %v5446
        %v5632 = vsel %vm942, %v5142, %v5448
        %v5634 = vsel %vm942, %v5143, %v5450
        %v5636 = vsel %vm942, %v5144, %v5452
        %v5638 = vsel %vm942, %v5145, %v5454
        %v5640 = vsel %vm942, %v5146, %v5456
        %v5642 = vsel %vm942, %v5147, %v5458
        %v5644 = vsel %vm942, %v5148, %v5460
        %v5646 = vsel %vm942, %v5149, %v5462
        %v5648 = vsel %vm942, %v5150, %v5464
        %v5650 = vsel %vm942, %v5151, %v5466
        %v5652 = vsel %vm942, %v5152, %v5468
        %v5654 = vsel %vm942, %v5153, %v5470
        %v5656 = vsel %vm942, %v5154, %v5472
        %v5658 = vsel %vm942, %v5155, %v5474
        %v5660 = vsel %vm975, %v5630, %v5476
        %v5662 = vsel %vm975, %v5632, %v5478
        %v5664 = vsel %vm975, %v5634, %v5480
        %v5666 = vsel %vm975, %v5636, %v5482
        %v5668 = vsel %vm975, %v5638, %v5484
        %v5670 = vsel %vm975, %v5640, %v5486
        %v5672 = vsel %vm975, %v5642, %v5488
        %v5674 = vsel %vm975, %v5644, %v5490
        %v5676 = vsel %vm975, %v5646, %v5492
        %v5678 = vsel %vm975, %v5648, %v5494
        %v5680 = vsel %vm975, %v5650, %v5496
        %v5682 = vsel %vm975, %v5652, %v5498
        %v5684 = vsel %vm975, %v5654, %v5500
        %v5686 = vsel %vm975, %v5656, %v5502
        %v5688 = vsel %vm975, %v5658, %v5504
        %v5690 = vsel %vm1008, %v977, %v5506
        %v5693 = vsel %vm1008, %v5660, %v5508
        %v5696 = vsel %vm1008, %v5662, %v5510
        %v5699 = vsel %vm1008, %v5664, %v5512
        %v5702 = vsel %vm1008, %v5666, %v5514
        %v5705 = vsel %vm1008, %v5668, %v5516
        %v5708 = vsel %vm1008, %v5670, %v5518
        %v5711 = vsel %vm1008, %v5672, %v5520
        %v5714 = vsel %vm1008, %v5674, %v5522
        %v5717 = vsel %vm1008, %v5676, %v5524
        %v5720 = vsel %vm1008, %v5678, %v5526
        %v5723 = vsel %vm1008, %v5680, %v5528
        %v5726 = vsel %vm1008, %v5682, %v5530
        %v5729 = vsel %vm1008, %v5684, %v5532
        %v5732 = vsel %vm1008, %v5686, %v5534
        %v5735 = vsel %vm1008, %v5688, %v5536
        %v5739 = vsel %vm942, %v5184, %v5538
        %v5742 = vsel %vm942, %v5196, %v5540
        %v5745 = vsel %vm942, %v5208, %v5542
        %v5748 = vsel %vm942, %v5220, %v5544
        %v5751 = vsel %vm942, %v5232, %v5546
        %v5754 = vsel %vm942, %v5244, %v5548
        %v5757 = vsel %vm942, %v5256, %v5550
        %v5760 = vsel %vm942, %v5268, %v5552
        %v5763 = vsel %vm942, %v5280, %v5554
        %v5766 = vsel %vm942, %v5292, %v5556
        %v5769 = vsel %vm942, %v5304, %v5558
        %v5772 = vsel %vm942, %v5316, %v5560
        %v5775 = vsel %vm942, %v5328, %v5562
        %v5778 = vsel %vm942, %v5340, %v5564
        %v5781 = vsel %vm942, %v5352, %v5566
        %v5784 = vsel %vm942, %v5439, %v5568
        %v5786 = vsel %vm975, %v5739, %v5570
        %v5788 = vsel %vm975, %v5742, %v5572
        %v5790 = vsel %vm975, %v5745, %v5574
        %v5792 = vsel %vm975, %v5748, %v5576
        %v5794 = vsel %vm975, %v5751, %v5578
        %v5796 = vsel %vm975, %v5754, %v5580
        %v5798 = vsel %vm975, %v5757, %v5582
        %v5800 = vsel %vm975, %v5760, %v5584
        %v5802 = vsel %vm975, %v5763, %v5586
        %v5804 = vsel %vm975, %v5766, %v5588
        %v5806 = vsel %vm975, %v5769, %v5590
        %v5808 = vsel %vm975, %v5772, %v5592
        %v5810 = vsel %vm975, %v5775, %v5594
        %v5812 = vsel %vm975, %v5778, %v5596
        %v5814 = vsel %vm975, %v5781, %v5598
        %v5815 = vsel %vm975, %v5784, %v909
        %v5817 = vsel %vm1008, %v5786, %v5600
        %v5820 = vsel %vm1008, %v5788, %v5602
        %v5823 = vsel %vm1008, %v5790, %v5604
        %v5826 = vsel %vm1008, %v5792, %v5606
        %v5829 = vsel %vm1008, %v5794, %v5608
        %v5832 = vsel %vm1008, %v5796, %v5610
        %v5835 = vsel %vm1008, %v5798, %v5612
        %v5838 = vsel %vm1008, %v5800, %v5614
        %v5841 = vsel %vm1008, %v5802, %v5616
        %v5844 = vsel %vm1008, %v5804, %v5618
        %v5847 = vsel %vm1008, %v5806, %v5620
        %v5850 = vsel %vm1008, %v5808, %v5622
        %v5853 = vsel %vm1008, %v5810, %v5624
        %v5856 = vsel %vm1008, %v5812, %v5626
        %v5859 = vsel %vm1008, %v5814, %v5628
        %v5861 = vsel %vm1008, %v5815, %v941
        %s5863 = scalar_lea.vmem %s2, 432
        %v5864 = vld [vmem:[%s5863] sm:$0xf]
        %v5865 = vld [vmem:[%s5863 + $0x4] sm:$0xf]
        %v5866 = vld [vmem:[%s5863 + $0x8] sm:$0xf]
        %v5867 = vld [vmem:[%s5863 + $0xc] sm:$0xf]
        %v5868 = vld [vmem:[%s5863 + $0x10] sm:$0xf]
        %v5869 = vld [vmem:[%s5863 + $0x14] sm:$0xf]
        %v5870 = vld [vmem:[%s5863 + $0x18] sm:$0xf]
        %v5871 = vld [vmem:[%s5863 + $0x1c] sm:$0xf]
        %v5872 = vld [vmem:[%s5863 + $0x20] sm:$0xf]
        %v5873 = vld [vmem:[%s5863 + $0x24] sm:$0xf]
        %v5874 = vld [vmem:[%s5863 + $0x28] sm:$0xf]
        %v5875 = vld [vmem:[%s5863 + $0x2c] sm:$0xf]
        %v5876 = vld [vmem:[%s5863 + $0x30] sm:$0xf]
        %v5877 = vld [vmem:[%s5863 + $0x34] sm:$0xf]
        %v5878 = vld [vmem:[%s5863 + $0x38] sm:$0xf]
        %v5879 = vld [vmem:[%s5863 + $0x3c] sm:$0xf]
        %v5880 = vld [vmem:[%s5863 + $0x40] sm:$0xf]
        %v5881 = vld [vmem:[%s5863 + $0x44] sm:$0xf]
        %v5882 = vld [vmem:[%s5863 + $0x48] sm:$0xf]
        %v5883 = vld [vmem:[%s5863 + $0x4c] sm:$0xf]
        %v5884 = vld [vmem:[%s5863 + $0x50] sm:$0xf]
        %v5885 = vld [vmem:[%s5863 + $0x54] sm:$0xf]
        %v5886 = vld [vmem:[%s5863 + $0x58] sm:$0xf]
        %v5887 = vld [vmem:[%s5863 + $0x5c] sm:$0xf]
        %v5888 = vld [vmem:[%s5863 + $0x60] sm:$0xf]
        %v5889 = vld [vmem:[%s5863 + $0x64] sm:$0xf]
        %v5890 = vld [vmem:[%s5863 + $0x68] sm:$0xf]
        %v5891 = vld [vmem:[%s5863 + $0x6c] sm:$0xf]
        %v5892 = vld [vmem:[%s5863 + $0x70] sm:$0xf]
        %v5893 = vld [vmem:[%s5863 + $0x74] sm:$0xf]
        %v5894 = vld [vmem:[%s5863 + $0x78] sm:$0xf]
        %v5895 = vld [vmem:[%s5863 + $0x7c] sm:$0xf]
        %v5896 = vld [vmem:[%s5863 + $0x80] sm:$0xf]
        %v5897 = vld [vmem:[%s5863 + $0x84] sm:$0xf]
        %v5898 = vld [vmem:[%s5863 + $0x88] sm:$0xf]
        %v5899 = vld [vmem:[%s5863 + $0x8c] sm:$0xf]
        %v5936 = vunpack.c.l.b16 %v5864
        %v5937 = vunpack.c.l.b16 %v5865
        %v5938 = vunpack.c.l.b16 %v5866
        %v5939 = vunpack.c.l.b16 %v5867
        %v5940 = vunpack.c.l.b16 %v5868
        %v5941 = vunpack.c.l.b16 %v5869
        %v5942 = vunpack.c.l.b16 %v5870
        %v5943 = vunpack.c.l.b16 %v5871
        %v5944 = vunpack.c.l.b16 %v5872
        %v5945 = vunpack.c.l.b16 %v5873
        %v5946 = vunpack.c.l.b16 %v5874
        %v5947 = vunpack.c.l.b16 %v5875
        %v5948 = vunpack.c.l.b16 %v5876
        %v5949 = vunpack.c.l.b16 %v5877
        %v5950 = vunpack.c.l.b16 %v5878
        %v5951 = vunpack.c.l.b16 %v5879
        %v5952 = vunpack.c.l.b16 %v5880
        %v5953 = vunpack.c.l.b16 %v5881
        %v5954 = vunpack.c.l.b16 %v5882
        %v5955 = vunpack.c.l.b16 %v5883
        %v5956 = vunpack.c.l.b16 %v5884
        %v5957 = vunpack.c.l.b16 %v5885
        %v5958 = vunpack.c.l.b16 %v5886
        %v5959 = vunpack.c.l.b16 %v5887
        %v5960 = vunpack.c.l.b16 %v5888
        %v5961 = vunpack.c.l.b16 %v5889
        %v5962 = vunpack.c.l.b16 %v5890
        %v5963 = vunpack.c.l.b16 %v5891
        %v5964 = vunpack.c.l.b16 %v5892
        %v5965 = vunpack.c.l.b16 %v5893
        %v5966 = vunpack.c.l.b16 %v5894
        %v5967 = vunpack.c.l.b16 %v5895
        %v5968 = vunpack.c.l.b16 %v5896
        %v5969 = vunpack.c.l.b16 %v5897
        %v5970 = vunpack.c.l.b16 %v5898
        %v5971 = vunpack.c.l.b16 %v5899
        %v5972 = vpack.c.b16 %v5937, %v5936
        %v5973 = vpack.c.b16 %v5939, %v5938
        %v5974 = vpack.c.b16 %v5941, %v5940
        %v5975 = vpack.c.b16 %v5943, %v5942
        %v5976 = vpack.c.b16 %v5945, %v5944
        %v5977 = vpack.c.b16 %v5947, %v5946
        %v5978 = vpack.c.b16 %v5949, %v5948
        %v5979 = vpack.c.b16 %v5951, %v5950
        %v5980 = vpack.c.b16 %v5953, %v5952
        %v5981 = vpack.c.b16 %v5955, %v5954
        %v5982 = vpack.c.b16 %v5957, %v5956
        %v5983 = vpack.c.b16 %v5959, %v5958
        %v5984 = vpack.c.b16 %v5961, %v5960
        %v5985 = vpack.c.b16 %v5963, %v5962
        %v5986 = vpack.c.b16 %v5965, %v5964
        %v5987 = vpack.c.b16 %v5967, %v5966
        %v5988 = vpack.c.b16 %v5969, %v5968
        %v5989 = vpack.c.b16 %v5971, %v5970
        %v6009 = vsel %vm942, %v5388, 0
        %v6012 = vsel %vm942, %v5391, 0
        %v6015 = vsel %vm942, %v5394, 0
        %v6018 = vsel %vm942, %v5397, 0
        %v6021 = vsel %vm942, %v5400, 0
        %v6024 = vsel %vm942, %v5403, 0
        %v6027 = vsel %vm942, %v5406, 0
        %v6030 = vsel %vm942, %v5409, 0
        %v6033 = vsel %vm942, %v5412, 0
        %v6036 = vsel %vm942, %v5415, 0
        %v6039 = vsel %vm942, %v5418, 0
        %v6042 = vsel %vm942, %v5421, 0
        %v6045 = vsel %vm942, %v5424, 0
        %v6048 = vsel %vm942, %v5427, 0
        %v6051 = vsel %vm942, %v5444, 0
        %6053 = vmatprep.subr.bf16.mxu0 0
        %6054 = vmatpush1.bf16.msra.mxu0 %v5972
        %6055 = vmatprep.subr.bf16.mxu0 0
        %6056 = vmatpush1.bf16.msra.mxu0 %v5973
        %6057 = vmatprep.subr.bf16.mxu0 0
        %6058 = vmatpush1.bf16.msra.mxu0 %v5974
        %6059 = vmatprep.subr.bf16.mxu0 0
        %6060 = vmatpush1.bf16.msra.mxu0 %v5975
        %6061 = vmatprep.subr.bf16.mxu0 0
        %6062 = vmatpush1.bf16.msra.mxu0 %v5976
        %6063 = vmatprep.subr.bf16.mxu0 0
        %6064 = vmatpush1.bf16.msra.mxu0 %v5977
        %6065 = vmatprep.subr.bf16.mxu0 0
        %6066 = vmatpush1.bf16.msra.mxu0 %v5978
        %6067 = vmatprep.subr.bf16.mxu0 0
        %6068 = vmatpush1.bf16.msra.mxu0 %v5979
        %6069 = vmatprep.subr.bf16.mxu0 0
        %6070 = vmatpush1.bf16.msra.mxu0 %v5980
        %6071 = vmatprep.subr.bf16.mxu0 0
        %6072 = vmatpush1.bf16.msra.mxu0 %v5981
        %6073 = vmatprep.subr.bf16.mxu0 0
        %6074 = vmatpush1.bf16.msra.mxu0 %v5982
        %6075 = vmatprep.subr.bf16.mxu0 0
        %6076 = vmatpush1.bf16.msra.mxu0 %v5983
        %6077 = vmatprep.subr.bf16.mxu0 0
        %6078 = vmatpush1.bf16.msra.mxu0 %v5984
        %6079 = vmatprep.subr.bf16.mxu0 0
        %6080 = vmatpush1.bf16.msra.mxu0 %v5985
        %6081 = vmatprep.subr.bf16.mxu0 0
        %6082 = vmatpush1.bf16.msra.mxu0 %v5986
        %6083 = vmatprep.subr.bf16.mxu0 0
        %6084 = vmatpush1.bf16.msra.mxu0 %v5987
        %6085 = vmatprep.mubr.bf16.mxu0 %v5817
        %6086 = vmatmul.mubr.bf16.gmra.mrb[0].mxu0 %v5690
        %v6087 = vpop.f32.mrb[0].mxu0
        %v6088 = vadd.f32 0.0, %v6087
        %v6089 = vpop.f32.mrb[0].mxu0
        %v6090 = vpop.f32.mrb[0].mxu0
        %v6091 = vadd.f32 0.0, %v6090
        %v6092 = vpop.f32.mrb[0].mxu0
        %6093 = vmatprep.mubr.bf16.mxu0 %v5820
        %6094 = vmatmul.mubr.bf16.gmra.mrb[0].mxu0 %v5693
        %v6095 = vpop.f32.mrb[0].mxu0
        %v6096 = vadd.f32 0.0, %v6095
        %v6097 = vpop.f32.mrb[0].mxu0
        %v6098 = vpop.f32.mrb[0].mxu0
        %v6099 = vadd.f32 0.0, %v6098
        %v6100 = vpop.f32.mrb[0].mxu0
        %6101 = vmatprep.mubr.bf16.mxu0 %v5823
        %6102 = vmatmul.mubr.bf16.gmra.mrb[0].mxu0 %v5696
        %v6103 = vpop.f32.mrb[0].mxu0
        %v6104 = vadd.f32 0.0, %v6103
        %v6105 = vpop.f32.mrb[0].mxu0
        %v6106 = vpop.f32.mrb[0].mxu0
        %v6107 = vadd.f32 0.0, %v6106
        %v6108 = vpop.f32.mrb[0].mxu0
        %6109 = vmatprep.mubr.bf16.mxu0 %v5826
        %6110 = vmatmul.mubr.bf16.gmra.mrb[0].mxu0 %v5699
        %v6111 = vpop.f32.mrb[0].mxu0
        %v6112 = vadd.f32 0.0, %v6111
        %v6113 = vpop.f32.mrb[0].mxu0
        %v6114 = vpop.f32.mrb[0].mxu0
        %v6115 = vadd.f32 0.0, %v6114
        %v6116 = vpop.f32.mrb[0].mxu0
        %6117 = vmatprep.mubr.bf16.mxu0 %v5829
        %6118 = vmatmul.mubr.bf16.gmra.mrb[0].mxu0 %v5702
        %v6119 = vpop.f32.mrb[0].mxu0
        %v6120 = vadd.f32 0.0, %v6119
        %v6121 = vpop.f32.mrb[0].mxu0
        %v6122 = vpop.f32.mrb[0].mxu0
        %v6123 = vadd.f32 0.0, %v6122
        %v6124 = vpop.f32.mrb[0].mxu0
        %6125 = vmatprep.mubr.bf16.mxu0 %v5832
        %6126 = vmatmul.mubr.bf16.gmra.mrb[0].mxu0 %v5705
        %v6127 = vpop.f32.mrb[0].mxu0
        %v6128 = vadd.f32 0.0, %v6127
        %v6129 = vpop.f32.mrb[0].mxu0
        %v6130 = vpop.f32.mrb[0].mxu0
        %v6131 = vadd.f32 0.0, %v6130
        %v6132 = vpop.f32.mrb[0].mxu0
        %6133 = vmatprep.mubr.bf16.mxu0 %v5835
        %6134 = vmatmul.mubr.bf16.gmra.mrb[0].mxu0 %v5708
        %v6135 = vpop.f32.mrb[0].mxu0
        %v6136 = vadd.f32 0.0, %v6135
        %v6137 = vpop.f32.mrb[0].mxu0
        %v6138 = vpop.f32.mrb[0].mxu0
        %v6139 = vadd.f32 0.0, %v6138
        %v6140 = vpop.f32.mrb[0].mxu0
        %6141 = vmatprep.mubr.bf16.mxu0 %v5838
        %6142 = vmatmul.mubr.bf16.gmra.mrb[0].mxu0 %v5711
        %v6143 = vpop.f32.mrb[0].mxu0
        %v6144 = vadd.f32 0.0, %v6143
        %v6145 = vpop.f32.mrb[0].mxu0
        %v6146 = vpop.f32.mrb[0].mxu0
        %v6147 = vadd.f32 0.0, %v6146
        %v6148 = vpop.f32.mrb[0].mxu0
        %6149 = vmatprep.mubr.bf16.mxu0 %v5841
        %6150 = vmatmul.mubr.bf16.gmra.mrb[0].mxu0 %v5714
        %v6151 = vpop.f32.mrb[0].mxu0
        %v6152 = vadd.f32 0.0, %v6151
        %v6153 = vpop.f32.mrb[0].mxu0
        %v6154 = vpop.f32.mrb[0].mxu0
        %v6155 = vadd.f32 0.0, %v6154
        %v6156 = vpop.f32.mrb[0].mxu0
        %6157 = vmatprep.mubr.bf16.mxu0 %v5844
        %6158 = vmatmul.mubr.bf16.gmra.mrb[0].mxu0 %v5717
        %v6159 = vpop.f32.mrb[0].mxu0
        %v6160 = vadd.f32 0.0, %v6159
        %v6161 = vpop.f32.mrb[0].mxu0
        %v6162 = vpop.f32.mrb[0].mxu0
        %v6163 = vadd.f32 0.0, %v6162
        %v6164 = vpop.f32.mrb[0].mxu0
        %6165 = vmatprep.mubr.bf16.mxu0 %v5847
        %6166 = vmatmul.mubr.bf16.gmra.mrb[0].mxu0 %v5720
        %v6167 = vpop.f32.mrb[0].mxu0
        %v6168 = vadd.f32 0.0, %v6167
        %v6169 = vpop.f32.mrb[0].mxu0
        %v6170 = vpop.f32.mrb[0].mxu0
        %v6171 = vadd.f32 0.0, %v6170
        %v6172 = vpop.f32.mrb[0].mxu0
        %6173 = vmatprep.mubr.bf16.mxu0 %v5850
        %6174 = vmatmul.mubr.bf16.gmra.mrb[0].mxu0 %v5723
        %v6175 = vpop.f32.mrb[0].mxu0
        %v6176 = vadd.f32 0.0, %v6175
        %v6177 = vpop.f32.mrb[0].mxu0
        %v6178 = vpop.f32.mrb[0].mxu0
        %v6179 = vadd.f32 0.0, %v6178
        %v6180 = vpop.f32.mrb[0].mxu0
        %6181 = vmatprep.mubr.bf16.mxu0 %v5853
        %6182 = vmatmul.mubr.bf16.gmra.mrb[0].mxu0 %v5726
        %v6183 = vpop.f32.mrb[0].mxu0
        %v6184 = vadd.f32 0.0, %v6183
        %v6185 = vpop.f32.mrb[0].mxu0
        %v6186 = vpop.f32.mrb[0].mxu0
        %v6187 = vadd.f32 0.0, %v6186
        %v6188 = vpop.f32.mrb[0].mxu0
        %6189 = vmatprep.mubr.bf16.mxu0 %v5856
        %6190 = vmatmul.mubr.bf16.gmra.mrb[0].mxu0 %v5729
        %v6191 = vpop.f32.mrb[0].mxu0
        %v6192 = vadd.f32 0.0, %v6191
        %v6193 = vpop.f32.mrb[0].mxu0
        %v6194 = vpop.f32.mrb[0].mxu0
        %v6195 = vadd.f32 0.0, %v6194
        %v6196 = vpop.f32.mrb[0].mxu0
        %6197 = vmatprep.mubr.bf16.mxu0 %v5859
        %6198 = vmatmul.mubr.bf16.gmra.mrb[0].mxu0 %v5732
        %v6199 = vpop.f32.mrb[0].mxu0
        %v6200 = vadd.f32 0.0, %v6199
        %v6201 = vpop.f32.mrb[0].mxu0
        %v6202 = vpop.f32.mrb[0].mxu0
        %v6203 = vadd.f32 0.0, %v6202
        %v6204 = vpop.f32.mrb[0].mxu0
        %6205 = vmatprep.mubr.bf16.mxu0 %v5861
        %6206 = vmatmul.mubr.bf16.gmra.mrb[0].mxu0 %v5735
        %v6207 = vpop.f32.mrb[0].mxu0
        %v6208 = vadd.f32 0.0, %v6207
        %v6209 = vpop.f32.mrb[0].mxu0
        %v6210 = vpop.f32.mrb[0].mxu0
        %v6211 = vadd.f32 0.0, %v6210
        %v6212 = vpop.f32.mrb[0].mxu0
        %6213 = vdwg.mxu0
        %6214 = vmatprep.subr.bf16.mxu0 0
        %6215 = vmatpush1.bf16.msra.mxu0 %v5988
        %6216 = vmatprep.subr.bf16.mxu0 0
        %6217 = vmatpush1.bf16.msra.mxu0 %v5989
        %6218 = vmatprep.subr.bf16.mxu0 0
        %6219 = vmatpush1.bf16.msra.mxu0 0
        %6220 = vmatprep.subr.bf16.mxu0 0
        %6221 = vmatpush1.bf16.msra.mxu0 0
        %6222 = vmatprep.subr.bf16.mxu0 0
        %6223 = vmatpush1.bf16.msra.mxu0 0
        %6224 = vmatprep.subr.bf16.mxu0 0
        %6225 = vmatpush1.bf16.msra.mxu0 0
        %6226 = vmatprep.subr.bf16.mxu0 0
        %6227 = vmatpush1.bf16.msra.mxu0 0
        %6228 = vmatprep.subr.bf16.mxu0 0
        %6229 = vmatpush1.bf16.msra.mxu0 0
        %6230 = vmatprep.subr.bf16.mxu0 0
        %6231 = vmatpush1.bf16.msra.mxu0 0
        %6232 = vmatprep.subr.bf16.mxu0 0
        %6233 = vmatpush1.bf16.msra.mxu0 0
        %6234 = vmatprep.subr.bf16.mxu0 0
        %6235 = vmatpush1.bf16.msra.mxu0 0
        %6236 = vmatprep.subr.bf16.mxu0 0
        %6237 = vmatpush1.bf16.msra.mxu0 0
        %6238 = vmatprep.subr.bf16.mxu0 0
        %6239 = vmatpush1.bf16.msra.mxu0 0
        %6240 = vmatprep.subr.bf16.mxu0 0
        %6241 = vmatpush1.bf16.msra.mxu0 0
        %6242 = vmatprep.subr.bf16.mxu0 0
        %6243 = vmatpush1.bf16.msra.mxu0 0
        %6244 = vmatprep.subr.bf16.mxu0 0
        %6245 = vmatpush1.bf16.msra.mxu0 0
        %6246 = vmatprep.mubr.bf16.mxu0 0
        %6247 = vmatmul.mubr.bf16.gmra.mrb[0].mxu0 %v6009
        %v6248 = vpop.f32.mrb[0].mxu0
        %v6249 = vadd.f32 %v6088, %v6248
        %v6250 = vpop.f32.mrb[0].mxu0
        %v6251 = vpop.f32.mrb[0].mxu0
        %v6252 = vadd.f32 %v6091, %v6251
        %v6253 = vpop.f32.mrb[0].mxu0
        %6254 = vmatprep.mubr.bf16.mxu0 0
        %6255 = vmatmul.mubr.bf16.gmra.mrb[0].mxu0 %v6012
        %v6256 = vpop.f32.mrb[0].mxu0
        %v6257 = vadd.f32 %v6096, %v6256
        %v6258 = vpop.f32.mrb[0].mxu0
        %v6259 = vpop.f32.mrb[0].mxu0
        %v6260 = vadd.f32 %v6099, %v6259
        %v6261 = vpop.f32.mrb[0].mxu0
        %6262 = vmatprep.mubr.bf16.mxu0 0
        %6263 = vmatmul.mubr.bf16.gmra.mrb[0].mxu0 %v6015
        %v6264 = vpop.f32.mrb[0].mxu0
        %v6265 = vadd.f32 %v6104, %v6264
        %v6266 = vpop.f32.mrb[0].mxu0
        %v6267 = vpop.f32.mrb[0].mxu0
        %v6268 = vadd.f32 %v6107, %v6267
        %v6269 = vpop.f32.mrb[0].mxu0
        %6270 = vmatprep.mubr.bf16.mxu0 0
        %6271 = vmatmul.mubr.bf16.gmra.mrb[0].mxu0 %v6018
        %v6272 = vpop.f32.mrb[0].mxu0
        %v6273 = vadd.f32 %v6112, %v6272
        %v6274 = vpop.f32.mrb[0].mxu0
        %v6275 = vpop.f32.mrb[0].mxu0
        %v6276 = vadd.f32 %v6115, %v6275
        %v6277 = vpop.f32.mrb[0].mxu0
        %6278 = vmatprep.mubr.bf16.mxu0 0
        %6279 = vmatmul.mubr.bf16.gmra.mrb[0].mxu0 %v6021
        %v6280 = vpop.f32.mrb[0].mxu0
        %v6281 = vadd.f32 %v6120, %v6280
        %v6282 = vpop.f32.mrb[0].mxu0
        %v6283 = vpop.f32.mrb[0].mxu0
        %v6284 = vadd.f32 %v6123, %v6283
        %v6285 = vpop.f32.mrb[0].mxu0
        %6286 = vmatprep.mubr.bf16.mxu0 0
        %6287 = vmatmul.mubr.bf16.gmra.mrb[0].mxu0 %v6024
        %v6288 = vpop.f32.mrb[0].mxu0
        %v6289 = vadd.f32 %v6128, %v6288
        %v6290 = vpop.f32.mrb[0].mxu0
        %v6291 = vpop.f32.mrb[0].mxu0
        %v6292 = vadd.f32 %v6131, %v6291
        %v6293 = vpop.f32.mrb[0].mxu0
        %6294 = vmatprep.mubr.bf16.mxu0 0
        %6295 = vmatmul.mubr.bf16.gmra.mrb[0].mxu0 %v6027
        %v6296 = vpop.f32.mrb[0].mxu0
        %v6297 = vadd.f32 %v6136, %v6296
        %v6298 = vpop.f32.mrb[0].mxu0
        %v6299 = vpop.f32.mrb[0].mxu0
        %v6300 = vadd.f32 %v6139, %v6299
        %v6301 = vpop.f32.mrb[0].mxu0
        %6302 = vmatprep.mubr.bf16.mxu0 0
        %6303 = vmatmul.mubr.bf16.gmra.mrb[0].mxu0 %v6030
        %v6304 = vpop.f32.mrb[0].mxu0
        %v6305 = vadd.f32 %v6144, %v6304
        %v6306 = vpop.f32.mrb[0].mxu0
        %v6307 = vpop.f32.mrb[0].mxu0
        %v6308 = vadd.f32 %v6147, %v6307
        %v6309 = vpop.f32.mrb[0].mxu0
        %6310 = vmatprep.mubr.bf16.mxu0 0
        %6311 = vmatmul.mubr.bf16.gmra.mrb[0].mxu0 %v6033
        %v6312 = vpop.f32.mrb[0].mxu0
        %v6313 = vadd.f32 %v6152, %v6312
        %v6314 = vpop.f32.mrb[0].mxu0
        %v6315 = vpop.f32.mrb[0].mxu0
        %v6316 = vadd.f32 %v6155, %v6315
        %v6317 = vpop.f32.mrb[0].mxu0
        %6318 = vmatprep.mubr.bf16.mxu0 0
        %6319 = vmatmul.mubr.bf16.gmra.mrb[0].mxu0 %v6036
        %v6320 = vpop.f32.mrb[0].mxu0
        %v6321 = vadd.f32 %v6160, %v6320
        %v6322 = vpop.f32.mrb[0].mxu0
        %v6323 = vpop.f32.mrb[0].mxu0
        %v6324 = vadd.f32 %v6163, %v6323
        %v6325 = vpop.f32.mrb[0].mxu0
        %6326 = vmatprep.mubr.bf16.mxu0 0
        %6327 = vmatmul.mubr.bf16.gmra.mrb[0].mxu0 %v6039
        %v6328 = vpop.f32.mrb[0].mxu0
        %v6329 = vadd.f32 %v6168, %v6328
        %v6330 = vpop.f32.mrb[0].mxu0
        %v6331 = vpop.f32.mrb[0].mxu0
        %v6332 = vadd.f32 %v6171, %v6331
        %v6333 = vpop.f32.mrb[0].mxu0
        %6334 = vmatprep.mubr.bf16.mxu0 0
        %6335 = vmatmul.mubr.bf16.gmra.mrb[0].mxu0 %v6042
        %v6336 = vpop.f32.mrb[0].mxu0
        %v6337 = vadd.f32 %v6176, %v6336
        %v6338 = vpop.f32.mrb[0].mxu0
        %v6339 = vpop.f32.mrb[0].mxu0
        %v6340 = vadd.f32 %v6179, %v6339
        %v6341 = vpop.f32.mrb[0].mxu0
        %6342 = vmatprep.mubr.bf16.mxu0 0
        %6343 = vmatmul.mubr.bf16.gmra.mrb[0].mxu0 %v6045
        %v6344 = vpop.f32.mrb[0].mxu0
        %v6345 = vadd.f32 %v6184, %v6344
        %v6346 = vpop.f32.mrb[0].mxu0
        %v6347 = vpop.f32.mrb[0].mxu0
        %v6348 = vadd.f32 %v6187, %v6347
        %v6349 = vpop.f32.mrb[0].mxu0
        %6350 = vmatprep.mubr.bf16.mxu0 0
        %6351 = vmatmul.mubr.bf16.gmra.mrb[0].mxu0 %v6048
        %v6352 = vpop.f32.mrb[0].mxu0
        %v6353 = vadd.f32 %v6192, %v6352
        %v6354 = vpop.f32.mrb[0].mxu0
        %v6355 = vpop.f32.mrb[0].mxu0
        %v6356 = vadd.f32 %v6195, %v6355
        %v6357 = vpop.f32.mrb[0].mxu0
        %6358 = vmatprep.mubr.bf16.mxu0 0
        %6359 = vmatmul.mubr.bf16.gmra.mrb[0].mxu0 %v6051
        %v6360 = vpop.f32.mrb[0].mxu0
        %v6361 = vadd.f32 %v6200, %v6360
        %v6362 = vpop.f32.mrb[0].mxu0
        %v6363 = vpop.f32.mrb[0].mxu0
        %v6364 = vadd.f32 %v6203, %v6363
        %v6365 = vpop.f32.mrb[0].mxu0
        %6366 = vmatprep.mubr.bf16.mxu0 0
        %6367 = vmatmul.mubr.bf16.gmra.mrb[0].mxu0 %v1375
        %v6368 = vpop.f32.mrb[0].mxu0
        %v6369 = vadd.f32 %v6208, %v6368
        %v6370 = vpop.f32.mrb[0].mxu0
        %v6371 = vpop.f32.mrb[0].mxu0
        %v6372 = vadd.f32 %v6211, %v6371
        %v6373 = vpop.f32.mrb[0].mxu0
        %6374 = vdwg.mxu0
        %v6375 = vsel %vm942, %v6249, 0.0
        %v6376 = vsel %vm942, %v6252, 0.0
        %v6377 = vadd.f32 %v6375, %v6376
        %v6378 = vsel %vm942, %v6257, 0.0
        %v6379 = vadd.f32 %v6377, %v6378
        %v6380 = vsel %vm942, %v6260, 0.0
        %v6381 = vadd.f32 %v6379, %v6380
        %v6382 = vsel %vm942, %v6265, 0.0
        %v6383 = vadd.f32 %v6381, %v6382
        %v6384 = vsel %vm942, %v6268, 0.0
        %v6385 = vadd.f32 %v6383, %v6384
        %v6386 = vsel %vm942, %v6273, 0.0
        %v6387 = vadd.f32 %v6385, %v6386
        %v6388 = vsel %vm942, %v6276, 0.0
        %v6389 = vadd.f32 %v6387, %v6388
        %v6390 = vsel %vm942, %v6281, 0.0
        %v6391 = vadd.f32 %v6389, %v6390
        %v6392 = vsel %vm942, %v6284, 0.0
        %v6393 = vadd.f32 %v6391, %v6392
        %v6394 = vsel %vm942, %v6289, 0.0
        %v6395 = vadd.f32 %v6393, %v6394
        %v6396 = vsel %vm942, %v6292, 0.0
        %v6397 = vadd.f32 %v6395, %v6396
        %v6398 = vsel %vm942, %v6297, 0.0
        %v6399 = vadd.f32 %v6397, %v6398
        %v6400 = vsel %vm942, %v6300, 0.0
        %v6401 = vadd.f32 %v6399, %v6400
        %v6402 = vsel %vm942, %v6305, 0.0
        %v6403 = vadd.f32 %v6401, %v6402
        %v6404 = vsel %vm942, %v6308, 0.0
        %v6405 = vadd.f32 %v6403, %v6404
        %v6406 = vsel %vm942, %v6313, 0.0
        %v6407 = vadd.f32 %v6405, %v6406
        %v6408 = vsel %vm942, %v6316, 0.0
        %v6409 = vadd.f32 %v6407, %v6408
        %v6410 = vsel %vm942, %v6321, 0.0
        %v6411 = vadd.f32 %v6409, %v6410
        %v6412 = vsel %vm942, %v6324, 0.0
        %v6413 = vadd.f32 %v6411, %v6412
        %v6414 = vsel %vm942, %v6329, 0.0
        %v6415 = vadd.f32 %v6413, %v6414
        %v6416 = vsel %vm942, %v6332, 0.0
        %v6417 = vadd.f32 %v6415, %v6416
        %v6418 = vsel %vm942, %v6337, 0.0
        %v6419 = vadd.f32 %v6417, %v6418
        %v6420 = vsel %vm942, %v6340, 0.0
        %v6421 = vadd.f32 %v6419, %v6420
        %v6422 = vsel %vm942, %v6345, 0.0
        %v6423 = vadd.f32 %v6421, %v6422
        %v6424 = vsel %vm942, %v6348, 0.0
        %v6425 = vadd.f32 %v6423, %v6424
        %v6426 = vsel %vm942, %v6353, 0.0
        %v6427 = vadd.f32 %v6425, %v6426
        %v6428 = vsel %vm942, %v6356, 0.0
        %v6429 = vadd.f32 %v6427, %v6428
        %v6430 = vsel %vm942, %v6361, 0.0
        %v6431 = vadd.f32 %v6429, %v6430
        %v6432 = vsel %vm942, %v6364, 0.0
        %v6433 = vadd.f32 %v6431, %v6432
        %v6434 = vsel %vm942, %v6369, 0.0
        %v6435 = vadd.f32 %v6433, %v6434
        %v6436 = vsel %vm942, %v6372, 0.0
        %v6437 = vadd.f32 %v6435, %v6436
        %v6438 = vrot.slane %v6437, 4
        %v6439 = vadd.f32 %v6437, %v6438
        %v6440 = vrot.slane %v6439, 2
        %v6441 = vadd.f32 %v6439, %v6440
        %v6442 = vrot.slane %v6441, 1
        %v6443 = vadd.f32 %v6441, %v6442
        %v6444 = vmul.f32 %v6443, %v3260
        %s6445 = scalar_lea.vmem %s3, 32
        %v6446 = vld [vmem:[%s6445] sm:$0xff]
        %v6447 = vld [vmem:[%s6445 + $0x8] sm:$0xff]
        %v6448 = vld [vmem:[%s6445 + $0x10] sm:$0xff]
        %v6449 = vld [vmem:[%s6445 + $0x18] sm:$0xff]
        %v6451 = vsel %vm942, %v6444, 0
        %6453 = vmatprep.subr.mxu0 0.0
        %6454 = vmatpush1.msra.mxu0 %v6446
        %6455 = vmatprep.subr.mxu0 0.0
        %6456 = vmatpush1.msra.mxu0 %v6447
        %6457 = vmatprep.subr.mxu0 0.0
        %6458 = vmatpush1.msra.mxu0 %v6448
        %6459 = vmatprep.subr.mxu0 0.0
        %6460 = vmatpush1.msra.mxu0 %v6449
        %6461 = vmatprep.subr.mxu0 0.0
        %6462 = vmatpush1.msra.mxu0 0.0
        %6463 = vmatprep.subr.mxu0 0.0
        %6464 = vmatpush1.msra.mxu0 0.0
        %6465 = vmatprep.subr.mxu0 0.0
        %6466 = vmatpush1.msra.mxu0 0.0
        %6467 = vmatprep.subr.mxu0 0.0
        %6468 = vmatpush1.msra.mxu0 0.0
        %6469 = vmatprep.subr.mxu0 0.0
        %6470 = vmatpush1.msra.mxu0 0.0
        %6471 = vmatprep.subr.mxu0 0.0
        %6472 = vmatpush1.msra.mxu0 0.0
        %6473 = vmatprep.subr.mxu0 0.0
        %6474 = vmatpush1.msra.mxu0 0.0
        %6475 = vmatprep.subr.mxu0 0.0
        %6476 = vmatpush1.msra.mxu0 0.0
        %6477 = vmatprep.subr.mxu0 0.0
        %6478 = vmatpush1.msra.mxu0 0.0
        %6479 = vmatprep.subr.mxu0 0.0
        %6480 = vmatpush1.msra.mxu0 0.0
        %6481 = vmatprep.subr.mxu0 0.0
        %6482 = vmatpush1.msra.mxu0 0.0
        %6483 = vmatprep.subr.mxu0 0.0
        %6484 = vmatpush1.msra.mxu0 0.0
        %6485 = vmatprep.subr.mxu0 0.0
        %6486 = vmatpush1.msra.mxu0 0.0
        %6487 = vmatprep.subr.mxu0 0.0
        %6488 = vmatpush1.msra.mxu0 0.0
        %6489 = vmatprep.subr.mxu0 0.0
        %6490 = vmatpush1.msra.mxu0 0.0
        %6491 = vmatprep.subr.mxu0 0.0
        %6492 = vmatpush1.msra.mxu0 0.0
        %6493 = vmatprep.subr.mxu0 0.0
        %6494 = vmatpush1.msra.mxu0 0.0
        %6495 = vmatprep.subr.mxu0 0.0
        %6496 = vmatpush1.msra.mxu0 0.0
        %6497 = vmatprep.subr.mxu0 0.0
        %6498 = vmatpush1.msra.mxu0 0.0
        %6499 = vmatprep.subr.mxu0 0.0
        %6500 = vmatpush1.msra.mxu0 0.0
        %6501 = vmatprep.subr.mxu0 0.0
        %6502 = vmatpush1.msra.mxu0 0.0
        %6503 = vmatprep.subr.mxu0 0.0
        %6504 = vmatpush1.msra.mxu0 0.0
        %6505 = vmatprep.subr.mxu0 0.0
        %6506 = vmatpush1.msra.mxu0 0.0
        %6507 = vmatprep.subr.mxu0 0.0
        %6508 = vmatpush1.msra.mxu0 0.0
        %6509 = vmatprep.subr.mxu0 0.0
        %6510 = vmatpush1.msra.mxu0 0.0
        %6511 = vmatprep.subr.mxu0 0.0
        %6512 = vmatpush1.msra.mxu0 0.0
        %6513 = vmatprep.subr.mxu0 0.0
        %6514 = vmatpush1.msra.mxu0 0.0
        %6515 = vmatprep.subr.mxu0 0.0
        %6516 = vmatpush1.msra.mxu0 0.0
        %6517 = vmatprep.mubr.f32.mxu0 0.0
        %6518 = vmatmul.mubr.f32.gmra.mrb[0].mxu0 %v6451
        %v6519 = vpop.f32.mrb[0].mxu0
        %v6520 = vadd.f32 0.0, %v6519
        %v6521 = vpop.f32.mrb[0].mxu0
        %6522 = vdwg.mxu0
        %v6523 = vmax.f32 %v6520, 0.0
        %s6524 = scalar_lea.vmem %s4, 8
        %v6525 = vld [vmem:[%s6524] sm:$0xff]
        %v6527 = vsel %vm3341, %v6523, 0
        %6529 = vmatprep.subr.mxu0 0.0
        %6530 = vmatpush1.msra.mxu0 %v6525
        %6531 = vmatprep.subr.mxu0 0.0
        %6532 = vmatpush1.msra.mxu0 0.0
        %6533 = vmatprep.subr.mxu0 0.0
        %6534 = vmatpush1.msra.mxu0 0.0
        %6535 = vmatprep.subr.mxu0 0.0
        %6536 = vmatpush1.msra.mxu0 0.0
        %6537 = vmatprep.subr.mxu0 0.0
        %6538 = vmatpush1.msra.mxu0 0.0
        %6539 = vmatprep.subr.mxu0 0.0
        %6540 = vmatpush1.msra.mxu0 0.0
        %6541 = vmatprep.subr.mxu0 0.0
        %6542 = vmatpush1.msra.mxu0 0.0
        %6543 = vmatprep.subr.mxu0 0.0
        %6544 = vmatpush1.msra.mxu0 0.0
        %6545 = vmatprep.subr.mxu0 0.0
        %6546 = vmatpush1.msra.mxu0 0.0
        %6547 = vmatprep.subr.mxu0 0.0
        %6548 = vmatpush1.msra.mxu0 0.0
        %6549 = vmatprep.subr.mxu0 0.0
        %6550 = vmatpush1.msra.mxu0 0.0
        %6551 = vmatprep.subr.mxu0 0.0
        %6552 = vmatpush1.msra.mxu0 0.0
        %6553 = vmatprep.subr.mxu0 0.0
        %6554 = vmatpush1.msra.mxu0 0.0
        %6555 = vmatprep.subr.mxu0 0.0
        %6556 = vmatpush1.msra.mxu0 0.0
        %6557 = vmatprep.subr.mxu0 0.0
        %6558 = vmatpush1.msra.mxu0 0.0
        %6559 = vmatprep.subr.mxu0 0.0
        %6560 = vmatpush1.msra.mxu0 0.0
        %6561 = vmatprep.subr.mxu0 0.0
        %6562 = vmatpush1.msra.mxu0 0.0
        %6563 = vmatprep.subr.mxu0 0.0
        %6564 = vmatpush1.msra.mxu0 0.0
        %6565 = vmatprep.subr.mxu0 0.0
        %6566 = vmatpush1.msra.mxu0 0.0
        %6567 = vmatprep.subr.mxu0 0.0
        %6568 = vmatpush1.msra.mxu0 0.0
        %6569 = vmatprep.subr.mxu0 0.0
        %6570 = vmatpush1.msra.mxu0 0.0
        %6571 = vmatprep.subr.mxu0 0.0
        %6572 = vmatpush1.msra.mxu0 0.0
        %6573 = vmatprep.subr.mxu0 0.0
        %6574 = vmatpush1.msra.mxu0 0.0
        %6575 = vmatprep.subr.mxu0 0.0
        %6576 = vmatpush1.msra.mxu0 0.0
        %6577 = vmatprep.subr.mxu0 0.0
        %6578 = vmatpush1.msra.mxu0 0.0
        %6579 = vmatprep.subr.mxu0 0.0
        %6580 = vmatpush1.msra.mxu0 0.0
        %6581 = vmatprep.subr.mxu0 0.0
        %6582 = vmatpush1.msra.mxu0 0.0
        %6583 = vmatprep.subr.mxu0 0.0
        %6584 = vmatpush1.msra.mxu0 0.0
        %6585 = vmatprep.subr.mxu0 0.0
        %6586 = vmatpush1.msra.mxu0 0.0
        %6587 = vmatprep.subr.mxu0 0.0
        %6588 = vmatpush1.msra.mxu0 0.0
        %6589 = vmatprep.subr.mxu0 0.0
        %6590 = vmatpush1.msra.mxu0 0.0
        %6591 = vmatprep.subr.mxu0 0.0
        %6592 = vmatpush1.msra.mxu0 0.0
        %6593 = vmatprep.mubr.f32.mxu0 0.0
        %6594 = vmatmul.mubr.f32.gmra.mrb[0].mxu0 %v6527
        %v6595 = vpop.f32.mrb[0].mxu0
        %v6596 = vadd.f32 0.0, %v6595
        %v6597 = vpop.f32.mrb[0].mxu0
        %6598 = vdwg.mxu0
        %v6599 = vxor.u32 %v6596, 2147483648
        %v6600 = vmul.f32 %v6599, 1.442695
        %v6601 = vpow.pop %v6600
        %v6602 = vadd.f32 %v6601, 1.0
        %v6603 = vrcp.pop %v6602
        %v6604 = vmul.f32 1.0, %v6603
        %v6605 = vlaneseq
        %v6606 = vshrl.u32 %v6605, 7
        %v6607 = vsub.s32 0, %v6606
        %v6608 = vrot.slane %v6604, %v6607
        %v6609 = vmul.f32 %v6249, %v6608
        %v6610 = vmul.f32 %v6252, %v6608
        %v6611 = vmul.f32 %v6257, %v6608
        %v6612 = vmul.f32 %v6260, %v6608
        %v6613 = vmul.f32 %v6265, %v6608
        %v6614 = vmul.f32 %v6268, %v6608
        %v6615 = vmul.f32 %v6273, %v6608
        %v6616 = vmul.f32 %v6276, %v6608
        %v6617 = vmul.f32 %v6281, %v6608
        %v6618 = vmul.f32 %v6284, %v6608
        %v6619 = vmul.f32 %v6289, %v6608
        %v6620 = vmul.f32 %v6292, %v6608
        %v6621 = vmul.f32 %v6297, %v6608
        %v6622 = vmul.f32 %v6300, %v6608
        %v6623 = vmul.f32 %v6305, %v6608
        %v6624 = vmul.f32 %v6308, %v6608
        %v6625 = vmul.f32 %v6313, %v6608
        %v6626 = vmul.f32 %v6316, %v6608
        %v6627 = vmul.f32 %v6321, %v6608
        %v6628 = vmul.f32 %v6324, %v6608
        %v6629 = vmul.f32 %v6329, %v6608
        %v6630 = vmul.f32 %v6332, %v6608
        %v6631 = vmul.f32 %v6337, %v6608
        %v6632 = vmul.f32 %v6340, %v6608
        %v6633 = vmul.f32 %v6345, %v6608
        %v6634 = vmul.f32 %v6348, %v6608
        %v6635 = vmul.f32 %v6353, %v6608
        %v6636 = vmul.f32 %v6356, %v6608
        %v6637 = vmul.f32 %v6361, %v6608
        %v6638 = vmul.f32 %v6364, %v6608
        %v6639 = vmul.f32 %v6369, %v6608
        %v6640 = vmul.f32 %v6372, %v6608
        %v6641 = vadd.f32 %v6609, %v3457
        %v6642 = vadd.f32 %v6610, %v3458
        %v6643 = vadd.f32 %v6611, %v3459
        %v6644 = vadd.f32 %v6612, %v3460
        %v6645 = vadd.f32 %v6613, %v3461
        %v6646 = vadd.f32 %v6614, %v3462
        %v6647 = vadd.f32 %v6615, %v3463
        %v6648 = vadd.f32 %v6616, %v3464
        %v6649 = vadd.f32 %v6617, %v3465
        %v6650 = vadd.f32 %v6618, %v3466
        %v6651 = vadd.f32 %v6619, %v3467
        %v6652 = vadd.f32 %v6620, %v3468
        %v6653 = vadd.f32 %v6621, %v3469
        %v6654 = vadd.f32 %v6622, %v3470
        %v6655 = vadd.f32 %v6623, %v3471
        %v6656 = vadd.f32 %v6624, %v3472
        %v6657 = vadd.f32 %v6625, %v3473
        %v6658 = vadd.f32 %v6626, %v3474
        %v6659 = vadd.f32 %v6627, %v3475
        %v6660 = vadd.f32 %v6628, %v3476
        %v6661 = vadd.f32 %v6629, %v3477
        %v6662 = vadd.f32 %v6630, %v3478
        %v6663 = vadd.f32 %v6631, %v3479
        %v6664 = vadd.f32 %v6632, %v3480
        %v6665 = vadd.f32 %v6633, %v3481
        %v6666 = vadd.f32 %v6634, %v3482
        %v6667 = vadd.f32 %v6635, %v3483
        %v6668 = vadd.f32 %v6636, %v3484
        %v6669 = vadd.f32 %v6637, %v3485
        %v6670 = vadd.f32 %v6638, %v3486
        %v6671 = vadd.f32 %v6639, %v3487
        %v6672 = vadd.f32 %v6640, %v3488
        %v6673 = vpack.c.bf16 %v6642, %v6641
        %v6674 = vpack.c.bf16 %v6644, %v6643
        %v6675 = vpack.c.bf16 %v6646, %v6645
        %v6676 = vpack.c.bf16 %v6648, %v6647
        %v6677 = vpack.c.bf16 %v6650, %v6649
        %v6678 = vpack.c.bf16 %v6652, %v6651
        %v6679 = vpack.c.bf16 %v6654, %v6653
        %v6680 = vpack.c.bf16 %v6656, %v6655
        %v6681 = vpack.c.bf16 %v6658, %v6657
        %v6682 = vpack.c.bf16 %v6660, %v6659
        %v6683 = vpack.c.bf16 %v6662, %v6661
        %v6684 = vpack.c.bf16 %v6664, %v6663
        %v6685 = vpack.c.bf16 %v6666, %v6665
        %v6686 = vpack.c.bf16 %v6668, %v6667
        %v6687 = vpack.c.bf16 %v6670, %v6669
        %v6688 = vpack.c.bf16 %v6672, %v6671
        %v6690 = vshrl.u32 %v6673, 16
        %v6692 = vrot.slane %v6690, 7
        %v6693 = vshll.u32 %v6673, 16
        %v6695 = vor.u32 %v6692, %v6693
        %v6697 = vshrl.u32 %v6674, 16
        %v6699 = vrot.slane %v6697, 7
        %v6700 = vshll.u32 %v6674, 16
        %v6702 = vor.u32 %v6699, %v6700
        %v6704 = vshrl.u32 %v6675, 16
        %v6706 = vrot.slane %v6704, 7
        %v6707 = vshll.u32 %v6675, 16
        %v6709 = vor.u32 %v6706, %v6707
        %v6711 = vshrl.u32 %v6676, 16
        %v6713 = vrot.slane %v6711, 7
        %v6714 = vshll.u32 %v6676, 16
        %v6716 = vor.u32 %v6713, %v6714
        %v6718 = vshrl.u32 %v6677, 16
        %v6720 = vrot.slane %v6718, 7
        %v6721 = vshll.u32 %v6677, 16
        %v6723 = vor.u32 %v6720, %v6721
        %v6725 = vshrl.u32 %v6678, 16
        %v6727 = vrot.slane %v6725, 7
        %v6728 = vshll.u32 %v6678, 16
        %v6730 = vor.u32 %v6727, %v6728
        %v6732 = vshrl.u32 %v6679, 16
        %v6734 = vrot.slane %v6732, 7
        %v6735 = vshll.u32 %v6679, 16
        %v6737 = vor.u32 %v6734, %v6735
        %v6739 = vshrl.u32 %v6680, 16
        %v6741 = vrot.slane %v6739, 7
        %v6742 = vshll.u32 %v6680, 16
        %v6744 = vor.u32 %v6741, %v6742
        %v6746 = vshrl.u32 %v6681, 16
        %v6748 = vrot.slane %v6746, 7
        %v6749 = vshll.u32 %v6681, 16
        %v6751 = vor.u32 %v6748, %v6749
        %v6753 = vshrl.u32 %v6682, 16
        %v6755 = vrot.slane %v6753, 7
        %v6756 = vshll.u32 %v6682, 16
        %v6758 = vor.u32 %v6755, %v6756
        %v6760 = vshrl.u32 %v6683, 16
        %v6762 = vrot.slane %v6760, 7
        %v6763 = vshll.u32 %v6683, 16
        %v6765 = vor.u32 %v6762, %v6763
        %v6767 = vshrl.u32 %v6684, 16
        %v6769 = vrot.slane %v6767, 7
        %v6770 = vshll.u32 %v6684, 16
        %v6772 = vor.u32 %v6769, %v6770
        %v6774 = vshrl.u32 %v6685, 16
        %v6776 = vrot.slane %v6774, 7
        %v6777 = vshll.u32 %v6685, 16
        %v6779 = vor.u32 %v6776, %v6777
        %v6781 = vshrl.u32 %v6686, 16
        %v6783 = vrot.slane %v6781, 7
        %v6784 = vshll.u32 %v6686, 16
        %v6786 = vor.u32 %v6783, %v6784
        %v6788 = vshrl.u32 %v6687, 16
        %v6790 = vrot.slane %v6788, 7
        %v6791 = vshll.u32 %v6687, 16
        %v6793 = vor.u32 %v6790, %v6791
        %v6795 = vshrl.u32 %v6688, 16
        %v6797 = vrot.slane %v6795, 7
        %v6798 = vshll.u32 %v6688, 16
        %v6800 = vor.u32 %v6797, %v6798
        %v6833 = vsel %vm432, 0, %v6695
        %v6834 = vsel %vm432, 0, %v6702
        %v6835 = vsel %vm432, 0, %v6709
        %v6836 = vsel %vm432, 0, %v6716
        %v6837 = vsel %vm432, 0, %v6723
        %v6838 = vsel %vm432, 0, %v6730
        %v6839 = vsel %vm432, 0, %v6737
        %v6840 = vsel %vm432, 0, %v6744
        %v6841 = vsel %vm432, 0, %v6751
        %v6842 = vsel %vm432, 0, %v6758
        %v6843 = vsel %vm432, 0, %v6765
        %v6844 = vsel %vm432, 0, %v6772
        %v6845 = vsel %vm432, 0, %v6779
        %v6846 = vsel %vm432, 0, %v6786
        %v6847 = vsel %vm432, 0, %v6793
        %v6848 = vsel %vm432, 0, %v6800
        %v6849 = vsel %vm432, %v6692, 0
        %v6850 = vsel %vm432, %v6699, 0
        %v6851 = vsel %vm432, %v6706, 0
        %v6852 = vsel %vm432, %v6713, 0
        %v6853 = vsel %vm432, %v6720, 0
        %v6854 = vsel %vm432, %v6727, 0
        %v6855 = vsel %vm432, %v6734, 0
        %v6856 = vsel %vm432, %v6741, 0
        %v6857 = vsel %vm432, %v6748, 0
        %v6858 = vsel %vm432, %v6755, 0
        %v6859 = vsel %vm432, %v6762, 0
        %v6860 = vsel %vm432, %v6769, 0
        %v6861 = vsel %vm432, %v6776, 0
        %v6862 = vsel %vm432, %v6783, 0
        %v6863 = vsel %vm432, %v6790, 0
        %v6864 = vsel %vm432, %v6797, 0
        %v6866 = vshrl.u32 %v6833, 16
        %v6868 = vshll.u32 %v6833, 16
        %v6870 = vrot.slane %v6868, 1
        %v6871 = vor.u32 %v6866, %v6870
        %v6873 = vshll.u32 %v6849, 16
        %v6875 = vrot.slane %v6873, 1
        %v6876 = vsel %vm465, %v6871, %v6875
        %v6878 = vshrl.u32 %v6834, 16
        %v6880 = vshll.u32 %v6834, 16
        %v6882 = vrot.slane %v6880, 1
        %v6883 = vor.u32 %v6878, %v6882
        %v6885 = vshll.u32 %v6850, 16
        %v6887 = vrot.slane %v6885, 1
        %v6888 = vsel %vm465, %v6883, %v6887
        %v6890 = vshrl.u32 %v6835, 16
        %v6892 = vshll.u32 %v6835, 16
        %v6894 = vrot.slane %v6892, 1
        %v6895 = vor.u32 %v6890, %v6894
        %v6897 = vshll.u32 %v6851, 16
        %v6899 = vrot.slane %v6897, 1
        %v6900 = vsel %vm465, %v6895, %v6899
        %v6902 = vshrl.u32 %v6836, 16
        %v6904 = vshll.u32 %v6836, 16
        %v6906 = vrot.slane %v6904, 1
        %v6907 = vor.u32 %v6902, %v6906
        %v6909 = vshll.u32 %v6852, 16
        %v6911 = vrot.slane %v6909, 1
        %v6912 = vsel %vm465, %v6907, %v6911
        %v6914 = vshrl.u32 %v6837, 16
        %v6916 = vshll.u32 %v6837, 16
        %v6918 = vrot.slane %v6916, 1
        %v6919 = vor.u32 %v6914, %v6918
        %v6921 = vshll.u32 %v6853, 16
        %v6923 = vrot.slane %v6921, 1
        %v6924 = vsel %vm465, %v6919, %v6923
        %v6926 = vshrl.u32 %v6838, 16
        %v6928 = vshll.u32 %v6838, 16
        %v6930 = vrot.slane %v6928, 1
        %v6931 = vor.u32 %v6926, %v6930
        %v6933 = vshll.u32 %v6854, 16
        %v6935 = vrot.slane %v6933, 1
        %v6936 = vsel %vm465, %v6931, %v6935
        %v6938 = vshrl.u32 %v6839, 16
        %v6940 = vshll.u32 %v6839, 16
        %v6942 = vrot.slane %v6940, 1
        %v6943 = vor.u32 %v6938, %v6942
        %v6945 = vshll.u32 %v6855, 16
        %v6947 = vrot.slane %v6945, 1
        %v6948 = vsel %vm465, %v6943, %v6947
        %v6950 = vshrl.u32 %v6840, 16
        %v6952 = vshll.u32 %v6840, 16
        %v6954 = vrot.slane %v6952, 1
        %v6955 = vor.u32 %v6950, %v6954
        %v6957 = vshll.u32 %v6856, 16
        %v6959 = vrot.slane %v6957, 1
        %v6960 = vsel %vm465, %v6955, %v6959
        %v6962 = vshrl.u32 %v6841, 16
        %v6964 = vshll.u32 %v6841, 16
        %v6966 = vrot.slane %v6964, 1
        %v6967 = vor.u32 %v6962, %v6966
        %v6969 = vshll.u32 %v6857, 16
        %v6971 = vrot.slane %v6969, 1
        %v6972 = vsel %vm465, %v6967, %v6971
        %v6974 = vshrl.u32 %v6842, 16
        %v6976 = vshll.u32 %v6842, 16
        %v6978 = vrot.slane %v6976, 1
        %v6979 = vor.u32 %v6974, %v6978
        %v6981 = vshll.u32 %v6858, 16
        %v6983 = vrot.slane %v6981, 1
        %v6984 = vsel %vm465, %v6979, %v6983
        %v6986 = vshrl.u32 %v6843, 16
        %v6988 = vshll.u32 %v6843, 16
        %v6990 = vrot.slane %v6988, 1
        %v6991 = vor.u32 %v6986, %v6990
        %v6993 = vshll.u32 %v6859, 16
        %v6995 = vrot.slane %v6993, 1
        %v6996 = vsel %vm465, %v6991, %v6995
        %v6998 = vshrl.u32 %v6844, 16
        %v7000 = vshll.u32 %v6844, 16
        %v7002 = vrot.slane %v7000, 1
        %v7003 = vor.u32 %v6998, %v7002
        %v7005 = vshll.u32 %v6860, 16
        %v7007 = vrot.slane %v7005, 1
        %v7008 = vsel %vm465, %v7003, %v7007
        %v7010 = vshrl.u32 %v6845, 16
        %v7012 = vshll.u32 %v6845, 16
        %v7014 = vrot.slane %v7012, 1
        %v7015 = vor.u32 %v7010, %v7014
        %v7017 = vshll.u32 %v6861, 16
        %v7019 = vrot.slane %v7017, 1
        %v7020 = vsel %vm465, %v7015, %v7019
        %v7022 = vshrl.u32 %v6846, 16
        %v7024 = vshll.u32 %v6846, 16
        %v7026 = vrot.slane %v7024, 1
        %v7027 = vor.u32 %v7022, %v7026
        %v7029 = vshll.u32 %v6862, 16
        %v7031 = vrot.slane %v7029, 1
        %v7032 = vsel %vm465, %v7027, %v7031
        %v7034 = vshrl.u32 %v6847, 16
        %v7036 = vshll.u32 %v6847, 16
        %v7038 = vrot.slane %v7036, 1
        %v7039 = vor.u32 %v7034, %v7038
        %v7041 = vshll.u32 %v6863, 16
        %v7043 = vrot.slane %v7041, 1
        %v7044 = vsel %vm465, %v7039, %v7043
        %v7075 = vrot.slane %v6833, 1
        %v7076 = vrot.slane %v6849, 1
        %v7077 = vsel %vm685, %v7075, %v7076
        %v7078 = vrot.slane %v6834, 1
        %v7079 = vrot.slane %v6850, 1
        %v7080 = vsel %vm685, %v7078, %v7079
        %v7081 = vrot.slane %v6835, 1
        %v7082 = vrot.slane %v6851, 1
        %v7083 = vsel %vm685, %v7081, %v7082
        %v7084 = vrot.slane %v6836, 1
        %v7085 = vrot.slane %v6852, 1
        %v7086 = vsel %vm685, %v7084, %v7085
        %v7087 = vrot.slane %v6837, 1
        %v7088 = vrot.slane %v6853, 1
        %v7089 = vsel %vm685, %v7087, %v7088
        %v7090 = vrot.slane %v6838, 1
        %v7091 = vrot.slane %v6854, 1
        %v7092 = vsel %vm685, %v7090, %v7091
        %v7093 = vrot.slane %v6839, 1
        %v7094 = vrot.slane %v6855, 1
        %v7095 = vsel %vm685, %v7093, %v7094
        %v7096 = vrot.slane %v6840, 1
        %v7097 = vrot.slane %v6856, 1
        %v7098 = vsel %vm685, %v7096, %v7097
        %v7099 = vrot.slane %v6841, 1
        %v7100 = vrot.slane %v6857, 1
        %v7101 = vsel %vm685, %v7099, %v7100
        %v7102 = vrot.slane %v6842, 1
        %v7103 = vrot.slane %v6858, 1
        %v7104 = vsel %vm685, %v7102, %v7103
        %v7105 = vrot.slane %v6843, 1
        %v7106 = vrot.slane %v6859, 1
        %v7107 = vsel %vm685, %v7105, %v7106
        %v7108 = vrot.slane %v6844, 1
        %v7109 = vrot.slane %v6860, 1
        %v7110 = vsel %vm685, %v7108, %v7109
        %v7111 = vrot.slane %v6845, 1
        %v7112 = vrot.slane %v6861, 1
        %v7113 = vsel %vm685, %v7111, %v7112
        %v7114 = vrot.slane %v6846, 1
        %v7115 = vrot.slane %v6862, 1
        %v7116 = vsel %vm685, %v7114, %v7115
        %v7117 = vrot.slane %v6847, 1
        %v7118 = vrot.slane %v6863, 1
        %v7119 = vsel %vm685, %v7117, %v7118
        %v7121 = vshrl.u32 %v6848, 16
        %v7123 = vshll.u32 %v6848, 16
        %v7125 = vrot.slane %v7123, 1
        %v7126 = vor.u32 %v7121, %v7125
        %v7128 = vshll.u32 %v6864, 16
        %v7130 = vrot.slane %v7128, 1
        %v7131 = vsel %vm465, %v7126, %v7130
        %v7134 = vrot.slane %v6848, 1
        %v7135 = vrot.slane %v6864, 1
        %v7136 = vsel %vm685, %v7134, %v7135
        %7137 = vrot.lane.b32.xlu0 %v6876, 32
        %v7138 = vpop.permute.xlu0 %7137
        %7139 = vrot.lane.b32.xlu0 %v6888, 32
        %v7140 = vpop.permute.xlu0 %7139
        %7141 = vrot.lane.b32.xlu0 %v6900, 32
        %v7142 = vpop.permute.xlu0 %7141
        %7143 = vrot.lane.b32.xlu0 %v6912, 32
        %v7144 = vpop.permute.xlu0 %7143
        %7145 = vrot.lane.b32.xlu0 %v6924, 32
        %v7146 = vpop.permute.xlu0 %7145
        %7147 = vrot.lane.b32.xlu0 %v6936, 32
        %v7148 = vpop.permute.xlu0 %7147
        %7149 = vrot.lane.b32.xlu0 %v6948, 32
        %v7150 = vpop.permute.xlu0 %7149
        %7151 = vrot.lane.b32.xlu0 %v6960, 32
        %v7152 = vpop.permute.xlu0 %7151
        %7153 = vrot.lane.b32.xlu0 %v6972, 32
        %v7154 = vpop.permute.xlu0 %7153
        %7155 = vrot.lane.b32.xlu0 %v6984, 32
        %v7156 = vpop.permute.xlu0 %7155
        %7157 = vrot.lane.b32.xlu0 %v6996, 32
        %v7158 = vpop.permute.xlu0 %7157
        %7159 = vrot.lane.b32.xlu0 %v7008, 32
        %v7160 = vpop.permute.xlu0 %7159
        %7161 = vrot.lane.b32.xlu0 %v7020, 32
        %v7162 = vpop.permute.xlu0 %7161
        %7163 = vrot.lane.b32.xlu0 %v7032, 32
        %v7164 = vpop.permute.xlu0 %7163
        %7165 = vrot.lane.b32.xlu0 %v7044, 32
        %v7166 = vpop.permute.xlu0 %7165
        %7167 = vrot.lane.b32.xlu0 %v7077, 64
        %v7168 = vpop.permute.xlu0 %7167
        %7169 = vrot.lane.b32.xlu0 %v7080, 64
        %v7170 = vpop.permute.xlu0 %7169
        %7171 = vrot.lane.b32.xlu0 %v7083, 64
        %v7172 = vpop.permute.xlu0 %7171
        %7173 = vrot.lane.b32.xlu0 %v7086, 64
        %v7174 = vpop.permute.xlu0 %7173
        %7175 = vrot.lane.b32.xlu0 %v7089, 64
        %v7176 = vpop.permute.xlu0 %7175
        %7177 = vrot.lane.b32.xlu0 %v7092, 64
        %v7178 = vpop.permute.xlu0 %7177
        %7179 = vrot.lane.b32.xlu0 %v7095, 64
        %v7180 = vpop.permute.xlu0 %7179
        %7181 = vrot.lane.b32.xlu0 %v7098, 64
        %v7182 = vpop.permute.xlu0 %7181
        %7183 = vrot.lane.b32.xlu0 %v7101, 64
        %v7184 = vpop.permute.xlu0 %7183
        %7185 = vrot.lane.b32.xlu0 %v7104, 64
        %v7186 = vpop.permute.xlu0 %7185
        %7187 = vrot.lane.b32.xlu0 %v7107, 64
        %v7188 = vpop.permute.xlu0 %7187
        %7189 = vrot.lane.b32.xlu0 %v7110, 64
        %v7190 = vpop.permute.xlu0 %7189
        %7191 = vrot.lane.b32.xlu0 %v7113, 64
        %v7192 = vpop.permute.xlu0 %7191
        %7193 = vrot.lane.b32.xlu0 %v7116, 64
        %v7194 = vpop.permute.xlu0 %7193
        %7195 = vrot.lane.b32.xlu0 %v7119, 64
        %v7196 = vpop.permute.xlu0 %7195
        %7197 = vrot.lane.b32.xlu0 %v6833, 96
        %v7198 = vpop.permute.xlu0 %7197
        %7199 = vrot.lane.b32.xlu0 %v6834, 96
        %v7200 = vpop.permute.xlu0 %7199
        %7201 = vrot.lane.b32.xlu0 %v6835, 96
        %v7202 = vpop.permute.xlu0 %7201
        %7203 = vrot.lane.b32.xlu0 %v6836, 96
        %v7204 = vpop.permute.xlu0 %7203
        %7205 = vrot.lane.b32.xlu0 %v6837, 96
        %v7206 = vpop.permute.xlu0 %7205
        %7207 = vrot.lane.b32.xlu0 %v6838, 96
        %v7208 = vpop.permute.xlu0 %7207
        %7209 = vrot.lane.b32.xlu0 %v6839, 96
        %v7210 = vpop.permute.xlu0 %7209
        %7211 = vrot.lane.b32.xlu0 %v6840, 96
        %v7212 = vpop.permute.xlu0 %7211
        %7213 = vrot.lane.b32.xlu0 %v6841, 96
        %v7214 = vpop.permute.xlu0 %7213
        %7215 = vrot.lane.b32.xlu0 %v6842, 96
        %v7216 = vpop.permute.xlu0 %7215
        %7217 = vrot.lane.b32.xlu0 %v6843, 96
        %v7218 = vpop.permute.xlu0 %7217
        %7219 = vrot.lane.b32.xlu0 %v6844, 96
        %v7220 = vpop.permute.xlu0 %7219
        %7221 = vrot.lane.b32.xlu0 %v6845, 96
        %v7222 = vpop.permute.xlu0 %7221
        %7223 = vrot.lane.b32.xlu0 %v6846, 96
        %v7224 = vpop.permute.xlu0 %7223
        %7225 = vrot.lane.b32.xlu0 %v6847, 96
        %v7226 = vpop.permute.xlu0 %7225
        %7227 = vrot.lane.b32.xlu0 %v6848, 96
        %v7228 = vpop.permute.xlu0 %7227
        %7229 = vrot.lane.b32.xlu0 %v7077, 32
        %v7230 = vpop.permute.xlu0 %7229
        %7231 = vrot.lane.b32.xlu0 %v7080, 32
        %v7232 = vpop.permute.xlu0 %7231
        %7233 = vrot.lane.b32.xlu0 %v7083, 32
        %v7234 = vpop.permute.xlu0 %7233
        %7235 = vrot.lane.b32.xlu0 %v7086, 32
        %v7236 = vpop.permute.xlu0 %7235
        %7237 = vrot.lane.b32.xlu0 %v7089, 32
        %v7238 = vpop.permute.xlu0 %7237
        %7239 = vrot.lane.b32.xlu0 %v7092, 32
        %v7240 = vpop.permute.xlu0 %7239
        %7241 = vrot.lane.b32.xlu0 %v7095, 32
        %v7242 = vpop.permute.xlu0 %7241
        %7243 = vrot.lane.b32.xlu0 %v7098, 32
        %v7244 = vpop.permute.xlu0 %7243
        %7245 = vrot.lane.b32.xlu0 %v7101, 32
        %v7246 = vpop.permute.xlu0 %7245
        %7247 = vrot.lane.b32.xlu0 %v7104, 32
        %v7248 = vpop.permute.xlu0 %7247
        %7249 = vrot.lane.b32.xlu0 %v7107, 32
        %v7250 = vpop.permute.xlu0 %7249
        %7251 = vrot.lane.b32.xlu0 %v7110, 32
        %v7252 = vpop.permute.xlu0 %7251
        %7253 = vrot.lane.b32.xlu0 %v7113, 32
        %v7254 = vpop.permute.xlu0 %7253
        %7255 = vrot.lane.b32.xlu0 %v7116, 32
        %v7256 = vpop.permute.xlu0 %7255
        %7257 = vrot.lane.b32.xlu0 %v7119, 32
        %v7258 = vpop.permute.xlu0 %7257
        %7259 = vrot.lane.b32.xlu0 %v7136, 32
        %v7260 = vpop.permute.xlu0 %7259
        %7261 = vrot.lane.b32.xlu0 %v6834, 64
        %v7262 = vpop.permute.xlu0 %7261
        %7263 = vrot.lane.b32.xlu0 %v6835, 64
        %v7264 = vpop.permute.xlu0 %7263
        %7265 = vrot.lane.b32.xlu0 %v6836, 64
        %v7266 = vpop.permute.xlu0 %7265
        %7267 = vrot.lane.b32.xlu0 %v6837, 64
        %v7268 = vpop.permute.xlu0 %7267
        %7269 = vrot.lane.b32.xlu0 %v6838, 64
        %v7270 = vpop.permute.xlu0 %7269
        %7271 = vrot.lane.b32.xlu0 %v6839, 64
        %v7272 = vpop.permute.xlu0 %7271
        %7273 = vrot.lane.b32.xlu0 %v6840, 64
        %v7274 = vpop.permute.xlu0 %7273
        %7275 = vrot.lane.b32.xlu0 %v6841, 64
        %v7276 = vpop.permute.xlu0 %7275
        %7277 = vrot.lane.b32.xlu0 %v6842, 64
        %v7278 = vpop.permute.xlu0 %7277
        %7279 = vrot.lane.b32.xlu0 %v6843, 64
        %v7280 = vpop.permute.xlu0 %7279
        %7281 = vrot.lane.b32.xlu0 %v6844, 64
        %v7282 = vpop.permute.xlu0 %7281
        %7283 = vrot.lane.b32.xlu0 %v6845, 64
        %v7284 = vpop.permute.xlu0 %7283
        %7285 = vrot.lane.b32.xlu0 %v6846, 64
        %v7286 = vpop.permute.xlu0 %7285
        %7287 = vrot.lane.b32.xlu0 %v6847, 64
        %v7288 = vpop.permute.xlu0 %7287
        %7289 = vrot.lane.b32.xlu0 %v6848, 64
        %v7290 = vpop.permute.xlu0 %7289
        %7291 = vrot.lane.b32.xlu0 %v6888, 96
        %v7292 = vpop.permute.xlu0 %7291
        %7293 = vrot.lane.b32.xlu0 %v6900, 96
        %v7294 = vpop.permute.xlu0 %7293
        %7295 = vrot.lane.b32.xlu0 %v6912, 96
        %v7296 = vpop.permute.xlu0 %7295
        %7297 = vrot.lane.b32.xlu0 %v6924, 96
        %v7298 = vpop.permute.xlu0 %7297
        %7299 = vrot.lane.b32.xlu0 %v6936, 96
        %v7300 = vpop.permute.xlu0 %7299
        %7301 = vrot.lane.b32.xlu0 %v6948, 96
        %v7302 = vpop.permute.xlu0 %7301
        %7303 = vrot.lane.b32.xlu0 %v6960, 96
        %v7304 = vpop.permute.xlu0 %7303
        %7305 = vrot.lane.b32.xlu0 %v6972, 96
        %v7306 = vpop.permute.xlu0 %7305
        %7307 = vrot.lane.b32.xlu0 %v6984, 96
        %v7308 = vpop.permute.xlu0 %7307
        %7309 = vrot.lane.b32.xlu0 %v6996, 96
        %v7310 = vpop.permute.xlu0 %7309
        %7311 = vrot.lane.b32.xlu0 %v7008, 96
        %v7312 = vpop.permute.xlu0 %7311
        %7313 = vrot.lane.b32.xlu0 %v7020, 96
        %v7314 = vpop.permute.xlu0 %7313
        %7315 = vrot.lane.b32.xlu0 %v7032, 96
        %v7316 = vpop.permute.xlu0 %7315
        %7317 = vrot.lane.b32.xlu0 %v7044, 96
        %v7318 = vpop.permute.xlu0 %7317
        %7319 = vrot.lane.b32.xlu0 %v7131, 96
        %v7320 = vpop.permute.xlu0 %7319
        %v7322 = vsel %vm942, %v6833, %v7138
        %v7324 = vsel %vm942, %v6834, %v7140
        %v7326 = vsel %vm942, %v6835, %v7142
        %v7328 = vsel %vm942, %v6836, %v7144
        %v7330 = vsel %vm942, %v6837, %v7146
        %v7332 = vsel %vm942, %v6838, %v7148
        %v7334 = vsel %vm942, %v6839, %v7150
        %v7336 = vsel %vm942, %v6840, %v7152
        %v7338 = vsel %vm942, %v6841, %v7154
        %v7340 = vsel %vm942, %v6842, %v7156
        %v7342 = vsel %vm942, %v6843, %v7158
        %v7344 = vsel %vm942, %v6844, %v7160
        %v7346 = vsel %vm942, %v6845, %v7162
        %v7348 = vsel %vm942, %v6846, %v7164
        %v7350 = vsel %vm942, %v6847, %v7166
        %v7352 = vsel %vm975, %v7322, %v7168
        %v7354 = vsel %vm975, %v7324, %v7170
        %v7356 = vsel %vm975, %v7326, %v7172
        %v7358 = vsel %vm975, %v7328, %v7174
        %v7360 = vsel %vm975, %v7330, %v7176
        %v7362 = vsel %vm975, %v7332, %v7178
        %v7364 = vsel %vm975, %v7334, %v7180
        %v7366 = vsel %vm975, %v7336, %v7182
        %v7368 = vsel %vm975, %v7338, %v7184
        %v7370 = vsel %vm975, %v7340, %v7186
        %v7372 = vsel %vm975, %v7342, %v7188
        %v7374 = vsel %vm975, %v7344, %v7190
        %v7376 = vsel %vm975, %v7346, %v7192
        %v7378 = vsel %vm975, %v7348, %v7194
        %v7380 = vsel %vm975, %v7350, %v7196
        %v7382 = vsel %vm1008, %v977, %v7198
        %v7385 = vsel %vm1008, %v7352, %v7200
        %v7388 = vsel %vm1008, %v7354, %v7202
        %v7391 = vsel %vm1008, %v7356, %v7204
        %v7394 = vsel %vm1008, %v7358, %v7206
        %v7397 = vsel %vm1008, %v7360, %v7208
        %v7400 = vsel %vm1008, %v7362, %v7210
        %v7403 = vsel %vm1008, %v7364, %v7212
        %v7406 = vsel %vm1008, %v7366, %v7214
        %v7409 = vsel %vm1008, %v7368, %v7216
        %v7412 = vsel %vm1008, %v7370, %v7218
        %v7415 = vsel %vm1008, %v7372, %v7220
        %v7418 = vsel %vm1008, %v7374, %v7222
        %v7421 = vsel %vm1008, %v7376, %v7224
        %v7424 = vsel %vm1008, %v7378, %v7226
        %v7427 = vsel %vm1008, %v7380, %v7228
        %v7431 = vsel %vm942, %v6876, %v7230
        %v7434 = vsel %vm942, %v6888, %v7232
        %v7437 = vsel %vm942, %v6900, %v7234
        %v7440 = vsel %vm942, %v6912, %v7236
        %v7443 = vsel %vm942, %v6924, %v7238
        %v7446 = vsel %vm942, %v6936, %v7240
        %v7449 = vsel %vm942, %v6948, %v7242
        %v7452 = vsel %vm942, %v6960, %v7244
        %v7455 = vsel %vm942, %v6972, %v7246
        %v7458 = vsel %vm942, %v6984, %v7248
        %v7461 = vsel %vm942, %v6996, %v7250
        %v7464 = vsel %vm942, %v7008, %v7252
        %v7467 = vsel %vm942, %v7020, %v7254
        %v7470 = vsel %vm942, %v7032, %v7256
        %v7473 = vsel %vm942, %v7044, %v7258
        %v7476 = vsel %vm942, %v7131, %v7260
        %v7478 = vsel %vm975, %v7431, %v7262
        %v7480 = vsel %vm975, %v7434, %v7264
        %v7482 = vsel %vm975, %v7437, %v7266
        %v7484 = vsel %vm975, %v7440, %v7268
        %v7486 = vsel %vm975, %v7443, %v7270
        %v7488 = vsel %vm975, %v7446, %v7272
        %v7490 = vsel %vm975, %v7449, %v7274
        %v7492 = vsel %vm975, %v7452, %v7276
        %v7494 = vsel %vm975, %v7455, %v7278
        %v7496 = vsel %vm975, %v7458, %v7280
        %v7498 = vsel %vm975, %v7461, %v7282
        %v7500 = vsel %vm975, %v7464, %v7284
        %v7502 = vsel %vm975, %v7467, %v7286
        %v7504 = vsel %vm975, %v7470, %v7288
        %v7506 = vsel %vm975, %v7473, %v7290
        %v7507 = vsel %vm975, %v7476, %v909
        %v7509 = vsel %vm1008, %v7478, %v7292
        %v7512 = vsel %vm1008, %v7480, %v7294
        %v7515 = vsel %vm1008, %v7482, %v7296
        %v7518 = vsel %vm1008, %v7484, %v7298
        %v7521 = vsel %vm1008, %v7486, %v7300
        %v7524 = vsel %vm1008, %v7488, %v7302
        %v7527 = vsel %vm1008, %v7490, %v7304
        %v7530 = vsel %vm1008, %v7492, %v7306
        %v7533 = vsel %vm1008, %v7494, %v7308
        %v7536 = vsel %vm1008, %v7496, %v7310
        %v7539 = vsel %vm1008, %v7498, %v7312
        %v7542 = vsel %vm1008, %v7500, %v7314
        %v7545 = vsel %vm1008, %v7502, %v7316
        %v7548 = vsel %vm1008, %v7504, %v7318
        %v7551 = vsel %vm1008, %v7506, %v7320
        %v7553 = vsel %vm1008, %v7507, %v941
        %s7555 = scalar_lea.vmem %s2, 576
        %v7556 = vld [vmem:[%s7555] sm:$0xf]
        %v7557 = vld [vmem:[%s7555 + $0x4] sm:$0xf]
        %v7558 = vld [vmem:[%s7555 + $0x8] sm:$0xf]
        %v7559 = vld [vmem:[%s7555 + $0xc] sm:$0xf]
        %v7560 = vld [vmem:[%s7555 + $0x10] sm:$0xf]
        %v7561 = vld [vmem:[%s7555 + $0x14] sm:$0xf]
        %v7562 = vld [vmem:[%s7555 + $0x18] sm:$0xf]
        %v7563 = vld [vmem:[%s7555 + $0x1c] sm:$0xf]
        %v7564 = vld [vmem:[%s7555 + $0x20] sm:$0xf]
        %v7565 = vld [vmem:[%s7555 + $0x24] sm:$0xf]
        %v7566 = vld [vmem:[%s7555 + $0x28] sm:$0xf]
        %v7567 = vld [vmem:[%s7555 + $0x2c] sm:$0xf]
        %v7568 = vld [vmem:[%s7555 + $0x30] sm:$0xf]
        %v7569 = vld [vmem:[%s7555 + $0x34] sm:$0xf]
        %v7570 = vld [vmem:[%s7555 + $0x38] sm:$0xf]
        %v7571 = vld [vmem:[%s7555 + $0x3c] sm:$0xf]
        %v7572 = vld [vmem:[%s7555 + $0x40] sm:$0xf]
        %v7573 = vld [vmem:[%s7555 + $0x44] sm:$0xf]
        %v7574 = vld [vmem:[%s7555 + $0x48] sm:$0xf]
        %v7575 = vld [vmem:[%s7555 + $0x4c] sm:$0xf]
        %v7576 = vld [vmem:[%s7555 + $0x50] sm:$0xf]
        %v7577 = vld [vmem:[%s7555 + $0x54] sm:$0xf]
        %v7578 = vld [vmem:[%s7555 + $0x58] sm:$0xf]
        %v7579 = vld [vmem:[%s7555 + $0x5c] sm:$0xf]
        %v7580 = vld [vmem:[%s7555 + $0x60] sm:$0xf]
        %v7581 = vld [vmem:[%s7555 + $0x64] sm:$0xf]
        %v7582 = vld [vmem:[%s7555 + $0x68] sm:$0xf]
        %v7583 = vld [vmem:[%s7555 + $0x6c] sm:$0xf]
        %v7584 = vld [vmem:[%s7555 + $0x70] sm:$0xf]
        %v7585 = vld [vmem:[%s7555 + $0x74] sm:$0xf]
        %v7586 = vld [vmem:[%s7555 + $0x78] sm:$0xf]
        %v7587 = vld [vmem:[%s7555 + $0x7c] sm:$0xf]
        %v7588 = vld [vmem:[%s7555 + $0x80] sm:$0xf]
        %v7589 = vld [vmem:[%s7555 + $0x84] sm:$0xf]
        %v7590 = vld [vmem:[%s7555 + $0x88] sm:$0xf]
        %v7591 = vld [vmem:[%s7555 + $0x8c] sm:$0xf]
        %v7628 = vunpack.c.l.b16 %v7556
        %v7629 = vunpack.c.l.b16 %v7557
        %v7630 = vunpack.c.l.b16 %v7558
        %v7631 = vunpack.c.l.b16 %v7559
        %v7632 = vunpack.c.l.b16 %v7560
        %v7633 = vunpack.c.l.b16 %v7561
        %v7634 = vunpack.c.l.b16 %v7562
        %v7635 = vunpack.c.l.b16 %v7563
        %v7636 = vunpack.c.l.b16 %v7564
        %v7637 = vunpack.c.l.b16 %v7565
        %v7638 = vunpack.c.l.b16 %v7566
        %v7639 = vunpack.c.l.b16 %v7567
        %v7640 = vunpack.c.l.b16 %v7568
        %v7641 = vunpack.c.l.b16 %v7569
        %v7642 = vunpack.c.l.b16 %v7570
        %v7643 = vunpack.c.l.b16 %v7571
        %v7644 = vunpack.c.l.b16 %v7572
        %v7645 = vunpack.c.l.b16 %v7573
        %v7646 = vunpack.c.l.b16 %v7574
        %v7647 = vunpack.c.l.b16 %v7575
        %v7648 = vunpack.c.l.b16 %v7576
        %v7649 = vunpack.c.l.b16 %v7577
        %v7650 = vunpack.c.l.b16 %v7578
        %v7651 = vunpack.c.l.b16 %v7579
        %v7652 = vunpack.c.l.b16 %v7580
        %v7653 = vunpack.c.l.b16 %v7581
        %v7654 = vunpack.c.l.b16 %v7582
        %v7655 = vunpack.c.l.b16 %v7583
        %v7656 = vunpack.c.l.b16 %v7584
        %v7657 = vunpack.c.l.b16 %v7585
        %v7658 = vunpack.c.l.b16 %v7586
        %v7659 = vunpack.c.l.b16 %v7587
        %v7660 = vunpack.c.l.b16 %v7588
        %v7661 = vunpack.c.l.b16 %v7589
        %v7662 = vunpack.c.l.b16 %v7590
        %v7663 = vunpack.c.l.b16 %v7591
        %v7664 = vpack.c.b16 %v7629, %v7628
        %v7665 = vpack.c.b16 %v7631, %v7630
        %v7666 = vpack.c.b16 %v7633, %v7632
        %v7667 = vpack.c.b16 %v7635, %v7634
        %v7668 = vpack.c.b16 %v7637, %v7636
        %v7669 = vpack.c.b16 %v7639, %v7638
        %v7670 = vpack.c.b16 %v7641, %v7640
        %v7671 = vpack.c.b16 %v7643, %v7642
        %v7672 = vpack.c.b16 %v7645, %v7644
        %v7673 = vpack.c.b16 %v7647, %v7646
        %v7674 = vpack.c.b16 %v7649, %v7648
        %v7675 = vpack.c.b16 %v7651, %v7650
        %v7676 = vpack.c.b16 %v7653, %v7652
        %v7677 = vpack.c.b16 %v7655, %v7654
        %v7678 = vpack.c.b16 %v7657, %v7656
        %v7679 = vpack.c.b16 %v7659, %v7658
        %v7680 = vpack.c.b16 %v7661, %v7660
        %v7681 = vpack.c.b16 %v7663, %v7662
        %v7701 = vsel %vm942, %v7080, 0
        %v7704 = vsel %vm942, %v7083, 0
        %v7707 = vsel %vm942, %v7086, 0
        %v7710 = vsel %vm942, %v7089, 0
        %v7713 = vsel %vm942, %v7092, 0
        %v7716 = vsel %vm942, %v7095, 0
        %v7719 = vsel %vm942, %v7098, 0
        %v7722 = vsel %vm942, %v7101, 0
        %v7725 = vsel %vm942, %v7104, 0
        %v7728 = vsel %vm942, %v7107, 0
        %v7731 = vsel %vm942, %v7110, 0
        %v7734 = vsel %vm942, %v7113, 0
        %v7737 = vsel %vm942, %v7116, 0
        %v7740 = vsel %vm942, %v7119, 0
        %v7743 = vsel %vm942, %v7136, 0
        %7745 = vmatprep.subr.bf16.mxu0 0
        %7746 = vmatpush1.bf16.msra.mxu0 %v7664
        %7747 = vmatprep.subr.bf16.mxu0 0
        %7748 = vmatpush1.bf16.msra.mxu0 %v7665
        %7749 = vmatprep.subr.bf16.mxu0 0
        %7750 = vmatpush1.bf16.msra.mxu0 %v7666
        %7751 = vmatprep.subr.bf16.mxu0 0
        %7752 = vmatpush1.bf16.msra.mxu0 %v7667
        %7753 = vmatprep.subr.bf16.mxu0 0
        %7754 = vmatpush1.bf16.msra.mxu0 %v7668
        %7755 = vmatprep.subr.bf16.mxu0 0
        %7756 = vmatpush1.bf16.msra.mxu0 %v7669
        %7757 = vmatprep.subr.bf16.mxu0 0
        %7758 = vmatpush1.bf16.msra.mxu0 %v7670
        %7759 = vmatprep.subr.bf16.mxu0 0
        %7760 = vmatpush1.bf16.msra.mxu0 %v7671
        %7761 = vmatprep.subr.bf16.mxu0 0
        %7762 = vmatpush1.bf16.msra.mxu0 %v7672
        %7763 = vmatprep.subr.bf16.mxu0 0
        %7764 = vmatpush1.bf16.msra.mxu0 %v7673
        %7765 = vmatprep.subr.bf16.mxu0 0
        %7766 = vmatpush1.bf16.msra.mxu0 %v7674
        %7767 = vmatprep.subr.bf16.mxu0 0
        %7768 = vmatpush1.bf16.msra.mxu0 %v7675
        %7769 = vmatprep.subr.bf16.mxu0 0
        %7770 = vmatpush1.bf16.msra.mxu0 %v7676
        %7771 = vmatprep.subr.bf16.mxu0 0
        %7772 = vmatpush1.bf16.msra.mxu0 %v7677
        %7773 = vmatprep.subr.bf16.mxu0 0
        %7774 = vmatpush1.bf16.msra.mxu0 %v7678
        %7775 = vmatprep.subr.bf16.mxu0 0
        %7776 = vmatpush1.bf16.msra.mxu0 %v7679
        %7777 = vmatprep.mubr.bf16.mxu0 %v7509
        %7778 = vmatmul.mubr.bf16.gmra.mrb[0].mxu0 %v7382
        %v7779 = vpop.f32.mrb[0].mxu0
        %v7780 = vadd.f32 %v238, %v7779
        %v7781 = vpop.f32.mrb[0].mxu0
        %v7782 = vpop.f32.mrb[0].mxu0
        %v7783 = vadd.f32 %v239, %v7782
        %v7784 = vpop.f32.mrb[0].mxu0
        %7785 = vmatprep.mubr.bf16.mxu0 %v7512
        %7786 = vmatmul.mubr.bf16.gmra.mrb[0].mxu0 %v7385
        %v7787 = vpop.f32.mrb[0].mxu0
        %v7788 = vadd.f32 %v240, %v7787
        %v7789 = vpop.f32.mrb[0].mxu0
        %v7790 = vpop.f32.mrb[0].mxu0
        %v7791 = vadd.f32 %v241, %v7790
        %v7792 = vpop.f32.mrb[0].mxu0
        %7793 = vmatprep.mubr.bf16.mxu0 %v7515
        %7794 = vmatmul.mubr.bf16.gmra.mrb[0].mxu0 %v7388
        %v7795 = vpop.f32.mrb[0].mxu0
        %v7796 = vadd.f32 %v242, %v7795
        %v7797 = vpop.f32.mrb[0].mxu0
        %v7798 = vpop.f32.mrb[0].mxu0
        %v7799 = vadd.f32 %v243, %v7798
        %v7800 = vpop.f32.mrb[0].mxu0
        %7801 = vmatprep.mubr.bf16.mxu0 %v7518
        %7802 = vmatmul.mubr.bf16.gmra.mrb[0].mxu0 %v7391
        %v7803 = vpop.f32.mrb[0].mxu0
        %v7804 = vadd.f32 %v244, %v7803
        %v7805 = vpop.f32.mrb[0].mxu0
        %v7806 = vpop.f32.mrb[0].mxu0
        %v7807 = vadd.f32 %v245, %v7806
        %v7808 = vpop.f32.mrb[0].mxu0
        %7809 = vmatprep.mubr.bf16.mxu0 %v7521
        %7810 = vmatmul.mubr.bf16.gmra.mrb[0].mxu0 %v7394
        %v7811 = vpop.f32.mrb[0].mxu0
        %v7812 = vadd.f32 %v246, %v7811
        %v7813 = vpop.f32.mrb[0].mxu0
        %v7814 = vpop.f32.mrb[0].mxu0
        %v7815 = vadd.f32 %v247, %v7814
        %v7816 = vpop.f32.mrb[0].mxu0
        %7817 = vmatprep.mubr.bf16.mxu0 %v7524
        %7818 = vmatmul.mubr.bf16.gmra.mrb[0].mxu0 %v7397
        %v7819 = vpop.f32.mrb[0].mxu0
        %v7820 = vadd.f32 %v248, %v7819
        %v7821 = vpop.f32.mrb[0].mxu0
        %v7822 = vpop.f32.mrb[0].mxu0
        %v7823 = vadd.f32 %v249, %v7822
        %v7824 = vpop.f32.mrb[0].mxu0
        %7825 = vmatprep.mubr.bf16.mxu0 %v7527
        %7826 = vmatmul.mubr.bf16.gmra.mrb[0].mxu0 %v7400
        %v7827 = vpop.f32.mrb[0].mxu0
        %v7828 = vadd.f32 %v250, %v7827
        %v7829 = vpop.f32.mrb[0].mxu0
        %v7830 = vpop.f32.mrb[0].mxu0
        %v7831 = vadd.f32 %v251, %v7830
        %v7832 = vpop.f32.mrb[0].mxu0
        %7833 = vmatprep.mubr.bf16.mxu0 %v7530
        %7834 = vmatmul.mubr.bf16.gmra.mrb[0].mxu0 %v7403
        %v7835 = vpop.f32.mrb[0].mxu0
        %v7836 = vadd.f32 %v252, %v7835
        %v7837 = vpop.f32.mrb[0].mxu0
        %v7838 = vpop.f32.mrb[0].mxu0
        %v7839 = vadd.f32 %v253, %v7838
        %v7840 = vpop.f32.mrb[0].mxu0
        %7841 = vmatprep.mubr.bf16.mxu0 %v7533
        %7842 = vmatmul.mubr.bf16.gmra.mrb[0].mxu0 %v7406
        %v7843 = vpop.f32.mrb[0].mxu0
        %v7844 = vadd.f32 %v254, %v7843
        %v7845 = vpop.f32.mrb[0].mxu0
        %v7846 = vpop.f32.mrb[0].mxu0
        %v7847 = vadd.f32 %v255, %v7846
        %v7848 = vpop.f32.mrb[0].mxu0
        %7849 = vmatprep.mubr.bf16.mxu0 %v7536
        %7850 = vmatmul.mubr.bf16.gmra.mrb[0].mxu0 %v7409
        %v7851 = vpop.f32.mrb[0].mxu0
        %v7852 = vadd.f32 %v256, %v7851
        %v7853 = vpop.f32.mrb[0].mxu0
        %v7854 = vpop.f32.mrb[0].mxu0
        %v7855 = vadd.f32 %v257, %v7854
        %v7856 = vpop.f32.mrb[0].mxu0
        %7857 = vmatprep.mubr.bf16.mxu0 %v7539
        %7858 = vmatmul.mubr.bf16.gmra.mrb[0].mxu0 %v7412
        %v7859 = vpop.f32.mrb[0].mxu0
        %v7860 = vadd.f32 %v258, %v7859
        %v7861 = vpop.f32.mrb[0].mxu0
        %v7862 = vpop.f32.mrb[0].mxu0
        %v7863 = vadd.f32 %v259, %v7862
        %v7864 = vpop.f32.mrb[0].mxu0
        %7865 = vmatprep.mubr.bf16.mxu0 %v7542
        %7866 = vmatmul.mubr.bf16.gmra.mrb[0].mxu0 %v7415
        %v7867 = vpop.f32.mrb[0].mxu0
        %v7868 = vadd.f32 %v260, %v7867
        %v7869 = vpop.f32.mrb[0].mxu0
        %v7870 = vpop.f32.mrb[0].mxu0
        %v7871 = vadd.f32 %v261, %v7870
        %v7872 = vpop.f32.mrb[0].mxu0
        %7873 = vmatprep.mubr.bf16.mxu0 %v7545
        %7874 = vmatmul.mubr.bf16.gmra.mrb[0].mxu0 %v7418
        %v7875 = vpop.f32.mrb[0].mxu0
        %v7876 = vadd.f32 %v262, %v7875
        %v7877 = vpop.f32.mrb[0].mxu0
        %v7878 = vpop.f32.mrb[0].mxu0
        %v7879 = vadd.f32 %v263, %v7878
        %v7880 = vpop.f32.mrb[0].mxu0
        %7881 = vmatprep.mubr.bf16.mxu0 %v7548
        %7882 = vmatmul.mubr.bf16.gmra.mrb[0].mxu0 %v7421
        %v7883 = vpop.f32.mrb[0].mxu0
        %v7884 = vadd.f32 %v264, %v7883
        %v7885 = vpop.f32.mrb[0].mxu0
        %v7886 = vpop.f32.mrb[0].mxu0
        %v7887 = vadd.f32 %v265, %v7886
        %v7888 = vpop.f32.mrb[0].mxu0
        %7889 = vmatprep.mubr.bf16.mxu0 %v7551
        %7890 = vmatmul.mubr.bf16.gmra.mrb[0].mxu0 %v7424
        %v7891 = vpop.f32.mrb[0].mxu0
        %v7892 = vadd.f32 %v266, %v7891
        %v7893 = vpop.f32.mrb[0].mxu0
        %v7894 = vpop.f32.mrb[0].mxu0
        %v7895 = vadd.f32 %v267, %v7894
        %v7896 = vpop.f32.mrb[0].mxu0
        %7897 = vmatprep.mubr.bf16.mxu0 %v7553
        %7898 = vmatmul.mubr.bf16.gmra.mrb[0].mxu0 %v7427
        %v7899 = vpop.f32.mrb[0].mxu0
        %v7900 = vadd.f32 %v268, %v7899
        %v7901 = vpop.f32.mrb[0].mxu0
        %v7902 = vpop.f32.mrb[0].mxu0
        %v7903 = vadd.f32 %v269, %v7902
        %v7904 = vpop.f32.mrb[0].mxu0
        %7905 = vdwg.mxu0
        %7906 = vmatprep.subr.bf16.mxu0 0
        %7907 = vmatpush1.bf16.msra.mxu0 %v7680
        %7908 = vmatprep.subr.bf16.mxu0 0
        %7909 = vmatpush1.bf16.msra.mxu0 %v7681
        %7910 = vmatprep.subr.bf16.mxu0 0
        %7911 = vmatpush1.bf16.msra.mxu0 0
        %7912 = vmatprep.subr.bf16.mxu0 0
        %7913 = vmatpush1.bf16.msra.mxu0 0
        %7914 = vmatprep.subr.bf16.mxu0 0
        %7915 = vmatpush1.bf16.msra.mxu0 0
        %7916 = vmatprep.subr.bf16.mxu0 0
        %7917 = vmatpush1.bf16.msra.mxu0 0
        %7918 = vmatprep.subr.bf16.mxu0 0
        %7919 = vmatpush1.bf16.msra.mxu0 0
        %7920 = vmatprep.subr.bf16.mxu0 0
        %7921 = vmatpush1.bf16.msra.mxu0 0
        %7922 = vmatprep.subr.bf16.mxu0 0
        %7923 = vmatpush1.bf16.msra.mxu0 0
        %7924 = vmatprep.subr.bf16.mxu0 0
        %7925 = vmatpush1.bf16.msra.mxu0 0
        %7926 = vmatprep.subr.bf16.mxu0 0
        %7927 = vmatpush1.bf16.msra.mxu0 0
        %7928 = vmatprep.subr.bf16.mxu0 0
        %7929 = vmatpush1.bf16.msra.mxu0 0
        %7930 = vmatprep.subr.bf16.mxu0 0
        %7931 = vmatpush1.bf16.msra.mxu0 0
        %7932 = vmatprep.subr.bf16.mxu0 0
        %7933 = vmatpush1.bf16.msra.mxu0 0
        %7934 = vmatprep.subr.bf16.mxu0 0
        %7935 = vmatpush1.bf16.msra.mxu0 0
        %7936 = vmatprep.subr.bf16.mxu0 0
        %7937 = vmatpush1.bf16.msra.mxu0 0
        %7938 = vmatprep.mubr.bf16.mxu0 0
        %7939 = vmatmul.mubr.bf16.gmra.mrb[0].mxu0 %v7701
        %v7940 = vpop.f32.mrb[0].mxu0
        %v7941 = vadd.f32 %v7780, %v7940
        %v7942 = vpop.f32.mrb[0].mxu0
        %v7943 = vpop.f32.mrb[0].mxu0
        %v7944 = vadd.f32 %v7783, %v7943
        %v7945 = vpop.f32.mrb[0].mxu0
        %7946 = vmatprep.mubr.bf16.mxu0 0
        %7947 = vmatmul.mubr.bf16.gmra.mrb[0].mxu0 %v7704
        %v7948 = vpop.f32.mrb[0].mxu0
        %v7949 = vadd.f32 %v7788, %v7948
        %v7950 = vpop.f32.mrb[0].mxu0
        %v7951 = vpop.f32.mrb[0].mxu0
        %v7952 = vadd.f32 %v7791, %v7951
        %v7953 = vpop.f32.mrb[0].mxu0
        %7954 = vmatprep.mubr.bf16.mxu0 0
        %7955 = vmatmul.mubr.bf16.gmra.mrb[0].mxu0 %v7707
        %v7956 = vpop.f32.mrb[0].mxu0
        %v7957 = vadd.f32 %v7796, %v7956
        %v7958 = vpop.f32.mrb[0].mxu0
        %v7959 = vpop.f32.mrb[0].mxu0
        %v7960 = vadd.f32 %v7799, %v7959
        %v7961 = vpop.f32.mrb[0].mxu0
        %7962 = vmatprep.mubr.bf16.mxu0 0
        %7963 = vmatmul.mubr.bf16.gmra.mrb[0].mxu0 %v7710
        %v7964 = vpop.f32.mrb[0].mxu0
        %v7965 = vadd.f32 %v7804, %v7964
        %v7966 = vpop.f32.mrb[0].mxu0
        %v7967 = vpop.f32.mrb[0].mxu0
        %v7968 = vadd.f32 %v7807, %v7967
        %v7969 = vpop.f32.mrb[0].mxu0
        %7970 = vmatprep.mubr.bf16.mxu0 0
        %7971 = vmatmul.mubr.bf16.gmra.mrb[0].mxu0 %v7713
        %v7972 = vpop.f32.mrb[0].mxu0
        %v7973 = vadd.f32 %v7812, %v7972
        %v7974 = vpop.f32.mrb[0].mxu0
        %v7975 = vpop.f32.mrb[0].mxu0
        %v7976 = vadd.f32 %v7815, %v7975
        %v7977 = vpop.f32.mrb[0].mxu0
        %7978 = vmatprep.mubr.bf16.mxu0 0
        %7979 = vmatmul.mubr.bf16.gmra.mrb[0].mxu0 %v7716
        %v7980 = vpop.f32.mrb[0].mxu0
        %v7981 = vadd.f32 %v7820, %v7980
        %v7982 = vpop.f32.mrb[0].mxu0
        %v7983 = vpop.f32.mrb[0].mxu0
        %v7984 = vadd.f32 %v7823, %v7983
        %v7985 = vpop.f32.mrb[0].mxu0
        %7986 = vmatprep.mubr.bf16.mxu0 0
        %7987 = vmatmul.mubr.bf16.gmra.mrb[0].mxu0 %v7719
        %v7988 = vpop.f32.mrb[0].mxu0
        %v7989 = vadd.f32 %v7828, %v7988
        %v7990 = vpop.f32.mrb[0].mxu0
        %v7991 = vpop.f32.mrb[0].mxu0
        %v7992 = vadd.f32 %v7831, %v7991
        %v7993 = vpop.f32.mrb[0].mxu0
        %7994 = vmatprep.mubr.bf16.mxu0 0
        %7995 = vmatmul.mubr.bf16.gmra.mrb[0].mxu0 %v7722
        %v7996 = vpop.f32.mrb[0].mxu0
        %v7997 = vadd.f32 %v7836, %v7996
        %v7998 = vpop.f32.mrb[0].mxu0
        %v7999 = vpop.f32.mrb[0].mxu0
        %v8000 = vadd.f32 %v7839, %v7999
        %v8001 = vpop.f32.mrb[0].mxu0
        %8002 = vmatprep.mubr.bf16.mxu0 0
        %8003 = vmatmul.mubr.bf16.gmra.mrb[0].mxu0 %v7725
        %v8004 = vpop.f32.mrb[0].mxu0
        %v8005 = vadd.f32 %v7844, %v8004
        %v8006 = vpop.f32.mrb[0].mxu0
        %v8007 = vpop.f32.mrb[0].mxu0
        %v8008 = vadd.f32 %v7847, %v8007
        %v8009 = vpop.f32.mrb[0].mxu0
        %8010 = vmatprep.mubr.bf16.mxu0 0
        %8011 = vmatmul.mubr.bf16.gmra.mrb[0].mxu0 %v7728
        %v8012 = vpop.f32.mrb[0].mxu0
        %v8013 = vadd.f32 %v7852, %v8012
        %v8014 = vpop.f32.mrb[0].mxu0
        %v8015 = vpop.f32.mrb[0].mxu0
        %v8016 = vadd.f32 %v7855, %v8015
        %v8017 = vpop.f32.mrb[0].mxu0
        %8018 = vmatprep.mubr.bf16.mxu0 0
        %8019 = vmatmul.mubr.bf16.gmra.mrb[0].mxu0 %v7731
        %v8020 = vpop.f32.mrb[0].mxu0
        %v8021 = vadd.f32 %v7860, %v8020
        %v8022 = vpop.f32.mrb[0].mxu0
        %v8023 = vpop.f32.mrb[0].mxu0
        %v8024 = vadd.f32 %v7863, %v8023
        %v8025 = vpop.f32.mrb[0].mxu0
        %8026 = vmatprep.mubr.bf16.mxu0 0
        %8027 = vmatmul.mubr.bf16.gmra.mrb[0].mxu0 %v7734
        %v8028 = vpop.f32.mrb[0].mxu0
        %v8029 = vadd.f32 %v7868, %v8028
        %v8030 = vpop.f32.mrb[0].mxu0
        %v8031 = vpop.f32.mrb[0].mxu0
        %v8032 = vadd.f32 %v7871, %v8031
        %v8033 = vpop.f32.mrb[0].mxu0
        %8034 = vmatprep.mubr.bf16.mxu0 0
        %8035 = vmatmul.mubr.bf16.gmra.mrb[0].mxu0 %v7737
        %v8036 = vpop.f32.mrb[0].mxu0
        %v8037 = vadd.f32 %v7876, %v8036
        %v8038 = vpop.f32.mrb[0].mxu0
        %v8039 = vpop.f32.mrb[0].mxu0
        %v8040 = vadd.f32 %v7879, %v8039
        %v8041 = vpop.f32.mrb[0].mxu0
        %8042 = vmatprep.mubr.bf16.mxu0 0
        %8043 = vmatmul.mubr.bf16.gmra.mrb[0].mxu0 %v7740
        %v8044 = vpop.f32.mrb[0].mxu0
        %v8045 = vadd.f32 %v7884, %v8044
        %v8046 = vpop.f32.mrb[0].mxu0
        %v8047 = vpop.f32.mrb[0].mxu0
        %v8048 = vadd.f32 %v7887, %v8047
        %v8049 = vpop.f32.mrb[0].mxu0
        %8050 = vmatprep.mubr.bf16.mxu0 0
        %8051 = vmatmul.mubr.bf16.gmra.mrb[0].mxu0 %v7743
        %v8052 = vpop.f32.mrb[0].mxu0
        %v8053 = vadd.f32 %v7892, %v8052
        %v8054 = vpop.f32.mrb[0].mxu0
        %v8055 = vpop.f32.mrb[0].mxu0
        %v8056 = vadd.f32 %v7895, %v8055
        %v8057 = vpop.f32.mrb[0].mxu0
        %8058 = vmatprep.mubr.bf16.mxu0 0
        %8059 = vmatmul.mubr.bf16.gmra.mrb[0].mxu0 %v1375
        %v8060 = vpop.f32.mrb[0].mxu0
        %v8061 = vadd.f32 %v7900, %v8060
        %v8062 = vpop.f32.mrb[0].mxu0
        %v8063 = vpop.f32.mrb[0].mxu0
        %v8064 = vadd.f32 %v7903, %v8063
        %v8065 = vpop.f32.mrb[0].mxu0
        %8066 = vdwg.mxu0
        %8067 = vst.msk [vmem:[%s231] sm:$0xff] %vm942, %v7941
        %8068 = vst.msk [vmem:[%s231 + $0x8] sm:$0xff] %vm942, %v7944
        %8069 = vst.msk [vmem:[%s231 + $0x10] sm:$0xff] %vm942, %v7949
        %8070 = vst.msk [vmem:[%s231 + $0x18] sm:$0xff] %vm942, %v7952
        %8071 = vst.msk [vmem:[%s231 + $0x20] sm:$0xff] %vm942, %v7957
        %8072 = vst.msk [vmem:[%s231 + $0x28] sm:$0xff] %vm942, %v7960
        %8073 = vst.msk [vmem:[%s231 + $0x30] sm:$0xff] %vm942, %v7965
        %8074 = vst.msk [vmem:[%s231 + $0x38] sm:$0xff] %vm942, %v7968
        %8075 = vst.msk [vmem:[%s231 + $0x40] sm:$0xff] %vm942, %v7973
        %8076 = vst.msk [vmem:[%s231 + $0x48] sm:$0xff] %vm942, %v7976
        %8077 = vst.msk [vmem:[%s231 + $0x50] sm:$0xff] %vm942, %v7981
        %8078 = vst.msk [vmem:[%s231 + $0x58] sm:$0xff] %vm942, %v7984
        %8079 = vst.msk [vmem:[%s231 + $0x60] sm:$0xff] %vm942, %v7989
        %8080 = vst.msk [vmem:[%s231 + $0x68] sm:$0xff] %vm942, %v7992
        %8081 = vst.msk [vmem:[%s231 + $0x70] sm:$0xff] %vm942, %v7997
        %8082 = vst.msk [vmem:[%s231 + $0x78] sm:$0xff] %vm942, %v8000
        %8083 = vst.msk [vmem:[%s231 + $0x80] sm:$0xff] %vm942, %v8005
        %8084 = vst.msk [vmem:[%s231 + $0x88] sm:$0xff] %vm942, %v8008
        %8085 = vst.msk [vmem:[%s231 + $0x90] sm:$0xff] %vm942, %v8013
        %8086 = vst.msk [vmem:[%s231 + $0x98] sm:$0xff] %vm942, %v8016
        %8087 = vst.msk [vmem:[%s231 + $0xa0] sm:$0xff] %vm942, %v8021
        %8088 = vst.msk [vmem:[%s231 + $0xa8] sm:$0xff] %vm942, %v8024
        %8089 = vst.msk [vmem:[%s231 + $0xb0] sm:$0xff] %vm942, %v8029
        %8090 = vst.msk [vmem:[%s231 + $0xb8] sm:$0xff] %vm942, %v8032
        %8091 = vst.msk [vmem:[%s231 + $0xc0] sm:$0xff] %vm942, %v8037
        %8092 = vst.msk [vmem:[%s231 + $0xc8] sm:$0xff] %vm942, %v8040
        %8093 = vst.msk [vmem:[%s231 + $0xd0] sm:$0xff] %vm942, %v8045
        %8094 = vst.msk [vmem:[%s231 + $0xd8] sm:$0xff] %vm942, %v8048
        %8095 = vst.msk [vmem:[%s231 + $0xe0] sm:$0xff] %vm942, %v8053
        %8096 = vst.msk [vmem:[%s231 + $0xe8] sm:$0xff] %vm942, %v8056
        %8097 = vst.msk [vmem:[%s231 + $0xf0] sm:$0xff] %vm942, %v8061
        %8098 = vst.msk [vmem:[%s231 + $0xf8] sm:$0xff] %vm942, %v8064
        %s8099 = sand.u32 %s138, 1
        %s8100 = scalar_lea.sflag [#allocation3], %s8099
        %s8101 = sand.u32 %s138, 1
        %s8102 = smul.addr %s8101, 256
        %s8103 = scalar_lea.vmem [#allocation5], %s8102
        // Predicated region
        $region45: #{tpu_custom_call.1} parent=39 // pred_check
          %p8104 = pneg %p148
        $region46: #{tpu_custom_call.1} parent=39 // pred_check_branch
          %8106 = sbr.rel (%p8104) target = $region48
        $region47: #{tpu_custom_call.1} parent=39 // pred_region
          %s8108 = ssub.s32 4096, 4096
          %8109 = vsyncadd %s8100, %s8108
          %s8110 = smul.addr %s20, 32
          %s8111 = smul.addr %s8110, 128
          %s8112 = scalar_lea.hbm %s5, %s8111
          %s8113 = sshll.u32 %s8103, 4
          %s8114 = int_to_ptr.vmem [resolvable:$true] %s8113
          %8119 = dma.vmem_to_hbm [thread:$0]  %s8114, 4096, %s8112, %s8100, 128, 128, 8
        $region48: #{tpu_custom_call.1} parent=39 // pred_fallthru
          _
      $region40: #{tpu_custom_call.1} parent=5 // pred_fallthru
        _
      %p8120 = scmp.le.s32.totalorder 2, %s15
      // Predicated region
      $region49: #{tpu_custom_call.1} parent=5 // pred_check
        %p8121 = pneg %p8120
      $region50: #{tpu_custom_call.1} parent=5 // pred_check_branch
        %8123 = sbr.rel (%p8121) target = $region52
      $region51: #{tpu_custom_call.1} parent=5 // pred_region
        %s8124 = ssub.s32 %s15, 2
        // Predicated region
        $region53: #{tpu_custom_call.1} parent=51 // pred_check
          %p8125 = pneg %p154
        $region54: #{tpu_custom_call.1} parent=51 // pred_check_branch
          %8127 = sbr.rel (%p8125) target = $region56
        $region55: #{tpu_custom_call.1} parent=51 // pred_region
          %s8128 = sand.u32 %s139, 1
          %s8129 = scalar_lea.sflag [#allocation3], %s8128
          %s8130 = sand.u32 %s139, 1
          %s8131 = smul.addr %s8130, 256
          %s8132 = scalar_lea.vmem [#allocation5], %s8131
          %8133 = dma.done %s8129, 4096
        $region56: #{tpu_custom_call.1} parent=51 // pred_fallthru
          _
      $region52: #{tpu_custom_call.1} parent=5 // pred_fallthru
        _
    $region6: #{tpu_custom_call.1} parent=1 // loop_footer
      %s19 = sadd.s32 1, %s15
    $region7: #{tpu_custom_call.1} parent=1 // loop_footer_branch
      %14 = sbr.rel target = $region3
    $region8: #{tpu_custom_call.1} parent=1 // loop_exit
      _
    %8134 = vsyncpa [#allocation3], 1
    %s8135 = scalar_lea.sflag [#allocation3], 1
    %8136 = vsyncpa %s8135, 1
    %8137 = vsyncpa [#allocation4], 1
    %s8138 = scalar_lea.sflag [#allocation4], 1
    %8139 = vsyncpa %s8138, 1

</llo_original>
